<compile_context>
chip_gen: v7x
topology: tpu7x:2x2x1
jax: 0.10.0
libtpu: 0.0.40
codegen_flags: <defaults>
</compile_context>

<pallas_src>
import jax
import jax.numpy as jnp
import numpy as np
from jax.experimental import pallas as pl
from jax.experimental.pallas import tpu as pltpu

# ---------------- small ViT config (scaled-down ViT-base) ----------------
B = 2           # batch
C = 3           # image channels (ViT expects RGB)
IMG = 16        # image height/width
PATCH = 8       # patch size  -> N = (16/8)^2 = 4 patches
N_PATCH = (IMG // PATCH) ** 2
S = N_PATCH + 1     # +1 CLS token = 5
D = 32          # hidden size
HEADS = 4
HD = D // HEADS
MLP = 64        # intermediate size
LAYERS = 2
OUT = 256       # nn.Linear(hidden, 256) head, as in the PyTorch module
LN_EPS = 1e-12  # HF ViT layer_norm_eps

LAYER_PARAM_ORDER = (
    "ln1_g", "ln1_b", "wq", "bq", "wk", "bk", "wv", "bv", "wo", "bo",
    "ln2_g", "ln2_b", "w1", "b1", "w2", "b2",
)


def _layernorm(v, g, b):
    mu = jnp.mean(v, axis=-1, keepdims=True)
    var = jnp.mean((v - mu) ** 2, axis=-1, keepdims=True)
    return (v - mu) * jax.lax.rsqrt(var + LN_EPS) * g + b


# --------------------------- fused Pallas kernel ---------------------------
def vit_fused_kernel(
    patches_ref, pw_ref, pb_ref, cls_ref, pos_ref,
    ln1_g, ln1_b, wq, bq, wk, bk, wv, bv, wo, bo,
    ln2_g, ln2_b, w1, b1, w2, b2,
    lng_ref, lnb_ref, fcw_ref, fcb_ref,
    o_ref,
    x_scr,
):
    f32 = jnp.float32

    # ---- patch embedding: (B*N, C*P*P) @ (C*P*P, D) + b ----
    emb = (jnp.dot(patches_ref[...], pw_ref[...], preferred_element_type=f32)
           + pb_ref[...])                                       # (B*N, D)

    # ---- token assembly into VMEM-resident residual stream (B*S, D) ----
    cls_row = cls_ref[...] + pos_ref[0:1, :]                    # (1, D)
    pos_patch = pos_ref[1:S, :]                                 # (N, D)
    for bi in range(B):
        x_scr[bi * S:bi * S + 1, :] = cls_row
        x_scr[bi * S + 1:(bi + 1) * S, :] = (
            emb[bi * N_PATCH:(bi + 1) * N_PATCH, :] + pos_patch)
    h = x_scr[...]                                              # (B*S, D)

    scale = 1.0 / float(np.sqrt(HD))
    for l in range(LAYERS):
        # --- self-attention block (pre-LN), whole batch as one (B*S, D) tile ---
        xn = _layernorm(h, ln1_g[l], ln1_b[l])
        q = jnp.dot(xn, wq[l], preferred_element_type=f32) + bq[l]
        k = jnp.dot(xn, wk[l], preferred_element_type=f32) + bk[l]
        v = jnp.dot(xn, wv[l], preferred_element_type=f32) + bv[l]
        wo_l = wo[l]                                            # (D, D)

        batch_outs = []
        for bi in range(B):                 # statically unrolled (B=2)
            r = bi * S
            qb = q[r:r + S, :]
            kb = k[r:r + S, :]
            vb = v[r:r + S, :]
            acc = None
            for hh in range(HEADS):         # unrolled; out-proj fused, no concat
                c = hh * HD
                qh = qb[:, c:c + HD]
                kh = kb[:, c:c + HD]
                vh = vb[:, c:c + HD]
                # scores = qh @ kh^T without materializing the transpose
                s = jax.lax.dot_general(
                    qh, kh, (((1,), (1,)), ((), ())),
                    preferred_element_type=f32) * scale         # (S, S)
                p = jax.nn.softmax(s, axis=-1)
                ctx_h = jnp.dot(p, vh, preferred_element_type=f32)      # (S, HD)
                contrib = jnp.dot(ctx_h, wo_l[c:c + HD, :],
                                  preferred_element_type=f32)           # (S, D)
                acc = contrib if acc is None else acc + contrib
            batch_outs.append(acc)
        attn = jnp.concatenate(batch_outs, axis=0) + bo[l]      # (B*S, D)
        h = h + attn

        # --- MLP block (pre-LN) ---
        xn2 = _layernorm(h, ln2_g[l], ln2_b[l])
        mid = jnp.dot(xn2, w1[l], preferred_element_type=f32) + b1[l]
        # TODO(synk): HF ViT uses exact (erf) GELU; tanh approximation used here
        # for Mosaic-safe lowering (difference is ~1e-3 absolute).
        mid = jax.nn.gelu(mid, approximate=True)
        h = h + jnp.dot(mid, w2[l], preferred_element_type=f32) + b2[l]

    # ---- head: final LN on CLS rows only -> Linear(D, OUT); (B, 256) lane-dense store ----
    cls_rows = jnp.concatenate(
        [h[bi * S:bi * S + 1, :] for bi in range(B)], axis=0)   # (B, D)
    n = _layernorm(cls_rows, lng_ref[...], lnb_ref[...])
    o_ref[...] = (jnp.dot(n, fcw_ref[...], preferred_element_type=f32)
                  + fcb_ref[...])


# ------------------------------ wrappers ----------------------------------
def _extract_patches(x):
    # NCHW -> (B*N, C*P*P) with (c, ph, pw) flattening order, matching
    # Conv2d(weight.reshape(D, C*P*P)) semantics for stride == kernel_size.
    b, c, hgt, wdt = x.shape
    nh, nw = hgt // PATCH, wdt // PATCH
    p = x.reshape(b, c, nh, PATCH, nw, PATCH)
    p = p.transpose(0, 2, 4, 1, 3, 5)   # (B, nh, nw, C, P, P)
    return p.reshape(b * nh * nw, c * PATCH * PATCH)


@jax.jit
def fine_tuned_vit(x, params):
    patches = _extract_patches(x)       # (B*N, C*P*P)
    args = [patches, params["patch_w"], params["patch_b"],
            params["cls"], params["pos"]]
    args += [params[k] for k in LAYER_PARAM_ORDER]
    args += [params["ln_g"], params["ln_b"], params["fc_w"], params["fc_b"]]
    return pl.pallas_call(
        vit_fused_kernel,
        out_shape=jax.ShapeDtypeStruct((B, OUT), jnp.float32),
        scratch_shapes=[pltpu.VMEM((B * S, D), jnp.float32)],
    )(*args)


# --------------------- deterministic synthetic params ---------------------
def init_params(key):
    keys = iter(jax.random.split(key, 256))

    def nrm(shape, scale=0.02):
        return scale * jax.random.normal(next(keys), shape, dtype=jnp.float32)

    ones = lambda s: jnp.ones(s, jnp.float32)
    zeros = lambda s: jnp.zeros(s, jnp.float32)

    params = {
        "patch_w": nrm((C * PATCH * PATCH, D)),
        "patch_b": nrm((1, D)),
        "cls": nrm((1, D)),
        "pos": nrm((S, D)),
        "ln_g": ones((1, D)),
        "ln_b": zeros((1, D)),
        "fc_w": nrm((D, OUT)),
        "fc_b": zeros((1, OUT)),
    }
    per_layer = []
    for _ in range(LAYERS):
        per_layer.append(dict(
            ln1_g=ones((1, D)), ln1_b=zeros((1, D)),
            wq=nrm((D, D)), bq=zeros((1, D)),
            wk=nrm((D, D)), bk=zeros((1, D)),
            wv=nrm((D, D)), bv=zeros((1, D)),
            wo=nrm((D, D)), bo=zeros((1, D)),
            ln2_g=ones((1, D)), ln2_b=zeros((1, D)),
            w1=nrm((D, MLP)), b1=zeros((1, MLP)),
            w2=nrm((MLP, D)), b2=zeros((1, D)),
        ))
    # stack per-layer weights with a leading LAYERS axis (indexed statically in-kernel)
    for k in LAYER_PARAM_ORDER:
        params[k] = jnp.stack([lp[k] for lp in per_layer], axis=0)
    return params


# ---------------------- pure-JAX reference (for check) --------------------
def reference(x, params):
    b = x.shape[0]
    patches = _extract_patches(x)
    emb = (patches @ params["patch_w"] + params["patch_b"]).reshape(b, N_PATCH, D)
    cls = jnp.broadcast_to(params["cls"][None], (b, 1, D))
    h = jnp.concatenate([cls, emb], axis=1) + params["pos"][None]

    for l in range(LAYERS):
        lp = {k: params[k][l] for k in LAYER_PARAM_ORDER}
        xn = _layernorm(h, lp["ln1_g"], lp["ln1_b"])
        q = xn @ lp["wq"] + lp["bq"]
        k = xn @ lp["wk"] + lp["bk"]
        v = xn @ lp["wv"] + lp["bv"]
        q = q.reshape(b, S, HEADS, HD).transpose(0, 2, 1, 3)
        k = k.reshape(b, S, HEADS, HD).transpose(0, 2, 1, 3)
        v = v.reshape(b, S, HEADS, HD).transpose(0, 2, 1, 3)
        s = jnp.einsum("bhqd,bhkd->bhqk", q, k) / np.sqrt(HD)
        p = jax.nn.softmax(s, axis=-1)
        ctx = jnp.einsum("bhqk,bhkd->bhqd", p, v)
        ctx = ctx.transpose(0, 2, 1, 3).reshape(b, S, D)
        h = h + (ctx @ lp["wo"] + lp["bo"])
        xn2 = _layernorm(h, lp["ln2_g"], lp["ln2_b"])
        mid = jax.nn.gelu(xn2 @ lp["w1"] + lp["b1"], approximate=True)
        h = h + (mid @ lp["w2"] + lp["b2"])

    cls_tok = _layernorm(h[:, 0, :], params["ln_g"], params["ln_b"])
    return cls_tok @ params["fc_w"] + params["fc_b"]


# --------------------------------- main ------------------------------------
if __name__ == "__main__":
    key = jax.random.PRNGKey(0)
    k_x, k_p = jax.random.split(key)
    x = jax.random.normal(k_x, (B, C, IMG, IMG), dtype=jnp.float32)
    params = init_params(k_p)

    out = jax.block_until_ready(fine_tuned_vit(x, params))
    assert out.shape == (B, OUT), out.shape

    ref = jax.block_until_ready(reference(x, params))
    np.testing.assert_allclose(np.asarray(out), np.asarray(ref),
                               rtol=2e-2, atol=2e-3)
    print("KERNEL_OK")
</pallas_src>

<mosaic_0001>
module attributes {stable_mosaic.version = 11 : i64} {
  func.func @vit_fused_kernel(%arg0: memref<8x192xf32, #tpu.memory_space<vmem>>, %arg1: memref<192x32xf32, #tpu.memory_space<vmem>>, %arg2: memref<1x32xf32, #tpu.memory_space<vmem>>, %arg3: memref<1x32xf32, #tpu.memory_space<vmem>>, %arg4: memref<5x32xf32, #tpu.memory_space<vmem>>, %arg5: memref<2x1x32xf32, #tpu.memory_space<vmem>>, %arg6: memref<2x1x32xf32, #tpu.memory_space<vmem>>, %arg7: memref<2x32x32xf32, #tpu.memory_space<vmem>>, %arg8: memref<2x1x32xf32, #tpu.memory_space<vmem>>, %arg9: memref<2x32x32xf32, #tpu.memory_space<vmem>>, %arg10: memref<2x1x32xf32, #tpu.memory_space<vmem>>, %arg11: memref<2x32x32xf32, #tpu.memory_space<vmem>>, %arg12: memref<2x1x32xf32, #tpu.memory_space<vmem>>, %arg13: memref<2x32x32xf32, #tpu.memory_space<vmem>>, %arg14: memref<2x1x32xf32, #tpu.memory_space<vmem>>, %arg15: memref<2x1x32xf32, #tpu.memory_space<vmem>>, %arg16: memref<2x1x32xf32, #tpu.memory_space<vmem>>, %arg17: memref<2x32x64xf32, #tpu.memory_space<vmem>>, %arg18: memref<2x1x64xf32, #tpu.memory_space<vmem>>, %arg19: memref<2x64x32xf32, #tpu.memory_space<vmem>>, %arg20: memref<2x1x32xf32, #tpu.memory_space<vmem>>, %arg21: memref<1x32xf32, #tpu.memory_space<vmem>>, %arg22: memref<1x32xf32, #tpu.memory_space<vmem>>, %arg23: memref<32x256xf32, #tpu.memory_space<vmem>>, %arg24: memref<1x256xf32, #tpu.memory_space<vmem>>, %arg25: memref<2x256xf32, #tpu.memory_space<vmem>>, %arg26: memref<10x32xf32, #tpu.memory_space<vmem>>) attributes {dimension_semantics = [], scalar_prefetch = 0 : i64, scratch_operands = 1 : i64, tpu.core_type = #tpu.core_type<tc>} {
    %c0 = arith.constant 0 : index
    %c0_0 = arith.constant 0 : index
    %0 = vector.load %arg0[%c0, %c0_0] : memref<8x192xf32, #tpu.memory_space<vmem>>, vector<8x192xf32>
    %c0_1 = arith.constant 0 : index
    %c0_2 = arith.constant 0 : index
    %1 = vector.load %arg1[%c0_1, %c0_2] : memref<192x32xf32, #tpu.memory_space<vmem>>, vector<192x32xf32>
    %cst = arith.constant dense<0.000000e+00> : vector<8x32xf32>
    %2 = tpu.matmul %0, %1, %cst {dimension_numbers = #tpu.dot_dimension_numbers<[1], [0], [0], [1], [0, 0, 1, 1], [], []>} : vector<8x192xf32>, vector<192x32xf32>, vector<8x32xf32> -> vector<8x32xf32>
    %c0_3 = arith.constant 0 : index
    %c0_4 = arith.constant 0 : index
    %3 = vector.load %arg2[%c0_3, %c0_4] : memref<1x32xf32, #tpu.memory_space<vmem>>, vector<1x32xf32>
    %4 = vector.broadcast %3 : vector<1x32xf32> to vector<8x32xf32>
    %5 = arith.addf %2, %4 : vector<8x32xf32>
    %c0_5 = arith.constant 0 : index
    %c0_6 = arith.constant 0 : index
    %6 = vector.load %arg3[%c0_5, %c0_6] : memref<1x32xf32, #tpu.memory_space<vmem>>, vector<1x32xf32>
    %c0_7 = arith.constant 0 : index
    %c0_8 = arith.constant 0 : index
    %7 = vector.load %arg4[%c0_7, %c0_8] : memref<5x32xf32, #tpu.memory_space<vmem>>, vector<1x32xf32>
    %8 = arith.addf %6, %7 : vector<1x32xf32>
    %c1 = arith.constant 1 : index
    %c0_9 = arith.constant 0 : index
    %9 = vector.load %arg4[%c1, %c0_9] : memref<5x32xf32, #tpu.memory_space<vmem>>, vector<4x32xf32>
    %c0_10 = arith.constant 0 : index
    %c0_11 = arith.constant 0 : index
    %10 = vector.load %arg26[%c0_10, %c0_11] : memref<10x32xf32, #tpu.memory_space<vmem>>, vector<1x32xf32>
    tpu.vector_store %arg26[%c0_10, %c0_11], %8 {strides = array<i32>} : memref<10x32xf32, #tpu.memory_space<vmem>>, vector<1x32xf32>,
    %11 = vector.extract_strided_slice %5 {offsets = [0, 0], sizes = [4, 32], strides = [1, 1]} : vector<8x32xf32> to vector<4x32xf32>
    %12 = arith.addf %11, %9 : vector<4x32xf32>
    %c1_12 = arith.constant 1 : index
    %c0_13 = arith.constant 0 : index
    %13 = vector.load %arg26[%c1_12, %c0_13] : memref<10x32xf32, #tpu.memory_space<vmem>>, vector<4x32xf32>
    tpu.vector_store %arg26[%c1_12, %c0_13], %12 {strides = array<i32>} : memref<10x32xf32, #tpu.memory_space<vmem>>, vector<4x32xf32>,
    %c5 = arith.constant 5 : index
    %c0_14 = arith.constant 0 : index
    %14 = vector.load %arg26[%c5, %c0_14] : memref<10x32xf32, #tpu.memory_space<vmem>>, vector<1x32xf32>
    tpu.vector_store %arg26[%c5, %c0_14], %8 {strides = array<i32>} : memref<10x32xf32, #tpu.memory_space<vmem>>, vector<1x32xf32>,
    %15 = vector.extract_strided_slice %5 {offsets = [4, 0], sizes = [4, 32], strides = [1, 1]} : vector<8x32xf32> to vector<4x32xf32>
    %16 = arith.addf %15, %9 : vector<4x32xf32>
    %c6 = arith.constant 6 : index
    %c0_15 = arith.constant 0 : index
    %17 = vector.load %arg26[%c6, %c0_15] : memref<10x32xf32, #tpu.memory_space<vmem>>, vector<4x32xf32>
    tpu.vector_store %arg26[%c6, %c0_15], %16 {strides = array<i32>} : memref<10x32xf32, #tpu.memory_space<vmem>>, vector<4x32xf32>,
    %c0_16 = arith.constant 0 : index
    %c0_17 = arith.constant 0 : index
    %18 = vector.load %arg26[%c0_16, %c0_17] : memref<10x32xf32, #tpu.memory_space<vmem>>, vector<10x32xf32>
    %c0_18 = arith.constant 0 : index
    %c0_19 = arith.constant 0 : index
    %c0_20 = arith.constant 0 : index
    %19 = vector.load %arg5[%c0_18, %c0_19, %c0_20] : memref<2x1x32xf32, #tpu.memory_space<vmem>>, vector<1x1x32xf32>
    %20 = vector.shape_cast %19 : vector<1x1x32xf32> to vector<1x32xf32>
    %c0_21 = arith.constant 0 : index
    %c0_22 = arith.constant 0 : index
    %c0_23 = arith.constant 0 : index
    %21 = vector.load %arg6[%c0_21, %c0_22, %c0_23] : memref<2x1x32xf32, #tpu.memory_space<vmem>>, vector<1x1x32xf32>
    %22 = vector.shape_cast %21 : vector<1x1x32xf32> to vector<1x32xf32>
    %cst_24 = arith.constant dense<0.000000e+00> : vector<10xf32>
    %23 = vector.multi_reduction <add>, %18, %cst_24 [1] : vector<10x32xf32> to vector<10xf32>
    %24 = vector.shape_cast %23 : vector<10xf32> to vector<10x1xf32>
    %cst_25 = arith.constant 3.200000e+01 : f32
    %25 = vector.broadcast %cst_25 : f32 to vector<10x1xf32>
    %26 = arith.divf %24, %25 : vector<10x1xf32>
    %27 = vector.broadcast %26 : vector<10x1xf32> to vector<10x32xf32>
    %28 = arith.subf %18, %27 : vector<10x32xf32>
    %29 = arith.mulf %28, %28 : vector<10x32xf32>
    %cst_26 = arith.constant dense<0.000000e+00> : vector<10xf32>
    %30 = vector.multi_reduction <add>, %29, %cst_26 [1] : vector<10x32xf32> to vector<10xf32>
    %31 = vector.shape_cast %30 : vector<10xf32> to vector<10x1xf32>
    %cst_27 = arith.constant 3.200000e+01 : f32
    %32 = vector.broadcast %cst_27 : f32 to vector<10x1xf32>
    %33 = arith.divf %31, %32 : vector<10x1xf32>
    %34 = vector.broadcast %26 : vector<10x1xf32> to vector<10x32xf32>
    %35 = arith.subf %18, %34 : vector<10x32xf32>
    %cst_28 = arith.constant 9.99999996E-13 : f32
    %36 = vector.broadcast %cst_28 : f32 to vector<10x1xf32>
    %37 = arith.addf %33, %36 : vector<10x1xf32>
    %38 = math.rsqrt %37 : vector<10x1xf32>
    %39 = vector.broadcast %38 : vector<10x1xf32> to vector<10x32xf32>
    %40 = arith.mulf %35, %39 : vector<10x32xf32>
    %41 = vector.broadcast %20 : vector<1x32xf32> to vector<10x32xf32>
    %42 = arith.mulf %40, %41 : vector<10x32xf32>
    %43 = vector.broadcast %22 : vector<1x32xf32> to vector<10x32xf32>
    %44 = arith.addf %42, %43 : vector<10x32xf32>
    %c0_29 = arith.constant 0 : index
    %c0_30 = arith.constant 0 : index
    %c0_31 = arith.constant 0 : index
    %45 = vector.load %arg7[%c0_29, %c0_30, %c0_31] : memref<2x32x32xf32, #tpu.memory_space<vmem>>, vector<1x32x32xf32>
    %46 = vector.shape_cast %45 : vector<1x32x32xf32> to vector<32x32xf32>
    %cst_32 = arith.constant dense<0.000000e+00> : vector<10x32xf32>
    %47 = tpu.matmul %44, %46, %cst_32 {dimension_numbers = #tpu.dot_dimension_numbers<[1], [0], [0], [1], [0, 0, 1, 1], [], []>} : vector<10x32xf32>, vector<32x32xf32>, vector<10x32xf32> -> vector<10x32xf32>
    %c0_33 = arith.constant 0 : index
    %c0_34 = arith.constant 0 : index
    %c0_35 = arith.constant 0 : index
    %48 = vector.load %arg8[%c0_33, %c0_34, %c0_35] : memref<2x1x32xf32, #tpu.memory_space<vmem>>, vector<1x1x32xf32>
    %49 = vector.shape_cast %48 : vector<1x1x32xf32> to vector<1x32xf32>
    %50 = vector.broadcast %49 : vector<1x32xf32> to vector<10x32xf32>
    %51 = arith.addf %47, %50 : vector<10x32xf32>
    %c0_36 = arith.constant 0 : index
    %c0_37 = arith.constant 0 : index
    %c0_38 = arith.constant 0 : index
    %52 = vector.load %arg9[%c0_36, %c0_37, %c0_38] : memref<2x32x32xf32, #tpu.memory_space<vmem>>, vector<1x32x32xf32>
    %53 = vector.shape_cast %52 : vector<1x32x32xf32> to vector<32x32xf32>
    %cst_39 = arith.constant dense<0.000000e+00> : vector<10x32xf32>
    %54 = tpu.matmul %44, %53, %cst_39 {dimension_numbers = #tpu.dot_dimension_numbers<[1], [0], [0], [1], [0, 0, 1, 1], [], []>} : vector<10x32xf32>, vector<32x32xf32>, vector<10x32xf32> -> vector<10x32xf32>
    %c0_40 = arith.constant 0 : index
    %c0_41 = arith.constant 0 : index
    %c0_42 = arith.constant 0 : index
    %55 = vector.load %arg10[%c0_40, %c0_41, %c0_42] : memref<2x1x32xf32, #tpu.memory_space<vmem>>, vector<1x1x32xf32>
    %56 = vector.shape_cast %55 : vector<1x1x32xf32> to vector<1x32xf32>
    %57 = vector.broadcast %56 : vector<1x32xf32> to vector<10x32xf32>
    %58 = arith.addf %54, %57 : vector<10x32xf32>
    %c0_43 = arith.constant 0 : index
    %c0_44 = arith.constant 0 : index
    %c0_45 = arith.constant 0 : index
    %59 = vector.load %arg11[%c0_43, %c0_44, %c0_45] : memref<2x32x32xf32, #tpu.memory_space<vmem>>, vector<1x32x32xf32>
    %60 = vector.shape_cast %59 : vector<1x32x32xf32> to vector<32x32xf32>
    %cst_46 = arith.constant dense<0.000000e+00> : vector<10x32xf32>
    %61 = tpu.matmul %44, %60, %cst_46 {dimension_numbers = #tpu.dot_dimension_numbers<[1], [0], [0], [1], [0, 0, 1, 1], [], []>} : vector<10x32xf32>, vector<32x32xf32>, vector<10x32xf32> -> vector<10x32xf32>
    %c0_47 = arith.constant 0 : index
    %c0_48 = arith.constant 0 : index
    %c0_49 = arith.constant 0 : index
    %62 = vector.load %arg12[%c0_47, %c0_48, %c0_49] : memref<2x1x32xf32, #tpu.memory_space<vmem>>, vector<1x1x32xf32>
    %63 = vector.shape_cast %62 : vector<1x1x32xf32> to vector<1x32xf32>
    %64 = vector.broadcast %63 : vector<1x32xf32> to vector<10x32xf32>
    %65 = arith.addf %61, %64 : vector<10x32xf32>
    %c0_50 = arith.constant 0 : index
    %c0_51 = arith.constant 0 : index
    %c0_52 = arith.constant 0 : index
    %66 = vector.load %arg13[%c0_50, %c0_51, %c0_52] : memref<2x32x32xf32, #tpu.memory_space<vmem>>, vector<1x32x32xf32>
    %67 = vector.shape_cast %66 : vector<1x32x32xf32> to vector<32x32xf32>
    %68 = vector.extract_strided_slice %51 {offsets = [0, 0], sizes = [5, 32], strides = [1, 1]} : vector<10x32xf32> to vector<5x32xf32>
    %69 = vector.extract_strided_slice %58 {offsets = [0, 0], sizes = [5, 32], strides = [1, 1]} : vector<10x32xf32> to vector<5x32xf32>
    %70 = vector.extract_strided_slice %65 {offsets = [0, 0], sizes = [5, 32], strides = [1, 1]} : vector<10x32xf32> to vector<5x32xf32>
    %71 = vector.extract_strided_slice %68 {offsets = [0, 0], sizes = [5, 8], strides = [1, 1]} : vector<5x32xf32> to vector<5x8xf32>
    %72 = vector.extract_strided_slice %69 {offsets = [0, 0], sizes = [5, 8], strides = [1, 1]} : vector<5x32xf32> to vector<5x8xf32>
    %73 = vector.extract_strided_slice %70 {offsets = [0, 0], sizes = [5, 8], strides = [1, 1]} : vector<5x32xf32> to vector<5x8xf32>
    %cst_53 = arith.constant dense<0.000000e+00> : vector<5x5xf32>
    %74 = tpu.matmul %71, %72, %cst_53 {dimension_numbers = #tpu.dot_dimension_numbers<[1], [1], [0], [0], [0, 0, 1, 0], [], []>} : vector<5x8xf32>, vector<5x8xf32>, vector<5x5xf32> -> vector<5x5xf32>
    %cst_54 = arith.constant 0.353553385 : f32
    %75 = vector.broadcast %cst_54 : f32 to vector<5x5xf32>
    %76 = arith.mulf %74, %75 : vector<5x5xf32>
    %cst_55 = arith.constant dense<0xFF800000> : vector<5xf32>
    %77 = vector.multi_reduction <maximumf>, %76, %cst_55 [1] : vector<5x5xf32> to vector<5xf32>
    %cst_56 = arith.constant 0xFF800000 : f32
    %78 = vector.broadcast %cst_56 : f32 to vector<5xf32>
    %79 = arith.maximumf %78, %77 : vector<5xf32>
    %80 = vector.shape_cast %79 : vector<5xf32> to vector<5x1xf32>
    %81 = vector.broadcast %80 : vector<5x1xf32> to vector<5x5xf32>
    %82 = arith.subf %76, %81 : vector<5x5xf32>
    %83 = math.exp %82 : vector<5x5xf32>
    %cst_57 = arith.constant dense<0.000000e+00> : vector<5xf32>
    %84 = vector.multi_reduction <add>, %83, %cst_57 [1] : vector<5x5xf32> to vector<5xf32>
    %85 = vector.shape_cast %84 : vector<5xf32> to vector<5x1xf32>
    %86 = vector.broadcast %85 : vector<5x1xf32> to vector<5x5xf32>
    %87 = arith.divf %83, %86 : vector<5x5xf32>
    %cst_58 = arith.constant dense<0.000000e+00> : vector<5x8xf32>
    %88 = tpu.matmul %87, %73, %cst_58 {dimension_numbers = #tpu.dot_dimension_numbers<[1], [0], [0], [1], [0, 0, 1, 1], [], []>} : vector<5x5xf32>, vector<5x8xf32>, vector<5x8xf32> -> vector<5x8xf32>
    %89 = vector.extract_strided_slice %67 {offsets = [0, 0], sizes = [8, 32], strides = [1, 1]} : vector<32x32xf32> to vector<8x32xf32>
    %cst_59 = arith.constant dense<0.000000e+00> : vector<5x32xf32>
    %90 = tpu.matmul %88, %89, %cst_59 {dimension_numbers = #tpu.dot_dimension_numbers<[1], [0], [0], [1], [0, 0, 1, 1], [], []>} : vector<5x8xf32>, vector<8x32xf32>, vector<5x32xf32> -> vector<5x32xf32>
    %91 = vector.extract_strided_slice %68 {offsets = [0, 8], sizes = [5, 8], strides = [1, 1]} : vector<5x32xf32> to vector<5x8xf32>
    %92 = vector.extract_strided_slice %69 {offsets = [0, 8], sizes = [5, 8], strides = [1, 1]} : vector<5x32xf32> to vector<5x8xf32>
    %93 = vector.extract_strided_slice %70 {offsets = [0, 8], sizes = [5, 8], strides = [1, 1]} : vector<5x32xf32> to vector<5x8xf32>
    %cst_60 = arith.constant dense<0.000000e+00> : vector<5x5xf32>
    %94 = tpu.matmul %91, %92, %cst_60 {dimension_numbers = #tpu.dot_dimension_numbers<[1], [1], [0], [0], [0, 0, 1, 0], [], []>} : vector<5x8xf32>, vector<5x8xf32>, vector<5x5xf32> -> vector<5x5xf32>
    %cst_61 = arith.constant 0.353553385 : f32
    %95 = vector.broadcast %cst_61 : f32 to vector<5x5xf32>
    %96 = arith.mulf %94, %95 : vector<5x5xf32>
    %cst_62 = arith.constant dense<0xFF800000> : vector<5xf32>
    %97 = vector.multi_reduction <maximumf>, %96, %cst_62 [1] : vector<5x5xf32> to vector<5xf32>
    %cst_63 = arith.constant 0xFF800000 : f32
    %98 = vector.broadcast %cst_63 : f32 to vector<5xf32>
    %99 = arith.maximumf %98, %97 : vector<5xf32>
    %100 = vector.shape_cast %99 : vector<5xf32> to vector<5x1xf32>
    %101 = vector.broadcast %100 : vector<5x1xf32> to vector<5x5xf32>
    %102 = arith.subf %96, %101 : vector<5x5xf32>
    %103 = math.exp %102 : vector<5x5xf32>
    %cst_64 = arith.constant dense<0.000000e+00> : vector<5xf32>
    %104 = vector.multi_reduction <add>, %103, %cst_64 [1] : vector<5x5xf32> to vector<5xf32>
    %105 = vector.shape_cast %104 : vector<5xf32> to vector<5x1xf32>
    %106 = vector.broadcast %105 : vector<5x1xf32> to vector<5x5xf32>
    %107 = arith.divf %103, %106 : vector<5x5xf32>
    %cst_65 = arith.constant dense<0.000000e+00> : vector<5x8xf32>
    %108 = tpu.matmul %107, %93, %cst_65 {dimension_numbers = #tpu.dot_dimension_numbers<[1], [0], [0], [1], [0, 0, 1, 1], [], []>} : vector<5x5xf32>, vector<5x8xf32>, vector<5x8xf32> -> vector<5x8xf32>
    %109 = vector.extract_strided_slice %67 {offsets = [8, 0], sizes = [8, 32], strides = [1, 1]} : vector<32x32xf32> to vector<8x32xf32>
    %cst_66 = arith.constant dense<0.000000e+00> : vector<5x32xf32>
    %110 = tpu.matmul %108, %109, %cst_66 {dimension_numbers = #tpu.dot_dimension_numbers<[1], [0], [0], [1], [0, 0, 1, 1], [], []>} : vector<5x8xf32>, vector<8x32xf32>, vector<5x32xf32> -> vector<5x32xf32>
    %111 = arith.addf %90, %110 : vector<5x32xf32>
    %112 = vector.extract_strided_slice %68 {offsets = [0, 16], sizes = [5, 8], strides = [1, 1]} : vector<5x32xf32> to vector<5x8xf32>
    %113 = vector.extract_strided_slice %69 {offsets = [0, 16], sizes = [5, 8], strides = [1, 1]} : vector<5x32xf32> to vector<5x8xf32>
    %114 = vector.extract_strided_slice %70 {offsets = [0, 16], sizes = [5, 8], strides = [1, 1]} : vector<5x32xf32> to vector<5x8xf32>
    %cst_67 = arith.constant dense<0.000000e+00> : vector<5x5xf32>
    %115 = tpu.matmul %112, %113, %cst_67 {dimension_numbers = #tpu.dot_dimension_numbers<[1], [1], [0], [0], [0, 0, 1, 0], [], []>} : vector<5x8xf32>, vector<5x8xf32>, vector<5x5xf32> -> vector<5x5xf32>
    %cst_68 = arith.constant 0.353553385 : f32
    %116 = vector.broadcast %cst_68 : f32 to vector<5x5xf32>
    %117 = arith.mulf %115, %116 : vector<5x5xf32>
    %cst_69 = arith.constant dense<0xFF800000> : vector<5xf32>
    %118 = vector.multi_reduction <maximumf>, %117, %cst_69 [1] : vector<5x5xf32> to vector<5xf32>
    %cst_70 = arith.constant 0xFF800000 : f32
    %119 = vector.broadcast %cst_70 : f32 to vector<5xf32>
    %120 = arith.maximumf %119, %118 : vector<5xf32>
    %121 = vector.shape_cast %120 : vector<5xf32> to vector<5x1xf32>
    %122 = vector.broadcast %121 : vector<5x1xf32> to vector<5x5xf32>
    %123 = arith.subf %117, %122 : vector<5x5xf32>
    %124 = math.exp %123 : vector<5x5xf32>
    %cst_71 = arith.constant dense<0.000000e+00> : vector<5xf32>
    %125 = vector.multi_reduction <add>, %124, %cst_71 [1] : vector<5x5xf32> to vector<5xf32>
    %126 = vector.shape_cast %125 : vector<5xf32> to vector<5x1xf32>
    %127 = vector.broadcast %126 : vector<5x1xf32> to vector<5x5xf32>
    %128 = arith.divf %124, %127 : vector<5x5xf32>
    %cst_72 = arith.constant dense<0.000000e+00> : vector<5x8xf32>
    %129 = tpu.matmul %128, %114, %cst_72 {dimension_numbers = #tpu.dot_dimension_numbers<[1], [0], [0], [1], [0, 0, 1, 1], [], []>} : vector<5x5xf32>, vector<5x8xf32>, vector<5x8xf32> -> vector<5x8xf32>
    %130 = vector.extract_strided_slice %67 {offsets = [16, 0], sizes = [8, 32], strides = [1, 1]} : vector<32x32xf32> to vector<8x32xf32>
    %cst_73 = arith.constant dense<0.000000e+00> : vector<5x32xf32>
    %131 = tpu.matmul %129, %130, %cst_73 {dimension_numbers = #tpu.dot_dimension_numbers<[1], [0], [0], [1], [0, 0, 1, 1], [], []>} : vector<5x8xf32>, vector<8x32xf32>, vector<5x32xf32> -> vector<5x32xf32>
    %132 = arith.addf %111, %131 : vector<5x32xf32>
    %133 = vector.extract_strided_slice %68 {offsets = [0, 24], sizes = [5, 8], strides = [1, 1]} : vector<5x32xf32> to vector<5x8xf32>
    %134 = vector.extract_strided_slice %69 {offsets = [0, 24], sizes = [5, 8], strides = [1, 1]} : vector<5x32xf32> to vector<5x8xf32>
    %135 = vector.extract_strided_slice %70 {offsets = [0, 24], sizes = [5, 8], strides = [1, 1]} : vector<5x32xf32> to vector<5x8xf32>
    %cst_74 = arith.constant dense<0.000000e+00> : vector<5x5xf32>
    %136 = tpu.matmul %133, %134, %cst_74 {dimension_numbers = #tpu.dot_dimension_numbers<[1], [1], [0], [0], [0, 0, 1, 0], [], []>} : vector<5x8xf32>, vector<5x8xf32>, vector<5x5xf32> -> vector<5x5xf32>
    %cst_75 = arith.constant 0.353553385 : f32
    %137 = vector.broadcast %cst_75 : f32 to vector<5x5xf32>
    %138 = arith.mulf %136, %137 : vector<5x5xf32>
    %cst_76 = arith.constant dense<0xFF800000> : vector<5xf32>
    %139 = vector.multi_reduction <maximumf>, %138, %cst_76 [1] : vector<5x5xf32> to vector<5xf32>
    %cst_77 = arith.constant 0xFF800000 : f32
    %140 = vector.broadcast %cst_77 : f32 to vector<5xf32>
    %141 = arith.maximumf %140, %139 : vector<5xf32>
    %142 = vector.shape_cast %141 : vector<5xf32> to vector<5x1xf32>
    %143 = vector.broadcast %142 : vector<5x1xf32> to vector<5x5xf32>
    %144 = arith.subf %138, %143 : vector<5x5xf32>
    %145 = math.exp %144 : vector<5x5xf32>
    %cst_78 = arith.constant dense<0.000000e+00> : vector<5xf32>
    %146 = vector.multi_reduction <add>, %145, %cst_78 [1] : vector<5x5xf32> to vector<5xf32>
    %147 = vector.shape_cast %146 : vector<5xf32> to vector<5x1xf32>
    %148 = vector.broadcast %147 : vector<5x1xf32> to vector<5x5xf32>
    %149 = arith.divf %145, %148 : vector<5x5xf32>
    %cst_79 = arith.constant dense<0.000000e+00> : vector<5x8xf32>
    %150 = tpu.matmul %149, %135, %cst_79 {dimension_numbers = #tpu.dot_dimension_numbers<[1], [0], [0], [1], [0, 0, 1, 1], [], []>} : vector<5x5xf32>, vector<5x8xf32>, vector<5x8xf32> -> vector<5x8xf32>
    %151 = vector.extract_strided_slice %67 {offsets = [24, 0], sizes = [8, 32], strides = [1, 1]} : vector<32x32xf32> to vector<8x32xf32>
    %cst_80 = arith.constant dense<0.000000e+00> : vector<5x32xf32>
    %152 = tpu.matmul %150, %151, %cst_80 {dimension_numbers = #tpu.dot_dimension_numbers<[1], [0], [0], [1], [0, 0, 1, 1], [], []>} : vector<5x8xf32>, vector<8x32xf32>, vector<5x32xf32> -> vector<5x32xf32>
    %153 = arith.addf %132, %152 : vector<5x32xf32>
    %154 = vector.extract_strided_slice %51 {offsets = [5, 0], sizes = [5, 32], strides = [1, 1]} : vector<10x32xf32> to vector<5x32xf32>
    %155 = vector.extract_strided_slice %58 {offsets = [5, 0], sizes = [5, 32], strides = [1, 1]} : vector<10x32xf32> to vector<5x32xf32>
    %156 = vector.extract_strided_slice %65 {offsets = [5, 0], sizes = [5, 32], strides = [1, 1]} : vector<10x32xf32> to vector<5x32xf32>
    %157 = vector.extract_strided_slice %154 {offsets = [0, 0], sizes = [5, 8], strides = [1, 1]} : vector<5x32xf32> to vector<5x8xf32>
    %158 = vector.extract_strided_slice %155 {offsets = [0, 0], sizes = [5, 8], strides = [1, 1]} : vector<5x32xf32> to vector<5x8xf32>
    %159 = vector.extract_strided_slice %156 {offsets = [0, 0], sizes = [5, 8], strides = [1, 1]} : vector<5x32xf32> to vector<5x8xf32>
    %cst_81 = arith.constant dense<0.000000e+00> : vector<5x5xf32>
    %160 = tpu.matmul %157, %158, %cst_81 {dimension_numbers = #tpu.dot_dimension_numbers<[1], [1], [0], [0], [0, 0, 1, 0], [], []>} : vector<5x8xf32>, vector<5x8xf32>, vector<5x5xf32> -> vector<5x5xf32>
    %cst_82 = arith.constant 0.353553385 : f32
    %161 = vector.broadcast %cst_82 : f32 to vector<5x5xf32>
    %162 = arith.mulf %160, %161 : vector<5x5xf32>
    %cst_83 = arith.constant dense<0xFF800000> : vector<5xf32>
    %163 = vector.multi_reduction <maximumf>, %162, %cst_83 [1] : vector<5x5xf32> to vector<5xf32>
    %cst_84 = arith.constant 0xFF800000 : f32
    %164 = vector.broadcast %cst_84 : f32 to vector<5xf32>
    %165 = arith.maximumf %164, %163 : vector<5xf32>
    %166 = vector.shape_cast %165 : vector<5xf32> to vector<5x1xf32>
    %167 = vector.broadcast %166 : vector<5x1xf32> to vector<5x5xf32>
    %168 = arith.subf %162, %167 : vector<5x5xf32>
    %169 = math.exp %168 : vector<5x5xf32>
    %cst_85 = arith.constant dense<0.000000e+00> : vector<5xf32>
    %170 = vector.multi_reduction <add>, %169, %cst_85 [1] : vector<5x5xf32> to vector<5xf32>
    %171 = vector.shape_cast %170 : vector<5xf32> to vector<5x1xf32>
    %172 = vector.broadcast %171 : vector<5x1xf32> to vector<5x5xf32>
    %173 = arith.divf %169, %172 : vector<5x5xf32>
    %cst_86 = arith.constant dense<0.000000e+00> : vector<5x8xf32>
    %174 = tpu.matmul %173, %159, %cst_86 {dimension_numbers = #tpu.dot_dimension_numbers<[1], [0], [0], [1], [0, 0, 1, 1], [], []>} : vector<5x5xf32>, vector<5x8xf32>, vector<5x8xf32> -> vector<5x8xf32>
    %175 = vector.extract_strided_slice %67 {offsets = [0, 0], sizes = [8, 32], strides = [1, 1]} : vector<32x32xf32> to vector<8x32xf32>
    %cst_87 = arith.constant dense<0.000000e+00> : vector<5x32xf32>
    %176 = tpu.matmul %174, %175, %cst_87 {dimension_numbers = #tpu.dot_dimension_numbers<[1], [0], [0], [1], [0, 0, 1, 1], [], []>} : vector<5x8xf32>, vector<8x32xf32>, vector<5x32xf32> -> vector<5x32xf32>
    %177 = vector.extract_strided_slice %154 {offsets = [0, 8], sizes = [5, 8], strides = [1, 1]} : vector<5x32xf32> to vector<5x8xf32>
    %178 = vector.extract_strided_slice %155 {offsets = [0, 8], sizes = [5, 8], strides = [1, 1]} : vector<5x32xf32> to vector<5x8xf32>
    %179 = vector.extract_strided_slice %156 {offsets = [0, 8], sizes = [5, 8], strides = [1, 1]} : vector<5x32xf32> to vector<5x8xf32>
    %cst_88 = arith.constant dense<0.000000e+00> : vector<5x5xf32>
    %180 = tpu.matmul %177, %178, %cst_88 {dimension_numbers = #tpu.dot_dimension_numbers<[1], [1], [0], [0], [0, 0, 1, 0], [], []>} : vector<5x8xf32>, vector<5x8xf32>, vector<5x5xf32> -> vector<5x5xf32>
    %cst_89 = arith.constant 0.353553385 : f32
    %181 = vector.broadcast %cst_89 : f32 to vector<5x5xf32>
    %182 = arith.mulf %180, %181 : vector<5x5xf32>
    %cst_90 = arith.constant dense<0xFF800000> : vector<5xf32>
    %183 = vector.multi_reduction <maximumf>, %182, %cst_90 [1] : vector<5x5xf32> to vector<5xf32>
    %cst_91 = arith.constant 0xFF800000 : f32
    %184 = vector.broadcast %cst_91 : f32 to vector<5xf32>
    %185 = arith.maximumf %184, %183 : vector<5xf32>
    %186 = vector.shape_cast %185 : vector<5xf32> to vector<5x1xf32>
    %187 = vector.broadcast %186 : vector<5x1xf32> to vector<5x5xf32>
    %188 = arith.subf %182, %187 : vector<5x5xf32>
    %189 = math.exp %188 : vector<5x5xf32>
    %cst_92 = arith.constant dense<0.000000e+00> : vector<5xf32>
    %190 = vector.multi_reduction <add>, %189, %cst_92 [1] : vector<5x5xf32> to vector<5xf32>
    %191 = vector.shape_cast %190 : vector<5xf32> to vector<5x1xf32>
    %192 = vector.broadcast %191 : vector<5x1xf32> to vector<5x5xf32>
    %193 = arith.divf %189, %192 : vector<5x5xf32>
    %cst_93 = arith.constant dense<0.000000e+00> : vector<5x8xf32>
    %194 = tpu.matmul %193, %179, %cst_93 {dimension_numbers = #tpu.dot_dimension_numbers<[1], [0], [0], [1], [0, 0, 1, 1], [], []>} : vector<5x5xf32>, vector<5x8xf32>, vector<5x8xf32> -> vector<5x8xf32>
    %195 = vector.extract_strided_slice %67 {offsets = [8, 0], sizes = [8, 32], strides = [1, 1]} : vector<32x32xf32> to vector<8x32xf32>
    %cst_94 = arith.constant dense<0.000000e+00> : vector<5x32xf32>
    %196 = tpu.matmul %194, %195, %cst_94 {dimension_numbers = #tpu.dot_dimension_numbers<[1], [0], [0], [1], [0, 0, 1, 1], [], []>} : vector<5x8xf32>, vector<8x32xf32>, vector<5x32xf32> -> vector<5x32xf32>
    %197 = arith.addf %176, %196 : vector<5x32xf32>
    %198 = vector.extract_strided_slice %154 {offsets = [0, 16], sizes = [5, 8], strides = [1, 1]} : vector<5x32xf32> to vector<5x8xf32>
    %199 = vector.extract_strided_slice %155 {offsets = [0, 16], sizes = [5, 8], strides = [1, 1]} : vector<5x32xf32> to vector<5x8xf32>
    %200 = vector.extract_strided_slice %156 {offsets = [0, 16], sizes = [5, 8], strides = [1, 1]} : vector<5x32xf32> to vector<5x8xf32>
    %cst_95 = arith.constant dense<0.000000e+00> : vector<5x5xf32>
    %201 = tpu.matmul %198, %199, %cst_95 {dimension_numbers = #tpu.dot_dimension_numbers<[1], [1], [0], [0], [0, 0, 1, 0], [], []>} : vector<5x8xf32>, vector<5x8xf32>, vector<5x5xf32> -> vector<5x5xf32>
    %cst_96 = arith.constant 0.353553385 : f32
    %202 = vector.broadcast %cst_96 : f32 to vector<5x5xf32>
    %203 = arith.mulf %201, %202 : vector<5x5xf32>
    %cst_97 = arith.constant dense<0xFF800000> : vector<5xf32>
    %204 = vector.multi_reduction <maximumf>, %203, %cst_97 [1] : vector<5x5xf32> to vector<5xf32>
    %cst_98 = arith.constant 0xFF800000 : f32
    %205 = vector.broadcast %cst_98 : f32 to vector<5xf32>
    %206 = arith.maximumf %205, %204 : vector<5xf32>
    %207 = vector.shape_cast %206 : vector<5xf32> to vector<5x1xf32>
    %208 = vector.broadcast %207 : vector<5x1xf32> to vector<5x5xf32>
    %209 = arith.subf %203, %208 : vector<5x5xf32>
    %210 = math.exp %209 : vector<5x5xf32>
    %cst_99 = arith.constant dense<0.000000e+00> : vector<5xf32>
    %211 = vector.multi_reduction <add>, %210, %cst_99 [1] : vector<5x5xf32> to vector<5xf32>
    %212 = vector.shape_cast %211 : vector<5xf32> to vector<5x1xf32>
    %213 = vector.broadcast %212 : vector<5x1xf32> to vector<5x5xf32>
    %214 = arith.divf %210, %213 : vector<5x5xf32>
    %cst_100 = arith.constant dense<0.000000e+00> : vector<5x8xf32>
    %215 = tpu.matmul %214, %200, %cst_100 {dimension_numbers = #tpu.dot_dimension_numbers<[1], [0], [0], [1], [0, 0, 1, 1], [], []>} : vector<5x5xf32>, vector<5x8xf32>, vector<5x8xf32> -> vector<5x8xf32>
    %216 = vector.extract_strided_slice %67 {offsets = [16, 0], sizes = [8, 32], strides = [1, 1]} : vector<32x32xf32> to vector<8x32xf32>
    %cst_101 = arith.constant dense<0.000000e+00> : vector<5x32xf32>
    %217 = tpu.matmul %215, %216, %cst_101 {dimension_numbers = #tpu.dot_dimension_numbers<[1], [0], [0], [1], [0, 0, 1, 1], [], []>} : vector<5x8xf32>, vector<8x32xf32>, vector<5x32xf32> -> vector<5x32xf32>
    %218 = arith.addf %197, %217 : vector<5x32xf32>
    %219 = vector.extract_strided_slice %154 {offsets = [0, 24], sizes = [5, 8], strides = [1, 1]} : vector<5x32xf32> to vector<5x8xf32>
    %220 = vector.extract_strided_slice %155 {offsets = [0, 24], sizes = [5, 8], strides = [1, 1]} : vector<5x32xf32> to vector<5x8xf32>
    %221 = vector.extract_strided_slice %156 {offsets = [0, 24], sizes = [5, 8], strides = [1, 1]} : vector<5x32xf32> to vector<5x8xf32>
    %cst_102 = arith.constant dense<0.000000e+00> : vector<5x5xf32>
    %222 = tpu.matmul %219, %220, %cst_102 {dimension_numbers = #tpu.dot_dimension_numbers<[1], [1], [0], [0], [0, 0, 1, 0], [], []>} : vector<5x8xf32>, vector<5x8xf32>, vector<5x5xf32> -> vector<5x5xf32>
    %cst_103 = arith.constant 0.353553385 : f32
    %223 = vector.broadcast %cst_103 : f32 to vector<5x5xf32>
    %224 = arith.mulf %222, %223 : vector<5x5xf32>
    %cst_104 = arith.constant dense<0xFF800000> : vector<5xf32>
    %225 = vector.multi_reduction <maximumf>, %224, %cst_104 [1] : vector<5x5xf32> to vector<5xf32>
    %cst_105 = arith.constant 0xFF800000 : f32
    %226 = vector.broadcast %cst_105 : f32 to vector<5xf32>
    %227 = arith.maximumf %226, %225 : vector<5xf32>
    %228 = vector.shape_cast %227 : vector<5xf32> to vector<5x1xf32>
    %229 = vector.broadcast %228 : vector<5x1xf32> to vector<5x5xf32>
    %230 = arith.subf %224, %229 : vector<5x5xf32>
    %231 = math.exp %230 : vector<5x5xf32>
    %cst_106 = arith.constant dense<0.000000e+00> : vector<5xf32>
    %232 = vector.multi_reduction <add>, %231, %cst_106 [1] : vector<5x5xf32> to vector<5xf32>
    %233 = vector.shape_cast %232 : vector<5xf32> to vector<5x1xf32>
    %234 = vector.broadcast %233 : vector<5x1xf32> to vector<5x5xf32>
    %235 = arith.divf %231, %234 : vector<5x5xf32>
    %cst_107 = arith.constant dense<0.000000e+00> : vector<5x8xf32>
    %236 = tpu.matmul %235, %221, %cst_107 {dimension_numbers = #tpu.dot_dimension_numbers<[1], [0], [0], [1], [0, 0, 1, 1], [], []>} : vector<5x5xf32>, vector<5x8xf32>, vector<5x8xf32> -> vector<5x8xf32>
    %237 = vector.extract_strided_slice %67 {offsets = [24, 0], sizes = [8, 32], strides = [1, 1]} : vector<32x32xf32> to vector<8x32xf32>
    %cst_108 = arith.constant dense<0.000000e+00> : vector<5x32xf32>
    %238 = tpu.matmul %236, %237, %cst_108 {dimension_numbers = #tpu.dot_dimension_numbers<[1], [0], [0], [1], [0, 0, 1, 1], [], []>} : vector<5x8xf32>, vector<8x32xf32>, vector<5x32xf32> -> vector<5x32xf32>
    %239 = arith.addf %218, %238 : vector<5x32xf32>
    %240 = tpu.concatenate %153, %239 in 0 : vector<5x32xf32>, vector<5x32xf32> -> vector<10x32xf32>
    %c0_109 = arith.constant 0 : index
    %c0_110 = arith.constant 0 : index
    %c0_111 = arith.constant 0 : index
    %241 = vector.load %arg14[%c0_109, %c0_110, %c0_111] : memref<2x1x32xf32, #tpu.memory_space<vmem>>, vector<1x1x32xf32>
    %242 = vector.shape_cast %241 : vector<1x1x32xf32> to vector<1x32xf32>
    %243 = vector.broadcast %242 : vector<1x32xf32> to vector<10x32xf32>
    %244 = arith.addf %240, %243 : vector<10x32xf32>
    %245 = arith.addf %18, %244 : vector<10x32xf32>
    %c0_112 = arith.constant 0 : index
    %c0_113 = arith.constant 0 : index
    %c0_114 = arith.constant 0 : index
    %246 = vector.load %arg15[%c0_112, %c0_113, %c0_114] : memref<2x1x32xf32, #tpu.memory_space<vmem>>, vector<1x1x32xf32>
    %247 = vector.shape_cast %246 : vector<1x1x32xf32> to vector<1x32xf32>
    %c0_115 = arith.constant 0 : index
    %c0_116 = arith.constant 0 : index
    %c0_117 = arith.constant 0 : index
    %248 = vector.load %arg16[%c0_115, %c0_116, %c0_117] : memref<2x1x32xf32, #tpu.memory_space<vmem>>, vector<1x1x32xf32>
    %249 = vector.shape_cast %248 : vector<1x1x32xf32> to vector<1x32xf32>
    %cst_118 = arith.constant dense<0.000000e+00> : vector<10xf32>
    %250 = vector.multi_reduction <add>, %245, %cst_118 [1] : vector<10x32xf32> to vector<10xf32>
    %251 = vector.shape_cast %250 : vector<10xf32> to vector<10x1xf32>
    %cst_119 = arith.constant 3.200000e+01 : f32
    %252 = vector.broadcast %cst_119 : f32 to vector<10x1xf32>
    %253 = arith.divf %251, %252 : vector<10x1xf32>
    %254 = vector.broadcast %253 : vector<10x1xf32> to vector<10x32xf32>
    %255 = arith.subf %245, %254 : vector<10x32xf32>
    %256 = arith.mulf %255, %255 : vector<10x32xf32>
    %cst_120 = arith.constant dense<0.000000e+00> : vector<10xf32>
    %257 = vector.multi_reduction <add>, %256, %cst_120 [1] : vector<10x32xf32> to vector<10xf32>
    %258 = vector.shape_cast %257 : vector<10xf32> to vector<10x1xf32>
    %cst_121 = arith.constant 3.200000e+01 : f32
    %259 = vector.broadcast %cst_121 : f32 to vector<10x1xf32>
    %260 = arith.divf %258, %259 : vector<10x1xf32>
    %261 = vector.broadcast %253 : vector<10x1xf32> to vector<10x32xf32>
    %262 = arith.subf %245, %261 : vector<10x32xf32>
    %cst_122 = arith.constant 9.99999996E-13 : f32
    %263 = vector.broadcast %cst_122 : f32 to vector<10x1xf32>
    %264 = arith.addf %260, %263 : vector<10x1xf32>
    %265 = math.rsqrt %264 : vector<10x1xf32>
    %266 = vector.broadcast %265 : vector<10x1xf32> to vector<10x32xf32>
    %267 = arith.mulf %262, %266 : vector<10x32xf32>
    %268 = vector.broadcast %247 : vector<1x32xf32> to vector<10x32xf32>
    %269 = arith.mulf %267, %268 : vector<10x32xf32>
    %270 = vector.broadcast %249 : vector<1x32xf32> to vector<10x32xf32>
    %271 = arith.addf %269, %270 : vector<10x32xf32>
    %c0_123 = arith.constant 0 : index
    %c0_124 = arith.constant 0 : index
    %c0_125 = arith.constant 0 : index
    %272 = vector.load %arg17[%c0_123, %c0_124, %c0_125] : memref<2x32x64xf32, #tpu.memory_space<vmem>>, vector<1x32x64xf32>
    %273 = vector.shape_cast %272 : vector<1x32x64xf32> to vector<32x64xf32>
    %cst_126 = arith.constant dense<0.000000e+00> : vector<10x64xf32>
    %274 = tpu.matmul %271, %273, %cst_126 {dimension_numbers = #tpu.dot_dimension_numbers<[1], [0], [0], [1], [0, 0, 1, 1], [], []>} : vector<10x32xf32>, vector<32x64xf32>, vector<10x64xf32> -> vector<10x64xf32>
    %c0_127 = arith.constant 0 : index
    %c0_128 = arith.constant 0 : index
    %c0_129 = arith.constant 0 : index
    %275 = vector.load %arg18[%c0_127, %c0_128, %c0_129] : memref<2x1x64xf32, #tpu.memory_space<vmem>>, vector<1x1x64xf32>
    %276 = vector.shape_cast %275 : vector<1x1x64xf32> to vector<1x64xf32>
    %277 = vector.broadcast %276 : vector<1x64xf32> to vector<10x64xf32>
    %278 = arith.addf %274, %277 : vector<10x64xf32>
    %279 = arith.mulf %278, %278 : vector<10x64xf32>
    %280 = arith.mulf %278, %279 : vector<10x64xf32>
    %cst_130 = arith.constant 4.471500e-02 : f32
    %281 = vector.broadcast %cst_130 : f32 to vector<10x64xf32>
    %282 = arith.mulf %281, %280 : vector<10x64xf32>
    %283 = arith.addf %278, %282 : vector<10x64xf32>
    %cst_131 = arith.constant 0.797884583 : f32
    %284 = vector.broadcast %cst_131 : f32 to vector<10x64xf32>
    %285 = arith.mulf %284, %283 : vector<10x64xf32>
    %286 = math.tanh %285 : vector<10x64xf32>
    %cst_132 = arith.constant 1.000000e+00 : f32
    %287 = vector.broadcast %cst_132 : f32 to vector<10x64xf32>
    %288 = arith.addf %287, %286 : vector<10x64xf32>
    %cst_133 = arith.constant 5.000000e-01 : f32
    %289 = vector.broadcast %cst_133 : f32 to vector<10x64xf32>
    %290 = arith.mulf %289, %288 : vector<10x64xf32>
    %291 = arith.mulf %278, %290 : vector<10x64xf32>
    %c0_134 = arith.constant 0 : index
    %c0_135 = arith.constant 0 : index
    %c0_136 = arith.constant 0 : index
    %292 = vector.load %arg19[%c0_134, %c0_135, %c0_136] : memref<2x64x32xf32, #tpu.memory_space<vmem>>, vector<1x64x32xf32>
    %293 = vector.shape_cast %292 : vector<1x64x32xf32> to vector<64x32xf32>
    %cst_137 = arith.constant dense<0.000000e+00> : vector<10x32xf32>
    %294 = tpu.matmul %291, %293, %cst_137 {dimension_numbers = #tpu.dot_dimension_numbers<[1], [0], [0], [1], [0, 0, 1, 1], [], []>} : vector<10x64xf32>, vector<64x32xf32>, vector<10x32xf32> -> vector<10x32xf32>
    %295 = arith.addf %245, %294 : vector<10x32xf32>
    %c0_138 = arith.constant 0 : index
    %c0_139 = arith.constant 0 : index
    %c0_140 = arith.constant 0 : index
    %296 = vector.load %arg20[%c0_138, %c0_139, %c0_140] : memref<2x1x32xf32, #tpu.memory_space<vmem>>, vector<1x1x32xf32>
    %297 = vector.shape_cast %296 : vector<1x1x32xf32> to vector<1x32xf32>
    %298 = vector.broadcast %297 : vector<1x32xf32> to vector<10x32xf32>
    %299 = arith.addf %295, %298 : vector<10x32xf32>
    %c1_141 = arith.constant 1 : index
    %c0_142 = arith.constant 0 : index
    %c0_143 = arith.constant 0 : index
    %300 = vector.load %arg5[%c1_141, %c0_142, %c0_143] : memref<2x1x32xf32, #tpu.memory_space<vmem>>, vector<1x1x32xf32>
    %301 = vector.shape_cast %300 : vector<1x1x32xf32> to vector<1x32xf32>
    %c1_144 = arith.constant 1 : index
    %c0_145 = arith.constant 0 : index
    %c0_146 = arith.constant 0 : index
    %302 = vector.load %arg6[%c1_144, %c0_145, %c0_146] : memref<2x1x32xf32, #tpu.memory_space<vmem>>, vector<1x1x32xf32>
    %303 = vector.shape_cast %302 : vector<1x1x32xf32> to vector<1x32xf32>
    %cst_147 = arith.constant dense<0.000000e+00> : vector<10xf32>
    %304 = vector.multi_reduction <add>, %299, %cst_147 [1] : vector<10x32xf32> to vector<10xf32>
    %305 = vector.shape_cast %304 : vector<10xf32> to vector<10x1xf32>
    %cst_148 = arith.constant 3.200000e+01 : f32
    %306 = vector.broadcast %cst_148 : f32 to vector<10x1xf32>
    %307 = arith.divf %305, %306 : vector<10x1xf32>
    %308 = vector.broadcast %307 : vector<10x1xf32> to vector<10x32xf32>
    %309 = arith.subf %299, %308 : vector<10x32xf32>
    %310 = arith.mulf %309, %309 : vector<10x32xf32>
    %cst_149 = arith.constant dense<0.000000e+00> : vector<10xf32>
    %311 = vector.multi_reduction <add>, %310, %cst_149 [1] : vector<10x32xf32> to vector<10xf32>
    %312 = vector.shape_cast %311 : vector<10xf32> to vector<10x1xf32>
    %cst_150 = arith.constant 3.200000e+01 : f32
    %313 = vector.broadcast %cst_150 : f32 to vector<10x1xf32>
    %314 = arith.divf %312, %313 : vector<10x1xf32>
    %315 = vector.broadcast %307 : vector<10x1xf32> to vector<10x32xf32>
    %316 = arith.subf %299, %315 : vector<10x32xf32>
    %cst_151 = arith.constant 9.99999996E-13 : f32
    %317 = vector.broadcast %cst_151 : f32 to vector<10x1xf32>
    %318 = arith.addf %314, %317 : vector<10x1xf32>
    %319 = math.rsqrt %318 : vector<10x1xf32>
    %320 = vector.broadcast %319 : vector<10x1xf32> to vector<10x32xf32>
    %321 = arith.mulf %316, %320 : vector<10x32xf32>
    %322 = vector.broadcast %301 : vector<1x32xf32> to vector<10x32xf32>
    %323 = arith.mulf %321, %322 : vector<10x32xf32>
    %324 = vector.broadcast %303 : vector<1x32xf32> to vector<10x32xf32>
    %325 = arith.addf %323, %324 : vector<10x32xf32>
    %c1_152 = arith.constant 1 : index
    %c0_153 = arith.constant 0 : index
    %c0_154 = arith.constant 0 : index
    %326 = vector.load %arg7[%c1_152, %c0_153, %c0_154] : memref<2x32x32xf32, #tpu.memory_space<vmem>>, vector<1x32x32xf32>
    %327 = vector.shape_cast %326 : vector<1x32x32xf32> to vector<32x32xf32>
    %cst_155 = arith.constant dense<0.000000e+00> : vector<10x32xf32>
    %328 = tpu.matmul %325, %327, %cst_155 {dimension_numbers = #tpu.dot_dimension_numbers<[1], [0], [0], [1], [0, 0, 1, 1], [], []>} : vector<10x32xf32>, vector<32x32xf32>, vector<10x32xf32> -> vector<10x32xf32>
    %c1_156 = arith.constant 1 : index
    %c0_157 = arith.constant 0 : index
    %c0_158 = arith.constant 0 : index
    %329 = vector.load %arg8[%c1_156, %c0_157, %c0_158] : memref<2x1x32xf32, #tpu.memory_space<vmem>>, vector<1x1x32xf32>
    %330 = vector.shape_cast %329 : vector<1x1x32xf32> to vector<1x32xf32>
    %331 = vector.broadcast %330 : vector<1x32xf32> to vector<10x32xf32>
    %332 = arith.addf %328, %331 : vector<10x32xf32>
    %c1_159 = arith.constant 1 : index
    %c0_160 = arith.constant 0 : index
    %c0_161 = arith.constant 0 : index
    %333 = vector.load %arg9[%c1_159, %c0_160, %c0_161] : memref<2x32x32xf32, #tpu.memory_space<vmem>>, vector<1x32x32xf32>
    %334 = vector.shape_cast %333 : vector<1x32x32xf32> to vector<32x32xf32>
    %cst_162 = arith.constant dense<0.000000e+00> : vector<10x32xf32>
    %335 = tpu.matmul %325, %334, %cst_162 {dimension_numbers = #tpu.dot_dimension_numbers<[1], [0], [0], [1], [0, 0, 1, 1], [], []>} : vector<10x32xf32>, vector<32x32xf32>, vector<10x32xf32> -> vector<10x32xf32>
    %c1_163 = arith.constant 1 : index
    %c0_164 = arith.constant 0 : index
    %c0_165 = arith.constant 0 : index
    %336 = vector.load %arg10[%c1_163, %c0_164, %c0_165] : memref<2x1x32xf32, #tpu.memory_space<vmem>>, vector<1x1x32xf32>
    %337 = vector.shape_cast %336 : vector<1x1x32xf32> to vector<1x32xf32>
    %338 = vector.broadcast %337 : vector<1x32xf32> to vector<10x32xf32>
    %339 = arith.addf %335, %338 : vector<10x32xf32>
    %c1_166 = arith.constant 1 : index
    %c0_167 = arith.constant 0 : index
    %c0_168 = arith.constant 0 : index
    %340 = vector.load %arg11[%c1_166, %c0_167, %c0_168] : memref<2x32x32xf32, #tpu.memory_space<vmem>>, vector<1x32x32xf32>
    %341 = vector.shape_cast %340 : vector<1x32x32xf32> to vector<32x32xf32>
    %cst_169 = arith.constant dense<0.000000e+00> : vector<10x32xf32>
    %342 = tpu.matmul %325, %341, %cst_169 {dimension_numbers = #tpu.dot_dimension_numbers<[1], [0], [0], [1], [0, 0, 1, 1], [], []>} : vector<10x32xf32>, vector<32x32xf32>, vector<10x32xf32> -> vector<10x32xf32>
    %c1_170 = arith.constant 1 : index
    %c0_171 = arith.constant 0 : index
    %c0_172 = arith.constant 0 : index
    %343 = vector.load %arg12[%c1_170, %c0_171, %c0_172] : memref<2x1x32xf32, #tpu.memory_space<vmem>>, vector<1x1x32xf32>
    %344 = vector.shape_cast %343 : vector<1x1x32xf32> to vector<1x32xf32>
    %345 = vector.broadcast %344 : vector<1x32xf32> to vector<10x32xf32>
    %346 = arith.addf %342, %345 : vector<10x32xf32>
    %c1_173 = arith.constant 1 : index
    %c0_174 = arith.constant 0 : index
    %c0_175 = arith.constant 0 : index
    %347 = vector.load %arg13[%c1_173, %c0_174, %c0_175] : memref<2x32x32xf32, #tpu.memory_space<vmem>>, vector<1x32x32xf32>
    %348 = vector.shape_cast %347 : vector<1x32x32xf32> to vector<32x32xf32>
    %349 = vector.extract_strided_slice %332 {offsets = [0, 0], sizes = [5, 32], strides = [1, 1]} : vector<10x32xf32> to vector<5x32xf32>
    %350 = vector.extract_strided_slice %339 {offsets = [0, 0], sizes = [5, 32], strides = [1, 1]} : vector<10x32xf32> to vector<5x32xf32>
    %351 = vector.extract_strided_slice %346 {offsets = [0, 0], sizes = [5, 32], strides = [1, 1]} : vector<10x32xf32> to vector<5x32xf32>
    %352 = vector.extract_strided_slice %349 {offsets = [0, 0], sizes = [5, 8], strides = [1, 1]} : vector<5x32xf32> to vector<5x8xf32>
    %353 = vector.extract_strided_slice %350 {offsets = [0, 0], sizes = [5, 8], strides = [1, 1]} : vector<5x32xf32> to vector<5x8xf32>
    %354 = vector.extract_strided_slice %351 {offsets = [0, 0], sizes = [5, 8], strides = [1, 1]} : vector<5x32xf32> to vector<5x8xf32>
    %cst_176 = arith.constant dense<0.000000e+00> : vector<5x5xf32>
    %355 = tpu.matmul %352, %353, %cst_176 {dimension_numbers = #tpu.dot_dimension_numbers<[1], [1], [0], [0], [0, 0, 1, 0], [], []>} : vector<5x8xf32>, vector<5x8xf32>, vector<5x5xf32> -> vector<5x5xf32>
    %cst_177 = arith.constant 0.353553385 : f32
    %356 = vector.broadcast %cst_177 : f32 to vector<5x5xf32>
    %357 = arith.mulf %355, %356 : vector<5x5xf32>
    %cst_178 = arith.constant dense<0xFF800000> : vector<5xf32>
    %358 = vector.multi_reduction <maximumf>, %357, %cst_178 [1] : vector<5x5xf32> to vector<5xf32>
    %cst_179 = arith.constant 0xFF800000 : f32
    %359 = vector.broadcast %cst_179 : f32 to vector<5xf32>
    %360 = arith.maximumf %359, %358 : vector<5xf32>
    %361 = vector.shape_cast %360 : vector<5xf32> to vector<5x1xf32>
    %362 = vector.broadcast %361 : vector<5x1xf32> to vector<5x5xf32>
    %363 = arith.subf %357, %362 : vector<5x5xf32>
    %364 = math.exp %363 : vector<5x5xf32>
    %cst_180 = arith.constant dense<0.000000e+00> : vector<5xf32>
    %365 = vector.multi_reduction <add>, %364, %cst_180 [1] : vector<5x5xf32> to vector<5xf32>
    %366 = vector.shape_cast %365 : vector<5xf32> to vector<5x1xf32>
    %367 = vector.broadcast %366 : vector<5x1xf32> to vector<5x5xf32>
    %368 = arith.divf %364, %367 : vector<5x5xf32>
    %cst_181 = arith.constant dense<0.000000e+00> : vector<5x8xf32>
    %369 = tpu.matmul %368, %354, %cst_181 {dimension_numbers = #tpu.dot_dimension_numbers<[1], [0], [0], [1], [0, 0, 1, 1], [], []>} : vector<5x5xf32>, vector<5x8xf32>, vector<5x8xf32> -> vector<5x8xf32>
    %370 = vector.extract_strided_slice %348 {offsets = [0, 0], sizes = [8, 32], strides = [1, 1]} : vector<32x32xf32> to vector<8x32xf32>
    %cst_182 = arith.constant dense<0.000000e+00> : vector<5x32xf32>
    %371 = tpu.matmul %369, %370, %cst_182 {dimension_numbers = #tpu.dot_dimension_numbers<[1], [0], [0], [1], [0, 0, 1, 1], [], []>} : vector<5x8xf32>, vector<8x32xf32>, vector<5x32xf32> -> vector<5x32xf32>
    %372 = vector.extract_strided_slice %349 {offsets = [0, 8], sizes = [5, 8], strides = [1, 1]} : vector<5x32xf32> to vector<5x8xf32>
    %373 = vector.extract_strided_slice %350 {offsets = [0, 8], sizes = [5, 8], strides = [1, 1]} : vector<5x32xf32> to vector<5x8xf32>
    %374 = vector.extract_strided_slice %351 {offsets = [0, 8], sizes = [5, 8], strides = [1, 1]} : vector<5x32xf32> to vector<5x8xf32>
    %cst_183 = arith.constant dense<0.000000e+00> : vector<5x5xf32>
    %375 = tpu.matmul %372, %373, %cst_183 {dimension_numbers = #tpu.dot_dimension_numbers<[1], [1], [0], [0], [0, 0, 1, 0], [], []>} : vector<5x8xf32>, vector<5x8xf32>, vector<5x5xf32> -> vector<5x5xf32>
    %cst_184 = arith.constant 0.353553385 : f32
    %376 = vector.broadcast %cst_184 : f32 to vector<5x5xf32>
    %377 = arith.mulf %375, %376 : vector<5x5xf32>
    %cst_185 = arith.constant dense<0xFF800000> : vector<5xf32>
    %378 = vector.multi_reduction <maximumf>, %377, %cst_185 [1] : vector<5x5xf32> to vector<5xf32>
    %cst_186 = arith.constant 0xFF800000 : f32
    %379 = vector.broadcast %cst_186 : f32 to vector<5xf32>
    %380 = arith.maximumf %379, %378 : vector<5xf32>
    %381 = vector.shape_cast %380 : vector<5xf32> to vector<5x1xf32>
    %382 = vector.broadcast %381 : vector<5x1xf32> to vector<5x5xf32>
    %383 = arith.subf %377, %382 : vector<5x5xf32>
    %384 = math.exp %383 : vector<5x5xf32>
    %cst_187 = arith.constant dense<0.000000e+00> : vector<5xf32>
    %385 = vector.multi_reduction <add>, %384, %cst_187 [1] : vector<5x5xf32> to vector<5xf32>
    %386 = vector.shape_cast %385 : vector<5xf32> to vector<5x1xf32>
    %387 = vector.broadcast %386 : vector<5x1xf32> to vector<5x5xf32>
    %388 = arith.divf %384, %387 : vector<5x5xf32>
    %cst_188 = arith.constant dense<0.000000e+00> : vector<5x8xf32>
    %389 = tpu.matmul %388, %374, %cst_188 {dimension_numbers = #tpu.dot_dimension_numbers<[1], [0], [0], [1], [0, 0, 1, 1], [], []>} : vector<5x5xf32>, vector<5x8xf32>, vector<5x8xf32> -> vector<5x8xf32>
    %390 = vector.extract_strided_slice %348 {offsets = [8, 0], sizes = [8, 32], strides = [1, 1]} : vector<32x32xf32> to vector<8x32xf32>
    %cst_189 = arith.constant dense<0.000000e+00> : vector<5x32xf32>
    %391 = tpu.matmul %389, %390, %cst_189 {dimension_numbers = #tpu.dot_dimension_numbers<[1], [0], [0], [1], [0, 0, 1, 1], [], []>} : vector<5x8xf32>, vector<8x32xf32>, vector<5x32xf32> -> vector<5x32xf32>
    %392 = arith.addf %371, %391 : vector<5x32xf32>
    %393 = vector.extract_strided_slice %349 {offsets = [0, 16], sizes = [5, 8], strides = [1, 1]} : vector<5x32xf32> to vector<5x8xf32>
    %394 = vector.extract_strided_slice %350 {offsets = [0, 16], sizes = [5, 8], strides = [1, 1]} : vector<5x32xf32> to vector<5x8xf32>
    %395 = vector.extract_strided_slice %351 {offsets = [0, 16], sizes = [5, 8], strides = [1, 1]} : vector<5x32xf32> to vector<5x8xf32>
    %cst_190 = arith.constant dense<0.000000e+00> : vector<5x5xf32>
    %396 = tpu.matmul %393, %394, %cst_190 {dimension_numbers = #tpu.dot_dimension_numbers<[1], [1], [0], [0], [0, 0, 1, 0], [], []>} : vector<5x8xf32>, vector<5x8xf32>, vector<5x5xf32> -> vector<5x5xf32>
    %cst_191 = arith.constant 0.353553385 : f32
    %397 = vector.broadcast %cst_191 : f32 to vector<5x5xf32>
    %398 = arith.mulf %396, %397 : vector<5x5xf32>
    %cst_192 = arith.constant dense<0xFF800000> : vector<5xf32>
    %399 = vector.multi_reduction <maximumf>, %398, %cst_192 [1] : vector<5x5xf32> to vector<5xf32>
    %cst_193 = arith.constant 0xFF800000 : f32
    %400 = vector.broadcast %cst_193 : f32 to vector<5xf32>
    %401 = arith.maximumf %400, %399 : vector<5xf32>
    %402 = vector.shape_cast %401 : vector<5xf32> to vector<5x1xf32>
    %403 = vector.broadcast %402 : vector<5x1xf32> to vector<5x5xf32>
    %404 = arith.subf %398, %403 : vector<5x5xf32>
    %405 = math.exp %404 : vector<5x5xf32>
    %cst_194 = arith.constant dense<0.000000e+00> : vector<5xf32>
    %406 = vector.multi_reduction <add>, %405, %cst_194 [1] : vector<5x5xf32> to vector<5xf32>
    %407 = vector.shape_cast %406 : vector<5xf32> to vector<5x1xf32>
    %408 = vector.broadcast %407 : vector<5x1xf32> to vector<5x5xf32>
    %409 = arith.divf %405, %408 : vector<5x5xf32>
    %cst_195 = arith.constant dense<0.000000e+00> : vector<5x8xf32>
    %410 = tpu.matmul %409, %395, %cst_195 {dimension_numbers = #tpu.dot_dimension_numbers<[1], [0], [0], [1], [0, 0, 1, 1], [], []>} : vector<5x5xf32>, vector<5x8xf32>, vector<5x8xf32> -> vector<5x8xf32>
    %411 = vector.extract_strided_slice %348 {offsets = [16, 0], sizes = [8, 32], strides = [1, 1]} : vector<32x32xf32> to vector<8x32xf32>
    %cst_196 = arith.constant dense<0.000000e+00> : vector<5x32xf32>
    %412 = tpu.matmul %410, %411, %cst_196 {dimension_numbers = #tpu.dot_dimension_numbers<[1], [0], [0], [1], [0, 0, 1, 1], [], []>} : vector<5x8xf32>, vector<8x32xf32>, vector<5x32xf32> -> vector<5x32xf32>
    %413 = arith.addf %392, %412 : vector<5x32xf32>
    %414 = vector.extract_strided_slice %349 {offsets = [0, 24], sizes = [5, 8], strides = [1, 1]} : vector<5x32xf32> to vector<5x8xf32>
    %415 = vector.extract_strided_slice %350 {offsets = [0, 24], sizes = [5, 8], strides = [1, 1]} : vector<5x32xf32> to vector<5x8xf32>
    %416 = vector.extract_strided_slice %351 {offsets = [0, 24], sizes = [5, 8], strides = [1, 1]} : vector<5x32xf32> to vector<5x8xf32>
    %cst_197 = arith.constant dense<0.000000e+00> : vector<5x5xf32>
    %417 = tpu.matmul %414, %415, %cst_197 {dimension_numbers = #tpu.dot_dimension_numbers<[1], [1], [0], [0], [0, 0, 1, 0], [], []>} : vector<5x8xf32>, vector<5x8xf32>, vector<5x5xf32> -> vector<5x5xf32>
    %cst_198 = arith.constant 0.353553385 : f32
    %418 = vector.broadcast %cst_198 : f32 to vector<5x5xf32>
    %419 = arith.mulf %417, %418 : vector<5x5xf32>
    %cst_199 = arith.constant dense<0xFF800000> : vector<5xf32>
    %420 = vector.multi_reduction <maximumf>, %419, %cst_199 [1] : vector<5x5xf32> to vector<5xf32>
    %cst_200 = arith.constant 0xFF800000 : f32
    %421 = vector.broadcast %cst_200 : f32 to vector<5xf32>
    %422 = arith.maximumf %421, %420 : vector<5xf32>
    %423 = vector.shape_cast %422 : vector<5xf32> to vector<5x1xf32>
    %424 = vector.broadcast %423 : vector<5x1xf32> to vector<5x5xf32>
    %425 = arith.subf %419, %424 : vector<5x5xf32>
    %426 = math.exp %425 : vector<5x5xf32>
    %cst_201 = arith.constant dense<0.000000e+00> : vector<5xf32>
    %427 = vector.multi_reduction <add>, %426, %cst_201 [1] : vector<5x5xf32> to vector<5xf32>
    %428 = vector.shape_cast %427 : vector<5xf32> to vector<5x1xf32>
    %429 = vector.broadcast %428 : vector<5x1xf32> to vector<5x5xf32>
    %430 = arith.divf %426, %429 : vector<5x5xf32>
    %cst_202 = arith.constant dense<0.000000e+00> : vector<5x8xf32>
    %431 = tpu.matmul %430, %416, %cst_202 {dimension_numbers = #tpu.dot_dimension_numbers<[1], [0], [0], [1], [0, 0, 1, 1], [], []>} : vector<5x5xf32>, vector<5x8xf32>, vector<5x8xf32> -> vector<5x8xf32>
    %432 = vector.extract_strided_slice %348 {offsets = [24, 0], sizes = [8, 32], strides = [1, 1]} : vector<32x32xf32> to vector<8x32xf32>
    %cst_203 = arith.constant dense<0.000000e+00> : vector<5x32xf32>
    %433 = tpu.matmul %431, %432, %cst_203 {dimension_numbers = #tpu.dot_dimension_numbers<[1], [0], [0], [1], [0, 0, 1, 1], [], []>} : vector<5x8xf32>, vector<8x32xf32>, vector<5x32xf32> -> vector<5x32xf32>
    %434 = arith.addf %413, %433 : vector<5x32xf32>
    %435 = vector.extract_strided_slice %332 {offsets = [5, 0], sizes = [5, 32], strides = [1, 1]} : vector<10x32xf32> to vector<5x32xf32>
    %436 = vector.extract_strided_slice %339 {offsets = [5, 0], sizes = [5, 32], strides = [1, 1]} : vector<10x32xf32> to vector<5x32xf32>
    %437 = vector.extract_strided_slice %346 {offsets = [5, 0], sizes = [5, 32], strides = [1, 1]} : vector<10x32xf32> to vector<5x32xf32>
    %438 = vector.extract_strided_slice %435 {offsets = [0, 0], sizes = [5, 8], strides = [1, 1]} : vector<5x32xf32> to vector<5x8xf32>
    %439 = vector.extract_strided_slice %436 {offsets = [0, 0], sizes = [5, 8], strides = [1, 1]} : vector<5x32xf32> to vector<5x8xf32>
    %440 = vector.extract_strided_slice %437 {offsets = [0, 0], sizes = [5, 8], strides = [1, 1]} : vector<5x32xf32> to vector<5x8xf32>
    %cst_204 = arith.constant dense<0.000000e+00> : vector<5x5xf32>
    %441 = tpu.matmul %438, %439, %cst_204 {dimension_numbers = #tpu.dot_dimension_numbers<[1], [1], [0], [0], [0, 0, 1, 0], [], []>} : vector<5x8xf32>, vector<5x8xf32>, vector<5x5xf32> -> vector<5x5xf32>
    %cst_205 = arith.constant 0.353553385 : f32
    %442 = vector.broadcast %cst_205 : f32 to vector<5x5xf32>
    %443 = arith.mulf %441, %442 : vector<5x5xf32>
    %cst_206 = arith.constant dense<0xFF800000> : vector<5xf32>
    %444 = vector.multi_reduction <maximumf>, %443, %cst_206 [1] : vector<5x5xf32> to vector<5xf32>
    %cst_207 = arith.constant 0xFF800000 : f32
    %445 = vector.broadcast %cst_207 : f32 to vector<5xf32>
    %446 = arith.maximumf %445, %444 : vector<5xf32>
    %447 = vector.shape_cast %446 : vector<5xf32> to vector<5x1xf32>
    %448 = vector.broadcast %447 : vector<5x1xf32> to vector<5x5xf32>
    %449 = arith.subf %443, %448 : vector<5x5xf32>
    %450 = math.exp %449 : vector<5x5xf32>
    %cst_208 = arith.constant dense<0.000000e+00> : vector<5xf32>
    %451 = vector.multi_reduction <add>, %450, %cst_208 [1] : vector<5x5xf32> to vector<5xf32>
    %452 = vector.shape_cast %451 : vector<5xf32> to vector<5x1xf32>
    %453 = vector.broadcast %452 : vector<5x1xf32> to vector<5x5xf32>
    %454 = arith.divf %450, %453 : vector<5x5xf32>
    %cst_209 = arith.constant dense<0.000000e+00> : vector<5x8xf32>
    %455 = tpu.matmul %454, %440, %cst_209 {dimension_numbers = #tpu.dot_dimension_numbers<[1], [0], [0], [1], [0, 0, 1, 1], [], []>} : vector<5x5xf32>, vector<5x8xf32>, vector<5x8xf32> -> vector<5x8xf32>
    %456 = vector.extract_strided_slice %348 {offsets = [0, 0], sizes = [8, 32], strides = [1, 1]} : vector<32x32xf32> to vector<8x32xf32>
    %cst_210 = arith.constant dense<0.000000e+00> : vector<5x32xf32>
    %457 = tpu.matmul %455, %456, %cst_210 {dimension_numbers = #tpu.dot_dimension_numbers<[1], [0], [0], [1], [0, 0, 1, 1], [], []>} : vector<5x8xf32>, vector<8x32xf32>, vector<5x32xf32> -> vector<5x32xf32>
    %458 = vector.extract_strided_slice %435 {offsets = [0, 8], sizes = [5, 8], strides = [1, 1]} : vector<5x32xf32> to vector<5x8xf32>
    %459 = vector.extract_strided_slice %436 {offsets = [0, 8], sizes = [5, 8], strides = [1, 1]} : vector<5x32xf32> to vector<5x8xf32>
    %460 = vector.extract_strided_slice %437 {offsets = [0, 8], sizes = [5, 8], strides = [1, 1]} : vector<5x32xf32> to vector<5x8xf32>
    %cst_211 = arith.constant dense<0.000000e+00> : vector<5x5xf32>
    %461 = tpu.matmul %458, %459, %cst_211 {dimension_numbers = #tpu.dot_dimension_numbers<[1], [1], [0], [0], [0, 0, 1, 0], [], []>} : vector<5x8xf32>, vector<5x8xf32>, vector<5x5xf32> -> vector<5x5xf32>
    %cst_212 = arith.constant 0.353553385 : f32
    %462 = vector.broadcast %cst_212 : f32 to vector<5x5xf32>
    %463 = arith.mulf %461, %462 : vector<5x5xf32>
    %cst_213 = arith.constant dense<0xFF800000> : vector<5xf32>
    %464 = vector.multi_reduction <maximumf>, %463, %cst_213 [1] : vector<5x5xf32> to vector<5xf32>
    %cst_214 = arith.constant 0xFF800000 : f32
    %465 = vector.broadcast %cst_214 : f32 to vector<5xf32>
    %466 = arith.maximumf %465, %464 : vector<5xf32>
    %467 = vector.shape_cast %466 : vector<5xf32> to vector<5x1xf32>
    %468 = vector.broadcast %467 : vector<5x1xf32> to vector<5x5xf32>
    %469 = arith.subf %463, %468 : vector<5x5xf32>
    %470 = math.exp %469 : vector<5x5xf32>
    %cst_215 = arith.constant dense<0.000000e+00> : vector<5xf32>
    %471 = vector.multi_reduction <add>, %470, %cst_215 [1] : vector<5x5xf32> to vector<5xf32>
    %472 = vector.shape_cast %471 : vector<5xf32> to vector<5x1xf32>
    %473 = vector.broadcast %472 : vector<5x1xf32> to vector<5x5xf32>
    %474 = arith.divf %470, %473 : vector<5x5xf32>
    %cst_216 = arith.constant dense<0.000000e+00> : vector<5x8xf32>
    %475 = tpu.matmul %474, %460, %cst_216 {dimension_numbers = #tpu.dot_dimension_numbers<[1], [0], [0], [1], [0, 0, 1, 1], [], []>} : vector<5x5xf32>, vector<5x8xf32>, vector<5x8xf32> -> vector<5x8xf32>
    %476 = vector.extract_strided_slice %348 {offsets = [8, 0], sizes = [8, 32], strides = [1, 1]} : vector<32x32xf32> to vector<8x32xf32>
    %cst_217 = arith.constant dense<0.000000e+00> : vector<5x32xf32>
    %477 = tpu.matmul %475, %476, %cst_217 {dimension_numbers = #tpu.dot_dimension_numbers<[1], [0], [0], [1], [0, 0, 1, 1], [], []>} : vector<5x8xf32>, vector<8x32xf32>, vector<5x32xf32> -> vector<5x32xf32>
    %478 = arith.addf %457, %477 : vector<5x32xf32>
    %479 = vector.extract_strided_slice %435 {offsets = [0, 16], sizes = [5, 8], strides = [1, 1]} : vector<5x32xf32> to vector<5x8xf32>
    %480 = vector.extract_strided_slice %436 {offsets = [0, 16], sizes = [5, 8], strides = [1, 1]} : vector<5x32xf32> to vector<5x8xf32>
    %481 = vector.extract_strided_slice %437 {offsets = [0, 16], sizes = [5, 8], strides = [1, 1]} : vector<5x32xf32> to vector<5x8xf32>
    %cst_218 = arith.constant dense<0.000000e+00> : vector<5x5xf32>
    %482 = tpu.matmul %479, %480, %cst_218 {dimension_numbers = #tpu.dot_dimension_numbers<[1], [1], [0], [0], [0, 0, 1, 0], [], []>} : vector<5x8xf32>, vector<5x8xf32>, vector<5x5xf32> -> vector<5x5xf32>
    %cst_219 = arith.constant 0.353553385 : f32
    %483 = vector.broadcast %cst_219 : f32 to vector<5x5xf32>
    %484 = arith.mulf %482, %483 : vector<5x5xf32>
    %cst_220 = arith.constant dense<0xFF800000> : vector<5xf32>
    %485 = vector.multi_reduction <maximumf>, %484, %cst_220 [1] : vector<5x5xf32> to vector<5xf32>
    %cst_221 = arith.constant 0xFF800000 : f32
    %486 = vector.broadcast %cst_221 : f32 to vector<5xf32>
    %487 = arith.maximumf %486, %485 : vector<5xf32>
    %488 = vector.shape_cast %487 : vector<5xf32> to vector<5x1xf32>
    %489 = vector.broadcast %488 : vector<5x1xf32> to vector<5x5xf32>
    %490 = arith.subf %484, %489 : vector<5x5xf32>
    %491 = math.exp %490 : vector<5x5xf32>
    %cst_222 = arith.constant dense<0.000000e+00> : vector<5xf32>
    %492 = vector.multi_reduction <add>, %491, %cst_222 [1] : vector<5x5xf32> to vector<5xf32>
    %493 = vector.shape_cast %492 : vector<5xf32> to vector<5x1xf32>
    %494 = vector.broadcast %493 : vector<5x1xf32> to vector<5x5xf32>
    %495 = arith.divf %491, %494 : vector<5x5xf32>
    %cst_223 = arith.constant dense<0.000000e+00> : vector<5x8xf32>
    %496 = tpu.matmul %495, %481, %cst_223 {dimension_numbers = #tpu.dot_dimension_numbers<[1], [0], [0], [1], [0, 0, 1, 1], [], []>} : vector<5x5xf32>, vector<5x8xf32>, vector<5x8xf32> -> vector<5x8xf32>
    %497 = vector.extract_strided_slice %348 {offsets = [16, 0], sizes = [8, 32], strides = [1, 1]} : vector<32x32xf32> to vector<8x32xf32>
    %cst_224 = arith.constant dense<0.000000e+00> : vector<5x32xf32>
    %498 = tpu.matmul %496, %497, %cst_224 {dimension_numbers = #tpu.dot_dimension_numbers<[1], [0], [0], [1], [0, 0, 1, 1], [], []>} : vector<5x8xf32>, vector<8x32xf32>, vector<5x32xf32> -> vector<5x32xf32>
    %499 = arith.addf %478, %498 : vector<5x32xf32>
    %500 = vector.extract_strided_slice %435 {offsets = [0, 24], sizes = [5, 8], strides = [1, 1]} : vector<5x32xf32> to vector<5x8xf32>
    %501 = vector.extract_strided_slice %436 {offsets = [0, 24], sizes = [5, 8], strides = [1, 1]} : vector<5x32xf32> to vector<5x8xf32>
    %502 = vector.extract_strided_slice %437 {offsets = [0, 24], sizes = [5, 8], strides = [1, 1]} : vector<5x32xf32> to vector<5x8xf32>
    %cst_225 = arith.constant dense<0.000000e+00> : vector<5x5xf32>
    %503 = tpu.matmul %500, %501, %cst_225 {dimension_numbers = #tpu.dot_dimension_numbers<[1], [1], [0], [0], [0, 0, 1, 0], [], []>} : vector<5x8xf32>, vector<5x8xf32>, vector<5x5xf32> -> vector<5x5xf32>
    %cst_226 = arith.constant 0.353553385 : f32
    %504 = vector.broadcast %cst_226 : f32 to vector<5x5xf32>
    %505 = arith.mulf %503, %504 : vector<5x5xf32>
    %cst_227 = arith.constant dense<0xFF800000> : vector<5xf32>
    %506 = vector.multi_reduction <maximumf>, %505, %cst_227 [1] : vector<5x5xf32> to vector<5xf32>
    %cst_228 = arith.constant 0xFF800000 : f32
    %507 = vector.broadcast %cst_228 : f32 to vector<5xf32>
    %508 = arith.maximumf %507, %506 : vector<5xf32>
    %509 = vector.shape_cast %508 : vector<5xf32> to vector<5x1xf32>
    %510 = vector.broadcast %509 : vector<5x1xf32> to vector<5x5xf32>
    %511 = arith.subf %505, %510 : vector<5x5xf32>
    %512 = math.exp %511 : vector<5x5xf32>
    %cst_229 = arith.constant dense<0.000000e+00> : vector<5xf32>
    %513 = vector.multi_reduction <add>, %512, %cst_229 [1] : vector<5x5xf32> to vector<5xf32>
    %514 = vector.shape_cast %513 : vector<5xf32> to vector<5x1xf32>
    %515 = vector.broadcast %514 : vector<5x1xf32> to vector<5x5xf32>
    %516 = arith.divf %512, %515 : vector<5x5xf32>
    %cst_230 = arith.constant dense<0.000000e+00> : vector<5x8xf32>
    %517 = tpu.matmul %516, %502, %cst_230 {dimension_numbers = #tpu.dot_dimension_numbers<[1], [0], [0], [1], [0, 0, 1, 1], [], []>} : vector<5x5xf32>, vector<5x8xf32>, vector<5x8xf32> -> vector<5x8xf32>
    %518 = vector.extract_strided_slice %348 {offsets = [24, 0], sizes = [8, 32], strides = [1, 1]} : vector<32x32xf32> to vector<8x32xf32>
    %cst_231 = arith.constant dense<0.000000e+00> : vector<5x32xf32>
    %519 = tpu.matmul %517, %518, %cst_231 {dimension_numbers = #tpu.dot_dimension_numbers<[1], [0], [0], [1], [0, 0, 1, 1], [], []>} : vector<5x8xf32>, vector<8x32xf32>, vector<5x32xf32> -> vector<5x32xf32>
    %520 = arith.addf %499, %519 : vector<5x32xf32>
    %521 = tpu.concatenate %434, %520 in 0 : vector<5x32xf32>, vector<5x32xf32> -> vector<10x32xf32>
    %c1_232 = arith.constant 1 : index
    %c0_233 = arith.constant 0 : index
    %c0_234 = arith.constant 0 : index
    %522 = vector.load %arg14[%c1_232, %c0_233, %c0_234] : memref<2x1x32xf32, #tpu.memory_space<vmem>>, vector<1x1x32xf32>
    %523 = vector.shape_cast %522 : vector<1x1x32xf32> to vector<1x32xf32>
    %524 = vector.broadcast %523 : vector<1x32xf32> to vector<10x32xf32>
    %525 = arith.addf %521, %524 : vector<10x32xf32>
    %526 = arith.addf %299, %525 : vector<10x32xf32>
    %c1_235 = arith.constant 1 : index
    %c0_236 = arith.constant 0 : index
    %c0_237 = arith.constant 0 : index
    %527 = vector.load %arg15[%c1_235, %c0_236, %c0_237] : memref<2x1x32xf32, #tpu.memory_space<vmem>>, vector<1x1x32xf32>
    %528 = vector.shape_cast %527 : vector<1x1x32xf32> to vector<1x32xf32>
    %c1_238 = arith.constant 1 : index
    %c0_239 = arith.constant 0 : index
    %c0_240 = arith.constant 0 : index
    %529 = vector.load %arg16[%c1_238, %c0_239, %c0_240] : memref<2x1x32xf32, #tpu.memory_space<vmem>>, vector<1x1x32xf32>
    %530 = vector.shape_cast %529 : vector<1x1x32xf32> to vector<1x32xf32>
    %cst_241 = arith.constant dense<0.000000e+00> : vector<10xf32>
    %531 = vector.multi_reduction <add>, %526, %cst_241 [1] : vector<10x32xf32> to vector<10xf32>
    %532 = vector.shape_cast %531 : vector<10xf32> to vector<10x1xf32>
    %cst_242 = arith.constant 3.200000e+01 : f32
    %533 = vector.broadcast %cst_242 : f32 to vector<10x1xf32>
    %534 = arith.divf %532, %533 : vector<10x1xf32>
    %535 = vector.broadcast %534 : vector<10x1xf32> to vector<10x32xf32>
    %536 = arith.subf %526, %535 : vector<10x32xf32>
    %537 = arith.mulf %536, %536 : vector<10x32xf32>
    %cst_243 = arith.constant dense<0.000000e+00> : vector<10xf32>
    %538 = vector.multi_reduction <add>, %537, %cst_243 [1] : vector<10x32xf32> to vector<10xf32>
    %539 = vector.shape_cast %538 : vector<10xf32> to vector<10x1xf32>
    %cst_244 = arith.constant 3.200000e+01 : f32
    %540 = vector.broadcast %cst_244 : f32 to vector<10x1xf32>
    %541 = arith.divf %539, %540 : vector<10x1xf32>
    %542 = vector.broadcast %534 : vector<10x1xf32> to vector<10x32xf32>
    %543 = arith.subf %526, %542 : vector<10x32xf32>
    %cst_245 = arith.constant 9.99999996E-13 : f32
    %544 = vector.broadcast %cst_245 : f32 to vector<10x1xf32>
    %545 = arith.addf %541, %544 : vector<10x1xf32>
    %546 = math.rsqrt %545 : vector<10x1xf32>
    %547 = vector.broadcast %546 : vector<10x1xf32> to vector<10x32xf32>
    %548 = arith.mulf %543, %547 : vector<10x32xf32>
    %549 = vector.broadcast %528 : vector<1x32xf32> to vector<10x32xf32>
    %550 = arith.mulf %548, %549 : vector<10x32xf32>
    %551 = vector.broadcast %530 : vector<1x32xf32> to vector<10x32xf32>
    %552 = arith.addf %550, %551 : vector<10x32xf32>
    %c1_246 = arith.constant 1 : index
    %c0_247 = arith.constant 0 : index
    %c0_248 = arith.constant 0 : index
    %553 = vector.load %arg17[%c1_246, %c0_247, %c0_248] : memref<2x32x64xf32, #tpu.memory_space<vmem>>, vector<1x32x64xf32>
    %554 = vector.shape_cast %553 : vector<1x32x64xf32> to vector<32x64xf32>
    %cst_249 = arith.constant dense<0.000000e+00> : vector<10x64xf32>
    %555 = tpu.matmul %552, %554, %cst_249 {dimension_numbers = #tpu.dot_dimension_numbers<[1], [0], [0], [1], [0, 0, 1, 1], [], []>} : vector<10x32xf32>, vector<32x64xf32>, vector<10x64xf32> -> vector<10x64xf32>
    %c1_250 = arith.constant 1 : index
    %c0_251 = arith.constant 0 : index
    %c0_252 = arith.constant 0 : index
    %556 = vector.load %arg18[%c1_250, %c0_251, %c0_252] : memref<2x1x64xf32, #tpu.memory_space<vmem>>, vector<1x1x64xf32>
    %557 = vector.shape_cast %556 : vector<1x1x64xf32> to vector<1x64xf32>
    %558 = vector.broadcast %557 : vector<1x64xf32> to vector<10x64xf32>
    %559 = arith.addf %555, %558 : vector<10x64xf32>
    %560 = arith.mulf %559, %559 : vector<10x64xf32>
    %561 = arith.mulf %559, %560 : vector<10x64xf32>
    %cst_253 = arith.constant 4.471500e-02 : f32
    %562 = vector.broadcast %cst_253 : f32 to vector<10x64xf32>
    %563 = arith.mulf %562, %561 : vector<10x64xf32>
    %564 = arith.addf %559, %563 : vector<10x64xf32>
    %cst_254 = arith.constant 0.797884583 : f32
    %565 = vector.broadcast %cst_254 : f32 to vector<10x64xf32>
    %566 = arith.mulf %565, %564 : vector<10x64xf32>
    %567 = math.tanh %566 : vector<10x64xf32>
    %cst_255 = arith.constant 1.000000e+00 : f32
    %568 = vector.broadcast %cst_255 : f32 to vector<10x64xf32>
    %569 = arith.addf %568, %567 : vector<10x64xf32>
    %cst_256 = arith.constant 5.000000e-01 : f32
    %570 = vector.broadcast %cst_256 : f32 to vector<10x64xf32>
    %571 = arith.mulf %570, %569 : vector<10x64xf32>
    %572 = arith.mulf %559, %571 : vector<10x64xf32>
    %c1_257 = arith.constant 1 : index
    %c0_258 = arith.constant 0 : index
    %c0_259 = arith.constant 0 : index
    %573 = vector.load %arg19[%c1_257, %c0_258, %c0_259] : memref<2x64x32xf32, #tpu.memory_space<vmem>>, vector<1x64x32xf32>
    %574 = vector.shape_cast %573 : vector<1x64x32xf32> to vector<64x32xf32>
    %cst_260 = arith.constant dense<0.000000e+00> : vector<10x32xf32>
    %575 = tpu.matmul %572, %574, %cst_260 {dimension_numbers = #tpu.dot_dimension_numbers<[1], [0], [0], [1], [0, 0, 1, 1], [], []>} : vector<10x64xf32>, vector<64x32xf32>, vector<10x32xf32> -> vector<10x32xf32>
    %576 = arith.addf %526, %575 : vector<10x32xf32>
    %c1_261 = arith.constant 1 : index
    %c0_262 = arith.constant 0 : index
    %c0_263 = arith.constant 0 : index
    %577 = vector.load %arg20[%c1_261, %c0_262, %c0_263] : memref<2x1x32xf32, #tpu.memory_space<vmem>>, vector<1x1x32xf32>
    %578 = vector.shape_cast %577 : vector<1x1x32xf32> to vector<1x32xf32>
    %579 = vector.broadcast %578 : vector<1x32xf32> to vector<10x32xf32>
    %580 = arith.addf %576, %579 : vector<10x32xf32>
    %581 = vector.extract_strided_slice %580 {offsets = [0, 0], sizes = [1, 32], strides = [1, 1]} : vector<10x32xf32> to vector<1x32xf32>
    %582 = vector.extract_strided_slice %580 {offsets = [5, 0], sizes = [1, 32], strides = [1, 1]} : vector<10x32xf32> to vector<1x32xf32>
    %583 = tpu.concatenate %581, %582 in 0 : vector<1x32xf32>, vector<1x32xf32> -> vector<2x32xf32>
    %c0_264 = arith.constant 0 : index
    %c0_265 = arith.constant 0 : index
    %584 = vector.load %arg21[%c0_264, %c0_265] : memref<1x32xf32, #tpu.memory_space<vmem>>, vector<1x32xf32>
    %c0_266 = arith.constant 0 : index
    %c0_267 = arith.constant 0 : index
    %585 = vector.load %arg22[%c0_266, %c0_267] : memref<1x32xf32, #tpu.memory_space<vmem>>, vector<1x32xf32>
    %cst_268 = arith.constant dense<0.000000e+00> : vector<2xf32>
    %586 = vector.multi_reduction <add>, %583, %cst_268 [1] : vector<2x32xf32> to vector<2xf32>
    %587 = vector.shape_cast %586 : vector<2xf32> to vector<2x1xf32>
    %cst_269 = arith.constant 3.200000e+01 : f32
    %588 = vector.broadcast %cst_269 : f32 to vector<2x1xf32>
    %589 = arith.divf %587, %588 : vector<2x1xf32>
    %590 = vector.broadcast %589 : vector<2x1xf32> to vector<2x32xf32>
    %591 = arith.subf %583, %590 : vector<2x32xf32>
    %592 = arith.mulf %591, %591 : vector<2x32xf32>
    %cst_270 = arith.constant dense<0.000000e+00> : vector<2xf32>
    %593 = vector.multi_reduction <add>, %592, %cst_270 [1] : vector<2x32xf32> to vector<2xf32>
    %594 = vector.shape_cast %593 : vector<2xf32> to vector<2x1xf32>
    %cst_271 = arith.constant 3.200000e+01 : f32
    %595 = vector.broadcast %cst_271 : f32 to vector<2x1xf32>
    %596 = arith.divf %594, %595 : vector<2x1xf32>
    %597 = vector.broadcast %589 : vector<2x1xf32> to vector<2x32xf32>
    %598 = arith.subf %583, %597 : vector<2x32xf32>
    %cst_272 = arith.constant 9.99999996E-13 : f32
    %599 = vector.broadcast %cst_272 : f32 to vector<2x1xf32>
    %600 = arith.addf %596, %599 : vector<2x1xf32>
    %601 = math.rsqrt %600 : vector<2x1xf32>
    %602 = vector.broadcast %601 : vector<2x1xf32> to vector<2x32xf32>
    %603 = arith.mulf %598, %602 : vector<2x32xf32>
    %604 = vector.broadcast %584 : vector<1x32xf32> to vector<2x32xf32>
    %605 = arith.mulf %603, %604 : vector<2x32xf32>
    %606 = vector.broadcast %585 : vector<1x32xf32> to vector<2x32xf32>
    %607 = arith.addf %605, %606 : vector<2x32xf32>
    %c0_273 = arith.constant 0 : index
    %c0_274 = arith.constant 0 : index
    %608 = vector.load %arg23[%c0_273, %c0_274] : memref<32x256xf32, #tpu.memory_space<vmem>>, vector<32x256xf32>
    %cst_275 = arith.constant dense<0.000000e+00> : vector<2x256xf32>
    %609 = tpu.matmul %607, %608, %cst_275 {dimension_numbers = #tpu.dot_dimension_numbers<[1], [0], [0], [1], [0, 0, 1, 1], [], []>} : vector<2x32xf32>, vector<32x256xf32>, vector<2x256xf32> -> vector<2x256xf32>
    %c0_276 = arith.constant 0 : index
    %c0_277 = arith.constant 0 : index
    %610 = vector.load %arg24[%c0_276, %c0_277] : memref<1x256xf32, #tpu.memory_space<vmem>>, vector<1x256xf32>
    %611 = vector.broadcast %610 : vector<1x256xf32> to vector<2x256xf32>
    %612 = arith.addf %609, %611 : vector<2x256xf32>
    %c0_278 = arith.constant 0 : index
    %c0_279 = arith.constant 0 : index
    %613 = vector.load %arg25[%c0_278, %c0_279] : memref<2x256xf32, #tpu.memory_space<vmem>>, vector<2x256xf32>
    tpu.vector_store %arg25[%c0_278, %c0_279], %612 {strides = array<i32>} : memref<2x256xf32, #tpu.memory_space<vmem>>, vector<2x256xf32>,
    return
  }
}

</mosaic_0001>

<llo_original>
// kernel: fine_tuned_vit.1
$region0: #{fine_tuned_vit.1}
  #allocation0 [shape = 'u32[]', space=smem, size = 0x4, offset = 0x4, fixed_abs, tag = 'smem constant byte address 0x4 - core index']
  #allocation1 [shape = 'u32[144,128]{1,0:T(1,128)}', space=vmem, size = 0x12000, scoped, tag = 'internal scratch']
  #allocation2 [shape = 'f32[10,32]{1,0:T(8,128)}', space=vmem, size = 0x2000, scoped, tag = 'scratch operand']
  %s0 = inlined_call_operand.vmem [shape: f32[8,192], index: 0, kind: input, shape index: {}]
  %s1 = inlined_call_operand.vmem [shape: f32[192,32], index: 1, kind: input, shape index: {}]
  %s2 = inlined_call_operand.vmem [shape: f32[1,32], index: 2, kind: input, shape index: {}]
  %s3 = inlined_call_operand.vmem [shape: f32[1,32], index: 3, kind: input, shape index: {}]
  %s4 = inlined_call_operand.vmem [shape: f32[5,32], index: 4, kind: input, shape index: {}]
  %s5 = inlined_call_operand.vmem [shape: f32[2,1,32], index: 5, kind: input, shape index: {}]
  %s6 = inlined_call_operand.vmem [shape: f32[2,1,32], index: 6, kind: input, shape index: {}]
  %s7 = inlined_call_operand.vmem [shape: f32[2,32,32], index: 7, kind: input, shape index: {}]
  %s8 = inlined_call_operand.vmem [shape: f32[2,1,32], index: 8, kind: input, shape index: {}]
  %s9 = inlined_call_operand.vmem [shape: f32[2,32,32], index: 9, kind: input, shape index: {}]
  %s10 = inlined_call_operand.vmem [shape: f32[2,1,32], index: 10, kind: input, shape index: {}]
  %s11 = inlined_call_operand.vmem [shape: f32[2,32,32], index: 11, kind: input, shape index: {}]
  %s12 = inlined_call_operand.vmem [shape: f32[2,1,32], index: 12, kind: input, shape index: {}]
  %s13 = inlined_call_operand.vmem [shape: f32[2,32,32], index: 13, kind: input, shape index: {}]
  %s14 = inlined_call_operand.vmem [shape: f32[2,1,32], index: 14, kind: input, shape index: {}]
  %s15 = inlined_call_operand.vmem [shape: f32[2,1,32], index: 15, kind: input, shape index: {}]
  %s16 = inlined_call_operand.vmem [shape: f32[2,1,32], index: 16, kind: input, shape index: {}]
  %s17 = inlined_call_operand.vmem [shape: f32[2,32,64], index: 17, kind: input, shape index: {}]
  %s18 = inlined_call_operand.vmem [shape: f32[2,1,64], index: 18, kind: input, shape index: {}]
  %s19 = inlined_call_operand.vmem [shape: f32[2,64,32], index: 19, kind: input, shape index: {}]
  %s20 = inlined_call_operand.vmem [shape: f32[2,1,32], index: 20, kind: input, shape index: {}]
  %s21 = inlined_call_operand.vmem [shape: f32[1,32], index: 21, kind: input, shape index: {}]
  %s22 = inlined_call_operand.vmem [shape: f32[1,32], index: 22, kind: input, shape index: {}]
  %s23 = inlined_call_operand.vmem [shape: f32[32,256], index: 23, kind: input, shape index: {}]
  %s24 = inlined_call_operand.vmem [shape: f32[1,256], index: 24, kind: input, shape index: {}]
  %s25 = inlined_call_operand.hbm [shape: f32[2,256], index: 25, kind: output, shape index: {}]
  %s26 = sld [smem:[#allocation0]]
  $region110: #{fine_tuned_vit.1} parent=0
    _
  %s28 = ssub.s32 1, %s26
  %s29 = scalar_select 0, %s28, %s26
  $region1: #{fine_tuned_vit.1} parent=0
    #allocation3 [shape = 'u8[2048]{0}', space=vmem, size = 0x800, scoped, tag = 'output window, operand 0, single buffered']
    #allocation4 [shape = 's32[1]{0}', space=sflag, size = 0x4, scoped, tag = 'scoped memory for fine_tuned_vit.1']
    %30 = vsyncpa [#allocation4], 0
    // Predicated region
    $region2: #{fine_tuned_vit.1} parent=1 // pred_check
      _
    $region3: #{fine_tuned_vit.1} parent=1 // pred_check_branch
      %32 = sbr.rel (0) target = $region5
    $region4: #{fine_tuned_vit.1} parent=1 // pred_region
      _
    $region5: #{fine_tuned_vit.1} parent=1 // pred_fallthru
      _
    // Predicated region
    $region6: #{fine_tuned_vit.1} parent=1 // pred_check
      _
    $region7: #{fine_tuned_vit.1} parent=1 // pred_check_branch
      %34 = sbr.rel (0) target = $region9
    $region8: #{fine_tuned_vit.1} parent=1 // pred_region
      _
    $region9: #{fine_tuned_vit.1} parent=1 // pred_fallthru
      _
    // Predicated region
    $region10: #{fine_tuned_vit.1} parent=1 // pred_check
      _
    $region11: #{fine_tuned_vit.1} parent=1 // pred_check_branch
      %36 = sbr.rel (0) target = $region13
    $region12: #{fine_tuned_vit.1} parent=1 // pred_region
      _
    $region13: #{fine_tuned_vit.1} parent=1 // pred_fallthru
      _
    // Predicated region
    $region14: #{fine_tuned_vit.1} parent=1 // pred_check
      _
    $region15: #{fine_tuned_vit.1} parent=1 // pred_check_branch
      %38 = sbr.rel (0) target = $region17
    $region16: #{fine_tuned_vit.1} parent=1 // pred_region
      _
    $region17: #{fine_tuned_vit.1} parent=1 // pred_fallthru
      _
    // Predicated region
    $region18: #{fine_tuned_vit.1} parent=1 // pred_check
      _
    $region19: #{fine_tuned_vit.1} parent=1 // pred_check_branch
      %40 = sbr.rel (0) target = $region21
    $region20: #{fine_tuned_vit.1} parent=1 // pred_region
      _
    $region21: #{fine_tuned_vit.1} parent=1 // pred_fallthru
      _
    // Predicated region
    $region22: #{fine_tuned_vit.1} parent=1 // pred_check
      _
    $region23: #{fine_tuned_vit.1} parent=1 // pred_check_branch
      %42 = sbr.rel (0) target = $region25
    $region24: #{fine_tuned_vit.1} parent=1 // pred_region
      _
    $region25: #{fine_tuned_vit.1} parent=1 // pred_fallthru
      _
    // Predicated region
    $region26: #{fine_tuned_vit.1} parent=1 // pred_check
      _
    $region27: #{fine_tuned_vit.1} parent=1 // pred_check_branch
      %44 = sbr.rel (0) target = $region29
    $region28: #{fine_tuned_vit.1} parent=1 // pred_region
      _
    $region29: #{fine_tuned_vit.1} parent=1 // pred_fallthru
      _
    // Predicated region
    $region30: #{fine_tuned_vit.1} parent=1 // pred_check
      _
    $region31: #{fine_tuned_vit.1} parent=1 // pred_check_branch
      %46 = sbr.rel (0) target = $region33
    $region32: #{fine_tuned_vit.1} parent=1 // pred_region
      _
    $region33: #{fine_tuned_vit.1} parent=1 // pred_fallthru
      _
    // Predicated region
    $region34: #{fine_tuned_vit.1} parent=1 // pred_check
      _
    $region35: #{fine_tuned_vit.1} parent=1 // pred_check_branch
      %48 = sbr.rel (0) target = $region37
    $region36: #{fine_tuned_vit.1} parent=1 // pred_region
      _
    $region37: #{fine_tuned_vit.1} parent=1 // pred_fallthru
      _
    // Predicated region
    $region38: #{fine_tuned_vit.1} parent=1 // pred_check
      _
    $region39: #{fine_tuned_vit.1} parent=1 // pred_check_branch
      %50 = sbr.rel (0) target = $region41
    $region40: #{fine_tuned_vit.1} parent=1 // pred_region
      _
    $region41: #{fine_tuned_vit.1} parent=1 // pred_fallthru
      _
    // Predicated region
    $region42: #{fine_tuned_vit.1} parent=1 // pred_check
      _
    $region43: #{fine_tuned_vit.1} parent=1 // pred_check_branch
      %52 = sbr.rel (0) target = $region45
    $region44: #{fine_tuned_vit.1} parent=1 // pred_region
      _
    $region45: #{fine_tuned_vit.1} parent=1 // pred_fallthru
      _
    // Predicated region
    $region46: #{fine_tuned_vit.1} parent=1 // pred_check
      _
    $region47: #{fine_tuned_vit.1} parent=1 // pred_check_branch
      %54 = sbr.rel (0) target = $region49
    $region48: #{fine_tuned_vit.1} parent=1 // pred_region
      _
    $region49: #{fine_tuned_vit.1} parent=1 // pred_fallthru
      _
    // Predicated region
    $region50: #{fine_tuned_vit.1} parent=1 // pred_check
      _
    $region51: #{fine_tuned_vit.1} parent=1 // pred_check_branch
      %56 = sbr.rel (0) target = $region53
    $region52: #{fine_tuned_vit.1} parent=1 // pred_region
      _
    $region53: #{fine_tuned_vit.1} parent=1 // pred_fallthru
      _
    // Predicated region
    $region54: #{fine_tuned_vit.1} parent=1 // pred_check
      _
    $region55: #{fine_tuned_vit.1} parent=1 // pred_check_branch
      %58 = sbr.rel (0) target = $region57
    $region56: #{fine_tuned_vit.1} parent=1 // pred_region
      _
    $region57: #{fine_tuned_vit.1} parent=1 // pred_fallthru
      _
    // Predicated region
    $region58: #{fine_tuned_vit.1} parent=1 // pred_check
      _
    $region59: #{fine_tuned_vit.1} parent=1 // pred_check_branch
      %60 = sbr.rel (0) target = $region61
    $region60: #{fine_tuned_vit.1} parent=1 // pred_region
      _
    $region61: #{fine_tuned_vit.1} parent=1 // pred_fallthru
      _
    // Predicated region
    $region62: #{fine_tuned_vit.1} parent=1 // pred_check
      _
    $region63: #{fine_tuned_vit.1} parent=1 // pred_check_branch
      %62 = sbr.rel (0) target = $region65
    $region64: #{fine_tuned_vit.1} parent=1 // pred_region
      _
    $region65: #{fine_tuned_vit.1} parent=1 // pred_fallthru
      _
    // Predicated region
    $region66: #{fine_tuned_vit.1} parent=1 // pred_check
      _
    $region67: #{fine_tuned_vit.1} parent=1 // pred_check_branch
      %64 = sbr.rel (0) target = $region69
    $region68: #{fine_tuned_vit.1} parent=1 // pred_region
      _
    $region69: #{fine_tuned_vit.1} parent=1 // pred_fallthru
      _
    // Predicated region
    $region70: #{fine_tuned_vit.1} parent=1 // pred_check
      _
    $region71: #{fine_tuned_vit.1} parent=1 // pred_check_branch
      %66 = sbr.rel (0) target = $region73
    $region72: #{fine_tuned_vit.1} parent=1 // pred_region
      _
    $region73: #{fine_tuned_vit.1} parent=1 // pred_fallthru
      _
    // Predicated region
    $region74: #{fine_tuned_vit.1} parent=1 // pred_check
      _
    $region75: #{fine_tuned_vit.1} parent=1 // pred_check_branch
      %68 = sbr.rel (0) target = $region77
    $region76: #{fine_tuned_vit.1} parent=1 // pred_region
      _
    $region77: #{fine_tuned_vit.1} parent=1 // pred_fallthru
      _
    // Predicated region
    $region78: #{fine_tuned_vit.1} parent=1 // pred_check
      _
    $region79: #{fine_tuned_vit.1} parent=1 // pred_check_branch
      %70 = sbr.rel (0) target = $region81
    $region80: #{fine_tuned_vit.1} parent=1 // pred_region
      _
    $region81: #{fine_tuned_vit.1} parent=1 // pred_fallthru
      _
    // Predicated region
    $region82: #{fine_tuned_vit.1} parent=1 // pred_check
      _
    $region83: #{fine_tuned_vit.1} parent=1 // pred_check_branch
      %72 = sbr.rel (0) target = $region85
    $region84: #{fine_tuned_vit.1} parent=1 // pred_region
      _
    $region85: #{fine_tuned_vit.1} parent=1 // pred_fallthru
      _
    // Predicated region
    $region86: #{fine_tuned_vit.1} parent=1 // pred_check
      _
    $region87: #{fine_tuned_vit.1} parent=1 // pred_check_branch
      %74 = sbr.rel (0) target = $region89
    $region88: #{fine_tuned_vit.1} parent=1 // pred_region
      _
    $region89: #{fine_tuned_vit.1} parent=1 // pred_fallthru
      _
    // Predicated region
    $region90: #{fine_tuned_vit.1} parent=1 // pred_check
      _
    $region91: #{fine_tuned_vit.1} parent=1 // pred_check_branch
      %76 = sbr.rel (0) target = $region93
    $region92: #{fine_tuned_vit.1} parent=1 // pred_region
      _
    $region93: #{fine_tuned_vit.1} parent=1 // pred_fallthru
      _
    // Predicated region
    $region94: #{fine_tuned_vit.1} parent=1 // pred_check
      _
    $region95: #{fine_tuned_vit.1} parent=1 // pred_check_branch
      %78 = sbr.rel (0) target = $region97
    $region96: #{fine_tuned_vit.1} parent=1 // pred_region
      _
    $region97: #{fine_tuned_vit.1} parent=1 // pred_fallthru
      _
    // Predicated region
    $region98: #{fine_tuned_vit.1} parent=1 // pred_check
      _
    $region99: #{fine_tuned_vit.1} parent=1 // pred_check_branch
      %80 = sbr.rel (0) target = $region101
    $region100: #{fine_tuned_vit.1} parent=1 // pred_region
      _
    $region101: #{fine_tuned_vit.1} parent=1 // pred_fallthru
      _
    %v81 = vld [vmem:[%s0] sm:$0xff]
    %v82 = vld [vmem:[%s0 + $0x8] sm:$0xff]
    %v83 = vld [vmem:[%s1] sm:$0xff]
    %v84 = vld [vmem:[%s1 + $0x8] sm:$0xff]
    %v85 = vld [vmem:[%s1 + $0x10] sm:$0xff]
    %v86 = vld [vmem:[%s1 + $0x18] sm:$0xff]
    %v87 = vld [vmem:[%s1 + $0x20] sm:$0xff]
    %v88 = vld [vmem:[%s1 + $0x28] sm:$0xff]
    %v89 = vld [vmem:[%s1 + $0x30] sm:$0xff]
    %v90 = vld [vmem:[%s1 + $0x38] sm:$0xff]
    %v91 = vld [vmem:[%s1 + $0x40] sm:$0xff]
    %v92 = vld [vmem:[%s1 + $0x48] sm:$0xff]
    %v93 = vld [vmem:[%s1 + $0x50] sm:$0xff]
    %v94 = vld [vmem:[%s1 + $0x58] sm:$0xff]
    %v95 = vld [vmem:[%s1 + $0x60] sm:$0xff]
    %v96 = vld [vmem:[%s1 + $0x68] sm:$0xff]
    %v97 = vld [vmem:[%s1 + $0x70] sm:$0xff]
    %v98 = vld [vmem:[%s1 + $0x78] sm:$0xff]
    %v99 = vld [vmem:[%s1 + $0x80] sm:$0xff]
    %v100 = vld [vmem:[%s1 + $0x88] sm:$0xff]
    %v101 = vld [vmem:[%s1 + $0x90] sm:$0xff]
    %v102 = vld [vmem:[%s1 + $0x98] sm:$0xff]
    %v103 = vld [vmem:[%s1 + $0xa0] sm:$0xff]
    %v104 = vld [vmem:[%s1 + $0xa8] sm:$0xff]
    %v105 = vld [vmem:[%s1 + $0xb0] sm:$0xff]
    %v106 = vld [vmem:[%s1 + $0xb8] sm:$0xff]
    %v107 = vld [vmem:[%s2] sm:$0x1]
    %v109 = vlaneseq
    %v110 = vshrl.u32 %v109, 7
    %v111 = vsub.s32 0, %v110
    %v112 = vrot.slane %v107, %v111
    %vm114 = vcmask 523264
    %v116 = vsel %vm114, %v82, 0
    %118 = vmatprep.subr.mxu0 0.0
    %119 = vmatpush1.msra.mxu0 %v83
    %120 = vmatprep.subr.mxu0 0.0
    %121 = vmatpush1.msra.mxu0 %v84
    %122 = vmatprep.subr.mxu0 0.0
    %123 = vmatpush1.msra.mxu0 %v85
    %124 = vmatprep.subr.mxu0 0.0
    %125 = vmatpush1.msra.mxu0 %v86
    %126 = vmatprep.subr.mxu0 0.0
    %127 = vmatpush1.msra.mxu0 %v87
    %128 = vmatprep.subr.mxu0 0.0
    %129 = vmatpush1.msra.mxu0 %v88
    %130 = vmatprep.subr.mxu0 0.0
    %131 = vmatpush1.msra.mxu0 %v89
    %132 = vmatprep.subr.mxu0 0.0
    %133 = vmatpush1.msra.mxu0 %v90
    %134 = vmatprep.subr.mxu0 0.0
    %135 = vmatpush1.msra.mxu0 %v91
    %136 = vmatprep.subr.mxu0 0.0
    %137 = vmatpush1.msra.mxu0 %v92
    %138 = vmatprep.subr.mxu0 0.0
    %139 = vmatpush1.msra.mxu0 %v93
    %140 = vmatprep.subr.mxu0 0.0
    %141 = vmatpush1.msra.mxu0 %v94
    %142 = vmatprep.subr.mxu0 0.0
    %143 = vmatpush1.msra.mxu0 %v95
    %144 = vmatprep.subr.mxu0 0.0
    %145 = vmatpush1.msra.mxu0 %v96
    %146 = vmatprep.subr.mxu0 0.0
    %147 = vmatpush1.msra.mxu0 %v97
    %148 = vmatprep.subr.mxu0 0.0
    %149 = vmatpush1.msra.mxu0 %v98
    %150 = vmatprep.subr.mxu0 0.0
    %151 = vmatpush1.msra.mxu0 %v99
    %152 = vmatprep.subr.mxu0 0.0
    %153 = vmatpush1.msra.mxu0 %v100
    %154 = vmatprep.subr.mxu0 0.0
    %155 = vmatpush1.msra.mxu0 %v101
    %156 = vmatprep.subr.mxu0 0.0
    %157 = vmatpush1.msra.mxu0 %v102
    %158 = vmatprep.subr.mxu0 0.0
    %159 = vmatpush1.msra.mxu0 %v103
    %160 = vmatprep.subr.mxu0 0.0
    %161 = vmatpush1.msra.mxu0 %v104
    %162 = vmatprep.subr.mxu0 0.0
    %163 = vmatpush1.msra.mxu0 %v105
    %164 = vmatprep.subr.mxu0 0.0
    %165 = vmatpush1.msra.mxu0 %v106
    %166 = vmatprep.subr.mxu0 0.0
    %167 = vmatpush1.msra.mxu0 0.0
    %168 = vmatprep.subr.mxu0 0.0
    %169 = vmatpush1.msra.mxu0 0.0
    %170 = vmatprep.subr.mxu0 0.0
    %171 = vmatpush1.msra.mxu0 0.0
    %172 = vmatprep.subr.mxu0 0.0
    %173 = vmatpush1.msra.mxu0 0.0
    %174 = vmatprep.subr.mxu0 0.0
    %175 = vmatpush1.msra.mxu0 0.0
    %176 = vmatprep.subr.mxu0 0.0
    %177 = vmatpush1.msra.mxu0 0.0
    %178 = vmatprep.subr.mxu0 0.0
    %179 = vmatpush1.msra.mxu0 0.0
    %180 = vmatprep.subr.mxu0 0.0
    %181 = vmatpush1.msra.mxu0 0.0
    %182 = vmatprep.mubr.f32.mxu0 %v116
    %183 = vmatmul.mubr.f32.gmra.mrb[0].mxu0 %v81
    %v184 = vpop.f32.mrb[0].mxu0
    %v185 = vadd.f32 %v112, %v184
    %v186 = vpop.f32.mrb[0].mxu0
    %187 = vdwg.mxu0
    %v188 = vld [vmem:[%s3] sm:$0x1]
    %v189 = vld [vmem:[%s4] sm:$0x1]
    %v190 = vadd.f32 %v188, %v189
    %v191 = vld [vmem:[%s4 + $0x1] sm:$0xf]
    %vm192 = vcmask 253952
    %193 = vst.msk [vmem:[#allocation2] sm:$0x1] %vm192, %v190
    %v194 = vadd.f32 %v185, %v191
    %vm195 = vcmask 257024
    %196 = vst.msk [vmem:[#allocation2 + $0x1] sm:$0xf] %vm195, %v194
    %197 = vst.msk [vmem:[#allocation2 + $0x5] sm:$0x1] %vm192, %v190
    %v199 = vrot.slane %v191, 4
    %v201 = vadd.f32 %v185, %v199
    %vm202 = vcmask 261124
    %203 = vst.msk [vmem:[#allocation2 + $0x2] sm:$0xf0] %vm202, %v201
    %v204 = vld [vmem:[#allocation2] sm:$0xff]
    %v205 = vld [vmem:[#allocation2 + $0x8] sm:$0x3]
    %v206 = vld [vmem:[%s5] sm:$0x1]
    %v207 = vld [vmem:[%s6] sm:$0x1]
    %vm208 = vcmask 261120
    %v209 = vsel %vm208, %v204, 0.0
    %210 = vadd.xlane.f32.xlu0 %v209
    %v211 = vpop.xlane.xlu0 %210
    %vm212 = vcmask 254976
    %v213 = vsel %vm212, %v205, 0.0
    %214 = vadd.xlane.f32.xlu0 %v213
    %v215 = vpop.xlane.xlu0 %214
    %v216 = vrcp.pop 32.0
    %v217 = vmul.f32 %v211, %v216
    %v218 = vmul.f32 %v215, %v216
    %v219 = vsub.f32 %v204, %v217
    %v220 = vsub.f32 %v205, %v218
    %v221 = vmul.f32 %v219, %v219
    %v222 = vmul.f32 %v220, %v220
    %v223 = vsel %vm208, %v221, 0.0
    %224 = vadd.xlane.f32.xlu0 %v223
    %v225 = vpop.xlane.xlu0 %224
    %v226 = vsel %vm212, %v222, 0.0
    %227 = vadd.xlane.f32.xlu0 %v226
    %v228 = vpop.xlane.xlu0 %227
    %v229 = vmul.f32 %v225, %v216
    %v230 = vmul.f32 %v228, %v216
    %v231 = vadd.f32 %v229, 1e-12
    %v232 = vadd.f32 %v230, 1e-12
    %v233 = vrsqrt.pop %v231
    %v234 = vrsqrt.pop %v232
    %v235 = vmul.f32 %v219, %v233
    %v236 = vmul.f32 %v220, %v234
    %v238 = vlaneseq
    %v239 = vshrl.u32 %v238, 7
    %v240 = vsub.s32 0, %v239
    %v241 = vrot.slane %v206, %v240
    %v243 = vmul.f32 %v235, %v241
    %v244 = vmul.f32 %v236, %v241
    %v246 = vlaneseq
    %v247 = vshrl.u32 %v246, 7
    %v248 = vsub.s32 0, %v247
    %v249 = vrot.slane %v207, %v248
    %v251 = vadd.f32 %v243, %v249
    %v252 = vadd.f32 %v244, %v249
    %v253 = vld [vmem:[%s7] sm:$0xff]
    %v254 = vld [vmem:[%s7 + $0x8] sm:$0xff]
    %v255 = vld [vmem:[%s7 + $0x10] sm:$0xff]
    %v256 = vld [vmem:[%s7 + $0x18] sm:$0xff]
    %v257 = vld [vmem:[%s8] sm:$0x1]
    %v259 = vlaneseq
    %v260 = vshrl.u32 %v259, 7
    %v261 = vsub.s32 0, %v260
    %v262 = vrot.slane %v257, %v261
    %v265 = vsel %vm208, %v251, 0
    %v268 = vsel %vm208, %v252, 0
    %270 = vmatprep.subr.mxu0 0.0
    %271 = vmatpush1.msra.mxu0 %v253
    %272 = vmatprep.subr.mxu0 0.0
    %273 = vmatpush1.msra.mxu0 %v254
    %274 = vmatprep.subr.mxu0 0.0
    %275 = vmatpush1.msra.mxu0 %v255
    %276 = vmatprep.subr.mxu0 0.0
    %277 = vmatpush1.msra.mxu0 %v256
    %278 = vmatprep.subr.mxu0 0.0
    %279 = vmatpush1.msra.mxu0 0.0
    %280 = vmatprep.subr.mxu0 0.0
    %281 = vmatpush1.msra.mxu0 0.0
    %282 = vmatprep.subr.mxu0 0.0
    %283 = vmatpush1.msra.mxu0 0.0
    %284 = vmatprep.subr.mxu0 0.0
    %285 = vmatpush1.msra.mxu0 0.0
    %286 = vmatprep.subr.mxu0 0.0
    %287 = vmatpush1.msra.mxu0 0.0
    %288 = vmatprep.subr.mxu0 0.0
    %289 = vmatpush1.msra.mxu0 0.0
    %290 = vmatprep.subr.mxu0 0.0
    %291 = vmatpush1.msra.mxu0 0.0
    %292 = vmatprep.subr.mxu0 0.0
    %293 = vmatpush1.msra.mxu0 0.0
    %294 = vmatprep.subr.mxu0 0.0
    %295 = vmatpush1.msra.mxu0 0.0
    %296 = vmatprep.subr.mxu0 0.0
    %297 = vmatpush1.msra.mxu0 0.0
    %298 = vmatprep.subr.mxu0 0.0
    %299 = vmatpush1.msra.mxu0 0.0
    %300 = vmatprep.subr.mxu0 0.0
    %301 = vmatpush1.msra.mxu0 0.0
    %302 = vmatprep.subr.mxu0 0.0
    %303 = vmatpush1.msra.mxu0 0.0
    %304 = vmatprep.subr.mxu0 0.0
    %305 = vmatpush1.msra.mxu0 0.0
    %306 = vmatprep.subr.mxu0 0.0
    %307 = vmatpush1.msra.mxu0 0.0
    %308 = vmatprep.subr.mxu0 0.0
    %309 = vmatpush1.msra.mxu0 0.0
    %310 = vmatprep.subr.mxu0 0.0
    %311 = vmatpush1.msra.mxu0 0.0
    %312 = vmatprep.subr.mxu0 0.0
    %313 = vmatpush1.msra.mxu0 0.0
    %314 = vmatprep.subr.mxu0 0.0
    %315 = vmatpush1.msra.mxu0 0.0
    %316 = vmatprep.subr.mxu0 0.0
    %317 = vmatpush1.msra.mxu0 0.0
    %318 = vmatprep.subr.mxu0 0.0
    %319 = vmatpush1.msra.mxu0 0.0
    %320 = vmatprep.subr.mxu0 0.0
    %321 = vmatpush1.msra.mxu0 0.0
    %322 = vmatprep.subr.mxu0 0.0
    %323 = vmatpush1.msra.mxu0 0.0
    %324 = vmatprep.subr.mxu0 0.0
    %325 = vmatpush1.msra.mxu0 0.0
    %326 = vmatprep.subr.mxu0 0.0
    %327 = vmatpush1.msra.mxu0 0.0
    %328 = vmatprep.subr.mxu0 0.0
    %329 = vmatpush1.msra.mxu0 0.0
    %330 = vmatprep.subr.mxu0 0.0
    %331 = vmatpush1.msra.mxu0 0.0
    %332 = vmatprep.subr.mxu0 0.0
    %333 = vmatpush1.msra.mxu0 0.0
    %334 = vmatprep.mubr.f32.mxu0 0.0
    %335 = vmatmul.mubr.f32.gmra.mrb[0].mxu0 %v265
    %v336 = vpop.f32.mrb[0].mxu0
    %v337 = vadd.f32 %v262, %v336
    %v338 = vpop.f32.mrb[0].mxu0
    %339 = vmatprep.mubr.f32.mxu0 0.0
    %340 = vmatmul.mubr.f32.gmra.mrb[0].mxu0 %v268
    %v341 = vpop.f32.mrb[0].mxu0
    %v342 = vadd.f32 %v262, %v341
    %v343 = vpop.f32.mrb[0].mxu0
    %344 = vdwg.mxu0
    %v345 = vld [vmem:[%s9] sm:$0xff]
    %v346 = vld [vmem:[%s9 + $0x8] sm:$0xff]
    %v347 = vld [vmem:[%s9 + $0x10] sm:$0xff]
    %v348 = vld [vmem:[%s9 + $0x18] sm:$0xff]
    %v349 = vld [vmem:[%s10] sm:$0x1]
    %v351 = vlaneseq
    %v352 = vshrl.u32 %v351, 7
    %v353 = vsub.s32 0, %v352
    %v354 = vrot.slane %v349, %v353
    %356 = vmatprep.subr.mxu0 0.0
    %357 = vmatpush1.msra.mxu0 %v345
    %358 = vmatprep.subr.mxu0 0.0
    %359 = vmatpush1.msra.mxu0 %v346
    %360 = vmatprep.subr.mxu0 0.0
    %361 = vmatpush1.msra.mxu0 %v347
    %362 = vmatprep.subr.mxu0 0.0
    %363 = vmatpush1.msra.mxu0 %v348
    %364 = vmatprep.subr.mxu0 0.0
    %365 = vmatpush1.msra.mxu0 0.0
    %366 = vmatprep.subr.mxu0 0.0
    %367 = vmatpush1.msra.mxu0 0.0
    %368 = vmatprep.subr.mxu0 0.0
    %369 = vmatpush1.msra.mxu0 0.0
    %370 = vmatprep.subr.mxu0 0.0
    %371 = vmatpush1.msra.mxu0 0.0
    %372 = vmatprep.subr.mxu0 0.0
    %373 = vmatpush1.msra.mxu0 0.0
    %374 = vmatprep.subr.mxu0 0.0
    %375 = vmatpush1.msra.mxu0 0.0
    %376 = vmatprep.subr.mxu0 0.0
    %377 = vmatpush1.msra.mxu0 0.0
    %378 = vmatprep.subr.mxu0 0.0
    %379 = vmatpush1.msra.mxu0 0.0
    %380 = vmatprep.subr.mxu0 0.0
    %381 = vmatpush1.msra.mxu0 0.0
    %382 = vmatprep.subr.mxu0 0.0
    %383 = vmatpush1.msra.mxu0 0.0
    %384 = vmatprep.subr.mxu0 0.0
    %385 = vmatpush1.msra.mxu0 0.0
    %386 = vmatprep.subr.mxu0 0.0
    %387 = vmatpush1.msra.mxu0 0.0
    %388 = vmatprep.subr.mxu0 0.0
    %389 = vmatpush1.msra.mxu0 0.0
    %390 = vmatprep.subr.mxu0 0.0
    %391 = vmatpush1.msra.mxu0 0.0
    %392 = vmatprep.subr.mxu0 0.0
    %393 = vmatpush1.msra.mxu0 0.0
    %394 = vmatprep.subr.mxu0 0.0
    %395 = vmatpush1.msra.mxu0 0.0
    %396 = vmatprep.subr.mxu0 0.0
    %397 = vmatpush1.msra.mxu0 0.0
    %398 = vmatprep.subr.mxu0 0.0
    %399 = vmatpush1.msra.mxu0 0.0
    %400 = vmatprep.subr.mxu0 0.0
    %401 = vmatpush1.msra.mxu0 0.0
    %402 = vmatprep.subr.mxu0 0.0
    %403 = vmatpush1.msra.mxu0 0.0
    %404 = vmatprep.subr.mxu0 0.0
    %405 = vmatpush1.msra.mxu0 0.0
    %406 = vmatprep.subr.mxu0 0.0
    %407 = vmatpush1.msra.mxu0 0.0
    %408 = vmatprep.subr.mxu0 0.0
    %409 = vmatpush1.msra.mxu0 0.0
    %410 = vmatprep.subr.mxu0 0.0
    %411 = vmatpush1.msra.mxu0 0.0
    %412 = vmatprep.subr.mxu0 0.0
    %413 = vmatpush1.msra.mxu0 0.0
    %414 = vmatprep.subr.mxu0 0.0
    %415 = vmatpush1.msra.mxu0 0.0
    %416 = vmatprep.subr.mxu0 0.0
    %417 = vmatpush1.msra.mxu0 0.0
    %418 = vmatprep.subr.mxu0 0.0
    %419 = vmatpush1.msra.mxu0 0.0
    %420 = vmatprep.mubr.f32.mxu0 0.0
    %421 = vmatmul.mubr.f32.gmra.mrb[0].mxu0 %v265
    %v422 = vpop.f32.mrb[0].mxu0
    %v423 = vadd.f32 %v354, %v422
    %v424 = vpop.f32.mrb[0].mxu0
    %425 = vmatprep.mubr.f32.mxu0 0.0
    %426 = vmatmul.mubr.f32.gmra.mrb[0].mxu0 %v268
    %v427 = vpop.f32.mrb[0].mxu0
    %v428 = vadd.f32 %v354, %v427
    %v429 = vpop.f32.mrb[0].mxu0
    %430 = vdwg.mxu0
    %v431 = vld [vmem:[%s11] sm:$0xff]
    %v432 = vld [vmem:[%s11 + $0x8] sm:$0xff]
    %v433 = vld [vmem:[%s11 + $0x10] sm:$0xff]
    %v434 = vld [vmem:[%s11 + $0x18] sm:$0xff]
    %v435 = vld [vmem:[%s12] sm:$0x1]
    %v437 = vlaneseq
    %v438 = vshrl.u32 %v437, 7
    %v439 = vsub.s32 0, %v438
    %v440 = vrot.slane %v435, %v439
    %442 = vmatprep.subr.mxu0 0.0
    %443 = vmatpush1.msra.mxu0 %v431
    %444 = vmatprep.subr.mxu0 0.0
    %445 = vmatpush1.msra.mxu0 %v432
    %446 = vmatprep.subr.mxu0 0.0
    %447 = vmatpush1.msra.mxu0 %v433
    %448 = vmatprep.subr.mxu0 0.0
    %449 = vmatpush1.msra.mxu0 %v434
    %450 = vmatprep.subr.mxu0 0.0
    %451 = vmatpush1.msra.mxu0 0.0
    %452 = vmatprep.subr.mxu0 0.0
    %453 = vmatpush1.msra.mxu0 0.0
    %454 = vmatprep.subr.mxu0 0.0
    %455 = vmatpush1.msra.mxu0 0.0
    %456 = vmatprep.subr.mxu0 0.0
    %457 = vmatpush1.msra.mxu0 0.0
    %458 = vmatprep.subr.mxu0 0.0
    %459 = vmatpush1.msra.mxu0 0.0
    %460 = vmatprep.subr.mxu0 0.0
    %461 = vmatpush1.msra.mxu0 0.0
    %462 = vmatprep.subr.mxu0 0.0
    %463 = vmatpush1.msra.mxu0 0.0
    %464 = vmatprep.subr.mxu0 0.0
    %465 = vmatpush1.msra.mxu0 0.0
    %466 = vmatprep.subr.mxu0 0.0
    %467 = vmatpush1.msra.mxu0 0.0
    %468 = vmatprep.subr.mxu0 0.0
    %469 = vmatpush1.msra.mxu0 0.0
    %470 = vmatprep.subr.mxu0 0.0
    %471 = vmatpush1.msra.mxu0 0.0
    %472 = vmatprep.subr.mxu0 0.0
    %473 = vmatpush1.msra.mxu0 0.0
    %474 = vmatprep.subr.mxu0 0.0
    %475 = vmatpush1.msra.mxu0 0.0
    %476 = vmatprep.subr.mxu0 0.0
    %477 = vmatpush1.msra.mxu0 0.0
    %478 = vmatprep.subr.mxu0 0.0
    %479 = vmatpush1.msra.mxu0 0.0
    %480 = vmatprep.subr.mxu0 0.0
    %481 = vmatpush1.msra.mxu0 0.0
    %482 = vmatprep.subr.mxu0 0.0
    %483 = vmatpush1.msra.mxu0 0.0
    %484 = vmatprep.subr.mxu0 0.0
    %485 = vmatpush1.msra.mxu0 0.0
    %486 = vmatprep.subr.mxu0 0.0
    %487 = vmatpush1.msra.mxu0 0.0
    %488 = vmatprep.subr.mxu0 0.0
    %489 = vmatpush1.msra.mxu0 0.0
    %490 = vmatprep.subr.mxu0 0.0
    %491 = vmatpush1.msra.mxu0 0.0
    %492 = vmatprep.subr.mxu0 0.0
    %493 = vmatpush1.msra.mxu0 0.0
    %494 = vmatprep.subr.mxu0 0.0
    %495 = vmatpush1.msra.mxu0 0.0
    %496 = vmatprep.subr.mxu0 0.0
    %497 = vmatpush1.msra.mxu0 0.0
    %498 = vmatprep.subr.mxu0 0.0
    %499 = vmatpush1.msra.mxu0 0.0
    %500 = vmatprep.subr.mxu0 0.0
    %501 = vmatpush1.msra.mxu0 0.0
    %502 = vmatprep.subr.mxu0 0.0
    %503 = vmatpush1.msra.mxu0 0.0
    %504 = vmatprep.subr.mxu0 0.0
    %505 = vmatpush1.msra.mxu0 0.0
    %506 = vmatprep.mubr.f32.mxu0 0.0
    %507 = vmatmul.mubr.f32.gmra.mrb[0].mxu0 %v265
    %v508 = vpop.f32.mrb[0].mxu0
    %v509 = vadd.f32 %v440, %v508
    %v510 = vpop.f32.mrb[0].mxu0
    %511 = vmatprep.mubr.f32.mxu0 0.0
    %512 = vmatmul.mubr.f32.gmra.mrb[0].mxu0 %v268
    %v513 = vpop.f32.mrb[0].mxu0
    %v514 = vadd.f32 %v440, %v513
    %v515 = vpop.f32.mrb[0].mxu0
    %516 = vdwg.mxu0
    %v517 = vld [vmem:[%s13] sm:$0xff]
    %v518 = vld [vmem:[%s13 + $0x8] sm:$0xff]
    %v519 = vld [vmem:[%s13 + $0x10] sm:$0xff]
    %v520 = vld [vmem:[%s13 + $0x18] sm:$0xff]
    %vm521 = vcmask 64512
    %v523 = vsel %vm521, %v337, 0
    %v526 = vsel %vm521, %v423, 0
    %528 = vmatprep.subr.mxu0 0.0
    %529 = vmatpush1.xpose.msra.mxu0 %v526
    %530 = vmatprep.subr.mxu0 0.0
    %531 = vmatpush1.xpose.msra.mxu0 0.0
    %532 = vmatprep.subr.mxu0 0.0
    %533 = vmatpush1.xpose.msra.mxu0 0.0
    %534 = vmatprep.subr.mxu0 0.0
    %535 = vmatpush1.xpose.msra.mxu0 0.0
    %536 = vmatprep.subr.mxu0 0.0
    %537 = vmatpush1.xpose.msra.mxu0 0.0
    %538 = vmatprep.subr.mxu0 0.0
    %539 = vmatpush1.xpose.msra.mxu0 0.0
    %540 = vmatprep.subr.mxu0 0.0
    %541 = vmatpush1.xpose.msra.mxu0 0.0
    %542 = vmatprep.subr.mxu0 0.0
    %543 = vmatpush1.xpose.msra.mxu0 0.0
    %544 = vmatprep.subr.mxu0 0.0
    %545 = vmatpush1.xpose.msra.mxu0 0.0
    %546 = vmatprep.subr.mxu0 0.0
    %547 = vmatpush1.xpose.msra.mxu0 0.0
    %548 = vmatprep.subr.mxu0 0.0
    %549 = vmatpush1.xpose.msra.mxu0 0.0
    %550 = vmatprep.subr.mxu0 0.0
    %551 = vmatpush1.xpose.msra.mxu0 0.0
    %552 = vmatprep.subr.mxu0 0.0
    %553 = vmatpush1.xpose.msra.mxu0 0.0
    %554 = vmatprep.subr.mxu0 0.0
    %555 = vmatpush1.xpose.msra.mxu0 0.0
    %556 = vmatprep.subr.mxu0 0.0
    %557 = vmatpush1.xpose.msra.mxu0 0.0
    %558 = vmatprep.subr.mxu0 0.0
    %559 = vmatpush1.xpose.msra.mxu0 0.0
    %560 = vmatprep.subr.mxu0 0.0
    %561 = vmatpush1.xpose.msra.mxu0 0.0
    %562 = vmatprep.subr.mxu0 0.0
    %563 = vmatpush1.xpose.msra.mxu0 0.0
    %564 = vmatprep.subr.mxu0 0.0
    %565 = vmatpush1.xpose.msra.mxu0 0.0
    %566 = vmatprep.subr.mxu0 0.0
    %567 = vmatpush1.xpose.msra.mxu0 0.0
    %568 = vmatprep.subr.mxu0 0.0
    %569 = vmatpush1.xpose.msra.mxu0 0.0
    %570 = vmatprep.subr.mxu0 0.0
    %571 = vmatpush1.xpose.msra.mxu0 0.0
    %572 = vmatprep.subr.mxu0 0.0
    %573 = vmatpush1.xpose.msra.mxu0 0.0
    %574 = vmatprep.subr.mxu0 0.0
    %575 = vmatpush1.xpose.msra.mxu0 0.0
    %576 = vmatprep.subr.mxu0 0.0
    %577 = vmatpush1.xpose.msra.mxu0 0.0
    %578 = vmatprep.subr.mxu0 0.0
    %579 = vmatpush1.xpose.msra.mxu0 0.0
    %580 = vmatprep.subr.mxu0 0.0
    %581 = vmatpush1.xpose.msra.mxu0 0.0
    %582 = vmatprep.subr.mxu0 0.0
    %583 = vmatpush1.xpose.msra.mxu0 0.0
    %584 = vmatprep.subr.mxu0 0.0
    %585 = vmatpush1.xpose.msra.mxu0 0.0
    %586 = vmatprep.subr.mxu0 0.0
    %587 = vmatpush1.xpose.msra.mxu0 0.0
    %588 = vmatprep.subr.mxu0 0.0
    %589 = vmatpush1.xpose.msra.mxu0 0.0
    %590 = vmatprep.subr.mxu0 0.0
    %591 = vmatpush1.xpose.msra.mxu0 0.0
    %592 = vmatprep.mubr.f32.mxu0 0.0
    %593 = vmatmul.mubr.f32.gmra.mrb[0].mxu0 %v523
    %v594 = vpop.f32.mrb[0].mxu0
    %v595 = vadd.f32 0.0, %v594
    %v596 = vpop.f32.mrb[0].mxu0
    %597 = vdwg.mxu0
    %v598 = vmul.f32 %v595, 0.35355338
    %vm599 = vcmask 36864
    %v600 = vsel %vm599, %v598, -inf
    %601 = vmax.xlane.f32.xlu0 %v600
    %v602 = vpop.xlane.xlu0 %601
    %v603 = vsub.f32 %v598, %v602
    %v604 = vmul.f32 %v603, 1.442695
    %v605 = vpow.pop %v604
    %v606 = vsel %vm599, %v605, 0.0
    %607 = vadd.xlane.f32.xlu0 %v606
    %v608 = vpop.xlane.xlu0 %607
    %v609 = vrcp.pop %v608
    %v610 = vmul.f32 %v605, %v609
    %vm611 = vcmask 39936
    %v613 = vsel %vm611, %v610, 0
    %vm615 = vcmask 1044480
    %v617 = vsel %vm615, %v509, 0
    %619 = vmatprep.subr.mxu0 0.0
    %620 = vmatpush1.msra.mxu0 %v617
    %621 = vmatprep.subr.mxu0 0.0
    %622 = vmatpush1.msra.mxu0 0.0
    %623 = vmatprep.subr.mxu0 0.0
    %624 = vmatpush1.msra.mxu0 0.0
    %625 = vmatprep.subr.mxu0 0.0
    %626 = vmatpush1.msra.mxu0 0.0
    %627 = vmatprep.subr.mxu0 0.0
    %628 = vmatpush1.msra.mxu0 0.0
    %629 = vmatprep.subr.mxu0 0.0
    %630 = vmatpush1.msra.mxu0 0.0
    %631 = vmatprep.subr.mxu0 0.0
    %632 = vmatpush1.msra.mxu0 0.0
    %633 = vmatprep.subr.mxu0 0.0
    %634 = vmatpush1.msra.mxu0 0.0
    %635 = vmatprep.subr.mxu0 0.0
    %636 = vmatpush1.msra.mxu0 0.0
    %637 = vmatprep.subr.mxu0 0.0
    %638 = vmatpush1.msra.mxu0 0.0
    %639 = vmatprep.subr.mxu0 0.0
    %640 = vmatpush1.msra.mxu0 0.0
    %641 = vmatprep.subr.mxu0 0.0
    %642 = vmatpush1.msra.mxu0 0.0
    %643 = vmatprep.subr.mxu0 0.0
    %644 = vmatpush1.msra.mxu0 0.0
    %645 = vmatprep.subr.mxu0 0.0
    %646 = vmatpush1.msra.mxu0 0.0
    %647 = vmatprep.subr.mxu0 0.0
    %648 = vmatpush1.msra.mxu0 0.0
    %649 = vmatprep.subr.mxu0 0.0
    %650 = vmatpush1.msra.mxu0 0.0
    %651 = vmatprep.subr.mxu0 0.0
    %652 = vmatpush1.msra.mxu0 0.0
    %653 = vmatprep.subr.mxu0 0.0
    %654 = vmatpush1.msra.mxu0 0.0
    %655 = vmatprep.subr.mxu0 0.0
    %656 = vmatpush1.msra.mxu0 0.0
    %657 = vmatprep.subr.mxu0 0.0
    %658 = vmatpush1.msra.mxu0 0.0
    %659 = vmatprep.subr.mxu0 0.0
    %660 = vmatpush1.msra.mxu0 0.0
    %661 = vmatprep.subr.mxu0 0.0
    %662 = vmatpush1.msra.mxu0 0.0
    %663 = vmatprep.subr.mxu0 0.0
    %664 = vmatpush1.msra.mxu0 0.0
    %665 = vmatprep.subr.mxu0 0.0
    %666 = vmatpush1.msra.mxu0 0.0
    %667 = vmatprep.subr.mxu0 0.0
    %668 = vmatpush1.msra.mxu0 0.0
    %669 = vmatprep.subr.mxu0 0.0
    %670 = vmatpush1.msra.mxu0 0.0
    %671 = vmatprep.subr.mxu0 0.0
    %672 = vmatpush1.msra.mxu0 0.0
    %673 = vmatprep.subr.mxu0 0.0
    %674 = vmatpush1.msra.mxu0 0.0
    %675 = vmatprep.subr.mxu0 0.0
    %676 = vmatpush1.msra.mxu0 0.0
    %677 = vmatprep.subr.mxu0 0.0
    %678 = vmatpush1.msra.mxu0 0.0
    %679 = vmatprep.subr.mxu0 0.0
    %680 = vmatpush1.msra.mxu0 0.0
    %681 = vmatprep.subr.mxu0 0.0
    %682 = vmatpush1.msra.mxu0 0.0
    %683 = vmatprep.mubr.f32.mxu0 0.0
    %684 = vmatmul.mubr.f32.gmra.mrb[0].mxu0 %v613
    %v685 = vpop.f32.mrb[0].mxu0
    %v686 = vadd.f32 0.0, %v685
    %v687 = vpop.f32.mrb[0].mxu0
    %688 = vdwg.mxu0
    %689 = vrot.lane.b32.xlu0 %v337, 120
    %v690 = vpop.permute.xlu0 %689
    %691 = vrot.lane.b32.xlu0 %v423, 120
    %v692 = vpop.permute.xlu0 %691
    %v693 = vsel %vm521, %v690, 0
    %v695 = vsel %vm521, %v692, 0
    %697 = vmatprep.subr.mxu0 0.0
    %698 = vmatpush1.xpose.msra.mxu0 %v695
    %699 = vmatprep.subr.mxu0 0.0
    %700 = vmatpush1.xpose.msra.mxu0 0.0
    %701 = vmatprep.subr.mxu0 0.0
    %702 = vmatpush1.xpose.msra.mxu0 0.0
    %703 = vmatprep.subr.mxu0 0.0
    %704 = vmatpush1.xpose.msra.mxu0 0.0
    %705 = vmatprep.subr.mxu0 0.0
    %706 = vmatpush1.xpose.msra.mxu0 0.0
    %707 = vmatprep.subr.mxu0 0.0
    %708 = vmatpush1.xpose.msra.mxu0 0.0
    %709 = vmatprep.subr.mxu0 0.0
    %710 = vmatpush1.xpose.msra.mxu0 0.0
    %711 = vmatprep.subr.mxu0 0.0
    %712 = vmatpush1.xpose.msra.mxu0 0.0
    %713 = vmatprep.subr.mxu0 0.0
    %714 = vmatpush1.xpose.msra.mxu0 0.0
    %715 = vmatprep.subr.mxu0 0.0
    %716 = vmatpush1.xpose.msra.mxu0 0.0
    %717 = vmatprep.subr.mxu0 0.0
    %718 = vmatpush1.xpose.msra.mxu0 0.0
    %719 = vmatprep.subr.mxu0 0.0
    %720 = vmatpush1.xpose.msra.mxu0 0.0
    %721 = vmatprep.subr.mxu0 0.0
    %722 = vmatpush1.xpose.msra.mxu0 0.0
    %723 = vmatprep.subr.mxu0 0.0
    %724 = vmatpush1.xpose.msra.mxu0 0.0
    %725 = vmatprep.subr.mxu0 0.0
    %726 = vmatpush1.xpose.msra.mxu0 0.0
    %727 = vmatprep.subr.mxu0 0.0
    %728 = vmatpush1.xpose.msra.mxu0 0.0
    %729 = vmatprep.subr.mxu0 0.0
    %730 = vmatpush1.xpose.msra.mxu0 0.0
    %731 = vmatprep.subr.mxu0 0.0
    %732 = vmatpush1.xpose.msra.mxu0 0.0
    %733 = vmatprep.subr.mxu0 0.0
    %734 = vmatpush1.xpose.msra.mxu0 0.0
    %735 = vmatprep.subr.mxu0 0.0
    %736 = vmatpush1.xpose.msra.mxu0 0.0
    %737 = vmatprep.subr.mxu0 0.0
    %738 = vmatpush1.xpose.msra.mxu0 0.0
    %739 = vmatprep.subr.mxu0 0.0
    %740 = vmatpush1.xpose.msra.mxu0 0.0
    %741 = vmatprep.subr.mxu0 0.0
    %742 = vmatpush1.xpose.msra.mxu0 0.0
    %743 = vmatprep.subr.mxu0 0.0
    %744 = vmatpush1.xpose.msra.mxu0 0.0
    %745 = vmatprep.subr.mxu0 0.0
    %746 = vmatpush1.xpose.msra.mxu0 0.0
    %747 = vmatprep.subr.mxu0 0.0
    %748 = vmatpush1.xpose.msra.mxu0 0.0
    %749 = vmatprep.subr.mxu0 0.0
    %750 = vmatpush1.xpose.msra.mxu0 0.0
    %751 = vmatprep.subr.mxu0 0.0
    %752 = vmatpush1.xpose.msra.mxu0 0.0
    %753 = vmatprep.subr.mxu0 0.0
    %754 = vmatpush1.xpose.msra.mxu0 0.0
    %755 = vmatprep.subr.mxu0 0.0
    %756 = vmatpush1.xpose.msra.mxu0 0.0
    %757 = vmatprep.subr.mxu0 0.0
    %758 = vmatpush1.xpose.msra.mxu0 0.0
    %759 = vmatprep.subr.mxu0 0.0
    %760 = vmatpush1.xpose.msra.mxu0 0.0
    %761 = vmatprep.mubr.f32.mxu0 0.0
    %762 = vmatmul.mubr.f32.gmra.mrb[0].mxu0 %v693
    %v763 = vpop.f32.mrb[0].mxu0
    %v764 = vadd.f32 0.0, %v763
    %v765 = vpop.f32.mrb[0].mxu0
    %766 = vdwg.mxu0
    %v767 = vmul.f32 %v764, 0.35355338
    %v768 = vsel %vm599, %v767, -inf
    %769 = vmax.xlane.f32.xlu0 %v768
    %v770 = vpop.xlane.xlu0 %769
    %v771 = vsub.f32 %v767, %v770
    %v772 = vmul.f32 %v771, 1.442695
    %v773 = vpow.pop %v772
    %v774 = vsel %vm599, %v773, 0.0
    %775 = vadd.xlane.f32.xlu0 %v774
    %v776 = vpop.xlane.xlu0 %775
    %v777 = vrcp.pop %v776
    %v778 = vmul.f32 %v773, %v777
    %779 = vrot.lane.b32.xlu0 %v509, 120
    %v780 = vpop.permute.xlu0 %779
    %v782 = vsel %vm611, %v778, 0
    %v784 = vsel %vm615, %v780, 0
    %786 = vmatprep.subr.mxu0 0.0
    %787 = vmatpush1.msra.mxu0 %v784
    %788 = vmatprep.subr.mxu0 0.0
    %789 = vmatpush1.msra.mxu0 0.0
    %790 = vmatprep.subr.mxu0 0.0
    %791 = vmatpush1.msra.mxu0 0.0
    %792 = vmatprep.subr.mxu0 0.0
    %793 = vmatpush1.msra.mxu0 0.0
    %794 = vmatprep.subr.mxu0 0.0
    %795 = vmatpush1.msra.mxu0 0.0
    %796 = vmatprep.subr.mxu0 0.0
    %797 = vmatpush1.msra.mxu0 0.0
    %798 = vmatprep.subr.mxu0 0.0
    %799 = vmatpush1.msra.mxu0 0.0
    %800 = vmatprep.subr.mxu0 0.0
    %801 = vmatpush1.msra.mxu0 0.0
    %802 = vmatprep.subr.mxu0 0.0
    %803 = vmatpush1.msra.mxu0 0.0
    %804 = vmatprep.subr.mxu0 0.0
    %805 = vmatpush1.msra.mxu0 0.0
    %806 = vmatprep.subr.mxu0 0.0
    %807 = vmatpush1.msra.mxu0 0.0
    %808 = vmatprep.subr.mxu0 0.0
    %809 = vmatpush1.msra.mxu0 0.0
    %810 = vmatprep.subr.mxu0 0.0
    %811 = vmatpush1.msra.mxu0 0.0
    %812 = vmatprep.subr.mxu0 0.0
    %813 = vmatpush1.msra.mxu0 0.0
    %814 = vmatprep.subr.mxu0 0.0
    %815 = vmatpush1.msra.mxu0 0.0
    %816 = vmatprep.subr.mxu0 0.0
    %817 = vmatpush1.msra.mxu0 0.0
    %818 = vmatprep.subr.mxu0 0.0
    %819 = vmatpush1.msra.mxu0 0.0
    %820 = vmatprep.subr.mxu0 0.0
    %821 = vmatpush1.msra.mxu0 0.0
    %822 = vmatprep.subr.mxu0 0.0
    %823 = vmatpush1.msra.mxu0 0.0
    %824 = vmatprep.subr.mxu0 0.0
    %825 = vmatpush1.msra.mxu0 0.0
    %826 = vmatprep.subr.mxu0 0.0
    %827 = vmatpush1.msra.mxu0 0.0
    %828 = vmatprep.subr.mxu0 0.0
    %829 = vmatpush1.msra.mxu0 0.0
    %830 = vmatprep.subr.mxu0 0.0
    %831 = vmatpush1.msra.mxu0 0.0
    %832 = vmatprep.subr.mxu0 0.0
    %833 = vmatpush1.msra.mxu0 0.0
    %834 = vmatprep.subr.mxu0 0.0
    %835 = vmatpush1.msra.mxu0 0.0
    %836 = vmatprep.subr.mxu0 0.0
    %837 = vmatpush1.msra.mxu0 0.0
    %838 = vmatprep.subr.mxu0 0.0
    %839 = vmatpush1.msra.mxu0 0.0
    %840 = vmatprep.subr.mxu0 0.0
    %841 = vmatpush1.msra.mxu0 0.0
    %842 = vmatprep.subr.mxu0 0.0
    %843 = vmatpush1.msra.mxu0 0.0
    %844 = vmatprep.subr.mxu0 0.0
    %845 = vmatpush1.msra.mxu0 0.0
    %846 = vmatprep.subr.mxu0 0.0
    %847 = vmatpush1.msra.mxu0 0.0
    %848 = vmatprep.subr.mxu0 0.0
    %849 = vmatpush1.msra.mxu0 0.0
    %850 = vmatprep.mubr.f32.mxu0 0.0
    %851 = vmatmul.mubr.f32.gmra.mrb[0].mxu0 %v782
    %v852 = vpop.f32.mrb[0].mxu0
    %v853 = vadd.f32 0.0, %v852
    %v854 = vpop.f32.mrb[0].mxu0
    %855 = vdwg.mxu0
    %v857 = vsel %vm521, %v853, 0
    %859 = vmatprep.subr.mxu0 0.0
    %860 = vmatpush1.msra.mxu0 %v518
    %861 = vmatprep.subr.mxu0 0.0
    %862 = vmatpush1.msra.mxu0 0.0
    %863 = vmatprep.subr.mxu0 0.0
    %864 = vmatpush1.msra.mxu0 0.0
    %865 = vmatprep.subr.mxu0 0.0
    %866 = vmatpush1.msra.mxu0 0.0
    %867 = vmatprep.subr.mxu0 0.0
    %868 = vmatpush1.msra.mxu0 0.0
    %869 = vmatprep.subr.mxu0 0.0
    %870 = vmatpush1.msra.mxu0 0.0
    %871 = vmatprep.subr.mxu0 0.0
    %872 = vmatpush1.msra.mxu0 0.0
    %873 = vmatprep.subr.mxu0 0.0
    %874 = vmatpush1.msra.mxu0 0.0
    %875 = vmatprep.subr.mxu0 0.0
    %876 = vmatpush1.msra.mxu0 0.0
    %877 = vmatprep.subr.mxu0 0.0
    %878 = vmatpush1.msra.mxu0 0.0
    %879 = vmatprep.subr.mxu0 0.0
    %880 = vmatpush1.msra.mxu0 0.0
    %881 = vmatprep.subr.mxu0 0.0
    %882 = vmatpush1.msra.mxu0 0.0
    %883 = vmatprep.subr.mxu0 0.0
    %884 = vmatpush1.msra.mxu0 0.0
    %885 = vmatprep.subr.mxu0 0.0
    %886 = vmatpush1.msra.mxu0 0.0
    %887 = vmatprep.subr.mxu0 0.0
    %888 = vmatpush1.msra.mxu0 0.0
    %889 = vmatprep.subr.mxu0 0.0
    %890 = vmatpush1.msra.mxu0 0.0
    %891 = vmatprep.subr.mxu0 0.0
    %892 = vmatpush1.msra.mxu0 0.0
    %893 = vmatprep.subr.mxu0 0.0
    %894 = vmatpush1.msra.mxu0 0.0
    %895 = vmatprep.subr.mxu0 0.0
    %896 = vmatpush1.msra.mxu0 0.0
    %897 = vmatprep.subr.mxu0 0.0
    %898 = vmatpush1.msra.mxu0 0.0
    %899 = vmatprep.subr.mxu0 0.0
    %900 = vmatpush1.msra.mxu0 0.0
    %901 = vmatprep.subr.mxu0 0.0
    %902 = vmatpush1.msra.mxu0 0.0
    %903 = vmatprep.subr.mxu0 0.0
    %904 = vmatpush1.msra.mxu0 0.0
    %905 = vmatprep.subr.mxu0 0.0
    %906 = vmatpush1.msra.mxu0 0.0
    %907 = vmatprep.subr.mxu0 0.0
    %908 = vmatpush1.msra.mxu0 0.0
    %909 = vmatprep.subr.mxu0 0.0
    %910 = vmatpush1.msra.mxu0 0.0
    %911 = vmatprep.subr.mxu0 0.0
    %912 = vmatpush1.msra.mxu0 0.0
    %913 = vmatprep.subr.mxu0 0.0
    %914 = vmatpush1.msra.mxu0 0.0
    %915 = vmatprep.subr.mxu0 0.0
    %916 = vmatpush1.msra.mxu0 0.0
    %917 = vmatprep.subr.mxu0 0.0
    %918 = vmatpush1.msra.mxu0 0.0
    %919 = vmatprep.subr.mxu0 0.0
    %920 = vmatpush1.msra.mxu0 0.0
    %921 = vmatprep.subr.mxu0 0.0
    %922 = vmatpush1.msra.mxu0 0.0
    %923 = vmatprep.mubr.f32.mxu0 0.0
    %924 = vmatmul.mubr.f32.gmra.mrb[0].mxu0 %v857
    %v925 = vpop.f32.mrb[0].mxu0
    %v926 = vadd.f32 0.0, %v925
    %v927 = vpop.f32.mrb[0].mxu0
    %928 = vdwg.mxu0
    %v930 = vsel %vm521, %v686, 0
    %932 = vmatprep.subr.mxu0 0.0
    %933 = vmatpush1.msra.mxu0 %v517
    %934 = vmatprep.subr.mxu0 0.0
    %935 = vmatpush1.msra.mxu0 0.0
    %936 = vmatprep.subr.mxu0 0.0
    %937 = vmatpush1.msra.mxu0 0.0
    %938 = vmatprep.subr.mxu0 0.0
    %939 = vmatpush1.msra.mxu0 0.0
    %940 = vmatprep.subr.mxu0 0.0
    %941 = vmatpush1.msra.mxu0 0.0
    %942 = vmatprep.subr.mxu0 0.0
    %943 = vmatpush1.msra.mxu0 0.0
    %944 = vmatprep.subr.mxu0 0.0
    %945 = vmatpush1.msra.mxu0 0.0
    %946 = vmatprep.subr.mxu0 0.0
    %947 = vmatpush1.msra.mxu0 0.0
    %948 = vmatprep.subr.mxu0 0.0
    %949 = vmatpush1.msra.mxu0 0.0
    %950 = vmatprep.subr.mxu0 0.0
    %951 = vmatpush1.msra.mxu0 0.0
    %952 = vmatprep.subr.mxu0 0.0
    %953 = vmatpush1.msra.mxu0 0.0
    %954 = vmatprep.subr.mxu0 0.0
    %955 = vmatpush1.msra.mxu0 0.0
    %956 = vmatprep.subr.mxu0 0.0
    %957 = vmatpush1.msra.mxu0 0.0
    %958 = vmatprep.subr.mxu0 0.0
    %959 = vmatpush1.msra.mxu0 0.0
    %960 = vmatprep.subr.mxu0 0.0
    %961 = vmatpush1.msra.mxu0 0.0
    %962 = vmatprep.subr.mxu0 0.0
    %963 = vmatpush1.msra.mxu0 0.0
    %964 = vmatprep.subr.mxu0 0.0
    %965 = vmatpush1.msra.mxu0 0.0
    %966 = vmatprep.subr.mxu0 0.0
    %967 = vmatpush1.msra.mxu0 0.0
    %968 = vmatprep.subr.mxu0 0.0
    %969 = vmatpush1.msra.mxu0 0.0
    %970 = vmatprep.subr.mxu0 0.0
    %971 = vmatpush1.msra.mxu0 0.0
    %972 = vmatprep.subr.mxu0 0.0
    %973 = vmatpush1.msra.mxu0 0.0
    %974 = vmatprep.subr.mxu0 0.0
    %975 = vmatpush1.msra.mxu0 0.0
    %976 = vmatprep.subr.mxu0 0.0
    %977 = vmatpush1.msra.mxu0 0.0
    %978 = vmatprep.subr.mxu0 0.0
    %979 = vmatpush1.msra.mxu0 0.0
    %980 = vmatprep.subr.mxu0 0.0
    %981 = vmatpush1.msra.mxu0 0.0
    %982 = vmatprep.subr.mxu0 0.0
    %983 = vmatpush1.msra.mxu0 0.0
    %984 = vmatprep.subr.mxu0 0.0
    %985 = vmatpush1.msra.mxu0 0.0
    %986 = vmatprep.subr.mxu0 0.0
    %987 = vmatpush1.msra.mxu0 0.0
    %988 = vmatprep.subr.mxu0 0.0
    %989 = vmatpush1.msra.mxu0 0.0
    %990 = vmatprep.subr.mxu0 0.0
    %991 = vmatpush1.msra.mxu0 0.0
    %992 = vmatprep.subr.mxu0 0.0
    %993 = vmatpush1.msra.mxu0 0.0
    %994 = vmatprep.subr.mxu0 0.0
    %995 = vmatpush1.msra.mxu0 0.0
    %996 = vmatprep.mubr.f32.mxu0 0.0
    %997 = vmatmul.mubr.f32.gmra.mrb[0].mxu0 %v930
    %v998 = vpop.f32.mrb[0].mxu0
    %v999 = vadd.f32 %v926, %v998
    %v1000 = vpop.f32.mrb[0].mxu0
    %1001 = vdwg.mxu0
    %1002 = vrot.lane.b32.xlu0 %v337, 112
    %v1003 = vpop.permute.xlu0 %1002
    %1004 = vrot.lane.b32.xlu0 %v423, 112
    %v1005 = vpop.permute.xlu0 %1004
    %v1006 = vsel %vm521, %v1003, 0
    %v1008 = vsel %vm521, %v1005, 0
    %1010 = vmatprep.subr.mxu0 0.0
    %1011 = vmatpush1.xpose.msra.mxu0 %v1008
    %1012 = vmatprep.subr.mxu0 0.0
    %1013 = vmatpush1.xpose.msra.mxu0 0.0
    %1014 = vmatprep.subr.mxu0 0.0
    %1015 = vmatpush1.xpose.msra.mxu0 0.0
    %1016 = vmatprep.subr.mxu0 0.0
    %1017 = vmatpush1.xpose.msra.mxu0 0.0
    %1018 = vmatprep.subr.mxu0 0.0
    %1019 = vmatpush1.xpose.msra.mxu0 0.0
    %1020 = vmatprep.subr.mxu0 0.0
    %1021 = vmatpush1.xpose.msra.mxu0 0.0
    %1022 = vmatprep.subr.mxu0 0.0
    %1023 = vmatpush1.xpose.msra.mxu0 0.0
    %1024 = vmatprep.subr.mxu0 0.0
    %1025 = vmatpush1.xpose.msra.mxu0 0.0
    %1026 = vmatprep.subr.mxu0 0.0
    %1027 = vmatpush1.xpose.msra.mxu0 0.0
    %1028 = vmatprep.subr.mxu0 0.0
    %1029 = vmatpush1.xpose.msra.mxu0 0.0
    %1030 = vmatprep.subr.mxu0 0.0
    %1031 = vmatpush1.xpose.msra.mxu0 0.0
    %1032 = vmatprep.subr.mxu0 0.0
    %1033 = vmatpush1.xpose.msra.mxu0 0.0
    %1034 = vmatprep.subr.mxu0 0.0
    %1035 = vmatpush1.xpose.msra.mxu0 0.0
    %1036 = vmatprep.subr.mxu0 0.0
    %1037 = vmatpush1.xpose.msra.mxu0 0.0
    %1038 = vmatprep.subr.mxu0 0.0
    %1039 = vmatpush1.xpose.msra.mxu0 0.0
    %1040 = vmatprep.subr.mxu0 0.0
    %1041 = vmatpush1.xpose.msra.mxu0 0.0
    %1042 = vmatprep.subr.mxu0 0.0
    %1043 = vmatpush1.xpose.msra.mxu0 0.0
    %1044 = vmatprep.subr.mxu0 0.0
    %1045 = vmatpush1.xpose.msra.mxu0 0.0
    %1046 = vmatprep.subr.mxu0 0.0
    %1047 = vmatpush1.xpose.msra.mxu0 0.0
    %1048 = vmatprep.subr.mxu0 0.0
    %1049 = vmatpush1.xpose.msra.mxu0 0.0
    %1050 = vmatprep.subr.mxu0 0.0
    %1051 = vmatpush1.xpose.msra.mxu0 0.0
    %1052 = vmatprep.subr.mxu0 0.0
    %1053 = vmatpush1.xpose.msra.mxu0 0.0
    %1054 = vmatprep.subr.mxu0 0.0
    %1055 = vmatpush1.xpose.msra.mxu0 0.0
    %1056 = vmatprep.subr.mxu0 0.0
    %1057 = vmatpush1.xpose.msra.mxu0 0.0
    %1058 = vmatprep.subr.mxu0 0.0
    %1059 = vmatpush1.xpose.msra.mxu0 0.0
    %1060 = vmatprep.subr.mxu0 0.0
    %1061 = vmatpush1.xpose.msra.mxu0 0.0
    %1062 = vmatprep.subr.mxu0 0.0
    %1063 = vmatpush1.xpose.msra.mxu0 0.0
    %1064 = vmatprep.subr.mxu0 0.0
    %1065 = vmatpush1.xpose.msra.mxu0 0.0
    %1066 = vmatprep.subr.mxu0 0.0
    %1067 = vmatpush1.xpose.msra.mxu0 0.0
    %1068 = vmatprep.subr.mxu0 0.0
    %1069 = vmatpush1.xpose.msra.mxu0 0.0
    %1070 = vmatprep.subr.mxu0 0.0
    %1071 = vmatpush1.xpose.msra.mxu0 0.0
    %1072 = vmatprep.subr.mxu0 0.0
    %1073 = vmatpush1.xpose.msra.mxu0 0.0
    %1074 = vmatprep.mubr.f32.mxu0 0.0
    %1075 = vmatmul.mubr.f32.gmra.mrb[0].mxu0 %v1006
    %v1076 = vpop.f32.mrb[0].mxu0
    %v1077 = vadd.f32 0.0, %v1076
    %v1078 = vpop.f32.mrb[0].mxu0
    %1079 = vdwg.mxu0
    %v1080 = vmul.f32 %v1077, 0.35355338
    %v1081 = vsel %vm599, %v1080, -inf
    %1082 = vmax.xlane.f32.xlu0 %v1081
    %v1083 = vpop.xlane.xlu0 %1082
    %v1084 = vsub.f32 %v1080, %v1083
    %v1085 = vmul.f32 %v1084, 1.442695
    %v1086 = vpow.pop %v1085
    %v1087 = vsel %vm599, %v1086, 0.0
    %1088 = vadd.xlane.f32.xlu0 %v1087
    %v1089 = vpop.xlane.xlu0 %1088
    %v1090 = vrcp.pop %v1089
    %v1091 = vmul.f32 %v1086, %v1090
    %1092 = vrot.lane.b32.xlu0 %v509, 112
    %v1093 = vpop.permute.xlu0 %1092
    %v1095 = vsel %vm611, %v1091, 0
    %v1097 = vsel %vm615, %v1093, 0
    %1099 = vmatprep.subr.mxu0 0.0
    %1100 = vmatpush1.msra.mxu0 %v1097
    %1101 = vmatprep.subr.mxu0 0.0
    %1102 = vmatpush1.msra.mxu0 0.0
    %1103 = vmatprep.subr.mxu0 0.0
    %1104 = vmatpush1.msra.mxu0 0.0
    %1105 = vmatprep.subr.mxu0 0.0
    %1106 = vmatpush1.msra.mxu0 0.0
    %1107 = vmatprep.subr.mxu0 0.0
    %1108 = vmatpush1.msra.mxu0 0.0
    %1109 = vmatprep.subr.mxu0 0.0
    %1110 = vmatpush1.msra.mxu0 0.0
    %1111 = vmatprep.subr.mxu0 0.0
    %1112 = vmatpush1.msra.mxu0 0.0
    %1113 = vmatprep.subr.mxu0 0.0
    %1114 = vmatpush1.msra.mxu0 0.0
    %1115 = vmatprep.subr.mxu0 0.0
    %1116 = vmatpush1.msra.mxu0 0.0
    %1117 = vmatprep.subr.mxu0 0.0
    %1118 = vmatpush1.msra.mxu0 0.0
    %1119 = vmatprep.subr.mxu0 0.0
    %1120 = vmatpush1.msra.mxu0 0.0
    %1121 = vmatprep.subr.mxu0 0.0
    %1122 = vmatpush1.msra.mxu0 0.0
    %1123 = vmatprep.subr.mxu0 0.0
    %1124 = vmatpush1.msra.mxu0 0.0
    %1125 = vmatprep.subr.mxu0 0.0
    %1126 = vmatpush1.msra.mxu0 0.0
    %1127 = vmatprep.subr.mxu0 0.0
    %1128 = vmatpush1.msra.mxu0 0.0
    %1129 = vmatprep.subr.mxu0 0.0
    %1130 = vmatpush1.msra.mxu0 0.0
    %1131 = vmatprep.subr.mxu0 0.0
    %1132 = vmatpush1.msra.mxu0 0.0
    %1133 = vmatprep.subr.mxu0 0.0
    %1134 = vmatpush1.msra.mxu0 0.0
    %1135 = vmatprep.subr.mxu0 0.0
    %1136 = vmatpush1.msra.mxu0 0.0
    %1137 = vmatprep.subr.mxu0 0.0
    %1138 = vmatpush1.msra.mxu0 0.0
    %1139 = vmatprep.subr.mxu0 0.0
    %1140 = vmatpush1.msra.mxu0 0.0
    %1141 = vmatprep.subr.mxu0 0.0
    %1142 = vmatpush1.msra.mxu0 0.0
    %1143 = vmatprep.subr.mxu0 0.0
    %1144 = vmatpush1.msra.mxu0 0.0
    %1145 = vmatprep.subr.mxu0 0.0
    %1146 = vmatpush1.msra.mxu0 0.0
    %1147 = vmatprep.subr.mxu0 0.0
    %1148 = vmatpush1.msra.mxu0 0.0
    %1149 = vmatprep.subr.mxu0 0.0
    %1150 = vmatpush1.msra.mxu0 0.0
    %1151 = vmatprep.subr.mxu0 0.0
    %1152 = vmatpush1.msra.mxu0 0.0
    %1153 = vmatprep.subr.mxu0 0.0
    %1154 = vmatpush1.msra.mxu0 0.0
    %1155 = vmatprep.subr.mxu0 0.0
    %1156 = vmatpush1.msra.mxu0 0.0
    %1157 = vmatprep.subr.mxu0 0.0
    %1158 = vmatpush1.msra.mxu0 0.0
    %1159 = vmatprep.subr.mxu0 0.0
    %1160 = vmatpush1.msra.mxu0 0.0
    %1161 = vmatprep.subr.mxu0 0.0
    %1162 = vmatpush1.msra.mxu0 0.0
    %1163 = vmatprep.mubr.f32.mxu0 0.0
    %1164 = vmatmul.mubr.f32.gmra.mrb[0].mxu0 %v1095
    %v1165 = vpop.f32.mrb[0].mxu0
    %v1166 = vadd.f32 0.0, %v1165
    %v1167 = vpop.f32.mrb[0].mxu0
    %1168 = vdwg.mxu0
    %v1170 = vsel %vm521, %v1166, 0
    %1172 = vmatprep.subr.mxu0 0.0
    %1173 = vmatpush1.msra.mxu0 %v519
    %1174 = vmatprep.subr.mxu0 0.0
    %1175 = vmatpush1.msra.mxu0 0.0
    %1176 = vmatprep.subr.mxu0 0.0
    %1177 = vmatpush1.msra.mxu0 0.0
    %1178 = vmatprep.subr.mxu0 0.0
    %1179 = vmatpush1.msra.mxu0 0.0
    %1180 = vmatprep.subr.mxu0 0.0
    %1181 = vmatpush1.msra.mxu0 0.0
    %1182 = vmatprep.subr.mxu0 0.0
    %1183 = vmatpush1.msra.mxu0 0.0
    %1184 = vmatprep.subr.mxu0 0.0
    %1185 = vmatpush1.msra.mxu0 0.0
    %1186 = vmatprep.subr.mxu0 0.0
    %1187 = vmatpush1.msra.mxu0 0.0
    %1188 = vmatprep.subr.mxu0 0.0
    %1189 = vmatpush1.msra.mxu0 0.0
    %1190 = vmatprep.subr.mxu0 0.0
    %1191 = vmatpush1.msra.mxu0 0.0
    %1192 = vmatprep.subr.mxu0 0.0
    %1193 = vmatpush1.msra.mxu0 0.0
    %1194 = vmatprep.subr.mxu0 0.0
    %1195 = vmatpush1.msra.mxu0 0.0
    %1196 = vmatprep.subr.mxu0 0.0
    %1197 = vmatpush1.msra.mxu0 0.0
    %1198 = vmatprep.subr.mxu0 0.0
    %1199 = vmatpush1.msra.mxu0 0.0
    %1200 = vmatprep.subr.mxu0 0.0
    %1201 = vmatpush1.msra.mxu0 0.0
    %1202 = vmatprep.subr.mxu0 0.0
    %1203 = vmatpush1.msra.mxu0 0.0
    %1204 = vmatprep.subr.mxu0 0.0
    %1205 = vmatpush1.msra.mxu0 0.0
    %1206 = vmatprep.subr.mxu0 0.0
    %1207 = vmatpush1.msra.mxu0 0.0
    %1208 = vmatprep.subr.mxu0 0.0
    %1209 = vmatpush1.msra.mxu0 0.0
    %1210 = vmatprep.subr.mxu0 0.0
    %1211 = vmatpush1.msra.mxu0 0.0
    %1212 = vmatprep.subr.mxu0 0.0
    %1213 = vmatpush1.msra.mxu0 0.0
    %1214 = vmatprep.subr.mxu0 0.0
    %1215 = vmatpush1.msra.mxu0 0.0
    %1216 = vmatprep.subr.mxu0 0.0
    %1217 = vmatpush1.msra.mxu0 0.0
    %1218 = vmatprep.subr.mxu0 0.0
    %1219 = vmatpush1.msra.mxu0 0.0
    %1220 = vmatprep.subr.mxu0 0.0
    %1221 = vmatpush1.msra.mxu0 0.0
    %1222 = vmatprep.subr.mxu0 0.0
    %1223 = vmatpush1.msra.mxu0 0.0
    %1224 = vmatprep.subr.mxu0 0.0
    %1225 = vmatpush1.msra.mxu0 0.0
    %1226 = vmatprep.subr.mxu0 0.0
    %1227 = vmatpush1.msra.mxu0 0.0
    %1228 = vmatprep.subr.mxu0 0.0
    %1229 = vmatpush1.msra.mxu0 0.0
    %1230 = vmatprep.subr.mxu0 0.0
    %1231 = vmatpush1.msra.mxu0 0.0
    %1232 = vmatprep.subr.mxu0 0.0
    %1233 = vmatpush1.msra.mxu0 0.0
    %1234 = vmatprep.subr.mxu0 0.0
    %1235 = vmatpush1.msra.mxu0 0.0
    %1236 = vmatprep.mubr.f32.mxu0 0.0
    %1237 = vmatmul.mubr.f32.gmra.mrb[0].mxu0 %v1170
    %v1238 = vpop.f32.mrb[0].mxu0
    %v1239 = vadd.f32 0.0, %v1238
    %v1240 = vpop.f32.mrb[0].mxu0
    %1241 = vdwg.mxu0
    %v1242 = vadd.f32 %v999, %v1239
    %1243 = vrot.lane.b32.xlu0 %v337, 104
    %v1244 = vpop.permute.xlu0 %1243
    %1245 = vrot.lane.b32.xlu0 %v423, 104
    %v1246 = vpop.permute.xlu0 %1245
    %v1247 = vsel %vm521, %v1244, 0
    %v1249 = vsel %vm521, %v1246, 0
    %1251 = vmatprep.subr.mxu0 0.0
    %1252 = vmatpush1.xpose.msra.mxu0 %v1249
    %1253 = vmatprep.subr.mxu0 0.0
    %1254 = vmatpush1.xpose.msra.mxu0 0.0
    %1255 = vmatprep.subr.mxu0 0.0
    %1256 = vmatpush1.xpose.msra.mxu0 0.0
    %1257 = vmatprep.subr.mxu0 0.0
    %1258 = vmatpush1.xpose.msra.mxu0 0.0
    %1259 = vmatprep.subr.mxu0 0.0
    %1260 = vmatpush1.xpose.msra.mxu0 0.0
    %1261 = vmatprep.subr.mxu0 0.0
    %1262 = vmatpush1.xpose.msra.mxu0 0.0
    %1263 = vmatprep.subr.mxu0 0.0
    %1264 = vmatpush1.xpose.msra.mxu0 0.0
    %1265 = vmatprep.subr.mxu0 0.0
    %1266 = vmatpush1.xpose.msra.mxu0 0.0
    %1267 = vmatprep.subr.mxu0 0.0
    %1268 = vmatpush1.xpose.msra.mxu0 0.0
    %1269 = vmatprep.subr.mxu0 0.0
    %1270 = vmatpush1.xpose.msra.mxu0 0.0
    %1271 = vmatprep.subr.mxu0 0.0
    %1272 = vmatpush1.xpose.msra.mxu0 0.0
    %1273 = vmatprep.subr.mxu0 0.0
    %1274 = vmatpush1.xpose.msra.mxu0 0.0
    %1275 = vmatprep.subr.mxu0 0.0
    %1276 = vmatpush1.xpose.msra.mxu0 0.0
    %1277 = vmatprep.subr.mxu0 0.0
    %1278 = vmatpush1.xpose.msra.mxu0 0.0
    %1279 = vmatprep.subr.mxu0 0.0
    %1280 = vmatpush1.xpose.msra.mxu0 0.0
    %1281 = vmatprep.subr.mxu0 0.0
    %1282 = vmatpush1.xpose.msra.mxu0 0.0
    %1283 = vmatprep.subr.mxu0 0.0
    %1284 = vmatpush1.xpose.msra.mxu0 0.0
    %1285 = vmatprep.subr.mxu0 0.0
    %1286 = vmatpush1.xpose.msra.mxu0 0.0
    %1287 = vmatprep.subr.mxu0 0.0
    %1288 = vmatpush1.xpose.msra.mxu0 0.0
    %1289 = vmatprep.subr.mxu0 0.0
    %1290 = vmatpush1.xpose.msra.mxu0 0.0
    %1291 = vmatprep.subr.mxu0 0.0
    %1292 = vmatpush1.xpose.msra.mxu0 0.0
    %1293 = vmatprep.subr.mxu0 0.0
    %1294 = vmatpush1.xpose.msra.mxu0 0.0
    %1295 = vmatprep.subr.mxu0 0.0
    %1296 = vmatpush1.xpose.msra.mxu0 0.0
    %1297 = vmatprep.subr.mxu0 0.0
    %1298 = vmatpush1.xpose.msra.mxu0 0.0
    %1299 = vmatprep.subr.mxu0 0.0
    %1300 = vmatpush1.xpose.msra.mxu0 0.0
    %1301 = vmatprep.subr.mxu0 0.0
    %1302 = vmatpush1.xpose.msra.mxu0 0.0
    %1303 = vmatprep.subr.mxu0 0.0
    %1304 = vmatpush1.xpose.msra.mxu0 0.0
    %1305 = vmatprep.subr.mxu0 0.0
    %1306 = vmatpush1.xpose.msra.mxu0 0.0
    %1307 = vmatprep.subr.mxu0 0.0
    %1308 = vmatpush1.xpose.msra.mxu0 0.0
    %1309 = vmatprep.subr.mxu0 0.0
    %1310 = vmatpush1.xpose.msra.mxu0 0.0
    %1311 = vmatprep.subr.mxu0 0.0
    %1312 = vmatpush1.xpose.msra.mxu0 0.0
    %1313 = vmatprep.subr.mxu0 0.0
    %1314 = vmatpush1.xpose.msra.mxu0 0.0
    %1315 = vmatprep.mubr.f32.mxu0 0.0
    %1316 = vmatmul.mubr.f32.gmra.mrb[0].mxu0 %v1247
    %v1317 = vpop.f32.mrb[0].mxu0
    %v1318 = vadd.f32 0.0, %v1317
    %v1319 = vpop.f32.mrb[0].mxu0
    %1320 = vdwg.mxu0
    %v1321 = vmul.f32 %v1318, 0.35355338
    %v1322 = vsel %vm599, %v1321, -inf
    %1323 = vmax.xlane.f32.xlu0 %v1322
    %v1324 = vpop.xlane.xlu0 %1323
    %v1325 = vsub.f32 %v1321, %v1324
    %v1326 = vmul.f32 %v1325, 1.442695
    %v1327 = vpow.pop %v1326
    %v1328 = vsel %vm599, %v1327, 0.0
    %1329 = vadd.xlane.f32.xlu0 %v1328
    %v1330 = vpop.xlane.xlu0 %1329
    %v1331 = vrcp.pop %v1330
    %v1332 = vmul.f32 %v1327, %v1331
    %1333 = vrot.lane.b32.xlu0 %v509, 104
    %v1334 = vpop.permute.xlu0 %1333
    %v1336 = vsel %vm611, %v1332, 0
    %v1338 = vsel %vm615, %v1334, 0
    %1340 = vmatprep.subr.mxu0 0.0
    %1341 = vmatpush1.msra.mxu0 %v1338
    %1342 = vmatprep.subr.mxu0 0.0
    %1343 = vmatpush1.msra.mxu0 0.0
    %1344 = vmatprep.subr.mxu0 0.0
    %1345 = vmatpush1.msra.mxu0 0.0
    %1346 = vmatprep.subr.mxu0 0.0
    %1347 = vmatpush1.msra.mxu0 0.0
    %1348 = vmatprep.subr.mxu0 0.0
    %1349 = vmatpush1.msra.mxu0 0.0
    %1350 = vmatprep.subr.mxu0 0.0
    %1351 = vmatpush1.msra.mxu0 0.0
    %1352 = vmatprep.subr.mxu0 0.0
    %1353 = vmatpush1.msra.mxu0 0.0
    %1354 = vmatprep.subr.mxu0 0.0
    %1355 = vmatpush1.msra.mxu0 0.0
    %1356 = vmatprep.subr.mxu0 0.0
    %1357 = vmatpush1.msra.mxu0 0.0
    %1358 = vmatprep.subr.mxu0 0.0
    %1359 = vmatpush1.msra.mxu0 0.0
    %1360 = vmatprep.subr.mxu0 0.0
    %1361 = vmatpush1.msra.mxu0 0.0
    %1362 = vmatprep.subr.mxu0 0.0
    %1363 = vmatpush1.msra.mxu0 0.0
    %1364 = vmatprep.subr.mxu0 0.0
    %1365 = vmatpush1.msra.mxu0 0.0
    %1366 = vmatprep.subr.mxu0 0.0
    %1367 = vmatpush1.msra.mxu0 0.0
    %1368 = vmatprep.subr.mxu0 0.0
    %1369 = vmatpush1.msra.mxu0 0.0
    %1370 = vmatprep.subr.mxu0 0.0
    %1371 = vmatpush1.msra.mxu0 0.0
    %1372 = vmatprep.subr.mxu0 0.0
    %1373 = vmatpush1.msra.mxu0 0.0
    %1374 = vmatprep.subr.mxu0 0.0
    %1375 = vmatpush1.msra.mxu0 0.0
    %1376 = vmatprep.subr.mxu0 0.0
    %1377 = vmatpush1.msra.mxu0 0.0
    %1378 = vmatprep.subr.mxu0 0.0
    %1379 = vmatpush1.msra.mxu0 0.0
    %1380 = vmatprep.subr.mxu0 0.0
    %1381 = vmatpush1.msra.mxu0 0.0
    %1382 = vmatprep.subr.mxu0 0.0
    %1383 = vmatpush1.msra.mxu0 0.0
    %1384 = vmatprep.subr.mxu0 0.0
    %1385 = vmatpush1.msra.mxu0 0.0
    %1386 = vmatprep.subr.mxu0 0.0
    %1387 = vmatpush1.msra.mxu0 0.0
    %1388 = vmatprep.subr.mxu0 0.0
    %1389 = vmatpush1.msra.mxu0 0.0
    %1390 = vmatprep.subr.mxu0 0.0
    %1391 = vmatpush1.msra.mxu0 0.0
    %1392 = vmatprep.subr.mxu0 0.0
    %1393 = vmatpush1.msra.mxu0 0.0
    %1394 = vmatprep.subr.mxu0 0.0
    %1395 = vmatpush1.msra.mxu0 0.0
    %1396 = vmatprep.subr.mxu0 0.0
    %1397 = vmatpush1.msra.mxu0 0.0
    %1398 = vmatprep.subr.mxu0 0.0
    %1399 = vmatpush1.msra.mxu0 0.0
    %1400 = vmatprep.subr.mxu0 0.0
    %1401 = vmatpush1.msra.mxu0 0.0
    %1402 = vmatprep.subr.mxu0 0.0
    %1403 = vmatpush1.msra.mxu0 0.0
    %1404 = vmatprep.mubr.f32.mxu0 0.0
    %1405 = vmatmul.mubr.f32.gmra.mrb[0].mxu0 %v1336
    %v1406 = vpop.f32.mrb[0].mxu0
    %v1407 = vadd.f32 0.0, %v1406
    %v1408 = vpop.f32.mrb[0].mxu0
    %1409 = vdwg.mxu0
    %v1411 = vsel %vm521, %v1407, 0
    %1413 = vmatprep.subr.mxu0 0.0
    %1414 = vmatpush1.msra.mxu0 %v520
    %1415 = vmatprep.subr.mxu0 0.0
    %1416 = vmatpush1.msra.mxu0 0.0
    %1417 = vmatprep.subr.mxu0 0.0
    %1418 = vmatpush1.msra.mxu0 0.0
    %1419 = vmatprep.subr.mxu0 0.0
    %1420 = vmatpush1.msra.mxu0 0.0
    %1421 = vmatprep.subr.mxu0 0.0
    %1422 = vmatpush1.msra.mxu0 0.0
    %1423 = vmatprep.subr.mxu0 0.0
    %1424 = vmatpush1.msra.mxu0 0.0
    %1425 = vmatprep.subr.mxu0 0.0
    %1426 = vmatpush1.msra.mxu0 0.0
    %1427 = vmatprep.subr.mxu0 0.0
    %1428 = vmatpush1.msra.mxu0 0.0
    %1429 = vmatprep.subr.mxu0 0.0
    %1430 = vmatpush1.msra.mxu0 0.0
    %1431 = vmatprep.subr.mxu0 0.0
    %1432 = vmatpush1.msra.mxu0 0.0
    %1433 = vmatprep.subr.mxu0 0.0
    %1434 = vmatpush1.msra.mxu0 0.0
    %1435 = vmatprep.subr.mxu0 0.0
    %1436 = vmatpush1.msra.mxu0 0.0
    %1437 = vmatprep.subr.mxu0 0.0
    %1438 = vmatpush1.msra.mxu0 0.0
    %1439 = vmatprep.subr.mxu0 0.0
    %1440 = vmatpush1.msra.mxu0 0.0
    %1441 = vmatprep.subr.mxu0 0.0
    %1442 = vmatpush1.msra.mxu0 0.0
    %1443 = vmatprep.subr.mxu0 0.0
    %1444 = vmatpush1.msra.mxu0 0.0
    %1445 = vmatprep.subr.mxu0 0.0
    %1446 = vmatpush1.msra.mxu0 0.0
    %1447 = vmatprep.subr.mxu0 0.0
    %1448 = vmatpush1.msra.mxu0 0.0
    %1449 = vmatprep.subr.mxu0 0.0
    %1450 = vmatpush1.msra.mxu0 0.0
    %1451 = vmatprep.subr.mxu0 0.0
    %1452 = vmatpush1.msra.mxu0 0.0
    %1453 = vmatprep.subr.mxu0 0.0
    %1454 = vmatpush1.msra.mxu0 0.0
    %1455 = vmatprep.subr.mxu0 0.0
    %1456 = vmatpush1.msra.mxu0 0.0
    %1457 = vmatprep.subr.mxu0 0.0
    %1458 = vmatpush1.msra.mxu0 0.0
    %1459 = vmatprep.subr.mxu0 0.0
    %1460 = vmatpush1.msra.mxu0 0.0
    %1461 = vmatprep.subr.mxu0 0.0
    %1462 = vmatpush1.msra.mxu0 0.0
    %1463 = vmatprep.subr.mxu0 0.0
    %1464 = vmatpush1.msra.mxu0 0.0
    %1465 = vmatprep.subr.mxu0 0.0
    %1466 = vmatpush1.msra.mxu0 0.0
    %1467 = vmatprep.subr.mxu0 0.0
    %1468 = vmatpush1.msra.mxu0 0.0
    %1469 = vmatprep.subr.mxu0 0.0
    %1470 = vmatpush1.msra.mxu0 0.0
    %1471 = vmatprep.subr.mxu0 0.0
    %1472 = vmatpush1.msra.mxu0 0.0
    %1473 = vmatprep.subr.mxu0 0.0
    %1474 = vmatpush1.msra.mxu0 0.0
    %1475 = vmatprep.subr.mxu0 0.0
    %1476 = vmatpush1.msra.mxu0 0.0
    %1477 = vmatprep.mubr.f32.mxu0 0.0
    %1478 = vmatmul.mubr.f32.gmra.mrb[0].mxu0 %v1411
    %v1479 = vpop.f32.mrb[0].mxu0
    %v1480 = vadd.f32 0.0, %v1479
    %v1481 = vpop.f32.mrb[0].mxu0
    %1482 = vdwg.mxu0
    %v1483 = vadd.f32 %v1242, %v1480
    %vm1485 = vcmask 1042432
    %v1486 = vrot.slane %v337, 5
    %v1487 = vrot.slane %v342, 5
    %v1488 = vsel %vm1485, %v1486, %v1487
    %v1490 = vrot.slane %v423, 5
    %v1491 = vrot.slane %v428, 5
    %v1492 = vsel %vm1485, %v1490, %v1491
    %v1493 = vsel %vm521, %v1488, 0
    %v1495 = vsel %vm521, %v1492, 0
    %1497 = vmatprep.subr.mxu0 0.0
    %1498 = vmatpush1.xpose.msra.mxu0 %v1495
    %1499 = vmatprep.subr.mxu0 0.0
    %1500 = vmatpush1.xpose.msra.mxu0 0.0
    %1501 = vmatprep.subr.mxu0 0.0
    %1502 = vmatpush1.xpose.msra.mxu0 0.0
    %1503 = vmatprep.subr.mxu0 0.0
    %1504 = vmatpush1.xpose.msra.mxu0 0.0
    %1505 = vmatprep.subr.mxu0 0.0
    %1506 = vmatpush1.xpose.msra.mxu0 0.0
    %1507 = vmatprep.subr.mxu0 0.0
    %1508 = vmatpush1.xpose.msra.mxu0 0.0
    %1509 = vmatprep.subr.mxu0 0.0
    %1510 = vmatpush1.xpose.msra.mxu0 0.0
    %1511 = vmatprep.subr.mxu0 0.0
    %1512 = vmatpush1.xpose.msra.mxu0 0.0
    %1513 = vmatprep.subr.mxu0 0.0
    %1514 = vmatpush1.xpose.msra.mxu0 0.0
    %1515 = vmatprep.subr.mxu0 0.0
    %1516 = vmatpush1.xpose.msra.mxu0 0.0
    %1517 = vmatprep.subr.mxu0 0.0
    %1518 = vmatpush1.xpose.msra.mxu0 0.0
    %1519 = vmatprep.subr.mxu0 0.0
    %1520 = vmatpush1.xpose.msra.mxu0 0.0
    %1521 = vmatprep.subr.mxu0 0.0
    %1522 = vmatpush1.xpose.msra.mxu0 0.0
    %1523 = vmatprep.subr.mxu0 0.0
    %1524 = vmatpush1.xpose.msra.mxu0 0.0
    %1525 = vmatprep.subr.mxu0 0.0
    %1526 = vmatpush1.xpose.msra.mxu0 0.0
    %1527 = vmatprep.subr.mxu0 0.0
    %1528 = vmatpush1.xpose.msra.mxu0 0.0
    %1529 = vmatprep.subr.mxu0 0.0
    %1530 = vmatpush1.xpose.msra.mxu0 0.0
    %1531 = vmatprep.subr.mxu0 0.0
    %1532 = vmatpush1.xpose.msra.mxu0 0.0
    %1533 = vmatprep.subr.mxu0 0.0
    %1534 = vmatpush1.xpose.msra.mxu0 0.0
    %1535 = vmatprep.subr.mxu0 0.0
    %1536 = vmatpush1.xpose.msra.mxu0 0.0
    %1537 = vmatprep.subr.mxu0 0.0
    %1538 = vmatpush1.xpose.msra.mxu0 0.0
    %1539 = vmatprep.subr.mxu0 0.0
    %1540 = vmatpush1.xpose.msra.mxu0 0.0
    %1541 = vmatprep.subr.mxu0 0.0
    %1542 = vmatpush1.xpose.msra.mxu0 0.0
    %1543 = vmatprep.subr.mxu0 0.0
    %1544 = vmatpush1.xpose.msra.mxu0 0.0
    %1545 = vmatprep.subr.mxu0 0.0
    %1546 = vmatpush1.xpose.msra.mxu0 0.0
    %1547 = vmatprep.subr.mxu0 0.0
    %1548 = vmatpush1.xpose.msra.mxu0 0.0
    %1549 = vmatprep.subr.mxu0 0.0
    %1550 = vmatpush1.xpose.msra.mxu0 0.0
    %1551 = vmatprep.subr.mxu0 0.0
    %1552 = vmatpush1.xpose.msra.mxu0 0.0
    %1553 = vmatprep.subr.mxu0 0.0
    %1554 = vmatpush1.xpose.msra.mxu0 0.0
    %1555 = vmatprep.subr.mxu0 0.0
    %1556 = vmatpush1.xpose.msra.mxu0 0.0
    %1557 = vmatprep.subr.mxu0 0.0
    %1558 = vmatpush1.xpose.msra.mxu0 0.0
    %1559 = vmatprep.subr.mxu0 0.0
    %1560 = vmatpush1.xpose.msra.mxu0 0.0
    %1561 = vmatprep.mubr.f32.mxu0 0.0
    %1562 = vmatmul.mubr.f32.gmra.mrb[0].mxu0 %v1493
    %v1563 = vpop.f32.mrb[0].mxu0
    %v1564 = vadd.f32 0.0, %v1563
    %v1565 = vpop.f32.mrb[0].mxu0
    %1566 = vdwg.mxu0
    %v1567 = vmul.f32 %v1564, 0.35355338
    %v1568 = vsel %vm599, %v1567, -inf
    %1569 = vmax.xlane.f32.xlu0 %v1568
    %v1570 = vpop.xlane.xlu0 %1569
    %v1571 = vsub.f32 %v1567, %v1570
    %v1572 = vmul.f32 %v1571, 1.442695
    %v1573 = vpow.pop %v1572
    %v1574 = vsel %vm599, %v1573, 0.0
    %1575 = vadd.xlane.f32.xlu0 %v1574
    %v1576 = vpop.xlane.xlu0 %1575
    %v1577 = vrcp.pop %v1576
    %v1578 = vmul.f32 %v1573, %v1577
    %v1580 = vrot.slane %v509, 5
    %v1581 = vrot.slane %v514, 5
    %v1582 = vsel %vm1485, %v1580, %v1581
    %v1584 = vsel %vm611, %v1578, 0
    %v1586 = vsel %vm615, %v1582, 0
    %1588 = vmatprep.subr.mxu0 0.0
    %1589 = vmatpush1.msra.mxu0 %v1586
    %1590 = vmatprep.subr.mxu0 0.0
    %1591 = vmatpush1.msra.mxu0 0.0
    %1592 = vmatprep.subr.mxu0 0.0
    %1593 = vmatpush1.msra.mxu0 0.0
    %1594 = vmatprep.subr.mxu0 0.0
    %1595 = vmatpush1.msra.mxu0 0.0
    %1596 = vmatprep.subr.mxu0 0.0
    %1597 = vmatpush1.msra.mxu0 0.0
    %1598 = vmatprep.subr.mxu0 0.0
    %1599 = vmatpush1.msra.mxu0 0.0
    %1600 = vmatprep.subr.mxu0 0.0
    %1601 = vmatpush1.msra.mxu0 0.0
    %1602 = vmatprep.subr.mxu0 0.0
    %1603 = vmatpush1.msra.mxu0 0.0
    %1604 = vmatprep.subr.mxu0 0.0
    %1605 = vmatpush1.msra.mxu0 0.0
    %1606 = vmatprep.subr.mxu0 0.0
    %1607 = vmatpush1.msra.mxu0 0.0
    %1608 = vmatprep.subr.mxu0 0.0
    %1609 = vmatpush1.msra.mxu0 0.0
    %1610 = vmatprep.subr.mxu0 0.0
    %1611 = vmatpush1.msra.mxu0 0.0
    %1612 = vmatprep.subr.mxu0 0.0
    %1613 = vmatpush1.msra.mxu0 0.0
    %1614 = vmatprep.subr.mxu0 0.0
    %1615 = vmatpush1.msra.mxu0 0.0
    %1616 = vmatprep.subr.mxu0 0.0
    %1617 = vmatpush1.msra.mxu0 0.0
    %1618 = vmatprep.subr.mxu0 0.0
    %1619 = vmatpush1.msra.mxu0 0.0
    %1620 = vmatprep.subr.mxu0 0.0
    %1621 = vmatpush1.msra.mxu0 0.0
    %1622 = vmatprep.subr.mxu0 0.0
    %1623 = vmatpush1.msra.mxu0 0.0
    %1624 = vmatprep.subr.mxu0 0.0
    %1625 = vmatpush1.msra.mxu0 0.0
    %1626 = vmatprep.subr.mxu0 0.0
    %1627 = vmatpush1.msra.mxu0 0.0
    %1628 = vmatprep.subr.mxu0 0.0
    %1629 = vmatpush1.msra.mxu0 0.0
    %1630 = vmatprep.subr.mxu0 0.0
    %1631 = vmatpush1.msra.mxu0 0.0
    %1632 = vmatprep.subr.mxu0 0.0
    %1633 = vmatpush1.msra.mxu0 0.0
    %1634 = vmatprep.subr.mxu0 0.0
    %1635 = vmatpush1.msra.mxu0 0.0
    %1636 = vmatprep.subr.mxu0 0.0
    %1637 = vmatpush1.msra.mxu0 0.0
    %1638 = vmatprep.subr.mxu0 0.0
    %1639 = vmatpush1.msra.mxu0 0.0
    %1640 = vmatprep.subr.mxu0 0.0
    %1641 = vmatpush1.msra.mxu0 0.0
    %1642 = vmatprep.subr.mxu0 0.0
    %1643 = vmatpush1.msra.mxu0 0.0
    %1644 = vmatprep.subr.mxu0 0.0
    %1645 = vmatpush1.msra.mxu0 0.0
    %1646 = vmatprep.subr.mxu0 0.0
    %1647 = vmatpush1.msra.mxu0 0.0
    %1648 = vmatprep.subr.mxu0 0.0
    %1649 = vmatpush1.msra.mxu0 0.0
    %1650 = vmatprep.subr.mxu0 0.0
    %1651 = vmatpush1.msra.mxu0 0.0
    %1652 = vmatprep.mubr.f32.mxu0 0.0
    %1653 = vmatmul.mubr.f32.gmra.mrb[0].mxu0 %v1584
    %v1654 = vpop.f32.mrb[0].mxu0
    %v1655 = vadd.f32 0.0, %v1654
    %v1656 = vpop.f32.mrb[0].mxu0
    %1657 = vdwg.mxu0
    %1658 = vrot.lane.b32.xlu0 %v1488, 120
    %v1659 = vpop.permute.xlu0 %1658
    %1660 = vrot.lane.b32.xlu0 %v1492, 120
    %v1661 = vpop.permute.xlu0 %1660
    %v1662 = vsel %vm521, %v1659, 0
    %v1664 = vsel %vm521, %v1661, 0
    %1666 = vmatprep.subr.mxu0 0.0
    %1667 = vmatpush1.xpose.msra.mxu0 %v1664
    %1668 = vmatprep.subr.mxu0 0.0
    %1669 = vmatpush1.xpose.msra.mxu0 0.0
    %1670 = vmatprep.subr.mxu0 0.0
    %1671 = vmatpush1.xpose.msra.mxu0 0.0
    %1672 = vmatprep.subr.mxu0 0.0
    %1673 = vmatpush1.xpose.msra.mxu0 0.0
    %1674 = vmatprep.subr.mxu0 0.0
    %1675 = vmatpush1.xpose.msra.mxu0 0.0
    %1676 = vmatprep.subr.mxu0 0.0
    %1677 = vmatpush1.xpose.msra.mxu0 0.0
    %1678 = vmatprep.subr.mxu0 0.0
    %1679 = vmatpush1.xpose.msra.mxu0 0.0
    %1680 = vmatprep.subr.mxu0 0.0
    %1681 = vmatpush1.xpose.msra.mxu0 0.0
    %1682 = vmatprep.subr.mxu0 0.0
    %1683 = vmatpush1.xpose.msra.mxu0 0.0
    %1684 = vmatprep.subr.mxu0 0.0
    %1685 = vmatpush1.xpose.msra.mxu0 0.0
    %1686 = vmatprep.subr.mxu0 0.0
    %1687 = vmatpush1.xpose.msra.mxu0 0.0
    %1688 = vmatprep.subr.mxu0 0.0
    %1689 = vmatpush1.xpose.msra.mxu0 0.0
    %1690 = vmatprep.subr.mxu0 0.0
    %1691 = vmatpush1.xpose.msra.mxu0 0.0
    %1692 = vmatprep.subr.mxu0 0.0
    %1693 = vmatpush1.xpose.msra.mxu0 0.0
    %1694 = vmatprep.subr.mxu0 0.0
    %1695 = vmatpush1.xpose.msra.mxu0 0.0
    %1696 = vmatprep.subr.mxu0 0.0
    %1697 = vmatpush1.xpose.msra.mxu0 0.0
    %1698 = vmatprep.subr.mxu0 0.0
    %1699 = vmatpush1.xpose.msra.mxu0 0.0
    %1700 = vmatprep.subr.mxu0 0.0
    %1701 = vmatpush1.xpose.msra.mxu0 0.0
    %1702 = vmatprep.subr.mxu0 0.0
    %1703 = vmatpush1.xpose.msra.mxu0 0.0
    %1704 = vmatprep.subr.mxu0 0.0
    %1705 = vmatpush1.xpose.msra.mxu0 0.0
    %1706 = vmatprep.subr.mxu0 0.0
    %1707 = vmatpush1.xpose.msra.mxu0 0.0
    %1708 = vmatprep.subr.mxu0 0.0
    %1709 = vmatpush1.xpose.msra.mxu0 0.0
    %1710 = vmatprep.subr.mxu0 0.0
    %1711 = vmatpush1.xpose.msra.mxu0 0.0
    %1712 = vmatprep.subr.mxu0 0.0
    %1713 = vmatpush1.xpose.msra.mxu0 0.0
    %1714 = vmatprep.subr.mxu0 0.0
    %1715 = vmatpush1.xpose.msra.mxu0 0.0
    %1716 = vmatprep.subr.mxu0 0.0
    %1717 = vmatpush1.xpose.msra.mxu0 0.0
    %1718 = vmatprep.subr.mxu0 0.0
    %1719 = vmatpush1.xpose.msra.mxu0 0.0
    %1720 = vmatprep.subr.mxu0 0.0
    %1721 = vmatpush1.xpose.msra.mxu0 0.0
    %1722 = vmatprep.subr.mxu0 0.0
    %1723 = vmatpush1.xpose.msra.mxu0 0.0
    %1724 = vmatprep.subr.mxu0 0.0
    %1725 = vmatpush1.xpose.msra.mxu0 0.0
    %1726 = vmatprep.subr.mxu0 0.0
    %1727 = vmatpush1.xpose.msra.mxu0 0.0
    %1728 = vmatprep.subr.mxu0 0.0
    %1729 = vmatpush1.xpose.msra.mxu0 0.0
    %1730 = vmatprep.mubr.f32.mxu0 0.0
    %1731 = vmatmul.mubr.f32.gmra.mrb[0].mxu0 %v1662
    %v1732 = vpop.f32.mrb[0].mxu0
    %v1733 = vadd.f32 0.0, %v1732
    %v1734 = vpop.f32.mrb[0].mxu0
    %1735 = vdwg.mxu0
    %v1736 = vmul.f32 %v1733, 0.35355338
    %v1737 = vsel %vm599, %v1736, -inf
    %1738 = vmax.xlane.f32.xlu0 %v1737
    %v1739 = vpop.xlane.xlu0 %1738
    %v1740 = vsub.f32 %v1736, %v1739
    %v1741 = vmul.f32 %v1740, 1.442695
    %v1742 = vpow.pop %v1741
    %v1743 = vsel %vm599, %v1742, 0.0
    %1744 = vadd.xlane.f32.xlu0 %v1743
    %v1745 = vpop.xlane.xlu0 %1744
    %v1746 = vrcp.pop %v1745
    %v1747 = vmul.f32 %v1742, %v1746
    %1748 = vrot.lane.b32.xlu0 %v1582, 120
    %v1749 = vpop.permute.xlu0 %1748
    %v1751 = vsel %vm611, %v1747, 0
    %v1753 = vsel %vm615, %v1749, 0
    %1755 = vmatprep.subr.mxu0 0.0
    %1756 = vmatpush1.msra.mxu0 %v1753
    %1757 = vmatprep.subr.mxu0 0.0
    %1758 = vmatpush1.msra.mxu0 0.0
    %1759 = vmatprep.subr.mxu0 0.0
    %1760 = vmatpush1.msra.mxu0 0.0
    %1761 = vmatprep.subr.mxu0 0.0
    %1762 = vmatpush1.msra.mxu0 0.0
    %1763 = vmatprep.subr.mxu0 0.0
    %1764 = vmatpush1.msra.mxu0 0.0
    %1765 = vmatprep.subr.mxu0 0.0
    %1766 = vmatpush1.msra.mxu0 0.0
    %1767 = vmatprep.subr.mxu0 0.0
    %1768 = vmatpush1.msra.mxu0 0.0
    %1769 = vmatprep.subr.mxu0 0.0
    %1770 = vmatpush1.msra.mxu0 0.0
    %1771 = vmatprep.subr.mxu0 0.0
    %1772 = vmatpush1.msra.mxu0 0.0
    %1773 = vmatprep.subr.mxu0 0.0
    %1774 = vmatpush1.msra.mxu0 0.0
    %1775 = vmatprep.subr.mxu0 0.0
    %1776 = vmatpush1.msra.mxu0 0.0
    %1777 = vmatprep.subr.mxu0 0.0
    %1778 = vmatpush1.msra.mxu0 0.0
    %1779 = vmatprep.subr.mxu0 0.0
    %1780 = vmatpush1.msra.mxu0 0.0
    %1781 = vmatprep.subr.mxu0 0.0
    %1782 = vmatpush1.msra.mxu0 0.0
    %1783 = vmatprep.subr.mxu0 0.0
    %1784 = vmatpush1.msra.mxu0 0.0
    %1785 = vmatprep.subr.mxu0 0.0
    %1786 = vmatpush1.msra.mxu0 0.0
    %1787 = vmatprep.subr.mxu0 0.0
    %1788 = vmatpush1.msra.mxu0 0.0
    %1789 = vmatprep.subr.mxu0 0.0
    %1790 = vmatpush1.msra.mxu0 0.0
    %1791 = vmatprep.subr.mxu0 0.0
    %1792 = vmatpush1.msra.mxu0 0.0
    %1793 = vmatprep.subr.mxu0 0.0
    %1794 = vmatpush1.msra.mxu0 0.0
    %1795 = vmatprep.subr.mxu0 0.0
    %1796 = vmatpush1.msra.mxu0 0.0
    %1797 = vmatprep.subr.mxu0 0.0
    %1798 = vmatpush1.msra.mxu0 0.0
    %1799 = vmatprep.subr.mxu0 0.0
    %1800 = vmatpush1.msra.mxu0 0.0
    %1801 = vmatprep.subr.mxu0 0.0
    %1802 = vmatpush1.msra.mxu0 0.0
    %1803 = vmatprep.subr.mxu0 0.0
    %1804 = vmatpush1.msra.mxu0 0.0
    %1805 = vmatprep.subr.mxu0 0.0
    %1806 = vmatpush1.msra.mxu0 0.0
    %1807 = vmatprep.subr.mxu0 0.0
    %1808 = vmatpush1.msra.mxu0 0.0
    %1809 = vmatprep.subr.mxu0 0.0
    %1810 = vmatpush1.msra.mxu0 0.0
    %1811 = vmatprep.subr.mxu0 0.0
    %1812 = vmatpush1.msra.mxu0 0.0
    %1813 = vmatprep.subr.mxu0 0.0
    %1814 = vmatpush1.msra.mxu0 0.0
    %1815 = vmatprep.subr.mxu0 0.0
    %1816 = vmatpush1.msra.mxu0 0.0
    %1817 = vmatprep.subr.mxu0 0.0
    %1818 = vmatpush1.msra.mxu0 0.0
    %1819 = vmatprep.mubr.f32.mxu0 0.0
    %1820 = vmatmul.mubr.f32.gmra.mrb[0].mxu0 %v1751
    %v1821 = vpop.f32.mrb[0].mxu0
    %v1822 = vadd.f32 0.0, %v1821
    %v1823 = vpop.f32.mrb[0].mxu0
    %1824 = vdwg.mxu0
    %v1826 = vsel %vm521, %v1822, 0
    %1828 = vmatprep.subr.mxu0 0.0
    %1829 = vmatpush1.msra.mxu0 %v518
    %1830 = vmatprep.subr.mxu0 0.0
    %1831 = vmatpush1.msra.mxu0 0.0
    %1832 = vmatprep.subr.mxu0 0.0
    %1833 = vmatpush1.msra.mxu0 0.0
    %1834 = vmatprep.subr.mxu0 0.0
    %1835 = vmatpush1.msra.mxu0 0.0
    %1836 = vmatprep.subr.mxu0 0.0
    %1837 = vmatpush1.msra.mxu0 0.0
    %1838 = vmatprep.subr.mxu0 0.0
    %1839 = vmatpush1.msra.mxu0 0.0
    %1840 = vmatprep.subr.mxu0 0.0
    %1841 = vmatpush1.msra.mxu0 0.0
    %1842 = vmatprep.subr.mxu0 0.0
    %1843 = vmatpush1.msra.mxu0 0.0
    %1844 = vmatprep.subr.mxu0 0.0
    %1845 = vmatpush1.msra.mxu0 0.0
    %1846 = vmatprep.subr.mxu0 0.0
    %1847 = vmatpush1.msra.mxu0 0.0
    %1848 = vmatprep.subr.mxu0 0.0
    %1849 = vmatpush1.msra.mxu0 0.0
    %1850 = vmatprep.subr.mxu0 0.0
    %1851 = vmatpush1.msra.mxu0 0.0
    %1852 = vmatprep.subr.mxu0 0.0
    %1853 = vmatpush1.msra.mxu0 0.0
    %1854 = vmatprep.subr.mxu0 0.0
    %1855 = vmatpush1.msra.mxu0 0.0
    %1856 = vmatprep.subr.mxu0 0.0
    %1857 = vmatpush1.msra.mxu0 0.0
    %1858 = vmatprep.subr.mxu0 0.0
    %1859 = vmatpush1.msra.mxu0 0.0
    %1860 = vmatprep.subr.mxu0 0.0
    %1861 = vmatpush1.msra.mxu0 0.0
    %1862 = vmatprep.subr.mxu0 0.0
    %1863 = vmatpush1.msra.mxu0 0.0
    %1864 = vmatprep.subr.mxu0 0.0
    %1865 = vmatpush1.msra.mxu0 0.0
    %1866 = vmatprep.subr.mxu0 0.0
    %1867 = vmatpush1.msra.mxu0 0.0
    %1868 = vmatprep.subr.mxu0 0.0
    %1869 = vmatpush1.msra.mxu0 0.0
    %1870 = vmatprep.subr.mxu0 0.0
    %1871 = vmatpush1.msra.mxu0 0.0
    %1872 = vmatprep.subr.mxu0 0.0
    %1873 = vmatpush1.msra.mxu0 0.0
    %1874 = vmatprep.subr.mxu0 0.0
    %1875 = vmatpush1.msra.mxu0 0.0
    %1876 = vmatprep.subr.mxu0 0.0
    %1877 = vmatpush1.msra.mxu0 0.0
    %1878 = vmatprep.subr.mxu0 0.0
    %1879 = vmatpush1.msra.mxu0 0.0
    %1880 = vmatprep.subr.mxu0 0.0
    %1881 = vmatpush1.msra.mxu0 0.0
    %1882 = vmatprep.subr.mxu0 0.0
    %1883 = vmatpush1.msra.mxu0 0.0
    %1884 = vmatprep.subr.mxu0 0.0
    %1885 = vmatpush1.msra.mxu0 0.0
    %1886 = vmatprep.subr.mxu0 0.0
    %1887 = vmatpush1.msra.mxu0 0.0
    %1888 = vmatprep.subr.mxu0 0.0
    %1889 = vmatpush1.msra.mxu0 0.0
    %1890 = vmatprep.subr.mxu0 0.0
    %1891 = vmatpush1.msra.mxu0 0.0
    %1892 = vmatprep.mubr.f32.mxu0 0.0
    %1893 = vmatmul.mubr.f32.gmra.mrb[0].mxu0 %v1826
    %v1894 = vpop.f32.mrb[0].mxu0
    %v1895 = vadd.f32 0.0, %v1894
    %v1896 = vpop.f32.mrb[0].mxu0
    %1897 = vdwg.mxu0
    %v1899 = vsel %vm521, %v1655, 0
    %1901 = vmatprep.subr.mxu0 0.0
    %1902 = vmatpush1.msra.mxu0 %v517
    %1903 = vmatprep.subr.mxu0 0.0
    %1904 = vmatpush1.msra.mxu0 0.0
    %1905 = vmatprep.subr.mxu0 0.0
    %1906 = vmatpush1.msra.mxu0 0.0
    %1907 = vmatprep.subr.mxu0 0.0
    %1908 = vmatpush1.msra.mxu0 0.0
    %1909 = vmatprep.subr.mxu0 0.0
    %1910 = vmatpush1.msra.mxu0 0.0
    %1911 = vmatprep.subr.mxu0 0.0
    %1912 = vmatpush1.msra.mxu0 0.0
    %1913 = vmatprep.subr.mxu0 0.0
    %1914 = vmatpush1.msra.mxu0 0.0
    %1915 = vmatprep.subr.mxu0 0.0
    %1916 = vmatpush1.msra.mxu0 0.0
    %1917 = vmatprep.subr.mxu0 0.0
    %1918 = vmatpush1.msra.mxu0 0.0
    %1919 = vmatprep.subr.mxu0 0.0
    %1920 = vmatpush1.msra.mxu0 0.0
    %1921 = vmatprep.subr.mxu0 0.0
    %1922 = vmatpush1.msra.mxu0 0.0
    %1923 = vmatprep.subr.mxu0 0.0
    %1924 = vmatpush1.msra.mxu0 0.0
    %1925 = vmatprep.subr.mxu0 0.0
    %1926 = vmatpush1.msra.mxu0 0.0
    %1927 = vmatprep.subr.mxu0 0.0
    %1928 = vmatpush1.msra.mxu0 0.0
    %1929 = vmatprep.subr.mxu0 0.0
    %1930 = vmatpush1.msra.mxu0 0.0
    %1931 = vmatprep.subr.mxu0 0.0
    %1932 = vmatpush1.msra.mxu0 0.0
    %1933 = vmatprep.subr.mxu0 0.0
    %1934 = vmatpush1.msra.mxu0 0.0
    %1935 = vmatprep.subr.mxu0 0.0
    %1936 = vmatpush1.msra.mxu0 0.0
    %1937 = vmatprep.subr.mxu0 0.0
    %1938 = vmatpush1.msra.mxu0 0.0
    %1939 = vmatprep.subr.mxu0 0.0
    %1940 = vmatpush1.msra.mxu0 0.0
    %1941 = vmatprep.subr.mxu0 0.0
    %1942 = vmatpush1.msra.mxu0 0.0
    %1943 = vmatprep.subr.mxu0 0.0
    %1944 = vmatpush1.msra.mxu0 0.0
    %1945 = vmatprep.subr.mxu0 0.0
    %1946 = vmatpush1.msra.mxu0 0.0
    %1947 = vmatprep.subr.mxu0 0.0
    %1948 = vmatpush1.msra.mxu0 0.0
    %1949 = vmatprep.subr.mxu0 0.0
    %1950 = vmatpush1.msra.mxu0 0.0
    %1951 = vmatprep.subr.mxu0 0.0
    %1952 = vmatpush1.msra.mxu0 0.0
    %1953 = vmatprep.subr.mxu0 0.0
    %1954 = vmatpush1.msra.mxu0 0.0
    %1955 = vmatprep.subr.mxu0 0.0
    %1956 = vmatpush1.msra.mxu0 0.0
    %1957 = vmatprep.subr.mxu0 0.0
    %1958 = vmatpush1.msra.mxu0 0.0
    %1959 = vmatprep.subr.mxu0 0.0
    %1960 = vmatpush1.msra.mxu0 0.0
    %1961 = vmatprep.subr.mxu0 0.0
    %1962 = vmatpush1.msra.mxu0 0.0
    %1963 = vmatprep.subr.mxu0 0.0
    %1964 = vmatpush1.msra.mxu0 0.0
    %1965 = vmatprep.mubr.f32.mxu0 0.0
    %1966 = vmatmul.mubr.f32.gmra.mrb[0].mxu0 %v1899
    %v1967 = vpop.f32.mrb[0].mxu0
    %v1968 = vadd.f32 %v1895, %v1967
    %v1969 = vpop.f32.mrb[0].mxu0
    %1970 = vdwg.mxu0
    %1971 = vrot.lane.b32.xlu0 %v1488, 112
    %v1972 = vpop.permute.xlu0 %1971
    %1973 = vrot.lane.b32.xlu0 %v1492, 112
    %v1974 = vpop.permute.xlu0 %1973
    %v1975 = vsel %vm521, %v1972, 0
    %v1977 = vsel %vm521, %v1974, 0
    %1979 = vmatprep.subr.mxu0 0.0
    %1980 = vmatpush1.xpose.msra.mxu0 %v1977
    %1981 = vmatprep.subr.mxu0 0.0
    %1982 = vmatpush1.xpose.msra.mxu0 0.0
    %1983 = vmatprep.subr.mxu0 0.0
    %1984 = vmatpush1.xpose.msra.mxu0 0.0
    %1985 = vmatprep.subr.mxu0 0.0
    %1986 = vmatpush1.xpose.msra.mxu0 0.0
    %1987 = vmatprep.subr.mxu0 0.0
    %1988 = vmatpush1.xpose.msra.mxu0 0.0
    %1989 = vmatprep.subr.mxu0 0.0
    %1990 = vmatpush1.xpose.msra.mxu0 0.0
    %1991 = vmatprep.subr.mxu0 0.0
    %1992 = vmatpush1.xpose.msra.mxu0 0.0
    %1993 = vmatprep.subr.mxu0 0.0
    %1994 = vmatpush1.xpose.msra.mxu0 0.0
    %1995 = vmatprep.subr.mxu0 0.0
    %1996 = vmatpush1.xpose.msra.mxu0 0.0
    %1997 = vmatprep.subr.mxu0 0.0
    %1998 = vmatpush1.xpose.msra.mxu0 0.0
    %1999 = vmatprep.subr.mxu0 0.0
    %2000 = vmatpush1.xpose.msra.mxu0 0.0
    %2001 = vmatprep.subr.mxu0 0.0
    %2002 = vmatpush1.xpose.msra.mxu0 0.0
    %2003 = vmatprep.subr.mxu0 0.0
    %2004 = vmatpush1.xpose.msra.mxu0 0.0
    %2005 = vmatprep.subr.mxu0 0.0
    %2006 = vmatpush1.xpose.msra.mxu0 0.0
    %2007 = vmatprep.subr.mxu0 0.0
    %2008 = vmatpush1.xpose.msra.mxu0 0.0
    %2009 = vmatprep.subr.mxu0 0.0
    %2010 = vmatpush1.xpose.msra.mxu0 0.0
    %2011 = vmatprep.subr.mxu0 0.0
    %2012 = vmatpush1.xpose.msra.mxu0 0.0
    %2013 = vmatprep.subr.mxu0 0.0
    %2014 = vmatpush1.xpose.msra.mxu0 0.0
    %2015 = vmatprep.subr.mxu0 0.0
    %2016 = vmatpush1.xpose.msra.mxu0 0.0
    %2017 = vmatprep.subr.mxu0 0.0
    %2018 = vmatpush1.xpose.msra.mxu0 0.0
    %2019 = vmatprep.subr.mxu0 0.0
    %2020 = vmatpush1.xpose.msra.mxu0 0.0
    %2021 = vmatprep.subr.mxu0 0.0
    %2022 = vmatpush1.xpose.msra.mxu0 0.0
    %2023 = vmatprep.subr.mxu0 0.0
    %2024 = vmatpush1.xpose.msra.mxu0 0.0
    %2025 = vmatprep.subr.mxu0 0.0
    %2026 = vmatpush1.xpose.msra.mxu0 0.0
    %2027 = vmatprep.subr.mxu0 0.0
    %2028 = vmatpush1.xpose.msra.mxu0 0.0
    %2029 = vmatprep.subr.mxu0 0.0
    %2030 = vmatpush1.xpose.msra.mxu0 0.0
    %2031 = vmatprep.subr.mxu0 0.0
    %2032 = vmatpush1.xpose.msra.mxu0 0.0
    %2033 = vmatprep.subr.mxu0 0.0
    %2034 = vmatpush1.xpose.msra.mxu0 0.0
    %2035 = vmatprep.subr.mxu0 0.0
    %2036 = vmatpush1.xpose.msra.mxu0 0.0
    %2037 = vmatprep.subr.mxu0 0.0
    %2038 = vmatpush1.xpose.msra.mxu0 0.0
    %2039 = vmatprep.subr.mxu0 0.0
    %2040 = vmatpush1.xpose.msra.mxu0 0.0
    %2041 = vmatprep.subr.mxu0 0.0
    %2042 = vmatpush1.xpose.msra.mxu0 0.0
    %2043 = vmatprep.mubr.f32.mxu0 0.0
    %2044 = vmatmul.mubr.f32.gmra.mrb[0].mxu0 %v1975
    %v2045 = vpop.f32.mrb[0].mxu0
    %v2046 = vadd.f32 0.0, %v2045
    %v2047 = vpop.f32.mrb[0].mxu0
    %2048 = vdwg.mxu0
    %v2049 = vmul.f32 %v2046, 0.35355338
    %v2050 = vsel %vm599, %v2049, -inf
    %2051 = vmax.xlane.f32.xlu0 %v2050
    %v2052 = vpop.xlane.xlu0 %2051
    %v2053 = vsub.f32 %v2049, %v2052
    %v2054 = vmul.f32 %v2053, 1.442695
    %v2055 = vpow.pop %v2054
    %v2056 = vsel %vm599, %v2055, 0.0
    %2057 = vadd.xlane.f32.xlu0 %v2056
    %v2058 = vpop.xlane.xlu0 %2057
    %v2059 = vrcp.pop %v2058
    %v2060 = vmul.f32 %v2055, %v2059
    %2061 = vrot.lane.b32.xlu0 %v1582, 112
    %v2062 = vpop.permute.xlu0 %2061
    %v2064 = vsel %vm611, %v2060, 0
    %v2066 = vsel %vm615, %v2062, 0
    %2068 = vmatprep.subr.mxu0 0.0
    %2069 = vmatpush1.msra.mxu0 %v2066
    %2070 = vmatprep.subr.mxu0 0.0
    %2071 = vmatpush1.msra.mxu0 0.0
    %2072 = vmatprep.subr.mxu0 0.0
    %2073 = vmatpush1.msra.mxu0 0.0
    %2074 = vmatprep.subr.mxu0 0.0
    %2075 = vmatpush1.msra.mxu0 0.0
    %2076 = vmatprep.subr.mxu0 0.0
    %2077 = vmatpush1.msra.mxu0 0.0
    %2078 = vmatprep.subr.mxu0 0.0
    %2079 = vmatpush1.msra.mxu0 0.0
    %2080 = vmatprep.subr.mxu0 0.0
    %2081 = vmatpush1.msra.mxu0 0.0
    %2082 = vmatprep.subr.mxu0 0.0
    %2083 = vmatpush1.msra.mxu0 0.0
    %2084 = vmatprep.subr.mxu0 0.0
    %2085 = vmatpush1.msra.mxu0 0.0
    %2086 = vmatprep.subr.mxu0 0.0
    %2087 = vmatpush1.msra.mxu0 0.0
    %2088 = vmatprep.subr.mxu0 0.0
    %2089 = vmatpush1.msra.mxu0 0.0
    %2090 = vmatprep.subr.mxu0 0.0
    %2091 = vmatpush1.msra.mxu0 0.0
    %2092 = vmatprep.subr.mxu0 0.0
    %2093 = vmatpush1.msra.mxu0 0.0
    %2094 = vmatprep.subr.mxu0 0.0
    %2095 = vmatpush1.msra.mxu0 0.0
    %2096 = vmatprep.subr.mxu0 0.0
    %2097 = vmatpush1.msra.mxu0 0.0
    %2098 = vmatprep.subr.mxu0 0.0
    %2099 = vmatpush1.msra.mxu0 0.0
    %2100 = vmatprep.subr.mxu0 0.0
    %2101 = vmatpush1.msra.mxu0 0.0
    %2102 = vmatprep.subr.mxu0 0.0
    %2103 = vmatpush1.msra.mxu0 0.0
    %2104 = vmatprep.subr.mxu0 0.0
    %2105 = vmatpush1.msra.mxu0 0.0
    %2106 = vmatprep.subr.mxu0 0.0
    %2107 = vmatpush1.msra.mxu0 0.0
    %2108 = vmatprep.subr.mxu0 0.0
    %2109 = vmatpush1.msra.mxu0 0.0
    %2110 = vmatprep.subr.mxu0 0.0
    %2111 = vmatpush1.msra.mxu0 0.0
    %2112 = vmatprep.subr.mxu0 0.0
    %2113 = vmatpush1.msra.mxu0 0.0
    %2114 = vmatprep.subr.mxu0 0.0
    %2115 = vmatpush1.msra.mxu0 0.0
    %2116 = vmatprep.subr.mxu0 0.0
    %2117 = vmatpush1.msra.mxu0 0.0
    %2118 = vmatprep.subr.mxu0 0.0
    %2119 = vmatpush1.msra.mxu0 0.0
    %2120 = vmatprep.subr.mxu0 0.0
    %2121 = vmatpush1.msra.mxu0 0.0
    %2122 = vmatprep.subr.mxu0 0.0
    %2123 = vmatpush1.msra.mxu0 0.0
    %2124 = vmatprep.subr.mxu0 0.0
    %2125 = vmatpush1.msra.mxu0 0.0
    %2126 = vmatprep.subr.mxu0 0.0
    %2127 = vmatpush1.msra.mxu0 0.0
    %2128 = vmatprep.subr.mxu0 0.0
    %2129 = vmatpush1.msra.mxu0 0.0
    %2130 = vmatprep.subr.mxu0 0.0
    %2131 = vmatpush1.msra.mxu0 0.0
    %2132 = vmatprep.mubr.f32.mxu0 0.0
    %2133 = vmatmul.mubr.f32.gmra.mrb[0].mxu0 %v2064
    %v2134 = vpop.f32.mrb[0].mxu0
    %v2135 = vadd.f32 0.0, %v2134
    %v2136 = vpop.f32.mrb[0].mxu0
    %2137 = vdwg.mxu0
    %v2139 = vsel %vm521, %v2135, 0
    %2141 = vmatprep.subr.mxu0 0.0
    %2142 = vmatpush1.msra.mxu0 %v519
    %2143 = vmatprep.subr.mxu0 0.0
    %2144 = vmatpush1.msra.mxu0 0.0
    %2145 = vmatprep.subr.mxu0 0.0
    %2146 = vmatpush1.msra.mxu0 0.0
    %2147 = vmatprep.subr.mxu0 0.0
    %2148 = vmatpush1.msra.mxu0 0.0
    %2149 = vmatprep.subr.mxu0 0.0
    %2150 = vmatpush1.msra.mxu0 0.0
    %2151 = vmatprep.subr.mxu0 0.0
    %2152 = vmatpush1.msra.mxu0 0.0
    %2153 = vmatprep.subr.mxu0 0.0
    %2154 = vmatpush1.msra.mxu0 0.0
    %2155 = vmatprep.subr.mxu0 0.0
    %2156 = vmatpush1.msra.mxu0 0.0
    %2157 = vmatprep.subr.mxu0 0.0
    %2158 = vmatpush1.msra.mxu0 0.0
    %2159 = vmatprep.subr.mxu0 0.0
    %2160 = vmatpush1.msra.mxu0 0.0
    %2161 = vmatprep.subr.mxu0 0.0
    %2162 = vmatpush1.msra.mxu0 0.0
    %2163 = vmatprep.subr.mxu0 0.0
    %2164 = vmatpush1.msra.mxu0 0.0
    %2165 = vmatprep.subr.mxu0 0.0
    %2166 = vmatpush1.msra.mxu0 0.0
    %2167 = vmatprep.subr.mxu0 0.0
    %2168 = vmatpush1.msra.mxu0 0.0
    %2169 = vmatprep.subr.mxu0 0.0
    %2170 = vmatpush1.msra.mxu0 0.0
    %2171 = vmatprep.subr.mxu0 0.0
    %2172 = vmatpush1.msra.mxu0 0.0
    %2173 = vmatprep.subr.mxu0 0.0
    %2174 = vmatpush1.msra.mxu0 0.0
    %2175 = vmatprep.subr.mxu0 0.0
    %2176 = vmatpush1.msra.mxu0 0.0
    %2177 = vmatprep.subr.mxu0 0.0
    %2178 = vmatpush1.msra.mxu0 0.0
    %2179 = vmatprep.subr.mxu0 0.0
    %2180 = vmatpush1.msra.mxu0 0.0
    %2181 = vmatprep.subr.mxu0 0.0
    %2182 = vmatpush1.msra.mxu0 0.0
    %2183 = vmatprep.subr.mxu0 0.0
    %2184 = vmatpush1.msra.mxu0 0.0
    %2185 = vmatprep.subr.mxu0 0.0
    %2186 = vmatpush1.msra.mxu0 0.0
    %2187 = vmatprep.subr.mxu0 0.0
    %2188 = vmatpush1.msra.mxu0 0.0
    %2189 = vmatprep.subr.mxu0 0.0
    %2190 = vmatpush1.msra.mxu0 0.0
    %2191 = vmatprep.subr.mxu0 0.0
    %2192 = vmatpush1.msra.mxu0 0.0
    %2193 = vmatprep.subr.mxu0 0.0
    %2194 = vmatpush1.msra.mxu0 0.0
    %2195 = vmatprep.subr.mxu0 0.0
    %2196 = vmatpush1.msra.mxu0 0.0
    %2197 = vmatprep.subr.mxu0 0.0
    %2198 = vmatpush1.msra.mxu0 0.0
    %2199 = vmatprep.subr.mxu0 0.0
    %2200 = vmatpush1.msra.mxu0 0.0
    %2201 = vmatprep.subr.mxu0 0.0
    %2202 = vmatpush1.msra.mxu0 0.0
    %2203 = vmatprep.subr.mxu0 0.0
    %2204 = vmatpush1.msra.mxu0 0.0
    %2205 = vmatprep.mubr.f32.mxu0 0.0
    %2206 = vmatmul.mubr.f32.gmra.mrb[0].mxu0 %v2139
    %v2207 = vpop.f32.mrb[0].mxu0
    %v2208 = vadd.f32 0.0, %v2207
    %v2209 = vpop.f32.mrb[0].mxu0
    %2210 = vdwg.mxu0
    %v2211 = vadd.f32 %v1968, %v2208
    %2212 = vrot.lane.b32.xlu0 %v1488, 104
    %v2213 = vpop.permute.xlu0 %2212
    %2214 = vrot.lane.b32.xlu0 %v1492, 104
    %v2215 = vpop.permute.xlu0 %2214
    %v2216 = vsel %vm521, %v2213, 0
    %v2218 = vsel %vm521, %v2215, 0
    %2220 = vmatprep.subr.mxu0 0.0
    %2221 = vmatpush1.xpose.msra.mxu0 %v2218
    %2222 = vmatprep.subr.mxu0 0.0
    %2223 = vmatpush1.xpose.msra.mxu0 0.0
    %2224 = vmatprep.subr.mxu0 0.0
    %2225 = vmatpush1.xpose.msra.mxu0 0.0
    %2226 = vmatprep.subr.mxu0 0.0
    %2227 = vmatpush1.xpose.msra.mxu0 0.0
    %2228 = vmatprep.subr.mxu0 0.0
    %2229 = vmatpush1.xpose.msra.mxu0 0.0
    %2230 = vmatprep.subr.mxu0 0.0
    %2231 = vmatpush1.xpose.msra.mxu0 0.0
    %2232 = vmatprep.subr.mxu0 0.0
    %2233 = vmatpush1.xpose.msra.mxu0 0.0
    %2234 = vmatprep.subr.mxu0 0.0
    %2235 = vmatpush1.xpose.msra.mxu0 0.0
    %2236 = vmatprep.subr.mxu0 0.0
    %2237 = vmatpush1.xpose.msra.mxu0 0.0
    %2238 = vmatprep.subr.mxu0 0.0
    %2239 = vmatpush1.xpose.msra.mxu0 0.0
    %2240 = vmatprep.subr.mxu0 0.0
    %2241 = vmatpush1.xpose.msra.mxu0 0.0
    %2242 = vmatprep.subr.mxu0 0.0
    %2243 = vmatpush1.xpose.msra.mxu0 0.0
    %2244 = vmatprep.subr.mxu0 0.0
    %2245 = vmatpush1.xpose.msra.mxu0 0.0
    %2246 = vmatprep.subr.mxu0 0.0
    %2247 = vmatpush1.xpose.msra.mxu0 0.0
    %2248 = vmatprep.subr.mxu0 0.0
    %2249 = vmatpush1.xpose.msra.mxu0 0.0
    %2250 = vmatprep.subr.mxu0 0.0
    %2251 = vmatpush1.xpose.msra.mxu0 0.0
    %2252 = vmatprep.subr.mxu0 0.0
    %2253 = vmatpush1.xpose.msra.mxu0 0.0
    %2254 = vmatprep.subr.mxu0 0.0
    %2255 = vmatpush1.xpose.msra.mxu0 0.0
    %2256 = vmatprep.subr.mxu0 0.0
    %2257 = vmatpush1.xpose.msra.mxu0 0.0
    %2258 = vmatprep.subr.mxu0 0.0
    %2259 = vmatpush1.xpose.msra.mxu0 0.0
    %2260 = vmatprep.subr.mxu0 0.0
    %2261 = vmatpush1.xpose.msra.mxu0 0.0
    %2262 = vmatprep.subr.mxu0 0.0
    %2263 = vmatpush1.xpose.msra.mxu0 0.0
    %2264 = vmatprep.subr.mxu0 0.0
    %2265 = vmatpush1.xpose.msra.mxu0 0.0
    %2266 = vmatprep.subr.mxu0 0.0
    %2267 = vmatpush1.xpose.msra.mxu0 0.0
    %2268 = vmatprep.subr.mxu0 0.0
    %2269 = vmatpush1.xpose.msra.mxu0 0.0
    %2270 = vmatprep.subr.mxu0 0.0
    %2271 = vmatpush1.xpose.msra.mxu0 0.0
    %2272 = vmatprep.subr.mxu0 0.0
    %2273 = vmatpush1.xpose.msra.mxu0 0.0
    %2274 = vmatprep.subr.mxu0 0.0
    %2275 = vmatpush1.xpose.msra.mxu0 0.0
    %2276 = vmatprep.subr.mxu0 0.0
    %2277 = vmatpush1.xpose.msra.mxu0 0.0
    %2278 = vmatprep.subr.mxu0 0.0
    %2279 = vmatpush1.xpose.msra.mxu0 0.0
    %2280 = vmatprep.subr.mxu0 0.0
    %2281 = vmatpush1.xpose.msra.mxu0 0.0
    %2282 = vmatprep.subr.mxu0 0.0
    %2283 = vmatpush1.xpose.msra.mxu0 0.0
    %2284 = vmatprep.mubr.f32.mxu0 0.0
    %2285 = vmatmul.mubr.f32.gmra.mrb[0].mxu0 %v2216
    %v2286 = vpop.f32.mrb[0].mxu0
    %v2287 = vadd.f32 0.0, %v2286
    %v2288 = vpop.f32.mrb[0].mxu0
    %2289 = vdwg.mxu0
    %v2290 = vmul.f32 %v2287, 0.35355338
    %v2291 = vsel %vm599, %v2290, -inf
    %2292 = vmax.xlane.f32.xlu0 %v2291
    %v2293 = vpop.xlane.xlu0 %2292
    %v2294 = vsub.f32 %v2290, %v2293
    %v2295 = vmul.f32 %v2294, 1.442695
    %v2296 = vpow.pop %v2295
    %v2297 = vsel %vm599, %v2296, 0.0
    %2298 = vadd.xlane.f32.xlu0 %v2297
    %v2299 = vpop.xlane.xlu0 %2298
    %v2300 = vrcp.pop %v2299
    %v2301 = vmul.f32 %v2296, %v2300
    %2302 = vrot.lane.b32.xlu0 %v1582, 104
    %v2303 = vpop.permute.xlu0 %2302
    %v2305 = vsel %vm611, %v2301, 0
    %v2307 = vsel %vm615, %v2303, 0
    %2309 = vmatprep.subr.mxu0 0.0
    %2310 = vmatpush1.msra.mxu0 %v2307
    %2311 = vmatprep.subr.mxu0 0.0
    %2312 = vmatpush1.msra.mxu0 0.0
    %2313 = vmatprep.subr.mxu0 0.0
    %2314 = vmatpush1.msra.mxu0 0.0
    %2315 = vmatprep.subr.mxu0 0.0
    %2316 = vmatpush1.msra.mxu0 0.0
    %2317 = vmatprep.subr.mxu0 0.0
    %2318 = vmatpush1.msra.mxu0 0.0
    %2319 = vmatprep.subr.mxu0 0.0
    %2320 = vmatpush1.msra.mxu0 0.0
    %2321 = vmatprep.subr.mxu0 0.0
    %2322 = vmatpush1.msra.mxu0 0.0
    %2323 = vmatprep.subr.mxu0 0.0
    %2324 = vmatpush1.msra.mxu0 0.0
    %2325 = vmatprep.subr.mxu0 0.0
    %2326 = vmatpush1.msra.mxu0 0.0
    %2327 = vmatprep.subr.mxu0 0.0
    %2328 = vmatpush1.msra.mxu0 0.0
    %2329 = vmatprep.subr.mxu0 0.0
    %2330 = vmatpush1.msra.mxu0 0.0
    %2331 = vmatprep.subr.mxu0 0.0
    %2332 = vmatpush1.msra.mxu0 0.0
    %2333 = vmatprep.subr.mxu0 0.0
    %2334 = vmatpush1.msra.mxu0 0.0
    %2335 = vmatprep.subr.mxu0 0.0
    %2336 = vmatpush1.msra.mxu0 0.0
    %2337 = vmatprep.subr.mxu0 0.0
    %2338 = vmatpush1.msra.mxu0 0.0
    %2339 = vmatprep.subr.mxu0 0.0
    %2340 = vmatpush1.msra.mxu0 0.0
    %2341 = vmatprep.subr.mxu0 0.0
    %2342 = vmatpush1.msra.mxu0 0.0
    %2343 = vmatprep.subr.mxu0 0.0
    %2344 = vmatpush1.msra.mxu0 0.0
    %2345 = vmatprep.subr.mxu0 0.0
    %2346 = vmatpush1.msra.mxu0 0.0
    %2347 = vmatprep.subr.mxu0 0.0
    %2348 = vmatpush1.msra.mxu0 0.0
    %2349 = vmatprep.subr.mxu0 0.0
    %2350 = vmatpush1.msra.mxu0 0.0
    %2351 = vmatprep.subr.mxu0 0.0
    %2352 = vmatpush1.msra.mxu0 0.0
    %2353 = vmatprep.subr.mxu0 0.0
    %2354 = vmatpush1.msra.mxu0 0.0
    %2355 = vmatprep.subr.mxu0 0.0
    %2356 = vmatpush1.msra.mxu0 0.0
    %2357 = vmatprep.subr.mxu0 0.0
    %2358 = vmatpush1.msra.mxu0 0.0
    %2359 = vmatprep.subr.mxu0 0.0
    %2360 = vmatpush1.msra.mxu0 0.0
    %2361 = vmatprep.subr.mxu0 0.0
    %2362 = vmatpush1.msra.mxu0 0.0
    %2363 = vmatprep.subr.mxu0 0.0
    %2364 = vmatpush1.msra.mxu0 0.0
    %2365 = vmatprep.subr.mxu0 0.0
    %2366 = vmatpush1.msra.mxu0 0.0
    %2367 = vmatprep.subr.mxu0 0.0
    %2368 = vmatpush1.msra.mxu0 0.0
    %2369 = vmatprep.subr.mxu0 0.0
    %2370 = vmatpush1.msra.mxu0 0.0
    %2371 = vmatprep.subr.mxu0 0.0
    %2372 = vmatpush1.msra.mxu0 0.0
    %2373 = vmatprep.mubr.f32.mxu0 0.0
    %2374 = vmatmul.mubr.f32.gmra.mrb[0].mxu0 %v2305
    %v2375 = vpop.f32.mrb[0].mxu0
    %v2376 = vadd.f32 0.0, %v2375
    %v2377 = vpop.f32.mrb[0].mxu0
    %2378 = vdwg.mxu0
    %v2380 = vsel %vm521, %v2376, 0
    %2382 = vmatprep.subr.mxu0 0.0
    %2383 = vmatpush1.msra.mxu0 %v520
    %2384 = vmatprep.subr.mxu0 0.0
    %2385 = vmatpush1.msra.mxu0 0.0
    %2386 = vmatprep.subr.mxu0 0.0
    %2387 = vmatpush1.msra.mxu0 0.0
    %2388 = vmatprep.subr.mxu0 0.0
    %2389 = vmatpush1.msra.mxu0 0.0
    %2390 = vmatprep.subr.mxu0 0.0
    %2391 = vmatpush1.msra.mxu0 0.0
    %2392 = vmatprep.subr.mxu0 0.0
    %2393 = vmatpush1.msra.mxu0 0.0
    %2394 = vmatprep.subr.mxu0 0.0
    %2395 = vmatpush1.msra.mxu0 0.0
    %2396 = vmatprep.subr.mxu0 0.0
    %2397 = vmatpush1.msra.mxu0 0.0
    %2398 = vmatprep.subr.mxu0 0.0
    %2399 = vmatpush1.msra.mxu0 0.0
    %2400 = vmatprep.subr.mxu0 0.0
    %2401 = vmatpush1.msra.mxu0 0.0
    %2402 = vmatprep.subr.mxu0 0.0
    %2403 = vmatpush1.msra.mxu0 0.0
    %2404 = vmatprep.subr.mxu0 0.0
    %2405 = vmatpush1.msra.mxu0 0.0
    %2406 = vmatprep.subr.mxu0 0.0
    %2407 = vmatpush1.msra.mxu0 0.0
    %2408 = vmatprep.subr.mxu0 0.0
    %2409 = vmatpush1.msra.mxu0 0.0
    %2410 = vmatprep.subr.mxu0 0.0
    %2411 = vmatpush1.msra.mxu0 0.0
    %2412 = vmatprep.subr.mxu0 0.0
    %2413 = vmatpush1.msra.mxu0 0.0
    %2414 = vmatprep.subr.mxu0 0.0
    %2415 = vmatpush1.msra.mxu0 0.0
    %2416 = vmatprep.subr.mxu0 0.0
    %2417 = vmatpush1.msra.mxu0 0.0
    %2418 = vmatprep.subr.mxu0 0.0
    %2419 = vmatpush1.msra.mxu0 0.0
    %2420 = vmatprep.subr.mxu0 0.0
    %2421 = vmatpush1.msra.mxu0 0.0
    %2422 = vmatprep.subr.mxu0 0.0
    %2423 = vmatpush1.msra.mxu0 0.0
    %2424 = vmatprep.subr.mxu0 0.0
    %2425 = vmatpush1.msra.mxu0 0.0
    %2426 = vmatprep.subr.mxu0 0.0
    %2427 = vmatpush1.msra.mxu0 0.0
    %2428 = vmatprep.subr.mxu0 0.0
    %2429 = vmatpush1.msra.mxu0 0.0
    %2430 = vmatprep.subr.mxu0 0.0
    %2431 = vmatpush1.msra.mxu0 0.0
    %2432 = vmatprep.subr.mxu0 0.0
    %2433 = vmatpush1.msra.mxu0 0.0
    %2434 = vmatprep.subr.mxu0 0.0
    %2435 = vmatpush1.msra.mxu0 0.0
    %2436 = vmatprep.subr.mxu0 0.0
    %2437 = vmatpush1.msra.mxu0 0.0
    %2438 = vmatprep.subr.mxu0 0.0
    %2439 = vmatpush1.msra.mxu0 0.0
    %2440 = vmatprep.subr.mxu0 0.0
    %2441 = vmatpush1.msra.mxu0 0.0
    %2442 = vmatprep.subr.mxu0 0.0
    %2443 = vmatpush1.msra.mxu0 0.0
    %2444 = vmatprep.subr.mxu0 0.0
    %2445 = vmatpush1.msra.mxu0 0.0
    %2446 = vmatprep.mubr.f32.mxu0 0.0
    %2447 = vmatmul.mubr.f32.gmra.mrb[0].mxu0 %v2380
    %v2448 = vpop.f32.mrb[0].mxu0
    %v2449 = vadd.f32 0.0, %v2448
    %v2450 = vpop.f32.mrb[0].mxu0
    %2451 = vdwg.mxu0
    %v2452 = vadd.f32 %v2211, %v2449
    %v2454 = vrot.slane %v2452, 3
    %v2456 = vsel %vm615, %v1483, %v2454
    %v2457 = vld [vmem:[%s14] sm:$0x1]
    %v2459 = vlaneseq
    %v2460 = vshrl.u32 %v2459, 7
    %v2461 = vsub.s32 0, %v2460
    %v2462 = vrot.slane %v2457, %v2461
    %v2464 = vadd.f32 %v2456, %v2462
    %v2465 = vadd.f32 %v2454, %v2462
    %v2466 = vadd.f32 %v204, %v2464
    %v2467 = vadd.f32 %v205, %v2465
    %v2468 = vld [vmem:[%s15] sm:$0x1]
    %v2469 = vld [vmem:[%s16] sm:$0x1]
    %v2470 = vsel %vm208, %v2466, 0.0
    %2471 = vadd.xlane.f32.xlu0 %v2470
    %v2472 = vpop.xlane.xlu0 %2471
    %v2473 = vsel %vm212, %v2467, 0.0
    %2474 = vadd.xlane.f32.xlu0 %v2473
    %v2475 = vpop.xlane.xlu0 %2474
    %v2476 = vmul.f32 %v2472, %v216
    %v2477 = vmul.f32 %v2475, %v216
    %v2478 = vsub.f32 %v2466, %v2476
    %v2479 = vsub.f32 %v2467, %v2477
    %v2480 = vmul.f32 %v2478, %v2478
    %v2481 = vmul.f32 %v2479, %v2479
    %v2482 = vsel %vm208, %v2480, 0.0
    %2483 = vadd.xlane.f32.xlu0 %v2482
    %v2484 = vpop.xlane.xlu0 %2483
    %v2485 = vsel %vm212, %v2481, 0.0
    %2486 = vadd.xlane.f32.xlu0 %v2485
    %v2487 = vpop.xlane.xlu0 %2486
    %v2488 = vmul.f32 %v2484, %v216
    %v2489 = vmul.f32 %v2487, %v216
    %v2490 = vadd.f32 %v2488, 1e-12
    %v2491 = vadd.f32 %v2489, 1e-12
    %v2492 = vrsqrt.pop %v2490
    %v2493 = vrsqrt.pop %v2491
    %v2494 = vmul.f32 %v2478, %v2492
    %v2495 = vmul.f32 %v2479, %v2493
    %v2497 = vlaneseq
    %v2498 = vshrl.u32 %v2497, 7
    %v2499 = vsub.s32 0, %v2498
    %v2500 = vrot.slane %v2468, %v2499
    %v2502 = vmul.f32 %v2494, %v2500
    %v2503 = vmul.f32 %v2495, %v2500
    %v2505 = vlaneseq
    %v2506 = vshrl.u32 %v2505, 7
    %v2507 = vsub.s32 0, %v2506
    %v2508 = vrot.slane %v2469, %v2507
    %v2510 = vadd.f32 %v2502, %v2508
    %v2511 = vadd.f32 %v2503, %v2508
    %v2512 = vld [vmem:[%s17] sm:$0xff]
    %v2513 = vld [vmem:[%s17 + $0x8] sm:$0xff]
    %v2514 = vld [vmem:[%s17 + $0x10] sm:$0xff]
    %v2515 = vld [vmem:[%s17 + $0x18] sm:$0xff]
    %v2516 = vld [vmem:[%s18] sm:$0x1]
    %v2518 = vlaneseq
    %v2519 = vshrl.u32 %v2518, 7
    %v2520 = vsub.s32 0, %v2519
    %v2521 = vrot.slane %v2516, %v2520
    %v2524 = vsel %vm208, %v2510, 0
    %v2527 = vsel %vm208, %v2511, 0
    %2529 = vmatprep.subr.mxu0 0.0
    %2530 = vmatpush1.msra.mxu0 %v2512
    %2531 = vmatprep.subr.mxu0 0.0
    %2532 = vmatpush1.msra.mxu0 %v2513
    %2533 = vmatprep.subr.mxu0 0.0
    %2534 = vmatpush1.msra.mxu0 %v2514
    %2535 = vmatprep.subr.mxu0 0.0
    %2536 = vmatpush1.msra.mxu0 %v2515
    %2537 = vmatprep.subr.mxu0 0.0
    %2538 = vmatpush1.msra.mxu0 0.0
    %2539 = vmatprep.subr.mxu0 0.0
    %2540 = vmatpush1.msra.mxu0 0.0
    %2541 = vmatprep.subr.mxu0 0.0
    %2542 = vmatpush1.msra.mxu0 0.0
    %2543 = vmatprep.subr.mxu0 0.0
    %2544 = vmatpush1.msra.mxu0 0.0
    %2545 = vmatprep.subr.mxu0 0.0
    %2546 = vmatpush1.msra.mxu0 0.0
    %2547 = vmatprep.subr.mxu0 0.0
    %2548 = vmatpush1.msra.mxu0 0.0
    %2549 = vmatprep.subr.mxu0 0.0
    %2550 = vmatpush1.msra.mxu0 0.0
    %2551 = vmatprep.subr.mxu0 0.0
    %2552 = vmatpush1.msra.mxu0 0.0
    %2553 = vmatprep.subr.mxu0 0.0
    %2554 = vmatpush1.msra.mxu0 0.0
    %2555 = vmatprep.subr.mxu0 0.0
    %2556 = vmatpush1.msra.mxu0 0.0
    %2557 = vmatprep.subr.mxu0 0.0
    %2558 = vmatpush1.msra.mxu0 0.0
    %2559 = vmatprep.subr.mxu0 0.0
    %2560 = vmatpush1.msra.mxu0 0.0
    %2561 = vmatprep.subr.mxu0 0.0
    %2562 = vmatpush1.msra.mxu0 0.0
    %2563 = vmatprep.subr.mxu0 0.0
    %2564 = vmatpush1.msra.mxu0 0.0
    %2565 = vmatprep.subr.mxu0 0.0
    %2566 = vmatpush1.msra.mxu0 0.0
    %2567 = vmatprep.subr.mxu0 0.0
    %2568 = vmatpush1.msra.mxu0 0.0
    %2569 = vmatprep.subr.mxu0 0.0
    %2570 = vmatpush1.msra.mxu0 0.0
    %2571 = vmatprep.subr.mxu0 0.0
    %2572 = vmatpush1.msra.mxu0 0.0
    %2573 = vmatprep.subr.mxu0 0.0
    %2574 = vmatpush1.msra.mxu0 0.0
    %2575 = vmatprep.subr.mxu0 0.0
    %2576 = vmatpush1.msra.mxu0 0.0
    %2577 = vmatprep.subr.mxu0 0.0
    %2578 = vmatpush1.msra.mxu0 0.0
    %2579 = vmatprep.subr.mxu0 0.0
    %2580 = vmatpush1.msra.mxu0 0.0
    %2581 = vmatprep.subr.mxu0 0.0
    %2582 = vmatpush1.msra.mxu0 0.0
    %2583 = vmatprep.subr.mxu0 0.0
    %2584 = vmatpush1.msra.mxu0 0.0
    %2585 = vmatprep.subr.mxu0 0.0
    %2586 = vmatpush1.msra.mxu0 0.0
    %2587 = vmatprep.subr.mxu0 0.0
    %2588 = vmatpush1.msra.mxu0 0.0
    %2589 = vmatprep.subr.mxu0 0.0
    %2590 = vmatpush1.msra.mxu0 0.0
    %2591 = vmatprep.subr.mxu0 0.0
    %2592 = vmatpush1.msra.mxu0 0.0
    %2593 = vmatprep.mubr.f32.mxu0 0.0
    %2594 = vmatmul.mubr.f32.gmra.mrb[0].mxu0 %v2524
    %v2595 = vpop.f32.mrb[0].mxu0
    %v2596 = vadd.f32 %v2521, %v2595
    %v2597 = vpop.f32.mrb[0].mxu0
    %2598 = vmatprep.mubr.f32.mxu0 0.0
    %2599 = vmatmul.mubr.f32.gmra.mrb[0].mxu0 %v2527
    %v2600 = vpop.f32.mrb[0].mxu0
    %v2601 = vadd.f32 %v2521, %v2600
    %v2602 = vpop.f32.mrb[0].mxu0
    %2603 = vdwg.mxu0
    %v2604 = vmul.f32 %v2596, %v2596
    %v2605 = vmul.f32 %v2601, %v2601
    %v2606 = vmul.f32 %v2596, %v2604
    %v2607 = vmul.f32 %v2601, %v2605
    %v2608 = vmul.f32 %v2606, 0.044715
    %v2609 = vmul.f32 %v2607, 0.044715
    %v2610 = vadd.f32 %v2596, %v2608
    %v2611 = vadd.f32 %v2601, %v2609
    %v2612 = vmul.f32 %v2610, 0.7978846
    %v2613 = vmul.f32 %v2611, 0.7978846
    %v2614 = vtanh.pop %v2612
    %v2615 = vtanh.pop %v2613
    %v2616 = vadd.f32 %v2614, 1.0
    %v2617 = vadd.f32 %v2615, 1.0
    %v2618 = vmul.f32 %v2616, 0.5
    %v2619 = vmul.f32 %v2617, 0.5
    %v2620 = vmul.f32 %v2596, %v2618
    %v2621 = vmul.f32 %v2601, %v2619
    %v2622 = vld [vmem:[%s19] sm:$0xff]
    %v2623 = vld [vmem:[%s19 + $0x8] sm:$0xff]
    %v2624 = vld [vmem:[%s19 + $0x10] sm:$0xff]
    %v2625 = vld [vmem:[%s19 + $0x18] sm:$0xff]
    %v2626 = vld [vmem:[%s19 + $0x20] sm:$0xff]
    %v2627 = vld [vmem:[%s19 + $0x28] sm:$0xff]
    %v2628 = vld [vmem:[%s19 + $0x30] sm:$0xff]
    %v2629 = vld [vmem:[%s19 + $0x38] sm:$0xff]
    %v2631 = vsel %vm114, %v2620, 0
    %v2634 = vsel %vm114, %v2621, 0
    %2636 = vmatprep.subr.mxu0 0.0
    %2637 = vmatpush1.msra.mxu0 %v2622
    %2638 = vmatprep.subr.mxu0 0.0
    %2639 = vmatpush1.msra.mxu0 %v2623
    %2640 = vmatprep.subr.mxu0 0.0
    %2641 = vmatpush1.msra.mxu0 %v2624
    %2642 = vmatprep.subr.mxu0 0.0
    %2643 = vmatpush1.msra.mxu0 %v2625
    %2644 = vmatprep.subr.mxu0 0.0
    %2645 = vmatpush1.msra.mxu0 %v2626
    %2646 = vmatprep.subr.mxu0 0.0
    %2647 = vmatpush1.msra.mxu0 %v2627
    %2648 = vmatprep.subr.mxu0 0.0
    %2649 = vmatpush1.msra.mxu0 %v2628
    %2650 = vmatprep.subr.mxu0 0.0
    %2651 = vmatpush1.msra.mxu0 %v2629
    %2652 = vmatprep.subr.mxu0 0.0
    %2653 = vmatpush1.msra.mxu0 0.0
    %2654 = vmatprep.subr.mxu0 0.0
    %2655 = vmatpush1.msra.mxu0 0.0
    %2656 = vmatprep.subr.mxu0 0.0
    %2657 = vmatpush1.msra.mxu0 0.0
    %2658 = vmatprep.subr.mxu0 0.0
    %2659 = vmatpush1.msra.mxu0 0.0
    %2660 = vmatprep.subr.mxu0 0.0
    %2661 = vmatpush1.msra.mxu0 0.0
    %2662 = vmatprep.subr.mxu0 0.0
    %2663 = vmatpush1.msra.mxu0 0.0
    %2664 = vmatprep.subr.mxu0 0.0
    %2665 = vmatpush1.msra.mxu0 0.0
    %2666 = vmatprep.subr.mxu0 0.0
    %2667 = vmatpush1.msra.mxu0 0.0
    %2668 = vmatprep.subr.mxu0 0.0
    %2669 = vmatpush1.msra.mxu0 0.0
    %2670 = vmatprep.subr.mxu0 0.0
    %2671 = vmatpush1.msra.mxu0 0.0
    %2672 = vmatprep.subr.mxu0 0.0
    %2673 = vmatpush1.msra.mxu0 0.0
    %2674 = vmatprep.subr.mxu0 0.0
    %2675 = vmatpush1.msra.mxu0 0.0
    %2676 = vmatprep.subr.mxu0 0.0
    %2677 = vmatpush1.msra.mxu0 0.0
    %2678 = vmatprep.subr.mxu0 0.0
    %2679 = vmatpush1.msra.mxu0 0.0
    %2680 = vmatprep.subr.mxu0 0.0
    %2681 = vmatpush1.msra.mxu0 0.0
    %2682 = vmatprep.subr.mxu0 0.0
    %2683 = vmatpush1.msra.mxu0 0.0
    %2684 = vmatprep.subr.mxu0 0.0
    %2685 = vmatpush1.msra.mxu0 0.0
    %2686 = vmatprep.subr.mxu0 0.0
    %2687 = vmatpush1.msra.mxu0 0.0
    %2688 = vmatprep.subr.mxu0 0.0
    %2689 = vmatpush1.msra.mxu0 0.0
    %2690 = vmatprep.subr.mxu0 0.0
    %2691 = vmatpush1.msra.mxu0 0.0
    %2692 = vmatprep.subr.mxu0 0.0
    %2693 = vmatpush1.msra.mxu0 0.0
    %2694 = vmatprep.subr.mxu0 0.0
    %2695 = vmatpush1.msra.mxu0 0.0
    %2696 = vmatprep.subr.mxu0 0.0
    %2697 = vmatpush1.msra.mxu0 0.0
    %2698 = vmatprep.subr.mxu0 0.0
    %2699 = vmatpush1.msra.mxu0 0.0
    %2700 = vmatprep.mubr.f32.mxu0 0.0
    %2701 = vmatmul.mubr.f32.gmra.mrb[0].mxu0 %v2631
    %v2702 = vpop.f32.mrb[0].mxu0
    %v2703 = vadd.f32 0.0, %v2702
    %v2704 = vpop.f32.mrb[0].mxu0
    %2705 = vmatprep.mubr.f32.mxu0 0.0
    %2706 = vmatmul.mubr.f32.gmra.mrb[0].mxu0 %v2634
    %v2707 = vpop.f32.mrb[0].mxu0
    %v2708 = vadd.f32 0.0, %v2707
    %v2709 = vpop.f32.mrb[0].mxu0
    %2710 = vdwg.mxu0
    %v2711 = vadd.f32 %v2466, %v2703
    %v2712 = vadd.f32 %v2467, %v2708
    %v2713 = vld [vmem:[%s20] sm:$0x1]
    %v2715 = vlaneseq
    %v2716 = vshrl.u32 %v2715, 7
    %v2717 = vsub.s32 0, %v2716
    %v2718 = vrot.slane %v2713, %v2717
    %v2720 = vadd.f32 %v2711, %v2718
    %v2721 = vadd.f32 %v2712, %v2718
    %s2722 = scalar_lea.vmem %s5, 1
    %v2723 = vld [vmem:[%s2722] sm:$0x1]
    %s2724 = scalar_lea.vmem %s6, 1
    %v2725 = vld [vmem:[%s2724] sm:$0x1]
    %v2726 = vsel %vm208, %v2720, 0.0
    %2727 = vadd.xlane.f32.xlu0 %v2726
    %v2728 = vpop.xlane.xlu0 %2727
    %v2729 = vsel %vm212, %v2721, 0.0
    %2730 = vadd.xlane.f32.xlu0 %v2729
    %v2731 = vpop.xlane.xlu0 %2730
    %v2732 = vmul.f32 %v2728, %v216
    %v2733 = vmul.f32 %v2731, %v216
    %v2734 = vsub.f32 %v2720, %v2732
    %v2735 = vsub.f32 %v2721, %v2733
    %v2736 = vmul.f32 %v2734, %v2734
    %v2737 = vmul.f32 %v2735, %v2735
    %v2738 = vsel %vm208, %v2736, 0.0
    %2739 = vadd.xlane.f32.xlu0 %v2738
    %v2740 = vpop.xlane.xlu0 %2739
    %v2741 = vsel %vm212, %v2737, 0.0
    %2742 = vadd.xlane.f32.xlu0 %v2741
    %v2743 = vpop.xlane.xlu0 %2742
    %v2744 = vmul.f32 %v2740, %v216
    %v2745 = vmul.f32 %v2743, %v216
    %v2746 = vadd.f32 %v2744, 1e-12
    %v2747 = vadd.f32 %v2745, 1e-12
    %v2748 = vrsqrt.pop %v2746
    %v2749 = vrsqrt.pop %v2747
    %v2750 = vmul.f32 %v2734, %v2748
    %v2751 = vmul.f32 %v2735, %v2749
    %v2753 = vlaneseq
    %v2754 = vshrl.u32 %v2753, 7
    %v2755 = vsub.s32 0, %v2754
    %v2756 = vrot.slane %v2723, %v2755
    %v2758 = vmul.f32 %v2750, %v2756
    %v2759 = vmul.f32 %v2751, %v2756
    %v2761 = vlaneseq
    %v2762 = vshrl.u32 %v2761, 7
    %v2763 = vsub.s32 0, %v2762
    %v2764 = vrot.slane %v2725, %v2763
    %v2766 = vadd.f32 %v2758, %v2764
    %v2767 = vadd.f32 %v2759, %v2764
    %s2768 = scalar_lea.vmem %s7, 32
    %v2769 = vld [vmem:[%s2768] sm:$0xff]
    %v2770 = vld [vmem:[%s2768 + $0x8] sm:$0xff]
    %v2771 = vld [vmem:[%s2768 + $0x10] sm:$0xff]
    %v2772 = vld [vmem:[%s2768 + $0x18] sm:$0xff]
    %s2773 = scalar_lea.vmem %s8, 1
    %v2774 = vld [vmem:[%s2773] sm:$0x1]
    %v2776 = vlaneseq
    %v2777 = vshrl.u32 %v2776, 7
    %v2778 = vsub.s32 0, %v2777
    %v2779 = vrot.slane %v2774, %v2778
    %v2782 = vsel %vm208, %v2766, 0
    %v2785 = vsel %vm208, %v2767, 0
    %2787 = vmatprep.subr.mxu0 0.0
    %2788 = vmatpush1.msra.mxu0 %v2769
    %2789 = vmatprep.subr.mxu0 0.0
    %2790 = vmatpush1.msra.mxu0 %v2770
    %2791 = vmatprep.subr.mxu0 0.0
    %2792 = vmatpush1.msra.mxu0 %v2771
    %2793 = vmatprep.subr.mxu0 0.0
    %2794 = vmatpush1.msra.mxu0 %v2772
    %2795 = vmatprep.subr.mxu0 0.0
    %2796 = vmatpush1.msra.mxu0 0.0
    %2797 = vmatprep.subr.mxu0 0.0
    %2798 = vmatpush1.msra.mxu0 0.0
    %2799 = vmatprep.subr.mxu0 0.0
    %2800 = vmatpush1.msra.mxu0 0.0
    %2801 = vmatprep.subr.mxu0 0.0
    %2802 = vmatpush1.msra.mxu0 0.0
    %2803 = vmatprep.subr.mxu0 0.0
    %2804 = vmatpush1.msra.mxu0 0.0
    %2805 = vmatprep.subr.mxu0 0.0
    %2806 = vmatpush1.msra.mxu0 0.0
    %2807 = vmatprep.subr.mxu0 0.0
    %2808 = vmatpush1.msra.mxu0 0.0
    %2809 = vmatprep.subr.mxu0 0.0
    %2810 = vmatpush1.msra.mxu0 0.0
    %2811 = vmatprep.subr.mxu0 0.0
    %2812 = vmatpush1.msra.mxu0 0.0
    %2813 = vmatprep.subr.mxu0 0.0
    %2814 = vmatpush1.msra.mxu0 0.0
    %2815 = vmatprep.subr.mxu0 0.0
    %2816 = vmatpush1.msra.mxu0 0.0
    %2817 = vmatprep.subr.mxu0 0.0
    %2818 = vmatpush1.msra.mxu0 0.0
    %2819 = vmatprep.subr.mxu0 0.0
    %2820 = vmatpush1.msra.mxu0 0.0
    %2821 = vmatprep.subr.mxu0 0.0
    %2822 = vmatpush1.msra.mxu0 0.0
    %2823 = vmatprep.subr.mxu0 0.0
    %2824 = vmatpush1.msra.mxu0 0.0
    %2825 = vmatprep.subr.mxu0 0.0
    %2826 = vmatpush1.msra.mxu0 0.0
    %2827 = vmatprep.subr.mxu0 0.0
    %2828 = vmatpush1.msra.mxu0 0.0
    %2829 = vmatprep.subr.mxu0 0.0
    %2830 = vmatpush1.msra.mxu0 0.0
    %2831 = vmatprep.subr.mxu0 0.0
    %2832 = vmatpush1.msra.mxu0 0.0
    %2833 = vmatprep.subr.mxu0 0.0
    %2834 = vmatpush1.msra.mxu0 0.0
    %2835 = vmatprep.subr.mxu0 0.0
    %2836 = vmatpush1.msra.mxu0 0.0
    %2837 = vmatprep.subr.mxu0 0.0
    %2838 = vmatpush1.msra.mxu0 0.0
    %2839 = vmatprep.subr.mxu0 0.0
    %2840 = vmatpush1.msra.mxu0 0.0
    %2841 = vmatprep.subr.mxu0 0.0
    %2842 = vmatpush1.msra.mxu0 0.0
    %2843 = vmatprep.subr.mxu0 0.0
    %2844 = vmatpush1.msra.mxu0 0.0
    %2845 = vmatprep.subr.mxu0 0.0
    %2846 = vmatpush1.msra.mxu0 0.0
    %2847 = vmatprep.subr.mxu0 0.0
    %2848 = vmatpush1.msra.mxu0 0.0
    %2849 = vmatprep.subr.mxu0 0.0
    %2850 = vmatpush1.msra.mxu0 0.0
    %2851 = vmatprep.mubr.f32.mxu0 0.0
    %2852 = vmatmul.mubr.f32.gmra.mrb[0].mxu0 %v2782
    %v2853 = vpop.f32.mrb[0].mxu0
    %v2854 = vadd.f32 %v2779, %v2853
    %v2855 = vpop.f32.mrb[0].mxu0
    %2856 = vmatprep.mubr.f32.mxu0 0.0
    %2857 = vmatmul.mubr.f32.gmra.mrb[0].mxu0 %v2785
    %v2858 = vpop.f32.mrb[0].mxu0
    %v2859 = vadd.f32 %v2779, %v2858
    %v2860 = vpop.f32.mrb[0].mxu0
    %2861 = vdwg.mxu0
    %s2862 = scalar_lea.vmem %s9, 32
    %v2863 = vld [vmem:[%s2862] sm:$0xff]
    %v2864 = vld [vmem:[%s2862 + $0x8] sm:$0xff]
    %v2865 = vld [vmem:[%s2862 + $0x10] sm:$0xff]
    %v2866 = vld [vmem:[%s2862 + $0x18] sm:$0xff]
    %s2867 = scalar_lea.vmem %s10, 1
    %v2868 = vld [vmem:[%s2867] sm:$0x1]
    %v2870 = vlaneseq
    %v2871 = vshrl.u32 %v2870, 7
    %v2872 = vsub.s32 0, %v2871
    %v2873 = vrot.slane %v2868, %v2872
    %2875 = vmatprep.subr.mxu0 0.0
    %2876 = vmatpush1.msra.mxu0 %v2863
    %2877 = vmatprep.subr.mxu0 0.0
    %2878 = vmatpush1.msra.mxu0 %v2864
    %2879 = vmatprep.subr.mxu0 0.0
    %2880 = vmatpush1.msra.mxu0 %v2865
    %2881 = vmatprep.subr.mxu0 0.0
    %2882 = vmatpush1.msra.mxu0 %v2866
    %2883 = vmatprep.subr.mxu0 0.0
    %2884 = vmatpush1.msra.mxu0 0.0
    %2885 = vmatprep.subr.mxu0 0.0
    %2886 = vmatpush1.msra.mxu0 0.0
    %2887 = vmatprep.subr.mxu0 0.0
    %2888 = vmatpush1.msra.mxu0 0.0
    %2889 = vmatprep.subr.mxu0 0.0
    %2890 = vmatpush1.msra.mxu0 0.0
    %2891 = vmatprep.subr.mxu0 0.0
    %2892 = vmatpush1.msra.mxu0 0.0
    %2893 = vmatprep.subr.mxu0 0.0
    %2894 = vmatpush1.msra.mxu0 0.0
    %2895 = vmatprep.subr.mxu0 0.0
    %2896 = vmatpush1.msra.mxu0 0.0
    %2897 = vmatprep.subr.mxu0 0.0
    %2898 = vmatpush1.msra.mxu0 0.0
    %2899 = vmatprep.subr.mxu0 0.0
    %2900 = vmatpush1.msra.mxu0 0.0
    %2901 = vmatprep.subr.mxu0 0.0
    %2902 = vmatpush1.msra.mxu0 0.0
    %2903 = vmatprep.subr.mxu0 0.0
    %2904 = vmatpush1.msra.mxu0 0.0
    %2905 = vmatprep.subr.mxu0 0.0
    %2906 = vmatpush1.msra.mxu0 0.0
    %2907 = vmatprep.subr.mxu0 0.0
    %2908 = vmatpush1.msra.mxu0 0.0
    %2909 = vmatprep.subr.mxu0 0.0
    %2910 = vmatpush1.msra.mxu0 0.0
    %2911 = vmatprep.subr.mxu0 0.0
    %2912 = vmatpush1.msra.mxu0 0.0
    %2913 = vmatprep.subr.mxu0 0.0
    %2914 = vmatpush1.msra.mxu0 0.0
    %2915 = vmatprep.subr.mxu0 0.0
    %2916 = vmatpush1.msra.mxu0 0.0
    %2917 = vmatprep.subr.mxu0 0.0
    %2918 = vmatpush1.msra.mxu0 0.0
    %2919 = vmatprep.subr.mxu0 0.0
    %2920 = vmatpush1.msra.mxu0 0.0
    %2921 = vmatprep.subr.mxu0 0.0
    %2922 = vmatpush1.msra.mxu0 0.0
    %2923 = vmatprep.subr.mxu0 0.0
    %2924 = vmatpush1.msra.mxu0 0.0
    %2925 = vmatprep.subr.mxu0 0.0
    %2926 = vmatpush1.msra.mxu0 0.0
    %2927 = vmatprep.subr.mxu0 0.0
    %2928 = vmatpush1.msra.mxu0 0.0
    %2929 = vmatprep.subr.mxu0 0.0
    %2930 = vmatpush1.msra.mxu0 0.0
    %2931 = vmatprep.subr.mxu0 0.0
    %2932 = vmatpush1.msra.mxu0 0.0
    %2933 = vmatprep.subr.mxu0 0.0
    %2934 = vmatpush1.msra.mxu0 0.0
    %2935 = vmatprep.subr.mxu0 0.0
    %2936 = vmatpush1.msra.mxu0 0.0
    %2937 = vmatprep.subr.mxu0 0.0
    %2938 = vmatpush1.msra.mxu0 0.0
    %2939 = vmatprep.mubr.f32.mxu0 0.0
    %2940 = vmatmul.mubr.f32.gmra.mrb[0].mxu0 %v2782
    %v2941 = vpop.f32.mrb[0].mxu0
    %v2942 = vadd.f32 %v2873, %v2941
    %v2943 = vpop.f32.mrb[0].mxu0
    %2944 = vmatprep.mubr.f32.mxu0 0.0
    %2945 = vmatmul.mubr.f32.gmra.mrb[0].mxu0 %v2785
    %v2946 = vpop.f32.mrb[0].mxu0
    %v2947 = vadd.f32 %v2873, %v2946
    %v2948 = vpop.f32.mrb[0].mxu0
    %2949 = vdwg.mxu0
    %s2950 = scalar_lea.vmem %s11, 32
    %v2951 = vld [vmem:[%s2950] sm:$0xff]
    %v2952 = vld [vmem:[%s2950 + $0x8] sm:$0xff]
    %v2953 = vld [vmem:[%s2950 + $0x10] sm:$0xff]
    %v2954 = vld [vmem:[%s2950 + $0x18] sm:$0xff]
    %s2955 = scalar_lea.vmem %s12, 1
    %v2956 = vld [vmem:[%s2955] sm:$0x1]
    %v2958 = vlaneseq
    %v2959 = vshrl.u32 %v2958, 7
    %v2960 = vsub.s32 0, %v2959
    %v2961 = vrot.slane %v2956, %v2960
    %2963 = vmatprep.subr.mxu0 0.0
    %2964 = vmatpush1.msra.mxu0 %v2951
    %2965 = vmatprep.subr.mxu0 0.0
    %2966 = vmatpush1.msra.mxu0 %v2952
    %2967 = vmatprep.subr.mxu0 0.0
    %2968 = vmatpush1.msra.mxu0 %v2953
    %2969 = vmatprep.subr.mxu0 0.0
    %2970 = vmatpush1.msra.mxu0 %v2954
    %2971 = vmatprep.subr.mxu0 0.0
    %2972 = vmatpush1.msra.mxu0 0.0
    %2973 = vmatprep.subr.mxu0 0.0
    %2974 = vmatpush1.msra.mxu0 0.0
    %2975 = vmatprep.subr.mxu0 0.0
    %2976 = vmatpush1.msra.mxu0 0.0
    %2977 = vmatprep.subr.mxu0 0.0
    %2978 = vmatpush1.msra.mxu0 0.0
    %2979 = vmatprep.subr.mxu0 0.0
    %2980 = vmatpush1.msra.mxu0 0.0
    %2981 = vmatprep.subr.mxu0 0.0
    %2982 = vmatpush1.msra.mxu0 0.0
    %2983 = vmatprep.subr.mxu0 0.0
    %2984 = vmatpush1.msra.mxu0 0.0
    %2985 = vmatprep.subr.mxu0 0.0
    %2986 = vmatpush1.msra.mxu0 0.0
    %2987 = vmatprep.subr.mxu0 0.0
    %2988 = vmatpush1.msra.mxu0 0.0
    %2989 = vmatprep.subr.mxu0 0.0
    %2990 = vmatpush1.msra.mxu0 0.0
    %2991 = vmatprep.subr.mxu0 0.0
    %2992 = vmatpush1.msra.mxu0 0.0
    %2993 = vmatprep.subr.mxu0 0.0
    %2994 = vmatpush1.msra.mxu0 0.0
    %2995 = vmatprep.subr.mxu0 0.0
    %2996 = vmatpush1.msra.mxu0 0.0
    %2997 = vmatprep.subr.mxu0 0.0
    %2998 = vmatpush1.msra.mxu0 0.0
    %2999 = vmatprep.subr.mxu0 0.0
    %3000 = vmatpush1.msra.mxu0 0.0
    %3001 = vmatprep.subr.mxu0 0.0
    %3002 = vmatpush1.msra.mxu0 0.0
    %3003 = vmatprep.subr.mxu0 0.0
    %3004 = vmatpush1.msra.mxu0 0.0
    %3005 = vmatprep.subr.mxu0 0.0
    %3006 = vmatpush1.msra.mxu0 0.0
    %3007 = vmatprep.subr.mxu0 0.0
    %3008 = vmatpush1.msra.mxu0 0.0
    %3009 = vmatprep.subr.mxu0 0.0
    %3010 = vmatpush1.msra.mxu0 0.0
    %3011 = vmatprep.subr.mxu0 0.0
    %3012 = vmatpush1.msra.mxu0 0.0
    %3013 = vmatprep.subr.mxu0 0.0
    %3014 = vmatpush1.msra.mxu0 0.0
    %3015 = vmatprep.subr.mxu0 0.0
    %3016 = vmatpush1.msra.mxu0 0.0
    %3017 = vmatprep.subr.mxu0 0.0
    %3018 = vmatpush1.msra.mxu0 0.0
    %3019 = vmatprep.subr.mxu0 0.0
    %3020 = vmatpush1.msra.mxu0 0.0
    %3021 = vmatprep.subr.mxu0 0.0
    %3022 = vmatpush1.msra.mxu0 0.0
    %3023 = vmatprep.subr.mxu0 0.0
    %3024 = vmatpush1.msra.mxu0 0.0
    %3025 = vmatprep.subr.mxu0 0.0
    %3026 = vmatpush1.msra.mxu0 0.0
    %3027 = vmatprep.mubr.f32.mxu0 0.0
    %3028 = vmatmul.mubr.f32.gmra.mrb[0].mxu0 %v2782
    %v3029 = vpop.f32.mrb[0].mxu0
    %v3030 = vadd.f32 %v2961, %v3029
    %v3031 = vpop.f32.mrb[0].mxu0
    %3032 = vmatprep.mubr.f32.mxu0 0.0
    %3033 = vmatmul.mubr.f32.gmra.mrb[0].mxu0 %v2785
    %v3034 = vpop.f32.mrb[0].mxu0
    %v3035 = vadd.f32 %v2961, %v3034
    %v3036 = vpop.f32.mrb[0].mxu0
    %3037 = vdwg.mxu0
    %s3038 = scalar_lea.vmem %s13, 32
    %v3039 = vld [vmem:[%s3038] sm:$0xff]
    %v3040 = vld [vmem:[%s3038 + $0x8] sm:$0xff]
    %v3041 = vld [vmem:[%s3038 + $0x10] sm:$0xff]
    %v3042 = vld [vmem:[%s3038 + $0x18] sm:$0xff]
    %v3044 = vsel %vm521, %v2854, 0
    %v3047 = vsel %vm521, %v2942, 0
    %3049 = vmatprep.subr.mxu0 0.0
    %3050 = vmatpush1.xpose.msra.mxu0 %v3047
    %3051 = vmatprep.subr.mxu0 0.0
    %3052 = vmatpush1.xpose.msra.mxu0 0.0
    %3053 = vmatprep.subr.mxu0 0.0
    %3054 = vmatpush1.xpose.msra.mxu0 0.0
    %3055 = vmatprep.subr.mxu0 0.0
    %3056 = vmatpush1.xpose.msra.mxu0 0.0
    %3057 = vmatprep.subr.mxu0 0.0
    %3058 = vmatpush1.xpose.msra.mxu0 0.0
    %3059 = vmatprep.subr.mxu0 0.0
    %3060 = vmatpush1.xpose.msra.mxu0 0.0
    %3061 = vmatprep.subr.mxu0 0.0
    %3062 = vmatpush1.xpose.msra.mxu0 0.0
    %3063 = vmatprep.subr.mxu0 0.0
    %3064 = vmatpush1.xpose.msra.mxu0 0.0
    %3065 = vmatprep.subr.mxu0 0.0
    %3066 = vmatpush1.xpose.msra.mxu0 0.0
    %3067 = vmatprep.subr.mxu0 0.0
    %3068 = vmatpush1.xpose.msra.mxu0 0.0
    %3069 = vmatprep.subr.mxu0 0.0
    %3070 = vmatpush1.xpose.msra.mxu0 0.0
    %3071 = vmatprep.subr.mxu0 0.0
    %3072 = vmatpush1.xpose.msra.mxu0 0.0
    %3073 = vmatprep.subr.mxu0 0.0
    %3074 = vmatpush1.xpose.msra.mxu0 0.0
    %3075 = vmatprep.subr.mxu0 0.0
    %3076 = vmatpush1.xpose.msra.mxu0 0.0
    %3077 = vmatprep.subr.mxu0 0.0
    %3078 = vmatpush1.xpose.msra.mxu0 0.0
    %3079 = vmatprep.subr.mxu0 0.0
    %3080 = vmatpush1.xpose.msra.mxu0 0.0
    %3081 = vmatprep.subr.mxu0 0.0
    %3082 = vmatpush1.xpose.msra.mxu0 0.0
    %3083 = vmatprep.subr.mxu0 0.0
    %3084 = vmatpush1.xpose.msra.mxu0 0.0
    %3085 = vmatprep.subr.mxu0 0.0
    %3086 = vmatpush1.xpose.msra.mxu0 0.0
    %3087 = vmatprep.subr.mxu0 0.0
    %3088 = vmatpush1.xpose.msra.mxu0 0.0
    %3089 = vmatprep.subr.mxu0 0.0
    %3090 = vmatpush1.xpose.msra.mxu0 0.0
    %3091 = vmatprep.subr.mxu0 0.0
    %3092 = vmatpush1.xpose.msra.mxu0 0.0
    %3093 = vmatprep.subr.mxu0 0.0
    %3094 = vmatpush1.xpose.msra.mxu0 0.0
    %3095 = vmatprep.subr.mxu0 0.0
    %3096 = vmatpush1.xpose.msra.mxu0 0.0
    %3097 = vmatprep.subr.mxu0 0.0
    %3098 = vmatpush1.xpose.msra.mxu0 0.0
    %3099 = vmatprep.subr.mxu0 0.0
    %3100 = vmatpush1.xpose.msra.mxu0 0.0
    %3101 = vmatprep.subr.mxu0 0.0
    %3102 = vmatpush1.xpose.msra.mxu0 0.0
    %3103 = vmatprep.subr.mxu0 0.0
    %3104 = vmatpush1.xpose.msra.mxu0 0.0
    %3105 = vmatprep.subr.mxu0 0.0
    %3106 = vmatpush1.xpose.msra.mxu0 0.0
    %3107 = vmatprep.subr.mxu0 0.0
    %3108 = vmatpush1.xpose.msra.mxu0 0.0
    %3109 = vmatprep.subr.mxu0 0.0
    %3110 = vmatpush1.xpose.msra.mxu0 0.0
    %3111 = vmatprep.subr.mxu0 0.0
    %3112 = vmatpush1.xpose.msra.mxu0 0.0
    %3113 = vmatprep.mubr.f32.mxu0 0.0
    %3114 = vmatmul.mubr.f32.gmra.mrb[0].mxu0 %v3044
    %v3115 = vpop.f32.mrb[0].mxu0
    %v3116 = vadd.f32 0.0, %v3115
    %v3117 = vpop.f32.mrb[0].mxu0
    %3118 = vdwg.mxu0
    %v3119 = vmul.f32 %v3116, 0.35355338
    %v3120 = vsel %vm599, %v3119, -inf
    %3121 = vmax.xlane.f32.xlu0 %v3120
    %v3122 = vpop.xlane.xlu0 %3121
    %v3123 = vsub.f32 %v3119, %v3122
    %v3124 = vmul.f32 %v3123, 1.442695
    %v3125 = vpow.pop %v3124
    %v3126 = vsel %vm599, %v3125, 0.0
    %3127 = vadd.xlane.f32.xlu0 %v3126
    %v3128 = vpop.xlane.xlu0 %3127
    %v3129 = vrcp.pop %v3128
    %v3130 = vmul.f32 %v3125, %v3129
    %v3132 = vsel %vm611, %v3130, 0
    %v3135 = vsel %vm615, %v3030, 0
    %3137 = vmatprep.subr.mxu0 0.0
    %3138 = vmatpush1.msra.mxu0 %v3135
    %3139 = vmatprep.subr.mxu0 0.0
    %3140 = vmatpush1.msra.mxu0 0.0
    %3141 = vmatprep.subr.mxu0 0.0
    %3142 = vmatpush1.msra.mxu0 0.0
    %3143 = vmatprep.subr.mxu0 0.0
    %3144 = vmatpush1.msra.mxu0 0.0
    %3145 = vmatprep.subr.mxu0 0.0
    %3146 = vmatpush1.msra.mxu0 0.0
    %3147 = vmatprep.subr.mxu0 0.0
    %3148 = vmatpush1.msra.mxu0 0.0
    %3149 = vmatprep.subr.mxu0 0.0
    %3150 = vmatpush1.msra.mxu0 0.0
    %3151 = vmatprep.subr.mxu0 0.0
    %3152 = vmatpush1.msra.mxu0 0.0
    %3153 = vmatprep.subr.mxu0 0.0
    %3154 = vmatpush1.msra.mxu0 0.0
    %3155 = vmatprep.subr.mxu0 0.0
    %3156 = vmatpush1.msra.mxu0 0.0
    %3157 = vmatprep.subr.mxu0 0.0
    %3158 = vmatpush1.msra.mxu0 0.0
    %3159 = vmatprep.subr.mxu0 0.0
    %3160 = vmatpush1.msra.mxu0 0.0
    %3161 = vmatprep.subr.mxu0 0.0
    %3162 = vmatpush1.msra.mxu0 0.0
    %3163 = vmatprep.subr.mxu0 0.0
    %3164 = vmatpush1.msra.mxu0 0.0
    %3165 = vmatprep.subr.mxu0 0.0
    %3166 = vmatpush1.msra.mxu0 0.0
    %3167 = vmatprep.subr.mxu0 0.0
    %3168 = vmatpush1.msra.mxu0 0.0
    %3169 = vmatprep.subr.mxu0 0.0
    %3170 = vmatpush1.msra.mxu0 0.0
    %3171 = vmatprep.subr.mxu0 0.0
    %3172 = vmatpush1.msra.mxu0 0.0
    %3173 = vmatprep.subr.mxu0 0.0
    %3174 = vmatpush1.msra.mxu0 0.0
    %3175 = vmatprep.subr.mxu0 0.0
    %3176 = vmatpush1.msra.mxu0 0.0
    %3177 = vmatprep.subr.mxu0 0.0
    %3178 = vmatpush1.msra.mxu0 0.0
    %3179 = vmatprep.subr.mxu0 0.0
    %3180 = vmatpush1.msra.mxu0 0.0
    %3181 = vmatprep.subr.mxu0 0.0
    %3182 = vmatpush1.msra.mxu0 0.0
    %3183 = vmatprep.subr.mxu0 0.0
    %3184 = vmatpush1.msra.mxu0 0.0
    %3185 = vmatprep.subr.mxu0 0.0
    %3186 = vmatpush1.msra.mxu0 0.0
    %3187 = vmatprep.subr.mxu0 0.0
    %3188 = vmatpush1.msra.mxu0 0.0
    %3189 = vmatprep.subr.mxu0 0.0
    %3190 = vmatpush1.msra.mxu0 0.0
    %3191 = vmatprep.subr.mxu0 0.0
    %3192 = vmatpush1.msra.mxu0 0.0
    %3193 = vmatprep.subr.mxu0 0.0
    %3194 = vmatpush1.msra.mxu0 0.0
    %3195 = vmatprep.subr.mxu0 0.0
    %3196 = vmatpush1.msra.mxu0 0.0
    %3197 = vmatprep.subr.mxu0 0.0
    %3198 = vmatpush1.msra.mxu0 0.0
    %3199 = vmatprep.subr.mxu0 0.0
    %3200 = vmatpush1.msra.mxu0 0.0
    %3201 = vmatprep.mubr.f32.mxu0 0.0
    %3202 = vmatmul.mubr.f32.gmra.mrb[0].mxu0 %v3132
    %v3203 = vpop.f32.mrb[0].mxu0
    %v3204 = vadd.f32 0.0, %v3203
    %v3205 = vpop.f32.mrb[0].mxu0
    %3206 = vdwg.mxu0
    %3207 = vrot.lane.b32.xlu0 %v2854, 120
    %v3208 = vpop.permute.xlu0 %3207
    %3209 = vrot.lane.b32.xlu0 %v2942, 120
    %v3210 = vpop.permute.xlu0 %3209
    %v3211 = vsel %vm521, %v3208, 0
    %v3213 = vsel %vm521, %v3210, 0
    %3215 = vmatprep.subr.mxu0 0.0
    %3216 = vmatpush1.xpose.msra.mxu0 %v3213
    %3217 = vmatprep.subr.mxu0 0.0
    %3218 = vmatpush1.xpose.msra.mxu0 0.0
    %3219 = vmatprep.subr.mxu0 0.0
    %3220 = vmatpush1.xpose.msra.mxu0 0.0
    %3221 = vmatprep.subr.mxu0 0.0
    %3222 = vmatpush1.xpose.msra.mxu0 0.0
    %3223 = vmatprep.subr.mxu0 0.0
    %3224 = vmatpush1.xpose.msra.mxu0 0.0
    %3225 = vmatprep.subr.mxu0 0.0
    %3226 = vmatpush1.xpose.msra.mxu0 0.0
    %3227 = vmatprep.subr.mxu0 0.0
    %3228 = vmatpush1.xpose.msra.mxu0 0.0
    %3229 = vmatprep.subr.mxu0 0.0
    %3230 = vmatpush1.xpose.msra.mxu0 0.0
    %3231 = vmatprep.subr.mxu0 0.0
    %3232 = vmatpush1.xpose.msra.mxu0 0.0
    %3233 = vmatprep.subr.mxu0 0.0
    %3234 = vmatpush1.xpose.msra.mxu0 0.0
    %3235 = vmatprep.subr.mxu0 0.0
    %3236 = vmatpush1.xpose.msra.mxu0 0.0
    %3237 = vmatprep.subr.mxu0 0.0
    %3238 = vmatpush1.xpose.msra.mxu0 0.0
    %3239 = vmatprep.subr.mxu0 0.0
    %3240 = vmatpush1.xpose.msra.mxu0 0.0
    %3241 = vmatprep.subr.mxu0 0.0
    %3242 = vmatpush1.xpose.msra.mxu0 0.0
    %3243 = vmatprep.subr.mxu0 0.0
    %3244 = vmatpush1.xpose.msra.mxu0 0.0
    %3245 = vmatprep.subr.mxu0 0.0
    %3246 = vmatpush1.xpose.msra.mxu0 0.0
    %3247 = vmatprep.subr.mxu0 0.0
    %3248 = vmatpush1.xpose.msra.mxu0 0.0
    %3249 = vmatprep.subr.mxu0 0.0
    %3250 = vmatpush1.xpose.msra.mxu0 0.0
    %3251 = vmatprep.subr.mxu0 0.0
    %3252 = vmatpush1.xpose.msra.mxu0 0.0
    %3253 = vmatprep.subr.mxu0 0.0
    %3254 = vmatpush1.xpose.msra.mxu0 0.0
    %3255 = vmatprep.subr.mxu0 0.0
    %3256 = vmatpush1.xpose.msra.mxu0 0.0
    %3257 = vmatprep.subr.mxu0 0.0
    %3258 = vmatpush1.xpose.msra.mxu0 0.0
    %3259 = vmatprep.subr.mxu0 0.0
    %3260 = vmatpush1.xpose.msra.mxu0 0.0
    %3261 = vmatprep.subr.mxu0 0.0
    %3262 = vmatpush1.xpose.msra.mxu0 0.0
    %3263 = vmatprep.subr.mxu0 0.0
    %3264 = vmatpush1.xpose.msra.mxu0 0.0
    %3265 = vmatprep.subr.mxu0 0.0
    %3266 = vmatpush1.xpose.msra.mxu0 0.0
    %3267 = vmatprep.subr.mxu0 0.0
    %3268 = vmatpush1.xpose.msra.mxu0 0.0
    %3269 = vmatprep.subr.mxu0 0.0
    %3270 = vmatpush1.xpose.msra.mxu0 0.0
    %3271 = vmatprep.subr.mxu0 0.0
    %3272 = vmatpush1.xpose.msra.mxu0 0.0
    %3273 = vmatprep.subr.mxu0 0.0
    %3274 = vmatpush1.xpose.msra.mxu0 0.0
    %3275 = vmatprep.subr.mxu0 0.0
    %3276 = vmatpush1.xpose.msra.mxu0 0.0
    %3277 = vmatprep.subr.mxu0 0.0
    %3278 = vmatpush1.xpose.msra.mxu0 0.0
    %3279 = vmatprep.mubr.f32.mxu0 0.0
    %3280 = vmatmul.mubr.f32.gmra.mrb[0].mxu0 %v3211
    %v3281 = vpop.f32.mrb[0].mxu0
    %v3282 = vadd.f32 0.0, %v3281
    %v3283 = vpop.f32.mrb[0].mxu0
    %3284 = vdwg.mxu0
    %v3285 = vmul.f32 %v3282, 0.35355338
    %v3286 = vsel %vm599, %v3285, -inf
    %3287 = vmax.xlane.f32.xlu0 %v3286
    %v3288 = vpop.xlane.xlu0 %3287
    %v3289 = vsub.f32 %v3285, %v3288
    %v3290 = vmul.f32 %v3289, 1.442695
    %v3291 = vpow.pop %v3290
    %v3292 = vsel %vm599, %v3291, 0.0
    %3293 = vadd.xlane.f32.xlu0 %v3292
    %v3294 = vpop.xlane.xlu0 %3293
    %v3295 = vrcp.pop %v3294
    %v3296 = vmul.f32 %v3291, %v3295
    %3297 = vrot.lane.b32.xlu0 %v3030, 120
    %v3298 = vpop.permute.xlu0 %3297
    %v3300 = vsel %vm611, %v3296, 0
    %v3302 = vsel %vm615, %v3298, 0
    %3304 = vmatprep.subr.mxu0 0.0
    %3305 = vmatpush1.msra.mxu0 %v3302
    %3306 = vmatprep.subr.mxu0 0.0
    %3307 = vmatpush1.msra.mxu0 0.0
    %3308 = vmatprep.subr.mxu0 0.0
    %3309 = vmatpush1.msra.mxu0 0.0
    %3310 = vmatprep.subr.mxu0 0.0
    %3311 = vmatpush1.msra.mxu0 0.0
    %3312 = vmatprep.subr.mxu0 0.0
    %3313 = vmatpush1.msra.mxu0 0.0
    %3314 = vmatprep.subr.mxu0 0.0
    %3315 = vmatpush1.msra.mxu0 0.0
    %3316 = vmatprep.subr.mxu0 0.0
    %3317 = vmatpush1.msra.mxu0 0.0
    %3318 = vmatprep.subr.mxu0 0.0
    %3319 = vmatpush1.msra.mxu0 0.0
    %3320 = vmatprep.subr.mxu0 0.0
    %3321 = vmatpush1.msra.mxu0 0.0
    %3322 = vmatprep.subr.mxu0 0.0
    %3323 = vmatpush1.msra.mxu0 0.0
    %3324 = vmatprep.subr.mxu0 0.0
    %3325 = vmatpush1.msra.mxu0 0.0
    %3326 = vmatprep.subr.mxu0 0.0
    %3327 = vmatpush1.msra.mxu0 0.0
    %3328 = vmatprep.subr.mxu0 0.0
    %3329 = vmatpush1.msra.mxu0 0.0
    %3330 = vmatprep.subr.mxu0 0.0
    %3331 = vmatpush1.msra.mxu0 0.0
    %3332 = vmatprep.subr.mxu0 0.0
    %3333 = vmatpush1.msra.mxu0 0.0
    %3334 = vmatprep.subr.mxu0 0.0
    %3335 = vmatpush1.msra.mxu0 0.0
    %3336 = vmatprep.subr.mxu0 0.0
    %3337 = vmatpush1.msra.mxu0 0.0
    %3338 = vmatprep.subr.mxu0 0.0
    %3339 = vmatpush1.msra.mxu0 0.0
    %3340 = vmatprep.subr.mxu0 0.0
    %3341 = vmatpush1.msra.mxu0 0.0
    %3342 = vmatprep.subr.mxu0 0.0
    %3343 = vmatpush1.msra.mxu0 0.0
    %3344 = vmatprep.subr.mxu0 0.0
    %3345 = vmatpush1.msra.mxu0 0.0
    %3346 = vmatprep.subr.mxu0 0.0
    %3347 = vmatpush1.msra.mxu0 0.0
    %3348 = vmatprep.subr.mxu0 0.0
    %3349 = vmatpush1.msra.mxu0 0.0
    %3350 = vmatprep.subr.mxu0 0.0
    %3351 = vmatpush1.msra.mxu0 0.0
    %3352 = vmatprep.subr.mxu0 0.0
    %3353 = vmatpush1.msra.mxu0 0.0
    %3354 = vmatprep.subr.mxu0 0.0
    %3355 = vmatpush1.msra.mxu0 0.0
    %3356 = vmatprep.subr.mxu0 0.0
    %3357 = vmatpush1.msra.mxu0 0.0
    %3358 = vmatprep.subr.mxu0 0.0
    %3359 = vmatpush1.msra.mxu0 0.0
    %3360 = vmatprep.subr.mxu0 0.0
    %3361 = vmatpush1.msra.mxu0 0.0
    %3362 = vmatprep.subr.mxu0 0.0
    %3363 = vmatpush1.msra.mxu0 0.0
    %3364 = vmatprep.subr.mxu0 0.0
    %3365 = vmatpush1.msra.mxu0 0.0
    %3366 = vmatprep.subr.mxu0 0.0
    %3367 = vmatpush1.msra.mxu0 0.0
    %3368 = vmatprep.mubr.f32.mxu0 0.0
    %3369 = vmatmul.mubr.f32.gmra.mrb[0].mxu0 %v3300
    %v3370 = vpop.f32.mrb[0].mxu0
    %v3371 = vadd.f32 0.0, %v3370
    %v3372 = vpop.f32.mrb[0].mxu0
    %3373 = vdwg.mxu0
    %v3375 = vsel %vm521, %v3371, 0
    %3377 = vmatprep.subr.mxu0 0.0
    %3378 = vmatpush1.msra.mxu0 %v3040
    %3379 = vmatprep.subr.mxu0 0.0
    %3380 = vmatpush1.msra.mxu0 0.0
    %3381 = vmatprep.subr.mxu0 0.0
    %3382 = vmatpush1.msra.mxu0 0.0
    %3383 = vmatprep.subr.mxu0 0.0
    %3384 = vmatpush1.msra.mxu0 0.0
    %3385 = vmatprep.subr.mxu0 0.0
    %3386 = vmatpush1.msra.mxu0 0.0
    %3387 = vmatprep.subr.mxu0 0.0
    %3388 = vmatpush1.msra.mxu0 0.0
    %3389 = vmatprep.subr.mxu0 0.0
    %3390 = vmatpush1.msra.mxu0 0.0
    %3391 = vmatprep.subr.mxu0 0.0
    %3392 = vmatpush1.msra.mxu0 0.0
    %3393 = vmatprep.subr.mxu0 0.0
    %3394 = vmatpush1.msra.mxu0 0.0
    %3395 = vmatprep.subr.mxu0 0.0
    %3396 = vmatpush1.msra.mxu0 0.0
    %3397 = vmatprep.subr.mxu0 0.0
    %3398 = vmatpush1.msra.mxu0 0.0
    %3399 = vmatprep.subr.mxu0 0.0
    %3400 = vmatpush1.msra.mxu0 0.0
    %3401 = vmatprep.subr.mxu0 0.0
    %3402 = vmatpush1.msra.mxu0 0.0
    %3403 = vmatprep.subr.mxu0 0.0
    %3404 = vmatpush1.msra.mxu0 0.0
    %3405 = vmatprep.subr.mxu0 0.0
    %3406 = vmatpush1.msra.mxu0 0.0
    %3407 = vmatprep.subr.mxu0 0.0
    %3408 = vmatpush1.msra.mxu0 0.0
    %3409 = vmatprep.subr.mxu0 0.0
    %3410 = vmatpush1.msra.mxu0 0.0
    %3411 = vmatprep.subr.mxu0 0.0
    %3412 = vmatpush1.msra.mxu0 0.0
    %3413 = vmatprep.subr.mxu0 0.0
    %3414 = vmatpush1.msra.mxu0 0.0
    %3415 = vmatprep.subr.mxu0 0.0
    %3416 = vmatpush1.msra.mxu0 0.0
    %3417 = vmatprep.subr.mxu0 0.0
    %3418 = vmatpush1.msra.mxu0 0.0
    %3419 = vmatprep.subr.mxu0 0.0
    %3420 = vmatpush1.msra.mxu0 0.0
    %3421 = vmatprep.subr.mxu0 0.0
    %3422 = vmatpush1.msra.mxu0 0.0
    %3423 = vmatprep.subr.mxu0 0.0
    %3424 = vmatpush1.msra.mxu0 0.0
    %3425 = vmatprep.subr.mxu0 0.0
    %3426 = vmatpush1.msra.mxu0 0.0
    %3427 = vmatprep.subr.mxu0 0.0
    %3428 = vmatpush1.msra.mxu0 0.0
    %3429 = vmatprep.subr.mxu0 0.0
    %3430 = vmatpush1.msra.mxu0 0.0
    %3431 = vmatprep.subr.mxu0 0.0
    %3432 = vmatpush1.msra.mxu0 0.0
    %3433 = vmatprep.subr.mxu0 0.0
    %3434 = vmatpush1.msra.mxu0 0.0
    %3435 = vmatprep.subr.mxu0 0.0
    %3436 = vmatpush1.msra.mxu0 0.0
    %3437 = vmatprep.subr.mxu0 0.0
    %3438 = vmatpush1.msra.mxu0 0.0
    %3439 = vmatprep.subr.mxu0 0.0
    %3440 = vmatpush1.msra.mxu0 0.0
    %3441 = vmatprep.mubr.f32.mxu0 0.0
    %3442 = vmatmul.mubr.f32.gmra.mrb[0].mxu0 %v3375
    %v3443 = vpop.f32.mrb[0].mxu0
    %v3444 = vadd.f32 0.0, %v3443
    %v3445 = vpop.f32.mrb[0].mxu0
    %3446 = vdwg.mxu0
    %v3448 = vsel %vm521, %v3204, 0
    %3450 = vmatprep.subr.mxu0 0.0
    %3451 = vmatpush1.msra.mxu0 %v3039
    %3452 = vmatprep.subr.mxu0 0.0
    %3453 = vmatpush1.msra.mxu0 0.0
    %3454 = vmatprep.subr.mxu0 0.0
    %3455 = vmatpush1.msra.mxu0 0.0
    %3456 = vmatprep.subr.mxu0 0.0
    %3457 = vmatpush1.msra.mxu0 0.0
    %3458 = vmatprep.subr.mxu0 0.0
    %3459 = vmatpush1.msra.mxu0 0.0
    %3460 = vmatprep.subr.mxu0 0.0
    %3461 = vmatpush1.msra.mxu0 0.0
    %3462 = vmatprep.subr.mxu0 0.0
    %3463 = vmatpush1.msra.mxu0 0.0
    %3464 = vmatprep.subr.mxu0 0.0
    %3465 = vmatpush1.msra.mxu0 0.0
    %3466 = vmatprep.subr.mxu0 0.0
    %3467 = vmatpush1.msra.mxu0 0.0
    %3468 = vmatprep.subr.mxu0 0.0
    %3469 = vmatpush1.msra.mxu0 0.0
    %3470 = vmatprep.subr.mxu0 0.0
    %3471 = vmatpush1.msra.mxu0 0.0
    %3472 = vmatprep.subr.mxu0 0.0
    %3473 = vmatpush1.msra.mxu0 0.0
    %3474 = vmatprep.subr.mxu0 0.0
    %3475 = vmatpush1.msra.mxu0 0.0
    %3476 = vmatprep.subr.mxu0 0.0
    %3477 = vmatpush1.msra.mxu0 0.0
    %3478 = vmatprep.subr.mxu0 0.0
    %3479 = vmatpush1.msra.mxu0 0.0
    %3480 = vmatprep.subr.mxu0 0.0
    %3481 = vmatpush1.msra.mxu0 0.0
    %3482 = vmatprep.subr.mxu0 0.0
    %3483 = vmatpush1.msra.mxu0 0.0
    %3484 = vmatprep.subr.mxu0 0.0
    %3485 = vmatpush1.msra.mxu0 0.0
    %3486 = vmatprep.subr.mxu0 0.0
    %3487 = vmatpush1.msra.mxu0 0.0
    %3488 = vmatprep.subr.mxu0 0.0
    %3489 = vmatpush1.msra.mxu0 0.0
    %3490 = vmatprep.subr.mxu0 0.0
    %3491 = vmatpush1.msra.mxu0 0.0
    %3492 = vmatprep.subr.mxu0 0.0
    %3493 = vmatpush1.msra.mxu0 0.0
    %3494 = vmatprep.subr.mxu0 0.0
    %3495 = vmatpush1.msra.mxu0 0.0
    %3496 = vmatprep.subr.mxu0 0.0
    %3497 = vmatpush1.msra.mxu0 0.0
    %3498 = vmatprep.subr.mxu0 0.0
    %3499 = vmatpush1.msra.mxu0 0.0
    %3500 = vmatprep.subr.mxu0 0.0
    %3501 = vmatpush1.msra.mxu0 0.0
    %3502 = vmatprep.subr.mxu0 0.0
    %3503 = vmatpush1.msra.mxu0 0.0
    %3504 = vmatprep.subr.mxu0 0.0
    %3505 = vmatpush1.msra.mxu0 0.0
    %3506 = vmatprep.subr.mxu0 0.0
    %3507 = vmatpush1.msra.mxu0 0.0
    %3508 = vmatprep.subr.mxu0 0.0
    %3509 = vmatpush1.msra.mxu0 0.0
    %3510 = vmatprep.subr.mxu0 0.0
    %3511 = vmatpush1.msra.mxu0 0.0
    %3512 = vmatprep.subr.mxu0 0.0
    %3513 = vmatpush1.msra.mxu0 0.0
    %3514 = vmatprep.mubr.f32.mxu0 0.0
    %3515 = vmatmul.mubr.f32.gmra.mrb[0].mxu0 %v3448
    %v3516 = vpop.f32.mrb[0].mxu0
    %v3517 = vadd.f32 %v3444, %v3516
    %v3518 = vpop.f32.mrb[0].mxu0
    %3519 = vdwg.mxu0
    %3520 = vrot.lane.b32.xlu0 %v2854, 112
    %v3521 = vpop.permute.xlu0 %3520
    %3522 = vrot.lane.b32.xlu0 %v2942, 112
    %v3523 = vpop.permute.xlu0 %3522
    %v3524 = vsel %vm521, %v3521, 0
    %v3526 = vsel %vm521, %v3523, 0
    %3528 = vmatprep.subr.mxu0 0.0
    %3529 = vmatpush1.xpose.msra.mxu0 %v3526
    %3530 = vmatprep.subr.mxu0 0.0
    %3531 = vmatpush1.xpose.msra.mxu0 0.0
    %3532 = vmatprep.subr.mxu0 0.0
    %3533 = vmatpush1.xpose.msra.mxu0 0.0
    %3534 = vmatprep.subr.mxu0 0.0
    %3535 = vmatpush1.xpose.msra.mxu0 0.0
    %3536 = vmatprep.subr.mxu0 0.0
    %3537 = vmatpush1.xpose.msra.mxu0 0.0
    %3538 = vmatprep.subr.mxu0 0.0
    %3539 = vmatpush1.xpose.msra.mxu0 0.0
    %3540 = vmatprep.subr.mxu0 0.0
    %3541 = vmatpush1.xpose.msra.mxu0 0.0
    %3542 = vmatprep.subr.mxu0 0.0
    %3543 = vmatpush1.xpose.msra.mxu0 0.0
    %3544 = vmatprep.subr.mxu0 0.0
    %3545 = vmatpush1.xpose.msra.mxu0 0.0
    %3546 = vmatprep.subr.mxu0 0.0
    %3547 = vmatpush1.xpose.msra.mxu0 0.0
    %3548 = vmatprep.subr.mxu0 0.0
    %3549 = vmatpush1.xpose.msra.mxu0 0.0
    %3550 = vmatprep.subr.mxu0 0.0
    %3551 = vmatpush1.xpose.msra.mxu0 0.0
    %3552 = vmatprep.subr.mxu0 0.0
    %3553 = vmatpush1.xpose.msra.mxu0 0.0
    %3554 = vmatprep.subr.mxu0 0.0
    %3555 = vmatpush1.xpose.msra.mxu0 0.0
    %3556 = vmatprep.subr.mxu0 0.0
    %3557 = vmatpush1.xpose.msra.mxu0 0.0
    %3558 = vmatprep.subr.mxu0 0.0
    %3559 = vmatpush1.xpose.msra.mxu0 0.0
    %3560 = vmatprep.subr.mxu0 0.0
    %3561 = vmatpush1.xpose.msra.mxu0 0.0
    %3562 = vmatprep.subr.mxu0 0.0
    %3563 = vmatpush1.xpose.msra.mxu0 0.0
    %3564 = vmatprep.subr.mxu0 0.0
    %3565 = vmatpush1.xpose.msra.mxu0 0.0
    %3566 = vmatprep.subr.mxu0 0.0
    %3567 = vmatpush1.xpose.msra.mxu0 0.0
    %3568 = vmatprep.subr.mxu0 0.0
    %3569 = vmatpush1.xpose.msra.mxu0 0.0
    %3570 = vmatprep.subr.mxu0 0.0
    %3571 = vmatpush1.xpose.msra.mxu0 0.0
    %3572 = vmatprep.subr.mxu0 0.0
    %3573 = vmatpush1.xpose.msra.mxu0 0.0
    %3574 = vmatprep.subr.mxu0 0.0
    %3575 = vmatpush1.xpose.msra.mxu0 0.0
    %3576 = vmatprep.subr.mxu0 0.0
    %3577 = vmatpush1.xpose.msra.mxu0 0.0
    %3578 = vmatprep.subr.mxu0 0.0
    %3579 = vmatpush1.xpose.msra.mxu0 0.0
    %3580 = vmatprep.subr.mxu0 0.0
    %3581 = vmatpush1.xpose.msra.mxu0 0.0
    %3582 = vmatprep.subr.mxu0 0.0
    %3583 = vmatpush1.xpose.msra.mxu0 0.0
    %3584 = vmatprep.subr.mxu0 0.0
    %3585 = vmatpush1.xpose.msra.mxu0 0.0
    %3586 = vmatprep.subr.mxu0 0.0
    %3587 = vmatpush1.xpose.msra.mxu0 0.0
    %3588 = vmatprep.subr.mxu0 0.0
    %3589 = vmatpush1.xpose.msra.mxu0 0.0
    %3590 = vmatprep.subr.mxu0 0.0
    %3591 = vmatpush1.xpose.msra.mxu0 0.0
    %3592 = vmatprep.mubr.f32.mxu0 0.0
    %3593 = vmatmul.mubr.f32.gmra.mrb[0].mxu0 %v3524
    %v3594 = vpop.f32.mrb[0].mxu0
    %v3595 = vadd.f32 0.0, %v3594
    %v3596 = vpop.f32.mrb[0].mxu0
    %3597 = vdwg.mxu0
    %v3598 = vmul.f32 %v3595, 0.35355338
    %v3599 = vsel %vm599, %v3598, -inf
    %3600 = vmax.xlane.f32.xlu0 %v3599
    %v3601 = vpop.xlane.xlu0 %3600
    %v3602 = vsub.f32 %v3598, %v3601
    %v3603 = vmul.f32 %v3602, 1.442695
    %v3604 = vpow.pop %v3603
    %v3605 = vsel %vm599, %v3604, 0.0
    %3606 = vadd.xlane.f32.xlu0 %v3605
    %v3607 = vpop.xlane.xlu0 %3606
    %v3608 = vrcp.pop %v3607
    %v3609 = vmul.f32 %v3604, %v3608
    %3610 = vrot.lane.b32.xlu0 %v3030, 112
    %v3611 = vpop.permute.xlu0 %3610
    %v3613 = vsel %vm611, %v3609, 0
    %v3615 = vsel %vm615, %v3611, 0
    %3617 = vmatprep.subr.mxu0 0.0
    %3618 = vmatpush1.msra.mxu0 %v3615
    %3619 = vmatprep.subr.mxu0 0.0
    %3620 = vmatpush1.msra.mxu0 0.0
    %3621 = vmatprep.subr.mxu0 0.0
    %3622 = vmatpush1.msra.mxu0 0.0
    %3623 = vmatprep.subr.mxu0 0.0
    %3624 = vmatpush1.msra.mxu0 0.0
    %3625 = vmatprep.subr.mxu0 0.0
    %3626 = vmatpush1.msra.mxu0 0.0
    %3627 = vmatprep.subr.mxu0 0.0
    %3628 = vmatpush1.msra.mxu0 0.0
    %3629 = vmatprep.subr.mxu0 0.0
    %3630 = vmatpush1.msra.mxu0 0.0
    %3631 = vmatprep.subr.mxu0 0.0
    %3632 = vmatpush1.msra.mxu0 0.0
    %3633 = vmatprep.subr.mxu0 0.0
    %3634 = vmatpush1.msra.mxu0 0.0
    %3635 = vmatprep.subr.mxu0 0.0
    %3636 = vmatpush1.msra.mxu0 0.0
    %3637 = vmatprep.subr.mxu0 0.0
    %3638 = vmatpush1.msra.mxu0 0.0
    %3639 = vmatprep.subr.mxu0 0.0
    %3640 = vmatpush1.msra.mxu0 0.0
    %3641 = vmatprep.subr.mxu0 0.0
    %3642 = vmatpush1.msra.mxu0 0.0
    %3643 = vmatprep.subr.mxu0 0.0
    %3644 = vmatpush1.msra.mxu0 0.0
    %3645 = vmatprep.subr.mxu0 0.0
    %3646 = vmatpush1.msra.mxu0 0.0
    %3647 = vmatprep.subr.mxu0 0.0
    %3648 = vmatpush1.msra.mxu0 0.0
    %3649 = vmatprep.subr.mxu0 0.0
    %3650 = vmatpush1.msra.mxu0 0.0
    %3651 = vmatprep.subr.mxu0 0.0
    %3652 = vmatpush1.msra.mxu0 0.0
    %3653 = vmatprep.subr.mxu0 0.0
    %3654 = vmatpush1.msra.mxu0 0.0
    %3655 = vmatprep.subr.mxu0 0.0
    %3656 = vmatpush1.msra.mxu0 0.0
    %3657 = vmatprep.subr.mxu0 0.0
    %3658 = vmatpush1.msra.mxu0 0.0
    %3659 = vmatprep.subr.mxu0 0.0
    %3660 = vmatpush1.msra.mxu0 0.0
    %3661 = vmatprep.subr.mxu0 0.0
    %3662 = vmatpush1.msra.mxu0 0.0
    %3663 = vmatprep.subr.mxu0 0.0
    %3664 = vmatpush1.msra.mxu0 0.0
    %3665 = vmatprep.subr.mxu0 0.0
    %3666 = vmatpush1.msra.mxu0 0.0
    %3667 = vmatprep.subr.mxu0 0.0
    %3668 = vmatpush1.msra.mxu0 0.0
    %3669 = vmatprep.subr.mxu0 0.0
    %3670 = vmatpush1.msra.mxu0 0.0
    %3671 = vmatprep.subr.mxu0 0.0
    %3672 = vmatpush1.msra.mxu0 0.0
    %3673 = vmatprep.subr.mxu0 0.0
    %3674 = vmatpush1.msra.mxu0 0.0
    %3675 = vmatprep.subr.mxu0 0.0
    %3676 = vmatpush1.msra.mxu0 0.0
    %3677 = vmatprep.subr.mxu0 0.0
    %3678 = vmatpush1.msra.mxu0 0.0
    %3679 = vmatprep.subr.mxu0 0.0
    %3680 = vmatpush1.msra.mxu0 0.0
    %3681 = vmatprep.mubr.f32.mxu0 0.0
    %3682 = vmatmul.mubr.f32.gmra.mrb[0].mxu0 %v3613
    %v3683 = vpop.f32.mrb[0].mxu0
    %v3684 = vadd.f32 0.0, %v3683
    %v3685 = vpop.f32.mrb[0].mxu0
    %3686 = vdwg.mxu0
    %v3688 = vsel %vm521, %v3684, 0
    %3690 = vmatprep.subr.mxu0 0.0
    %3691 = vmatpush1.msra.mxu0 %v3041
    %3692 = vmatprep.subr.mxu0 0.0
    %3693 = vmatpush1.msra.mxu0 0.0
    %3694 = vmatprep.subr.mxu0 0.0
    %3695 = vmatpush1.msra.mxu0 0.0
    %3696 = vmatprep.subr.mxu0 0.0
    %3697 = vmatpush1.msra.mxu0 0.0
    %3698 = vmatprep.subr.mxu0 0.0
    %3699 = vmatpush1.msra.mxu0 0.0
    %3700 = vmatprep.subr.mxu0 0.0
    %3701 = vmatpush1.msra.mxu0 0.0
    %3702 = vmatprep.subr.mxu0 0.0
    %3703 = vmatpush1.msra.mxu0 0.0
    %3704 = vmatprep.subr.mxu0 0.0
    %3705 = vmatpush1.msra.mxu0 0.0
    %3706 = vmatprep.subr.mxu0 0.0
    %3707 = vmatpush1.msra.mxu0 0.0
    %3708 = vmatprep.subr.mxu0 0.0
    %3709 = vmatpush1.msra.mxu0 0.0
    %3710 = vmatprep.subr.mxu0 0.0
    %3711 = vmatpush1.msra.mxu0 0.0
    %3712 = vmatprep.subr.mxu0 0.0
    %3713 = vmatpush1.msra.mxu0 0.0
    %3714 = vmatprep.subr.mxu0 0.0
    %3715 = vmatpush1.msra.mxu0 0.0
    %3716 = vmatprep.subr.mxu0 0.0
    %3717 = vmatpush1.msra.mxu0 0.0
    %3718 = vmatprep.subr.mxu0 0.0
    %3719 = vmatpush1.msra.mxu0 0.0
    %3720 = vmatprep.subr.mxu0 0.0
    %3721 = vmatpush1.msra.mxu0 0.0
    %3722 = vmatprep.subr.mxu0 0.0
    %3723 = vmatpush1.msra.mxu0 0.0
    %3724 = vmatprep.subr.mxu0 0.0
    %3725 = vmatpush1.msra.mxu0 0.0
    %3726 = vmatprep.subr.mxu0 0.0
    %3727 = vmatpush1.msra.mxu0 0.0
    %3728 = vmatprep.subr.mxu0 0.0
    %3729 = vmatpush1.msra.mxu0 0.0
    %3730 = vmatprep.subr.mxu0 0.0
    %3731 = vmatpush1.msra.mxu0 0.0
    %3732 = vmatprep.subr.mxu0 0.0
    %3733 = vmatpush1.msra.mxu0 0.0
    %3734 = vmatprep.subr.mxu0 0.0
    %3735 = vmatpush1.msra.mxu0 0.0
    %3736 = vmatprep.subr.mxu0 0.0
    %3737 = vmatpush1.msra.mxu0 0.0
    %3738 = vmatprep.subr.mxu0 0.0
    %3739 = vmatpush1.msra.mxu0 0.0
    %3740 = vmatprep.subr.mxu0 0.0
    %3741 = vmatpush1.msra.mxu0 0.0
    %3742 = vmatprep.subr.mxu0 0.0
    %3743 = vmatpush1.msra.mxu0 0.0
    %3744 = vmatprep.subr.mxu0 0.0
    %3745 = vmatpush1.msra.mxu0 0.0
    %3746 = vmatprep.subr.mxu0 0.0
    %3747 = vmatpush1.msra.mxu0 0.0
    %3748 = vmatprep.subr.mxu0 0.0
    %3749 = vmatpush1.msra.mxu0 0.0
    %3750 = vmatprep.subr.mxu0 0.0
    %3751 = vmatpush1.msra.mxu0 0.0
    %3752 = vmatprep.subr.mxu0 0.0
    %3753 = vmatpush1.msra.mxu0 0.0
    %3754 = vmatprep.mubr.f32.mxu0 0.0
    %3755 = vmatmul.mubr.f32.gmra.mrb[0].mxu0 %v3688
    %v3756 = vpop.f32.mrb[0].mxu0
    %v3757 = vadd.f32 0.0, %v3756
    %v3758 = vpop.f32.mrb[0].mxu0
    %3759 = vdwg.mxu0
    %v3760 = vadd.f32 %v3517, %v3757
    %3761 = vrot.lane.b32.xlu0 %v2854, 104
    %v3762 = vpop.permute.xlu0 %3761
    %3763 = vrot.lane.b32.xlu0 %v2942, 104
    %v3764 = vpop.permute.xlu0 %3763
    %v3765 = vsel %vm521, %v3762, 0
    %v3767 = vsel %vm521, %v3764, 0
    %3769 = vmatprep.subr.mxu0 0.0
    %3770 = vmatpush1.xpose.msra.mxu0 %v3767
    %3771 = vmatprep.subr.mxu0 0.0
    %3772 = vmatpush1.xpose.msra.mxu0 0.0
    %3773 = vmatprep.subr.mxu0 0.0
    %3774 = vmatpush1.xpose.msra.mxu0 0.0
    %3775 = vmatprep.subr.mxu0 0.0
    %3776 = vmatpush1.xpose.msra.mxu0 0.0
    %3777 = vmatprep.subr.mxu0 0.0
    %3778 = vmatpush1.xpose.msra.mxu0 0.0
    %3779 = vmatprep.subr.mxu0 0.0
    %3780 = vmatpush1.xpose.msra.mxu0 0.0
    %3781 = vmatprep.subr.mxu0 0.0
    %3782 = vmatpush1.xpose.msra.mxu0 0.0
    %3783 = vmatprep.subr.mxu0 0.0
    %3784 = vmatpush1.xpose.msra.mxu0 0.0
    %3785 = vmatprep.subr.mxu0 0.0
    %3786 = vmatpush1.xpose.msra.mxu0 0.0
    %3787 = vmatprep.subr.mxu0 0.0
    %3788 = vmatpush1.xpose.msra.mxu0 0.0
    %3789 = vmatprep.subr.mxu0 0.0
    %3790 = vmatpush1.xpose.msra.mxu0 0.0
    %3791 = vmatprep.subr.mxu0 0.0
    %3792 = vmatpush1.xpose.msra.mxu0 0.0
    %3793 = vmatprep.subr.mxu0 0.0
    %3794 = vmatpush1.xpose.msra.mxu0 0.0
    %3795 = vmatprep.subr.mxu0 0.0
    %3796 = vmatpush1.xpose.msra.mxu0 0.0
    %3797 = vmatprep.subr.mxu0 0.0
    %3798 = vmatpush1.xpose.msra.mxu0 0.0
    %3799 = vmatprep.subr.mxu0 0.0
    %3800 = vmatpush1.xpose.msra.mxu0 0.0
    %3801 = vmatprep.subr.mxu0 0.0
    %3802 = vmatpush1.xpose.msra.mxu0 0.0
    %3803 = vmatprep.subr.mxu0 0.0
    %3804 = vmatpush1.xpose.msra.mxu0 0.0
    %3805 = vmatprep.subr.mxu0 0.0
    %3806 = vmatpush1.xpose.msra.mxu0 0.0
    %3807 = vmatprep.subr.mxu0 0.0
    %3808 = vmatpush1.xpose.msra.mxu0 0.0
    %3809 = vmatprep.subr.mxu0 0.0
    %3810 = vmatpush1.xpose.msra.mxu0 0.0
    %3811 = vmatprep.subr.mxu0 0.0
    %3812 = vmatpush1.xpose.msra.mxu0 0.0
    %3813 = vmatprep.subr.mxu0 0.0
    %3814 = vmatpush1.xpose.msra.mxu0 0.0
    %3815 = vmatprep.subr.mxu0 0.0
    %3816 = vmatpush1.xpose.msra.mxu0 0.0
    %3817 = vmatprep.subr.mxu0 0.0
    %3818 = vmatpush1.xpose.msra.mxu0 0.0
    %3819 = vmatprep.subr.mxu0 0.0
    %3820 = vmatpush1.xpose.msra.mxu0 0.0
    %3821 = vmatprep.subr.mxu0 0.0
    %3822 = vmatpush1.xpose.msra.mxu0 0.0
    %3823 = vmatprep.subr.mxu0 0.0
    %3824 = vmatpush1.xpose.msra.mxu0 0.0
    %3825 = vmatprep.subr.mxu0 0.0
    %3826 = vmatpush1.xpose.msra.mxu0 0.0
    %3827 = vmatprep.subr.mxu0 0.0
    %3828 = vmatpush1.xpose.msra.mxu0 0.0
    %3829 = vmatprep.subr.mxu0 0.0
    %3830 = vmatpush1.xpose.msra.mxu0 0.0
    %3831 = vmatprep.subr.mxu0 0.0
    %3832 = vmatpush1.xpose.msra.mxu0 0.0
    %3833 = vmatprep.mubr.f32.mxu0 0.0
    %3834 = vmatmul.mubr.f32.gmra.mrb[0].mxu0 %v3765
    %v3835 = vpop.f32.mrb[0].mxu0
    %v3836 = vadd.f32 0.0, %v3835
    %v3837 = vpop.f32.mrb[0].mxu0
    %3838 = vdwg.mxu0
    %v3839 = vmul.f32 %v3836, 0.35355338
    %v3840 = vsel %vm599, %v3839, -inf
    %3841 = vmax.xlane.f32.xlu0 %v3840
    %v3842 = vpop.xlane.xlu0 %3841
    %v3843 = vsub.f32 %v3839, %v3842
    %v3844 = vmul.f32 %v3843, 1.442695
    %v3845 = vpow.pop %v3844
    %v3846 = vsel %vm599, %v3845, 0.0
    %3847 = vadd.xlane.f32.xlu0 %v3846
    %v3848 = vpop.xlane.xlu0 %3847
    %v3849 = vrcp.pop %v3848
    %v3850 = vmul.f32 %v3845, %v3849
    %3851 = vrot.lane.b32.xlu0 %v3030, 104
    %v3852 = vpop.permute.xlu0 %3851
    %v3854 = vsel %vm611, %v3850, 0
    %v3856 = vsel %vm615, %v3852, 0
    %3858 = vmatprep.subr.mxu0 0.0
    %3859 = vmatpush1.msra.mxu0 %v3856
    %3860 = vmatprep.subr.mxu0 0.0
    %3861 = vmatpush1.msra.mxu0 0.0
    %3862 = vmatprep.subr.mxu0 0.0
    %3863 = vmatpush1.msra.mxu0 0.0
    %3864 = vmatprep.subr.mxu0 0.0
    %3865 = vmatpush1.msra.mxu0 0.0
    %3866 = vmatprep.subr.mxu0 0.0
    %3867 = vmatpush1.msra.mxu0 0.0
    %3868 = vmatprep.subr.mxu0 0.0
    %3869 = vmatpush1.msra.mxu0 0.0
    %3870 = vmatprep.subr.mxu0 0.0
    %3871 = vmatpush1.msra.mxu0 0.0
    %3872 = vmatprep.subr.mxu0 0.0
    %3873 = vmatpush1.msra.mxu0 0.0
    %3874 = vmatprep.subr.mxu0 0.0
    %3875 = vmatpush1.msra.mxu0 0.0
    %3876 = vmatprep.subr.mxu0 0.0
    %3877 = vmatpush1.msra.mxu0 0.0
    %3878 = vmatprep.subr.mxu0 0.0
    %3879 = vmatpush1.msra.mxu0 0.0
    %3880 = vmatprep.subr.mxu0 0.0
    %3881 = vmatpush1.msra.mxu0 0.0
    %3882 = vmatprep.subr.mxu0 0.0
    %3883 = vmatpush1.msra.mxu0 0.0
    %3884 = vmatprep.subr.mxu0 0.0
    %3885 = vmatpush1.msra.mxu0 0.0
    %3886 = vmatprep.subr.mxu0 0.0
    %3887 = vmatpush1.msra.mxu0 0.0
    %3888 = vmatprep.subr.mxu0 0.0
    %3889 = vmatpush1.msra.mxu0 0.0
    %3890 = vmatprep.subr.mxu0 0.0
    %3891 = vmatpush1.msra.mxu0 0.0
    %3892 = vmatprep.subr.mxu0 0.0
    %3893 = vmatpush1.msra.mxu0 0.0
    %3894 = vmatprep.subr.mxu0 0.0
    %3895 = vmatpush1.msra.mxu0 0.0
    %3896 = vmatprep.subr.mxu0 0.0
    %3897 = vmatpush1.msra.mxu0 0.0
    %3898 = vmatprep.subr.mxu0 0.0
    %3899 = vmatpush1.msra.mxu0 0.0
    %3900 = vmatprep.subr.mxu0 0.0
    %3901 = vmatpush1.msra.mxu0 0.0
    %3902 = vmatprep.subr.mxu0 0.0
    %3903 = vmatpush1.msra.mxu0 0.0
    %3904 = vmatprep.subr.mxu0 0.0
    %3905 = vmatpush1.msra.mxu0 0.0
    %3906 = vmatprep.subr.mxu0 0.0
    %3907 = vmatpush1.msra.mxu0 0.0
    %3908 = vmatprep.subr.mxu0 0.0
    %3909 = vmatpush1.msra.mxu0 0.0
    %3910 = vmatprep.subr.mxu0 0.0
    %3911 = vmatpush1.msra.mxu0 0.0
    %3912 = vmatprep.subr.mxu0 0.0
    %3913 = vmatpush1.msra.mxu0 0.0
    %3914 = vmatprep.subr.mxu0 0.0
    %3915 = vmatpush1.msra.mxu0 0.0
    %3916 = vmatprep.subr.mxu0 0.0
    %3917 = vmatpush1.msra.mxu0 0.0
    %3918 = vmatprep.subr.mxu0 0.0
    %3919 = vmatpush1.msra.mxu0 0.0
    %3920 = vmatprep.subr.mxu0 0.0
    %3921 = vmatpush1.msra.mxu0 0.0
    %3922 = vmatprep.mubr.f32.mxu0 0.0
    %3923 = vmatmul.mubr.f32.gmra.mrb[0].mxu0 %v3854
    %v3924 = vpop.f32.mrb[0].mxu0
    %v3925 = vadd.f32 0.0, %v3924
    %v3926 = vpop.f32.mrb[0].mxu0
    %3927 = vdwg.mxu0
    %v3929 = vsel %vm521, %v3925, 0
    %3931 = vmatprep.subr.mxu0 0.0
    %3932 = vmatpush1.msra.mxu0 %v3042
    %3933 = vmatprep.subr.mxu0 0.0
    %3934 = vmatpush1.msra.mxu0 0.0
    %3935 = vmatprep.subr.mxu0 0.0
    %3936 = vmatpush1.msra.mxu0 0.0
    %3937 = vmatprep.subr.mxu0 0.0
    %3938 = vmatpush1.msra.mxu0 0.0
    %3939 = vmatprep.subr.mxu0 0.0
    %3940 = vmatpush1.msra.mxu0 0.0
    %3941 = vmatprep.subr.mxu0 0.0
    %3942 = vmatpush1.msra.mxu0 0.0
    %3943 = vmatprep.subr.mxu0 0.0
    %3944 = vmatpush1.msra.mxu0 0.0
    %3945 = vmatprep.subr.mxu0 0.0
    %3946 = vmatpush1.msra.mxu0 0.0
    %3947 = vmatprep.subr.mxu0 0.0
    %3948 = vmatpush1.msra.mxu0 0.0
    %3949 = vmatprep.subr.mxu0 0.0
    %3950 = vmatpush1.msra.mxu0 0.0
    %3951 = vmatprep.subr.mxu0 0.0
    %3952 = vmatpush1.msra.mxu0 0.0
    %3953 = vmatprep.subr.mxu0 0.0
    %3954 = vmatpush1.msra.mxu0 0.0
    %3955 = vmatprep.subr.mxu0 0.0
    %3956 = vmatpush1.msra.mxu0 0.0
    %3957 = vmatprep.subr.mxu0 0.0
    %3958 = vmatpush1.msra.mxu0 0.0
    %3959 = vmatprep.subr.mxu0 0.0
    %3960 = vmatpush1.msra.mxu0 0.0
    %3961 = vmatprep.subr.mxu0 0.0
    %3962 = vmatpush1.msra.mxu0 0.0
    %3963 = vmatprep.subr.mxu0 0.0
    %3964 = vmatpush1.msra.mxu0 0.0
    %3965 = vmatprep.subr.mxu0 0.0
    %3966 = vmatpush1.msra.mxu0 0.0
    %3967 = vmatprep.subr.mxu0 0.0
    %3968 = vmatpush1.msra.mxu0 0.0
    %3969 = vmatprep.subr.mxu0 0.0
    %3970 = vmatpush1.msra.mxu0 0.0
    %3971 = vmatprep.subr.mxu0 0.0
    %3972 = vmatpush1.msra.mxu0 0.0
    %3973 = vmatprep.subr.mxu0 0.0
    %3974 = vmatpush1.msra.mxu0 0.0
    %3975 = vmatprep.subr.mxu0 0.0
    %3976 = vmatpush1.msra.mxu0 0.0
    %3977 = vmatprep.subr.mxu0 0.0
    %3978 = vmatpush1.msra.mxu0 0.0
    %3979 = vmatprep.subr.mxu0 0.0
    %3980 = vmatpush1.msra.mxu0 0.0
    %3981 = vmatprep.subr.mxu0 0.0
    %3982 = vmatpush1.msra.mxu0 0.0
    %3983 = vmatprep.subr.mxu0 0.0
    %3984 = vmatpush1.msra.mxu0 0.0
    %3985 = vmatprep.subr.mxu0 0.0
    %3986 = vmatpush1.msra.mxu0 0.0
    %3987 = vmatprep.subr.mxu0 0.0
    %3988 = vmatpush1.msra.mxu0 0.0
    %3989 = vmatprep.subr.mxu0 0.0
    %3990 = vmatpush1.msra.mxu0 0.0
    %3991 = vmatprep.subr.mxu0 0.0
    %3992 = vmatpush1.msra.mxu0 0.0
    %3993 = vmatprep.subr.mxu0 0.0
    %3994 = vmatpush1.msra.mxu0 0.0
    %3995 = vmatprep.mubr.f32.mxu0 0.0
    %3996 = vmatmul.mubr.f32.gmra.mrb[0].mxu0 %v3929
    %v3997 = vpop.f32.mrb[0].mxu0
    %v3998 = vadd.f32 0.0, %v3997
    %v3999 = vpop.f32.mrb[0].mxu0
    %4000 = vdwg.mxu0
    %v4001 = vadd.f32 %v3760, %v3998
    %v4003 = vrot.slane %v2854, 5
    %v4004 = vrot.slane %v2859, 5
    %v4005 = vsel %vm1485, %v4003, %v4004
    %v4007 = vrot.slane %v2942, 5
    %v4008 = vrot.slane %v2947, 5
    %v4009 = vsel %vm1485, %v4007, %v4008
    %v4010 = vsel %vm521, %v4005, 0
    %v4012 = vsel %vm521, %v4009, 0
    %4014 = vmatprep.subr.mxu0 0.0
    %4015 = vmatpush1.xpose.msra.mxu0 %v4012
    %4016 = vmatprep.subr.mxu0 0.0
    %4017 = vmatpush1.xpose.msra.mxu0 0.0
    %4018 = vmatprep.subr.mxu0 0.0
    %4019 = vmatpush1.xpose.msra.mxu0 0.0
    %4020 = vmatprep.subr.mxu0 0.0
    %4021 = vmatpush1.xpose.msra.mxu0 0.0
    %4022 = vmatprep.subr.mxu0 0.0
    %4023 = vmatpush1.xpose.msra.mxu0 0.0
    %4024 = vmatprep.subr.mxu0 0.0
    %4025 = vmatpush1.xpose.msra.mxu0 0.0
    %4026 = vmatprep.subr.mxu0 0.0
    %4027 = vmatpush1.xpose.msra.mxu0 0.0
    %4028 = vmatprep.subr.mxu0 0.0
    %4029 = vmatpush1.xpose.msra.mxu0 0.0
    %4030 = vmatprep.subr.mxu0 0.0
    %4031 = vmatpush1.xpose.msra.mxu0 0.0
    %4032 = vmatprep.subr.mxu0 0.0
    %4033 = vmatpush1.xpose.msra.mxu0 0.0
    %4034 = vmatprep.subr.mxu0 0.0
    %4035 = vmatpush1.xpose.msra.mxu0 0.0
    %4036 = vmatprep.subr.mxu0 0.0
    %4037 = vmatpush1.xpose.msra.mxu0 0.0
    %4038 = vmatprep.subr.mxu0 0.0
    %4039 = vmatpush1.xpose.msra.mxu0 0.0
    %4040 = vmatprep.subr.mxu0 0.0
    %4041 = vmatpush1.xpose.msra.mxu0 0.0
    %4042 = vmatprep.subr.mxu0 0.0
    %4043 = vmatpush1.xpose.msra.mxu0 0.0
    %4044 = vmatprep.subr.mxu0 0.0
    %4045 = vmatpush1.xpose.msra.mxu0 0.0
    %4046 = vmatprep.subr.mxu0 0.0
    %4047 = vmatpush1.xpose.msra.mxu0 0.0
    %4048 = vmatprep.subr.mxu0 0.0
    %4049 = vmatpush1.xpose.msra.mxu0 0.0
    %4050 = vmatprep.subr.mxu0 0.0
    %4051 = vmatpush1.xpose.msra.mxu0 0.0
    %4052 = vmatprep.subr.mxu0 0.0
    %4053 = vmatpush1.xpose.msra.mxu0 0.0
    %4054 = vmatprep.subr.mxu0 0.0
    %4055 = vmatpush1.xpose.msra.mxu0 0.0
    %4056 = vmatprep.subr.mxu0 0.0
    %4057 = vmatpush1.xpose.msra.mxu0 0.0
    %4058 = vmatprep.subr.mxu0 0.0
    %4059 = vmatpush1.xpose.msra.mxu0 0.0
    %4060 = vmatprep.subr.mxu0 0.0
    %4061 = vmatpush1.xpose.msra.mxu0 0.0
    %4062 = vmatprep.subr.mxu0 0.0
    %4063 = vmatpush1.xpose.msra.mxu0 0.0
    %4064 = vmatprep.subr.mxu0 0.0
    %4065 = vmatpush1.xpose.msra.mxu0 0.0
    %4066 = vmatprep.subr.mxu0 0.0
    %4067 = vmatpush1.xpose.msra.mxu0 0.0
    %4068 = vmatprep.subr.mxu0 0.0
    %4069 = vmatpush1.xpose.msra.mxu0 0.0
    %4070 = vmatprep.subr.mxu0 0.0
    %4071 = vmatpush1.xpose.msra.mxu0 0.0
    %4072 = vmatprep.subr.mxu0 0.0
    %4073 = vmatpush1.xpose.msra.mxu0 0.0
    %4074 = vmatprep.subr.mxu0 0.0
    %4075 = vmatpush1.xpose.msra.mxu0 0.0
    %4076 = vmatprep.subr.mxu0 0.0
    %4077 = vmatpush1.xpose.msra.mxu0 0.0
    %4078 = vmatprep.mubr.f32.mxu0 0.0
    %4079 = vmatmul.mubr.f32.gmra.mrb[0].mxu0 %v4010
    %v4080 = vpop.f32.mrb[0].mxu0
    %v4081 = vadd.f32 0.0, %v4080
    %v4082 = vpop.f32.mrb[0].mxu0
    %4083 = vdwg.mxu0
    %v4084 = vmul.f32 %v4081, 0.35355338
    %v4085 = vsel %vm599, %v4084, -inf
    %4086 = vmax.xlane.f32.xlu0 %v4085
    %v4087 = vpop.xlane.xlu0 %4086
    %v4088 = vsub.f32 %v4084, %v4087
    %v4089 = vmul.f32 %v4088, 1.442695
    %v4090 = vpow.pop %v4089
    %v4091 = vsel %vm599, %v4090, 0.0
    %4092 = vadd.xlane.f32.xlu0 %v4091
    %v4093 = vpop.xlane.xlu0 %4092
    %v4094 = vrcp.pop %v4093
    %v4095 = vmul.f32 %v4090, %v4094
    %v4097 = vrot.slane %v3030, 5
    %v4098 = vrot.slane %v3035, 5
    %v4099 = vsel %vm1485, %v4097, %v4098
    %v4101 = vsel %vm611, %v4095, 0
    %v4103 = vsel %vm615, %v4099, 0
    %4105 = vmatprep.subr.mxu0 0.0
    %4106 = vmatpush1.msra.mxu0 %v4103
    %4107 = vmatprep.subr.mxu0 0.0
    %4108 = vmatpush1.msra.mxu0 0.0
    %4109 = vmatprep.subr.mxu0 0.0
    %4110 = vmatpush1.msra.mxu0 0.0
    %4111 = vmatprep.subr.mxu0 0.0
    %4112 = vmatpush1.msra.mxu0 0.0
    %4113 = vmatprep.subr.mxu0 0.0
    %4114 = vmatpush1.msra.mxu0 0.0
    %4115 = vmatprep.subr.mxu0 0.0
    %4116 = vmatpush1.msra.mxu0 0.0
    %4117 = vmatprep.subr.mxu0 0.0
    %4118 = vmatpush1.msra.mxu0 0.0
    %4119 = vmatprep.subr.mxu0 0.0
    %4120 = vmatpush1.msra.mxu0 0.0
    %4121 = vmatprep.subr.mxu0 0.0
    %4122 = vmatpush1.msra.mxu0 0.0
    %4123 = vmatprep.subr.mxu0 0.0
    %4124 = vmatpush1.msra.mxu0 0.0
    %4125 = vmatprep.subr.mxu0 0.0
    %4126 = vmatpush1.msra.mxu0 0.0
    %4127 = vmatprep.subr.mxu0 0.0
    %4128 = vmatpush1.msra.mxu0 0.0
    %4129 = vmatprep.subr.mxu0 0.0
    %4130 = vmatpush1.msra.mxu0 0.0
    %4131 = vmatprep.subr.mxu0 0.0
    %4132 = vmatpush1.msra.mxu0 0.0
    %4133 = vmatprep.subr.mxu0 0.0
    %4134 = vmatpush1.msra.mxu0 0.0
    %4135 = vmatprep.subr.mxu0 0.0
    %4136 = vmatpush1.msra.mxu0 0.0
    %4137 = vmatprep.subr.mxu0 0.0
    %4138 = vmatpush1.msra.mxu0 0.0
    %4139 = vmatprep.subr.mxu0 0.0
    %4140 = vmatpush1.msra.mxu0 0.0
    %4141 = vmatprep.subr.mxu0 0.0
    %4142 = vmatpush1.msra.mxu0 0.0
    %4143 = vmatprep.subr.mxu0 0.0
    %4144 = vmatpush1.msra.mxu0 0.0
    %4145 = vmatprep.subr.mxu0 0.0
    %4146 = vmatpush1.msra.mxu0 0.0
    %4147 = vmatprep.subr.mxu0 0.0
    %4148 = vmatpush1.msra.mxu0 0.0
    %4149 = vmatprep.subr.mxu0 0.0
    %4150 = vmatpush1.msra.mxu0 0.0
    %4151 = vmatprep.subr.mxu0 0.0
    %4152 = vmatpush1.msra.mxu0 0.0
    %4153 = vmatprep.subr.mxu0 0.0
    %4154 = vmatpush1.msra.mxu0 0.0
    %4155 = vmatprep.subr.mxu0 0.0
    %4156 = vmatpush1.msra.mxu0 0.0
    %4157 = vmatprep.subr.mxu0 0.0
    %4158 = vmatpush1.msra.mxu0 0.0
    %4159 = vmatprep.subr.mxu0 0.0
    %4160 = vmatpush1.msra.mxu0 0.0
    %4161 = vmatprep.subr.mxu0 0.0
    %4162 = vmatpush1.msra.mxu0 0.0
    %4163 = vmatprep.subr.mxu0 0.0
    %4164 = vmatpush1.msra.mxu0 0.0
    %4165 = vmatprep.subr.mxu0 0.0
    %4166 = vmatpush1.msra.mxu0 0.0
    %4167 = vmatprep.subr.mxu0 0.0
    %4168 = vmatpush1.msra.mxu0 0.0
    %4169 = vmatprep.mubr.f32.mxu0 0.0
    %4170 = vmatmul.mubr.f32.gmra.mrb[0].mxu0 %v4101
    %v4171 = vpop.f32.mrb[0].mxu0
    %v4172 = vadd.f32 0.0, %v4171
    %v4173 = vpop.f32.mrb[0].mxu0
    %4174 = vdwg.mxu0
    %4175 = vrot.lane.b32.xlu0 %v4005, 120
    %v4176 = vpop.permute.xlu0 %4175
    %4177 = vrot.lane.b32.xlu0 %v4009, 120
    %v4178 = vpop.permute.xlu0 %4177
    %v4179 = vsel %vm521, %v4176, 0
    %v4181 = vsel %vm521, %v4178, 0
    %4183 = vmatprep.subr.mxu0 0.0
    %4184 = vmatpush1.xpose.msra.mxu0 %v4181
    %4185 = vmatprep.subr.mxu0 0.0
    %4186 = vmatpush1.xpose.msra.mxu0 0.0
    %4187 = vmatprep.subr.mxu0 0.0
    %4188 = vmatpush1.xpose.msra.mxu0 0.0
    %4189 = vmatprep.subr.mxu0 0.0
    %4190 = vmatpush1.xpose.msra.mxu0 0.0
    %4191 = vmatprep.subr.mxu0 0.0
    %4192 = vmatpush1.xpose.msra.mxu0 0.0
    %4193 = vmatprep.subr.mxu0 0.0
    %4194 = vmatpush1.xpose.msra.mxu0 0.0
    %4195 = vmatprep.subr.mxu0 0.0
    %4196 = vmatpush1.xpose.msra.mxu0 0.0
    %4197 = vmatprep.subr.mxu0 0.0
    %4198 = vmatpush1.xpose.msra.mxu0 0.0
    %4199 = vmatprep.subr.mxu0 0.0
    %4200 = vmatpush1.xpose.msra.mxu0 0.0
    %4201 = vmatprep.subr.mxu0 0.0
    %4202 = vmatpush1.xpose.msra.mxu0 0.0
    %4203 = vmatprep.subr.mxu0 0.0
    %4204 = vmatpush1.xpose.msra.mxu0 0.0
    %4205 = vmatprep.subr.mxu0 0.0
    %4206 = vmatpush1.xpose.msra.mxu0 0.0
    %4207 = vmatprep.subr.mxu0 0.0
    %4208 = vmatpush1.xpose.msra.mxu0 0.0
    %4209 = vmatprep.subr.mxu0 0.0
    %4210 = vmatpush1.xpose.msra.mxu0 0.0
    %4211 = vmatprep.subr.mxu0 0.0
    %4212 = vmatpush1.xpose.msra.mxu0 0.0
    %4213 = vmatprep.subr.mxu0 0.0
    %4214 = vmatpush1.xpose.msra.mxu0 0.0
    %4215 = vmatprep.subr.mxu0 0.0
    %4216 = vmatpush1.xpose.msra.mxu0 0.0
    %4217 = vmatprep.subr.mxu0 0.0
    %4218 = vmatpush1.xpose.msra.mxu0 0.0
    %4219 = vmatprep.subr.mxu0 0.0
    %4220 = vmatpush1.xpose.msra.mxu0 0.0
    %4221 = vmatprep.subr.mxu0 0.0
    %4222 = vmatpush1.xpose.msra.mxu0 0.0
    %4223 = vmatprep.subr.mxu0 0.0
    %4224 = vmatpush1.xpose.msra.mxu0 0.0
    %4225 = vmatprep.subr.mxu0 0.0
    %4226 = vmatpush1.xpose.msra.mxu0 0.0
    %4227 = vmatprep.subr.mxu0 0.0
    %4228 = vmatpush1.xpose.msra.mxu0 0.0
    %4229 = vmatprep.subr.mxu0 0.0
    %4230 = vmatpush1.xpose.msra.mxu0 0.0
    %4231 = vmatprep.subr.mxu0 0.0
    %4232 = vmatpush1.xpose.msra.mxu0 0.0
    %4233 = vmatprep.subr.mxu0 0.0
    %4234 = vmatpush1.xpose.msra.mxu0 0.0
    %4235 = vmatprep.subr.mxu0 0.0
    %4236 = vmatpush1.xpose.msra.mxu0 0.0
    %4237 = vmatprep.subr.mxu0 0.0
    %4238 = vmatpush1.xpose.msra.mxu0 0.0
    %4239 = vmatprep.subr.mxu0 0.0
    %4240 = vmatpush1.xpose.msra.mxu0 0.0
    %4241 = vmatprep.subr.mxu0 0.0
    %4242 = vmatpush1.xpose.msra.mxu0 0.0
    %4243 = vmatprep.subr.mxu0 0.0
    %4244 = vmatpush1.xpose.msra.mxu0 0.0
    %4245 = vmatprep.subr.mxu0 0.0
    %4246 = vmatpush1.xpose.msra.mxu0 0.0
    %4247 = vmatprep.mubr.f32.mxu0 0.0
    %4248 = vmatmul.mubr.f32.gmra.mrb[0].mxu0 %v4179
    %v4249 = vpop.f32.mrb[0].mxu0
    %v4250 = vadd.f32 0.0, %v4249
    %v4251 = vpop.f32.mrb[0].mxu0
    %4252 = vdwg.mxu0
    %v4253 = vmul.f32 %v4250, 0.35355338
    %v4254 = vsel %vm599, %v4253, -inf
    %4255 = vmax.xlane.f32.xlu0 %v4254
    %v4256 = vpop.xlane.xlu0 %4255
    %v4257 = vsub.f32 %v4253, %v4256
    %v4258 = vmul.f32 %v4257, 1.442695
    %v4259 = vpow.pop %v4258
    %v4260 = vsel %vm599, %v4259, 0.0
    %4261 = vadd.xlane.f32.xlu0 %v4260
    %v4262 = vpop.xlane.xlu0 %4261
    %v4263 = vrcp.pop %v4262
    %v4264 = vmul.f32 %v4259, %v4263
    %4265 = vrot.lane.b32.xlu0 %v4099, 120
    %v4266 = vpop.permute.xlu0 %4265
    %v4268 = vsel %vm611, %v4264, 0
    %v4270 = vsel %vm615, %v4266, 0
    %4272 = vmatprep.subr.mxu0 0.0
    %4273 = vmatpush1.msra.mxu0 %v4270
    %4274 = vmatprep.subr.mxu0 0.0
    %4275 = vmatpush1.msra.mxu0 0.0
    %4276 = vmatprep.subr.mxu0 0.0
    %4277 = vmatpush1.msra.mxu0 0.0
    %4278 = vmatprep.subr.mxu0 0.0
    %4279 = vmatpush1.msra.mxu0 0.0
    %4280 = vmatprep.subr.mxu0 0.0
    %4281 = vmatpush1.msra.mxu0 0.0
    %4282 = vmatprep.subr.mxu0 0.0
    %4283 = vmatpush1.msra.mxu0 0.0
    %4284 = vmatprep.subr.mxu0 0.0
    %4285 = vmatpush1.msra.mxu0 0.0
    %4286 = vmatprep.subr.mxu0 0.0
    %4287 = vmatpush1.msra.mxu0 0.0
    %4288 = vmatprep.subr.mxu0 0.0
    %4289 = vmatpush1.msra.mxu0 0.0
    %4290 = vmatprep.subr.mxu0 0.0
    %4291 = vmatpush1.msra.mxu0 0.0
    %4292 = vmatprep.subr.mxu0 0.0
    %4293 = vmatpush1.msra.mxu0 0.0
    %4294 = vmatprep.subr.mxu0 0.0
    %4295 = vmatpush1.msra.mxu0 0.0
    %4296 = vmatprep.subr.mxu0 0.0
    %4297 = vmatpush1.msra.mxu0 0.0
    %4298 = vmatprep.subr.mxu0 0.0
    %4299 = vmatpush1.msra.mxu0 0.0
    %4300 = vmatprep.subr.mxu0 0.0
    %4301 = vmatpush1.msra.mxu0 0.0
    %4302 = vmatprep.subr.mxu0 0.0
    %4303 = vmatpush1.msra.mxu0 0.0
    %4304 = vmatprep.subr.mxu0 0.0
    %4305 = vmatpush1.msra.mxu0 0.0
    %4306 = vmatprep.subr.mxu0 0.0
    %4307 = vmatpush1.msra.mxu0 0.0
    %4308 = vmatprep.subr.mxu0 0.0
    %4309 = vmatpush1.msra.mxu0 0.0
    %4310 = vmatprep.subr.mxu0 0.0
    %4311 = vmatpush1.msra.mxu0 0.0
    %4312 = vmatprep.subr.mxu0 0.0
    %4313 = vmatpush1.msra.mxu0 0.0
    %4314 = vmatprep.subr.mxu0 0.0
    %4315 = vmatpush1.msra.mxu0 0.0
    %4316 = vmatprep.subr.mxu0 0.0
    %4317 = vmatpush1.msra.mxu0 0.0
    %4318 = vmatprep.subr.mxu0 0.0
    %4319 = vmatpush1.msra.mxu0 0.0
    %4320 = vmatprep.subr.mxu0 0.0
    %4321 = vmatpush1.msra.mxu0 0.0
    %4322 = vmatprep.subr.mxu0 0.0
    %4323 = vmatpush1.msra.mxu0 0.0
    %4324 = vmatprep.subr.mxu0 0.0
    %4325 = vmatpush1.msra.mxu0 0.0
    %4326 = vmatprep.subr.mxu0 0.0
    %4327 = vmatpush1.msra.mxu0 0.0
    %4328 = vmatprep.subr.mxu0 0.0
    %4329 = vmatpush1.msra.mxu0 0.0
    %4330 = vmatprep.subr.mxu0 0.0
    %4331 = vmatpush1.msra.mxu0 0.0
    %4332 = vmatprep.subr.mxu0 0.0
    %4333 = vmatpush1.msra.mxu0 0.0
    %4334 = vmatprep.subr.mxu0 0.0
    %4335 = vmatpush1.msra.mxu0 0.0
    %4336 = vmatprep.mubr.f32.mxu0 0.0
    %4337 = vmatmul.mubr.f32.gmra.mrb[0].mxu0 %v4268
    %v4338 = vpop.f32.mrb[0].mxu0
    %v4339 = vadd.f32 0.0, %v4338
    %v4340 = vpop.f32.mrb[0].mxu0
    %4341 = vdwg.mxu0
    %v4343 = vsel %vm521, %v4339, 0
    %4345 = vmatprep.subr.mxu0 0.0
    %4346 = vmatpush1.msra.mxu0 %v3040
    %4347 = vmatprep.subr.mxu0 0.0
    %4348 = vmatpush1.msra.mxu0 0.0
    %4349 = vmatprep.subr.mxu0 0.0
    %4350 = vmatpush1.msra.mxu0 0.0
    %4351 = vmatprep.subr.mxu0 0.0
    %4352 = vmatpush1.msra.mxu0 0.0
    %4353 = vmatprep.subr.mxu0 0.0
    %4354 = vmatpush1.msra.mxu0 0.0
    %4355 = vmatprep.subr.mxu0 0.0
    %4356 = vmatpush1.msra.mxu0 0.0
    %4357 = vmatprep.subr.mxu0 0.0
    %4358 = vmatpush1.msra.mxu0 0.0
    %4359 = vmatprep.subr.mxu0 0.0
    %4360 = vmatpush1.msra.mxu0 0.0
    %4361 = vmatprep.subr.mxu0 0.0
    %4362 = vmatpush1.msra.mxu0 0.0
    %4363 = vmatprep.subr.mxu0 0.0
    %4364 = vmatpush1.msra.mxu0 0.0
    %4365 = vmatprep.subr.mxu0 0.0
    %4366 = vmatpush1.msra.mxu0 0.0
    %4367 = vmatprep.subr.mxu0 0.0
    %4368 = vmatpush1.msra.mxu0 0.0
    %4369 = vmatprep.subr.mxu0 0.0
    %4370 = vmatpush1.msra.mxu0 0.0
    %4371 = vmatprep.subr.mxu0 0.0
    %4372 = vmatpush1.msra.mxu0 0.0
    %4373 = vmatprep.subr.mxu0 0.0
    %4374 = vmatpush1.msra.mxu0 0.0
    %4375 = vmatprep.subr.mxu0 0.0
    %4376 = vmatpush1.msra.mxu0 0.0
    %4377 = vmatprep.subr.mxu0 0.0
    %4378 = vmatpush1.msra.mxu0 0.0
    %4379 = vmatprep.subr.mxu0 0.0
    %4380 = vmatpush1.msra.mxu0 0.0
    %4381 = vmatprep.subr.mxu0 0.0
    %4382 = vmatpush1.msra.mxu0 0.0
    %4383 = vmatprep.subr.mxu0 0.0
    %4384 = vmatpush1.msra.mxu0 0.0
    %4385 = vmatprep.subr.mxu0 0.0
    %4386 = vmatpush1.msra.mxu0 0.0
    %4387 = vmatprep.subr.mxu0 0.0
    %4388 = vmatpush1.msra.mxu0 0.0
    %4389 = vmatprep.subr.mxu0 0.0
    %4390 = vmatpush1.msra.mxu0 0.0
    %4391 = vmatprep.subr.mxu0 0.0
    %4392 = vmatpush1.msra.mxu0 0.0
    %4393 = vmatprep.subr.mxu0 0.0
    %4394 = vmatpush1.msra.mxu0 0.0
    %4395 = vmatprep.subr.mxu0 0.0
    %4396 = vmatpush1.msra.mxu0 0.0
    %4397 = vmatprep.subr.mxu0 0.0
    %4398 = vmatpush1.msra.mxu0 0.0
    %4399 = vmatprep.subr.mxu0 0.0
    %4400 = vmatpush1.msra.mxu0 0.0
    %4401 = vmatprep.subr.mxu0 0.0
    %4402 = vmatpush1.msra.mxu0 0.0
    %4403 = vmatprep.subr.mxu0 0.0
    %4404 = vmatpush1.msra.mxu0 0.0
    %4405 = vmatprep.subr.mxu0 0.0
    %4406 = vmatpush1.msra.mxu0 0.0
    %4407 = vmatprep.subr.mxu0 0.0
    %4408 = vmatpush1.msra.mxu0 0.0
    %4409 = vmatprep.mubr.f32.mxu0 0.0
    %4410 = vmatmul.mubr.f32.gmra.mrb[0].mxu0 %v4343
    %v4411 = vpop.f32.mrb[0].mxu0
    %v4412 = vadd.f32 0.0, %v4411
    %v4413 = vpop.f32.mrb[0].mxu0
    %4414 = vdwg.mxu0
    %v4416 = vsel %vm521, %v4172, 0
    %4418 = vmatprep.subr.mxu0 0.0
    %4419 = vmatpush1.msra.mxu0 %v3039
    %4420 = vmatprep.subr.mxu0 0.0
    %4421 = vmatpush1.msra.mxu0 0.0
    %4422 = vmatprep.subr.mxu0 0.0
    %4423 = vmatpush1.msra.mxu0 0.0
    %4424 = vmatprep.subr.mxu0 0.0
    %4425 = vmatpush1.msra.mxu0 0.0
    %4426 = vmatprep.subr.mxu0 0.0
    %4427 = vmatpush1.msra.mxu0 0.0
    %4428 = vmatprep.subr.mxu0 0.0
    %4429 = vmatpush1.msra.mxu0 0.0
    %4430 = vmatprep.subr.mxu0 0.0
    %4431 = vmatpush1.msra.mxu0 0.0
    %4432 = vmatprep.subr.mxu0 0.0
    %4433 = vmatpush1.msra.mxu0 0.0
    %4434 = vmatprep.subr.mxu0 0.0
    %4435 = vmatpush1.msra.mxu0 0.0
    %4436 = vmatprep.subr.mxu0 0.0
    %4437 = vmatpush1.msra.mxu0 0.0
    %4438 = vmatprep.subr.mxu0 0.0
    %4439 = vmatpush1.msra.mxu0 0.0
    %4440 = vmatprep.subr.mxu0 0.0
    %4441 = vmatpush1.msra.mxu0 0.0
    %4442 = vmatprep.subr.mxu0 0.0
    %4443 = vmatpush1.msra.mxu0 0.0
    %4444 = vmatprep.subr.mxu0 0.0
    %4445 = vmatpush1.msra.mxu0 0.0
    %4446 = vmatprep.subr.mxu0 0.0
    %4447 = vmatpush1.msra.mxu0 0.0
    %4448 = vmatprep.subr.mxu0 0.0
    %4449 = vmatpush1.msra.mxu0 0.0
    %4450 = vmatprep.subr.mxu0 0.0
    %4451 = vmatpush1.msra.mxu0 0.0
    %4452 = vmatprep.subr.mxu0 0.0
    %4453 = vmatpush1.msra.mxu0 0.0
    %4454 = vmatprep.subr.mxu0 0.0
    %4455 = vmatpush1.msra.mxu0 0.0
    %4456 = vmatprep.subr.mxu0 0.0
    %4457 = vmatpush1.msra.mxu0 0.0
    %4458 = vmatprep.subr.mxu0 0.0
    %4459 = vmatpush1.msra.mxu0 0.0
    %4460 = vmatprep.subr.mxu0 0.0
    %4461 = vmatpush1.msra.mxu0 0.0
    %4462 = vmatprep.subr.mxu0 0.0
    %4463 = vmatpush1.msra.mxu0 0.0
    %4464 = vmatprep.subr.mxu0 0.0
    %4465 = vmatpush1.msra.mxu0 0.0
    %4466 = vmatprep.subr.mxu0 0.0
    %4467 = vmatpush1.msra.mxu0 0.0
    %4468 = vmatprep.subr.mxu0 0.0
    %4469 = vmatpush1.msra.mxu0 0.0
    %4470 = vmatprep.subr.mxu0 0.0
    %4471 = vmatpush1.msra.mxu0 0.0
    %4472 = vmatprep.subr.mxu0 0.0
    %4473 = vmatpush1.msra.mxu0 0.0
    %4474 = vmatprep.subr.mxu0 0.0
    %4475 = vmatpush1.msra.mxu0 0.0
    %4476 = vmatprep.subr.mxu0 0.0
    %4477 = vmatpush1.msra.mxu0 0.0
    %4478 = vmatprep.subr.mxu0 0.0
    %4479 = vmatpush1.msra.mxu0 0.0
    %4480 = vmatprep.subr.mxu0 0.0
    %4481 = vmatpush1.msra.mxu0 0.0
    %4482 = vmatprep.mubr.f32.mxu0 0.0
    %4483 = vmatmul.mubr.f32.gmra.mrb[0].mxu0 %v4416
    %v4484 = vpop.f32.mrb[0].mxu0
    %v4485 = vadd.f32 %v4412, %v4484
    %v4486 = vpop.f32.mrb[0].mxu0
    %4487 = vdwg.mxu0
    %4488 = vrot.lane.b32.xlu0 %v4005, 112
    %v4489 = vpop.permute.xlu0 %4488
    %4490 = vrot.lane.b32.xlu0 %v4009, 112
    %v4491 = vpop.permute.xlu0 %4490
    %v4492 = vsel %vm521, %v4489, 0
    %v4494 = vsel %vm521, %v4491, 0
    %4496 = vmatprep.subr.mxu0 0.0
    %4497 = vmatpush1.xpose.msra.mxu0 %v4494
    %4498 = vmatprep.subr.mxu0 0.0
    %4499 = vmatpush1.xpose.msra.mxu0 0.0
    %4500 = vmatprep.subr.mxu0 0.0
    %4501 = vmatpush1.xpose.msra.mxu0 0.0
    %4502 = vmatprep.subr.mxu0 0.0
    %4503 = vmatpush1.xpose.msra.mxu0 0.0
    %4504 = vmatprep.subr.mxu0 0.0
    %4505 = vmatpush1.xpose.msra.mxu0 0.0
    %4506 = vmatprep.subr.mxu0 0.0
    %4507 = vmatpush1.xpose.msra.mxu0 0.0
    %4508 = vmatprep.subr.mxu0 0.0
    %4509 = vmatpush1.xpose.msra.mxu0 0.0
    %4510 = vmatprep.subr.mxu0 0.0
    %4511 = vmatpush1.xpose.msra.mxu0 0.0
    %4512 = vmatprep.subr.mxu0 0.0
    %4513 = vmatpush1.xpose.msra.mxu0 0.0
    %4514 = vmatprep.subr.mxu0 0.0
    %4515 = vmatpush1.xpose.msra.mxu0 0.0
    %4516 = vmatprep.subr.mxu0 0.0
    %4517 = vmatpush1.xpose.msra.mxu0 0.0
    %4518 = vmatprep.subr.mxu0 0.0
    %4519 = vmatpush1.xpose.msra.mxu0 0.0
    %4520 = vmatprep.subr.mxu0 0.0
    %4521 = vmatpush1.xpose.msra.mxu0 0.0
    %4522 = vmatprep.subr.mxu0 0.0
    %4523 = vmatpush1.xpose.msra.mxu0 0.0
    %4524 = vmatprep.subr.mxu0 0.0
    %4525 = vmatpush1.xpose.msra.mxu0 0.0
    %4526 = vmatprep.subr.mxu0 0.0
    %4527 = vmatpush1.xpose.msra.mxu0 0.0
    %4528 = vmatprep.subr.mxu0 0.0
    %4529 = vmatpush1.xpose.msra.mxu0 0.0
    %4530 = vmatprep.subr.mxu0 0.0
    %4531 = vmatpush1.xpose.msra.mxu0 0.0
    %4532 = vmatprep.subr.mxu0 0.0
    %4533 = vmatpush1.xpose.msra.mxu0 0.0
    %4534 = vmatprep.subr.mxu0 0.0
    %4535 = vmatpush1.xpose.msra.mxu0 0.0
    %4536 = vmatprep.subr.mxu0 0.0
    %4537 = vmatpush1.xpose.msra.mxu0 0.0
    %4538 = vmatprep.subr.mxu0 0.0
    %4539 = vmatpush1.xpose.msra.mxu0 0.0
    %4540 = vmatprep.subr.mxu0 0.0
    %4541 = vmatpush1.xpose.msra.mxu0 0.0
    %4542 = vmatprep.subr.mxu0 0.0
    %4543 = vmatpush1.xpose.msra.mxu0 0.0
    %4544 = vmatprep.subr.mxu0 0.0
    %4545 = vmatpush1.xpose.msra.mxu0 0.0
    %4546 = vmatprep.subr.mxu0 0.0
    %4547 = vmatpush1.xpose.msra.mxu0 0.0
    %4548 = vmatprep.subr.mxu0 0.0
    %4549 = vmatpush1.xpose.msra.mxu0 0.0
    %4550 = vmatprep.subr.mxu0 0.0
    %4551 = vmatpush1.xpose.msra.mxu0 0.0
    %4552 = vmatprep.subr.mxu0 0.0
    %4553 = vmatpush1.xpose.msra.mxu0 0.0
    %4554 = vmatprep.subr.mxu0 0.0
    %4555 = vmatpush1.xpose.msra.mxu0 0.0
    %4556 = vmatprep.subr.mxu0 0.0
    %4557 = vmatpush1.xpose.msra.mxu0 0.0
    %4558 = vmatprep.subr.mxu0 0.0
    %4559 = vmatpush1.xpose.msra.mxu0 0.0
    %4560 = vmatprep.mubr.f32.mxu0 0.0
    %4561 = vmatmul.mubr.f32.gmra.mrb[0].mxu0 %v4492
    %v4562 = vpop.f32.mrb[0].mxu0
    %v4563 = vadd.f32 0.0, %v4562
    %v4564 = vpop.f32.mrb[0].mxu0
    %4565 = vdwg.mxu0
    %v4566 = vmul.f32 %v4563, 0.35355338
    %v4567 = vsel %vm599, %v4566, -inf
    %4568 = vmax.xlane.f32.xlu0 %v4567
    %v4569 = vpop.xlane.xlu0 %4568
    %v4570 = vsub.f32 %v4566, %v4569
    %v4571 = vmul.f32 %v4570, 1.442695
    %v4572 = vpow.pop %v4571
    %v4573 = vsel %vm599, %v4572, 0.0
    %4574 = vadd.xlane.f32.xlu0 %v4573
    %v4575 = vpop.xlane.xlu0 %4574
    %v4576 = vrcp.pop %v4575
    %v4577 = vmul.f32 %v4572, %v4576
    %4578 = vrot.lane.b32.xlu0 %v4099, 112
    %v4579 = vpop.permute.xlu0 %4578
    %v4581 = vsel %vm611, %v4577, 0
    %v4583 = vsel %vm615, %v4579, 0
    %4585 = vmatprep.subr.mxu0 0.0
    %4586 = vmatpush1.msra.mxu0 %v4583
    %4587 = vmatprep.subr.mxu0 0.0
    %4588 = vmatpush1.msra.mxu0 0.0
    %4589 = vmatprep.subr.mxu0 0.0
    %4590 = vmatpush1.msra.mxu0 0.0
    %4591 = vmatprep.subr.mxu0 0.0
    %4592 = vmatpush1.msra.mxu0 0.0
    %4593 = vmatprep.subr.mxu0 0.0
    %4594 = vmatpush1.msra.mxu0 0.0
    %4595 = vmatprep.subr.mxu0 0.0
    %4596 = vmatpush1.msra.mxu0 0.0
    %4597 = vmatprep.subr.mxu0 0.0
    %4598 = vmatpush1.msra.mxu0 0.0
    %4599 = vmatprep.subr.mxu0 0.0
    %4600 = vmatpush1.msra.mxu0 0.0
    %4601 = vmatprep.subr.mxu0 0.0
    %4602 = vmatpush1.msra.mxu0 0.0
    %4603 = vmatprep.subr.mxu0 0.0
    %4604 = vmatpush1.msra.mxu0 0.0
    %4605 = vmatprep.subr.mxu0 0.0
    %4606 = vmatpush1.msra.mxu0 0.0
    %4607 = vmatprep.subr.mxu0 0.0
    %4608 = vmatpush1.msra.mxu0 0.0
    %4609 = vmatprep.subr.mxu0 0.0
    %4610 = vmatpush1.msra.mxu0 0.0
    %4611 = vmatprep.subr.mxu0 0.0
    %4612 = vmatpush1.msra.mxu0 0.0
    %4613 = vmatprep.subr.mxu0 0.0
    %4614 = vmatpush1.msra.mxu0 0.0
    %4615 = vmatprep.subr.mxu0 0.0
    %4616 = vmatpush1.msra.mxu0 0.0
    %4617 = vmatprep.subr.mxu0 0.0
    %4618 = vmatpush1.msra.mxu0 0.0
    %4619 = vmatprep.subr.mxu0 0.0
    %4620 = vmatpush1.msra.mxu0 0.0
    %4621 = vmatprep.subr.mxu0 0.0
    %4622 = vmatpush1.msra.mxu0 0.0
    %4623 = vmatprep.subr.mxu0 0.0
    %4624 = vmatpush1.msra.mxu0 0.0
    %4625 = vmatprep.subr.mxu0 0.0
    %4626 = vmatpush1.msra.mxu0 0.0
    %4627 = vmatprep.subr.mxu0 0.0
    %4628 = vmatpush1.msra.mxu0 0.0
    %4629 = vmatprep.subr.mxu0 0.0
    %4630 = vmatpush1.msra.mxu0 0.0
    %4631 = vmatprep.subr.mxu0 0.0
    %4632 = vmatpush1.msra.mxu0 0.0
    %4633 = vmatprep.subr.mxu0 0.0
    %4634 = vmatpush1.msra.mxu0 0.0
    %4635 = vmatprep.subr.mxu0 0.0
    %4636 = vmatpush1.msra.mxu0 0.0
    %4637 = vmatprep.subr.mxu0 0.0
    %4638 = vmatpush1.msra.mxu0 0.0
    %4639 = vmatprep.subr.mxu0 0.0
    %4640 = vmatpush1.msra.mxu0 0.0
    %4641 = vmatprep.subr.mxu0 0.0
    %4642 = vmatpush1.msra.mxu0 0.0
    %4643 = vmatprep.subr.mxu0 0.0
    %4644 = vmatpush1.msra.mxu0 0.0
    %4645 = vmatprep.subr.mxu0 0.0
    %4646 = vmatpush1.msra.mxu0 0.0
    %4647 = vmatprep.subr.mxu0 0.0
    %4648 = vmatpush1.msra.mxu0 0.0
    %4649 = vmatprep.mubr.f32.mxu0 0.0
    %4650 = vmatmul.mubr.f32.gmra.mrb[0].mxu0 %v4581
    %v4651 = vpop.f32.mrb[0].mxu0
    %v4652 = vadd.f32 0.0, %v4651
    %v4653 = vpop.f32.mrb[0].mxu0
    %4654 = vdwg.mxu0
    %v4656 = vsel %vm521, %v4652, 0
    %4658 = vmatprep.subr.mxu0 0.0
    %4659 = vmatpush1.msra.mxu0 %v3041
    %4660 = vmatprep.subr.mxu0 0.0
    %4661 = vmatpush1.msra.mxu0 0.0
    %4662 = vmatprep.subr.mxu0 0.0
    %4663 = vmatpush1.msra.mxu0 0.0
    %4664 = vmatprep.subr.mxu0 0.0
    %4665 = vmatpush1.msra.mxu0 0.0
    %4666 = vmatprep.subr.mxu0 0.0
    %4667 = vmatpush1.msra.mxu0 0.0
    %4668 = vmatprep.subr.mxu0 0.0
    %4669 = vmatpush1.msra.mxu0 0.0
    %4670 = vmatprep.subr.mxu0 0.0
    %4671 = vmatpush1.msra.mxu0 0.0
    %4672 = vmatprep.subr.mxu0 0.0
    %4673 = vmatpush1.msra.mxu0 0.0
    %4674 = vmatprep.subr.mxu0 0.0
    %4675 = vmatpush1.msra.mxu0 0.0
    %4676 = vmatprep.subr.mxu0 0.0
    %4677 = vmatpush1.msra.mxu0 0.0
    %4678 = vmatprep.subr.mxu0 0.0
    %4679 = vmatpush1.msra.mxu0 0.0
    %4680 = vmatprep.subr.mxu0 0.0
    %4681 = vmatpush1.msra.mxu0 0.0
    %4682 = vmatprep.subr.mxu0 0.0
    %4683 = vmatpush1.msra.mxu0 0.0
    %4684 = vmatprep.subr.mxu0 0.0
    %4685 = vmatpush1.msra.mxu0 0.0
    %4686 = vmatprep.subr.mxu0 0.0
    %4687 = vmatpush1.msra.mxu0 0.0
    %4688 = vmatprep.subr.mxu0 0.0
    %4689 = vmatpush1.msra.mxu0 0.0
    %4690 = vmatprep.subr.mxu0 0.0
    %4691 = vmatpush1.msra.mxu0 0.0
    %4692 = vmatprep.subr.mxu0 0.0
    %4693 = vmatpush1.msra.mxu0 0.0
    %4694 = vmatprep.subr.mxu0 0.0
    %4695 = vmatpush1.msra.mxu0 0.0
    %4696 = vmatprep.subr.mxu0 0.0
    %4697 = vmatpush1.msra.mxu0 0.0
    %4698 = vmatprep.subr.mxu0 0.0
    %4699 = vmatpush1.msra.mxu0 0.0
    %4700 = vmatprep.subr.mxu0 0.0
    %4701 = vmatpush1.msra.mxu0 0.0
    %4702 = vmatprep.subr.mxu0 0.0
    %4703 = vmatpush1.msra.mxu0 0.0
    %4704 = vmatprep.subr.mxu0 0.0
    %4705 = vmatpush1.msra.mxu0 0.0
    %4706 = vmatprep.subr.mxu0 0.0
    %4707 = vmatpush1.msra.mxu0 0.0
    %4708 = vmatprep.subr.mxu0 0.0
    %4709 = vmatpush1.msra.mxu0 0.0
    %4710 = vmatprep.subr.mxu0 0.0
    %4711 = vmatpush1.msra.mxu0 0.0
    %4712 = vmatprep.subr.mxu0 0.0
    %4713 = vmatpush1.msra.mxu0 0.0
    %4714 = vmatprep.subr.mxu0 0.0
    %4715 = vmatpush1.msra.mxu0 0.0
    %4716 = vmatprep.subr.mxu0 0.0
    %4717 = vmatpush1.msra.mxu0 0.0
    %4718 = vmatprep.subr.mxu0 0.0
    %4719 = vmatpush1.msra.mxu0 0.0
    %4720 = vmatprep.subr.mxu0 0.0
    %4721 = vmatpush1.msra.mxu0 0.0
    %4722 = vmatprep.mubr.f32.mxu0 0.0
    %4723 = vmatmul.mubr.f32.gmra.mrb[0].mxu0 %v4656
    %v4724 = vpop.f32.mrb[0].mxu0
    %v4725 = vadd.f32 0.0, %v4724
    %v4726 = vpop.f32.mrb[0].mxu0
    %4727 = vdwg.mxu0
    %v4728 = vadd.f32 %v4485, %v4725
    %4729 = vrot.lane.b32.xlu0 %v4005, 104
    %v4730 = vpop.permute.xlu0 %4729
    %4731 = vrot.lane.b32.xlu0 %v4009, 104
    %v4732 = vpop.permute.xlu0 %4731
    %v4733 = vsel %vm521, %v4730, 0
    %v4735 = vsel %vm521, %v4732, 0
    %4737 = vmatprep.subr.mxu0 0.0
    %4738 = vmatpush1.xpose.msra.mxu0 %v4735
    %4739 = vmatprep.subr.mxu0 0.0
    %4740 = vmatpush1.xpose.msra.mxu0 0.0
    %4741 = vmatprep.subr.mxu0 0.0
    %4742 = vmatpush1.xpose.msra.mxu0 0.0
    %4743 = vmatprep.subr.mxu0 0.0
    %4744 = vmatpush1.xpose.msra.mxu0 0.0
    %4745 = vmatprep.subr.mxu0 0.0
    %4746 = vmatpush1.xpose.msra.mxu0 0.0
    %4747 = vmatprep.subr.mxu0 0.0
    %4748 = vmatpush1.xpose.msra.mxu0 0.0
    %4749 = vmatprep.subr.mxu0 0.0
    %4750 = vmatpush1.xpose.msra.mxu0 0.0
    %4751 = vmatprep.subr.mxu0 0.0
    %4752 = vmatpush1.xpose.msra.mxu0 0.0
    %4753 = vmatprep.subr.mxu0 0.0
    %4754 = vmatpush1.xpose.msra.mxu0 0.0
    %4755 = vmatprep.subr.mxu0 0.0
    %4756 = vmatpush1.xpose.msra.mxu0 0.0
    %4757 = vmatprep.subr.mxu0 0.0
    %4758 = vmatpush1.xpose.msra.mxu0 0.0
    %4759 = vmatprep.subr.mxu0 0.0
    %4760 = vmatpush1.xpose.msra.mxu0 0.0
    %4761 = vmatprep.subr.mxu0 0.0
    %4762 = vmatpush1.xpose.msra.mxu0 0.0
    %4763 = vmatprep.subr.mxu0 0.0
    %4764 = vmatpush1.xpose.msra.mxu0 0.0
    %4765 = vmatprep.subr.mxu0 0.0
    %4766 = vmatpush1.xpose.msra.mxu0 0.0
    %4767 = vmatprep.subr.mxu0 0.0
    %4768 = vmatpush1.xpose.msra.mxu0 0.0
    %4769 = vmatprep.subr.mxu0 0.0
    %4770 = vmatpush1.xpose.msra.mxu0 0.0
    %4771 = vmatprep.subr.mxu0 0.0
    %4772 = vmatpush1.xpose.msra.mxu0 0.0
    %4773 = vmatprep.subr.mxu0 0.0
    %4774 = vmatpush1.xpose.msra.mxu0 0.0
    %4775 = vmatprep.subr.mxu0 0.0
    %4776 = vmatpush1.xpose.msra.mxu0 0.0
    %4777 = vmatprep.subr.mxu0 0.0
    %4778 = vmatpush1.xpose.msra.mxu0 0.0
    %4779 = vmatprep.subr.mxu0 0.0
    %4780 = vmatpush1.xpose.msra.mxu0 0.0
    %4781 = vmatprep.subr.mxu0 0.0
    %4782 = vmatpush1.xpose.msra.mxu0 0.0
    %4783 = vmatprep.subr.mxu0 0.0
    %4784 = vmatpush1.xpose.msra.mxu0 0.0
    %4785 = vmatprep.subr.mxu0 0.0
    %4786 = vmatpush1.xpose.msra.mxu0 0.0
    %4787 = vmatprep.subr.mxu0 0.0
    %4788 = vmatpush1.xpose.msra.mxu0 0.0
    %4789 = vmatprep.subr.mxu0 0.0
    %4790 = vmatpush1.xpose.msra.mxu0 0.0
    %4791 = vmatprep.subr.mxu0 0.0
    %4792 = vmatpush1.xpose.msra.mxu0 0.0
    %4793 = vmatprep.subr.mxu0 0.0
    %4794 = vmatpush1.xpose.msra.mxu0 0.0
    %4795 = vmatprep.subr.mxu0 0.0
    %4796 = vmatpush1.xpose.msra.mxu0 0.0
    %4797 = vmatprep.subr.mxu0 0.0
    %4798 = vmatpush1.xpose.msra.mxu0 0.0
    %4799 = vmatprep.subr.mxu0 0.0
    %4800 = vmatpush1.xpose.msra.mxu0 0.0
    %4801 = vmatprep.mubr.f32.mxu0 0.0
    %4802 = vmatmul.mubr.f32.gmra.mrb[0].mxu0 %v4733
    %v4803 = vpop.f32.mrb[0].mxu0
    %v4804 = vadd.f32 0.0, %v4803
    %v4805 = vpop.f32.mrb[0].mxu0
    %4806 = vdwg.mxu0
    %v4807 = vmul.f32 %v4804, 0.35355338
    %v4808 = vsel %vm599, %v4807, -inf
    %4809 = vmax.xlane.f32.xlu0 %v4808
    %v4810 = vpop.xlane.xlu0 %4809
    %v4811 = vsub.f32 %v4807, %v4810
    %v4812 = vmul.f32 %v4811, 1.442695
    %v4813 = vpow.pop %v4812
    %v4814 = vsel %vm599, %v4813, 0.0
    %4815 = vadd.xlane.f32.xlu0 %v4814
    %v4816 = vpop.xlane.xlu0 %4815
    %v4817 = vrcp.pop %v4816
    %v4818 = vmul.f32 %v4813, %v4817
    %4819 = vrot.lane.b32.xlu0 %v4099, 104
    %v4820 = vpop.permute.xlu0 %4819
    %v4822 = vsel %vm611, %v4818, 0
    %v4824 = vsel %vm615, %v4820, 0
    %4826 = vmatprep.subr.mxu0 0.0
    %4827 = vmatpush1.msra.mxu0 %v4824
    %4828 = vmatprep.subr.mxu0 0.0
    %4829 = vmatpush1.msra.mxu0 0.0
    %4830 = vmatprep.subr.mxu0 0.0
    %4831 = vmatpush1.msra.mxu0 0.0
    %4832 = vmatprep.subr.mxu0 0.0
    %4833 = vmatpush1.msra.mxu0 0.0
    %4834 = vmatprep.subr.mxu0 0.0
    %4835 = vmatpush1.msra.mxu0 0.0
    %4836 = vmatprep.subr.mxu0 0.0
    %4837 = vmatpush1.msra.mxu0 0.0
    %4838 = vmatprep.subr.mxu0 0.0
    %4839 = vmatpush1.msra.mxu0 0.0
    %4840 = vmatprep.subr.mxu0 0.0
    %4841 = vmatpush1.msra.mxu0 0.0
    %4842 = vmatprep.subr.mxu0 0.0
    %4843 = vmatpush1.msra.mxu0 0.0
    %4844 = vmatprep.subr.mxu0 0.0
    %4845 = vmatpush1.msra.mxu0 0.0
    %4846 = vmatprep.subr.mxu0 0.0
    %4847 = vmatpush1.msra.mxu0 0.0
    %4848 = vmatprep.subr.mxu0 0.0
    %4849 = vmatpush1.msra.mxu0 0.0
    %4850 = vmatprep.subr.mxu0 0.0
    %4851 = vmatpush1.msra.mxu0 0.0
    %4852 = vmatprep.subr.mxu0 0.0
    %4853 = vmatpush1.msra.mxu0 0.0
    %4854 = vmatprep.subr.mxu0 0.0
    %4855 = vmatpush1.msra.mxu0 0.0
    %4856 = vmatprep.subr.mxu0 0.0
    %4857 = vmatpush1.msra.mxu0 0.0
    %4858 = vmatprep.subr.mxu0 0.0
    %4859 = vmatpush1.msra.mxu0 0.0
    %4860 = vmatprep.subr.mxu0 0.0
    %4861 = vmatpush1.msra.mxu0 0.0
    %4862 = vmatprep.subr.mxu0 0.0
    %4863 = vmatpush1.msra.mxu0 0.0
    %4864 = vmatprep.subr.mxu0 0.0
    %4865 = vmatpush1.msra.mxu0 0.0
    %4866 = vmatprep.subr.mxu0 0.0
    %4867 = vmatpush1.msra.mxu0 0.0
    %4868 = vmatprep.subr.mxu0 0.0
    %4869 = vmatpush1.msra.mxu0 0.0
    %4870 = vmatprep.subr.mxu0 0.0
    %4871 = vmatpush1.msra.mxu0 0.0
    %4872 = vmatprep.subr.mxu0 0.0
    %4873 = vmatpush1.msra.mxu0 0.0
    %4874 = vmatprep.subr.mxu0 0.0
    %4875 = vmatpush1.msra.mxu0 0.0
    %4876 = vmatprep.subr.mxu0 0.0
    %4877 = vmatpush1.msra.mxu0 0.0
    %4878 = vmatprep.subr.mxu0 0.0
    %4879 = vmatpush1.msra.mxu0 0.0
    %4880 = vmatprep.subr.mxu0 0.0
    %4881 = vmatpush1.msra.mxu0 0.0
    %4882 = vmatprep.subr.mxu0 0.0
    %4883 = vmatpush1.msra.mxu0 0.0
    %4884 = vmatprep.subr.mxu0 0.0
    %4885 = vmatpush1.msra.mxu0 0.0
    %4886 = vmatprep.subr.mxu0 0.0
    %4887 = vmatpush1.msra.mxu0 0.0
    %4888 = vmatprep.subr.mxu0 0.0
    %4889 = vmatpush1.msra.mxu0 0.0
    %4890 = vmatprep.mubr.f32.mxu0 0.0
    %4891 = vmatmul.mubr.f32.gmra.mrb[0].mxu0 %v4822
    %v4892 = vpop.f32.mrb[0].mxu0
    %v4893 = vadd.f32 0.0, %v4892
    %v4894 = vpop.f32.mrb[0].mxu0
    %4895 = vdwg.mxu0
    %v4897 = vsel %vm521, %v4893, 0
    %4899 = vmatprep.subr.mxu0 0.0
    %4900 = vmatpush1.msra.mxu0 %v3042
    %4901 = vmatprep.subr.mxu0 0.0
    %4902 = vmatpush1.msra.mxu0 0.0
    %4903 = vmatprep.subr.mxu0 0.0
    %4904 = vmatpush1.msra.mxu0 0.0
    %4905 = vmatprep.subr.mxu0 0.0
    %4906 = vmatpush1.msra.mxu0 0.0
    %4907 = vmatprep.subr.mxu0 0.0
    %4908 = vmatpush1.msra.mxu0 0.0
    %4909 = vmatprep.subr.mxu0 0.0
    %4910 = vmatpush1.msra.mxu0 0.0
    %4911 = vmatprep.subr.mxu0 0.0
    %4912 = vmatpush1.msra.mxu0 0.0
    %4913 = vmatprep.subr.mxu0 0.0
    %4914 = vmatpush1.msra.mxu0 0.0
    %4915 = vmatprep.subr.mxu0 0.0
    %4916 = vmatpush1.msra.mxu0 0.0
    %4917 = vmatprep.subr.mxu0 0.0
    %4918 = vmatpush1.msra.mxu0 0.0
    %4919 = vmatprep.subr.mxu0 0.0
    %4920 = vmatpush1.msra.mxu0 0.0
    %4921 = vmatprep.subr.mxu0 0.0
    %4922 = vmatpush1.msra.mxu0 0.0
    %4923 = vmatprep.subr.mxu0 0.0
    %4924 = vmatpush1.msra.mxu0 0.0
    %4925 = vmatprep.subr.mxu0 0.0
    %4926 = vmatpush1.msra.mxu0 0.0
    %4927 = vmatprep.subr.mxu0 0.0
    %4928 = vmatpush1.msra.mxu0 0.0
    %4929 = vmatprep.subr.mxu0 0.0
    %4930 = vmatpush1.msra.mxu0 0.0
    %4931 = vmatprep.subr.mxu0 0.0
    %4932 = vmatpush1.msra.mxu0 0.0
    %4933 = vmatprep.subr.mxu0 0.0
    %4934 = vmatpush1.msra.mxu0 0.0
    %4935 = vmatprep.subr.mxu0 0.0
    %4936 = vmatpush1.msra.mxu0 0.0
    %4937 = vmatprep.subr.mxu0 0.0
    %4938 = vmatpush1.msra.mxu0 0.0
    %4939 = vmatprep.subr.mxu0 0.0
    %4940 = vmatpush1.msra.mxu0 0.0
    %4941 = vmatprep.subr.mxu0 0.0
    %4942 = vmatpush1.msra.mxu0 0.0
    %4943 = vmatprep.subr.mxu0 0.0
    %4944 = vmatpush1.msra.mxu0 0.0
    %4945 = vmatprep.subr.mxu0 0.0
    %4946 = vmatpush1.msra.mxu0 0.0
    %4947 = vmatprep.subr.mxu0 0.0
    %4948 = vmatpush1.msra.mxu0 0.0
    %4949 = vmatprep.subr.mxu0 0.0
    %4950 = vmatpush1.msra.mxu0 0.0
    %4951 = vmatprep.subr.mxu0 0.0
    %4952 = vmatpush1.msra.mxu0 0.0
    %4953 = vmatprep.subr.mxu0 0.0
    %4954 = vmatpush1.msra.mxu0 0.0
    %4955 = vmatprep.subr.mxu0 0.0
    %4956 = vmatpush1.msra.mxu0 0.0
    %4957 = vmatprep.subr.mxu0 0.0
    %4958 = vmatpush1.msra.mxu0 0.0
    %4959 = vmatprep.subr.mxu0 0.0
    %4960 = vmatpush1.msra.mxu0 0.0
    %4961 = vmatprep.subr.mxu0 0.0
    %4962 = vmatpush1.msra.mxu0 0.0
    %4963 = vmatprep.mubr.f32.mxu0 0.0
    %4964 = vmatmul.mubr.f32.gmra.mrb[0].mxu0 %v4897
    %v4965 = vpop.f32.mrb[0].mxu0
    %v4966 = vadd.f32 0.0, %v4965
    %v4967 = vpop.f32.mrb[0].mxu0
    %4968 = vdwg.mxu0
    %v4969 = vadd.f32 %v4728, %v4966
    %v4971 = vrot.slane %v4969, 3
    %v4973 = vsel %vm615, %v4001, %v4971
    %s4974 = scalar_lea.vmem %s14, 1
    %v4975 = vld [vmem:[%s4974] sm:$0x1]
    %v4977 = vlaneseq
    %v4978 = vshrl.u32 %v4977, 7
    %v4979 = vsub.s32 0, %v4978
    %v4980 = vrot.slane %v4975, %v4979
    %v4982 = vadd.f32 %v4973, %v4980
    %v4983 = vadd.f32 %v4971, %v4980
    %v4984 = vadd.f32 %v2720, %v4982
    %v4985 = vadd.f32 %v2721, %v4983
    %s4986 = scalar_lea.vmem %s15, 1
    %v4987 = vld [vmem:[%s4986] sm:$0x1]
    %s4988 = scalar_lea.vmem %s16, 1
    %v4989 = vld [vmem:[%s4988] sm:$0x1]
    %v4990 = vsel %vm208, %v4984, 0.0
    %4991 = vadd.xlane.f32.xlu0 %v4990
    %v4992 = vpop.xlane.xlu0 %4991
    %v4993 = vsel %vm212, %v4985, 0.0
    %4994 = vadd.xlane.f32.xlu0 %v4993
    %v4995 = vpop.xlane.xlu0 %4994
    %v4996 = vmul.f32 %v4992, %v216
    %v4997 = vmul.f32 %v4995, %v216
    %v4998 = vsub.f32 %v4984, %v4996
    %v4999 = vsub.f32 %v4985, %v4997
    %v5000 = vmul.f32 %v4998, %v4998
    %v5001 = vmul.f32 %v4999, %v4999
    %v5002 = vsel %vm208, %v5000, 0.0
    %5003 = vadd.xlane.f32.xlu0 %v5002
    %v5004 = vpop.xlane.xlu0 %5003
    %v5005 = vsel %vm212, %v5001, 0.0
    %5006 = vadd.xlane.f32.xlu0 %v5005
    %v5007 = vpop.xlane.xlu0 %5006
    %v5008 = vmul.f32 %v5004, %v216
    %v5009 = vmul.f32 %v5007, %v216
    %v5010 = vadd.f32 %v5008, 1e-12
    %v5011 = vadd.f32 %v5009, 1e-12
    %v5012 = vrsqrt.pop %v5010
    %v5013 = vrsqrt.pop %v5011
    %v5014 = vmul.f32 %v4998, %v5012
    %v5015 = vmul.f32 %v4999, %v5013
    %v5017 = vlaneseq
    %v5018 = vshrl.u32 %v5017, 7
    %v5019 = vsub.s32 0, %v5018
    %v5020 = vrot.slane %v4987, %v5019
    %v5022 = vmul.f32 %v5014, %v5020
    %v5023 = vmul.f32 %v5015, %v5020
    %v5025 = vlaneseq
    %v5026 = vshrl.u32 %v5025, 7
    %v5027 = vsub.s32 0, %v5026
    %v5028 = vrot.slane %v4989, %v5027
    %v5030 = vadd.f32 %v5022, %v5028
    %v5031 = vadd.f32 %v5023, %v5028
    %s5032 = scalar_lea.vmem %s17, 32
    %v5033 = vld [vmem:[%s5032] sm:$0xff]
    %v5034 = vld [vmem:[%s5032 + $0x8] sm:$0xff]
    %v5035 = vld [vmem:[%s5032 + $0x10] sm:$0xff]
    %v5036 = vld [vmem:[%s5032 + $0x18] sm:$0xff]
    %s5037 = scalar_lea.vmem %s18, 1
    %v5038 = vld [vmem:[%s5037] sm:$0x1]
    %v5040 = vlaneseq
    %v5041 = vshrl.u32 %v5040, 7
    %v5042 = vsub.s32 0, %v5041
    %v5043 = vrot.slane %v5038, %v5042
    %v5046 = vsel %vm208, %v5030, 0
    %v5049 = vsel %vm208, %v5031, 0
    %5051 = vmatprep.subr.mxu0 0.0
    %5052 = vmatpush1.msra.mxu0 %v5033
    %5053 = vmatprep.subr.mxu0 0.0
    %5054 = vmatpush1.msra.mxu0 %v5034
    %5055 = vmatprep.subr.mxu0 0.0
    %5056 = vmatpush1.msra.mxu0 %v5035
    %5057 = vmatprep.subr.mxu0 0.0
    %5058 = vmatpush1.msra.mxu0 %v5036
    %5059 = vmatprep.subr.mxu0 0.0
    %5060 = vmatpush1.msra.mxu0 0.0
    %5061 = vmatprep.subr.mxu0 0.0
    %5062 = vmatpush1.msra.mxu0 0.0
    %5063 = vmatprep.subr.mxu0 0.0
    %5064 = vmatpush1.msra.mxu0 0.0
    %5065 = vmatprep.subr.mxu0 0.0
    %5066 = vmatpush1.msra.mxu0 0.0
    %5067 = vmatprep.subr.mxu0 0.0
    %5068 = vmatpush1.msra.mxu0 0.0
    %5069 = vmatprep.subr.mxu0 0.0
    %5070 = vmatpush1.msra.mxu0 0.0
    %5071 = vmatprep.subr.mxu0 0.0
    %5072 = vmatpush1.msra.mxu0 0.0
    %5073 = vmatprep.subr.mxu0 0.0
    %5074 = vmatpush1.msra.mxu0 0.0
    %5075 = vmatprep.subr.mxu0 0.0
    %5076 = vmatpush1.msra.mxu0 0.0
    %5077 = vmatprep.subr.mxu0 0.0
    %5078 = vmatpush1.msra.mxu0 0.0
    %5079 = vmatprep.subr.mxu0 0.0
    %5080 = vmatpush1.msra.mxu0 0.0
    %5081 = vmatprep.subr.mxu0 0.0
    %5082 = vmatpush1.msra.mxu0 0.0
    %5083 = vmatprep.subr.mxu0 0.0
    %5084 = vmatpush1.msra.mxu0 0.0
    %5085 = vmatprep.subr.mxu0 0.0
    %5086 = vmatpush1.msra.mxu0 0.0
    %5087 = vmatprep.subr.mxu0 0.0
    %5088 = vmatpush1.msra.mxu0 0.0
    %5089 = vmatprep.subr.mxu0 0.0
    %5090 = vmatpush1.msra.mxu0 0.0
    %5091 = vmatprep.subr.mxu0 0.0
    %5092 = vmatpush1.msra.mxu0 0.0
    %5093 = vmatprep.subr.mxu0 0.0
    %5094 = vmatpush1.msra.mxu0 0.0
    %5095 = vmatprep.subr.mxu0 0.0
    %5096 = vmatpush1.msra.mxu0 0.0
    %5097 = vmatprep.subr.mxu0 0.0
    %5098 = vmatpush1.msra.mxu0 0.0
    %5099 = vmatprep.subr.mxu0 0.0
    %5100 = vmatpush1.msra.mxu0 0.0
    %5101 = vmatprep.subr.mxu0 0.0
    %5102 = vmatpush1.msra.mxu0 0.0
    %5103 = vmatprep.subr.mxu0 0.0
    %5104 = vmatpush1.msra.mxu0 0.0
    %5105 = vmatprep.subr.mxu0 0.0
    %5106 = vmatpush1.msra.mxu0 0.0
    %5107 = vmatprep.subr.mxu0 0.0
    %5108 = vmatpush1.msra.mxu0 0.0
    %5109 = vmatprep.subr.mxu0 0.0
    %5110 = vmatpush1.msra.mxu0 0.0
    %5111 = vmatprep.subr.mxu0 0.0
    %5112 = vmatpush1.msra.mxu0 0.0
    %5113 = vmatprep.subr.mxu0 0.0
    %5114 = vmatpush1.msra.mxu0 0.0
    %5115 = vmatprep.mubr.f32.mxu0 0.0
    %5116 = vmatmul.mubr.f32.gmra.mrb[0].mxu0 %v5046
    %v5117 = vpop.f32.mrb[0].mxu0
    %v5118 = vadd.f32 %v5043, %v5117
    %v5119 = vpop.f32.mrb[0].mxu0
    %5120 = vmatprep.mubr.f32.mxu0 0.0
    %5121 = vmatmul.mubr.f32.gmra.mrb[0].mxu0 %v5049
    %v5122 = vpop.f32.mrb[0].mxu0
    %v5123 = vadd.f32 %v5043, %v5122
    %v5124 = vpop.f32.mrb[0].mxu0
    %5125 = vdwg.mxu0
    %v5126 = vmul.f32 %v5118, %v5118
    %v5127 = vmul.f32 %v5123, %v5123
    %v5128 = vmul.f32 %v5118, %v5126
    %v5129 = vmul.f32 %v5123, %v5127
    %v5130 = vmul.f32 %v5128, 0.044715
    %v5131 = vmul.f32 %v5129, 0.044715
    %v5132 = vadd.f32 %v5118, %v5130
    %v5133 = vadd.f32 %v5123, %v5131
    %v5134 = vmul.f32 %v5132, 0.7978846
    %v5135 = vmul.f32 %v5133, 0.7978846
    %v5136 = vtanh.pop %v5134
    %v5137 = vtanh.pop %v5135
    %v5138 = vadd.f32 %v5136, 1.0
    %v5139 = vadd.f32 %v5137, 1.0
    %v5140 = vmul.f32 %v5138, 0.5
    %v5141 = vmul.f32 %v5139, 0.5
    %v5142 = vmul.f32 %v5118, %v5140
    %v5143 = vmul.f32 %v5123, %v5141
    %s5144 = scalar_lea.vmem %s19, 64
    %v5145 = vld [vmem:[%s5144] sm:$0xff]
    %v5146 = vld [vmem:[%s5144 + $0x8] sm:$0xff]
    %v5147 = vld [vmem:[%s5144 + $0x10] sm:$0xff]
    %v5148 = vld [vmem:[%s5144 + $0x18] sm:$0xff]
    %v5149 = vld [vmem:[%s5144 + $0x20] sm:$0xff]
    %v5150 = vld [vmem:[%s5144 + $0x28] sm:$0xff]
    %v5151 = vld [vmem:[%s5144 + $0x30] sm:$0xff]
    %v5152 = vld [vmem:[%s5144 + $0x38] sm:$0xff]
    %v5154 = vsel %vm114, %v5142, 0
    %v5157 = vsel %vm114, %v5143, 0
    %5159 = vmatprep.subr.mxu0 0.0
    %5160 = vmatpush1.msra.mxu0 %v5145
    %5161 = vmatprep.subr.mxu0 0.0
    %5162 = vmatpush1.msra.mxu0 %v5146
    %5163 = vmatprep.subr.mxu0 0.0
    %5164 = vmatpush1.msra.mxu0 %v5147
    %5165 = vmatprep.subr.mxu0 0.0
    %5166 = vmatpush1.msra.mxu0 %v5148
    %5167 = vmatprep.subr.mxu0 0.0
    %5168 = vmatpush1.msra.mxu0 %v5149
    %5169 = vmatprep.subr.mxu0 0.0
    %5170 = vmatpush1.msra.mxu0 %v5150
    %5171 = vmatprep.subr.mxu0 0.0
    %5172 = vmatpush1.msra.mxu0 %v5151
    %5173 = vmatprep.subr.mxu0 0.0
    %5174 = vmatpush1.msra.mxu0 %v5152
    %5175 = vmatprep.subr.mxu0 0.0
    %5176 = vmatpush1.msra.mxu0 0.0
    %5177 = vmatprep.subr.mxu0 0.0
    %5178 = vmatpush1.msra.mxu0 0.0
    %5179 = vmatprep.subr.mxu0 0.0
    %5180 = vmatpush1.msra.mxu0 0.0
    %5181 = vmatprep.subr.mxu0 0.0
    %5182 = vmatpush1.msra.mxu0 0.0
    %5183 = vmatprep.subr.mxu0 0.0
    %5184 = vmatpush1.msra.mxu0 0.0
    %5185 = vmatprep.subr.mxu0 0.0
    %5186 = vmatpush1.msra.mxu0 0.0
    %5187 = vmatprep.subr.mxu0 0.0
    %5188 = vmatpush1.msra.mxu0 0.0
    %5189 = vmatprep.subr.mxu0 0.0
    %5190 = vmatpush1.msra.mxu0 0.0
    %5191 = vmatprep.subr.mxu0 0.0
    %5192 = vmatpush1.msra.mxu0 0.0
    %5193 = vmatprep.subr.mxu0 0.0
    %5194 = vmatpush1.msra.mxu0 0.0
    %5195 = vmatprep.subr.mxu0 0.0
    %5196 = vmatpush1.msra.mxu0 0.0
    %5197 = vmatprep.subr.mxu0 0.0
    %5198 = vmatpush1.msra.mxu0 0.0
    %5199 = vmatprep.subr.mxu0 0.0
    %5200 = vmatpush1.msra.mxu0 0.0
    %5201 = vmatprep.subr.mxu0 0.0
    %5202 = vmatpush1.msra.mxu0 0.0
    %5203 = vmatprep.subr.mxu0 0.0
    %5204 = vmatpush1.msra.mxu0 0.0
    %5205 = vmatprep.subr.mxu0 0.0
    %5206 = vmatpush1.msra.mxu0 0.0
    %5207 = vmatprep.subr.mxu0 0.0
    %5208 = vmatpush1.msra.mxu0 0.0
    %5209 = vmatprep.subr.mxu0 0.0
    %5210 = vmatpush1.msra.mxu0 0.0
    %5211 = vmatprep.subr.mxu0 0.0
    %5212 = vmatpush1.msra.mxu0 0.0
    %5213 = vmatprep.subr.mxu0 0.0
    %5214 = vmatpush1.msra.mxu0 0.0
    %5215 = vmatprep.subr.mxu0 0.0
    %5216 = vmatpush1.msra.mxu0 0.0
    %5217 = vmatprep.subr.mxu0 0.0
    %5218 = vmatpush1.msra.mxu0 0.0
    %5219 = vmatprep.subr.mxu0 0.0
    %5220 = vmatpush1.msra.mxu0 0.0
    %5221 = vmatprep.subr.mxu0 0.0
    %5222 = vmatpush1.msra.mxu0 0.0
    %5223 = vmatprep.mubr.f32.mxu0 0.0
    %5224 = vmatmul.mubr.f32.gmra.mrb[0].mxu0 %v5154
    %v5225 = vpop.f32.mrb[0].mxu0
    %v5226 = vadd.f32 0.0, %v5225
    %v5227 = vpop.f32.mrb[0].mxu0
    %5228 = vmatprep.mubr.f32.mxu0 0.0
    %5229 = vmatmul.mubr.f32.gmra.mrb[0].mxu0 %v5157
    %v5230 = vpop.f32.mrb[0].mxu0
    %v5231 = vpop.f32.mrb[0].mxu0
    %5232 = vdwg.mxu0
    %v5233 = vadd.f32 %v4984, %v5226
    %s5234 = scalar_lea.vmem %s20, 1
    %v5235 = vld [vmem:[%s5234] sm:$0x1]
    %v5237 = vlaneseq
    %v5238 = vshrl.u32 %v5237, 7
    %v5239 = vsub.s32 0, %v5238
    %v5240 = vrot.slane %v5235, %v5239
    %v5242 = vadd.f32 %v5233, %v5240
    %v5244 = vrot.slane %v5242, 4
    %vm5246 = vcmask 1040384
    %v5247 = vsel %vm5246, %v5242, %v5244
    %v5248 = vld [vmem:[%s21] sm:$0x1]
    %v5249 = vld [vmem:[%s22] sm:$0x1]
    %v5250 = vsel %vm212, %v5247, 0.0
    %5251 = vadd.xlane.f32.xlu0 %v5250
    %v5252 = vpop.xlane.xlu0 %5251
    %v5253 = vmul.f32 %v5252, %v216
    %v5254 = vsub.f32 %v5247, %v5253
    %v5255 = vmul.f32 %v5254, %v5254
    %v5256 = vsel %vm212, %v5255, 0.0
    %5257 = vadd.xlane.f32.xlu0 %v5256
    %v5258 = vpop.xlane.xlu0 %5257
    %v5259 = vmul.f32 %v5258, %v216
    %v5260 = vadd.f32 %v5259, 1e-12
    %v5261 = vrsqrt.pop %v5260
    %v5262 = vmul.f32 %v5254, %v5261
    %v5264 = vlaneseq
    %v5265 = vshrl.u32 %v5264, 7
    %v5266 = vsub.s32 0, %v5265
    %v5267 = vrot.slane %v5248, %v5266
    %v5269 = vmul.f32 %v5262, %v5267
    %v5271 = vlaneseq
    %v5272 = vshrl.u32 %v5271, 7
    %v5273 = vsub.s32 0, %v5272
    %v5274 = vrot.slane %v5249, %v5273
    %v5276 = vadd.f32 %v5269, %v5274
    %v5277 = vld [vmem:[%s23] sm:$0xff]
    %v5278 = vld [vmem:[%s23 + $0x8] sm:$0xff]
    %v5279 = vld [vmem:[%s23 + $0x10] sm:$0xff]
    %v5280 = vld [vmem:[%s23 + $0x18] sm:$0xff]
    %v5281 = vld [vmem:[%s23 + $0x20] sm:$0xff]
    %v5282 = vld [vmem:[%s23 + $0x28] sm:$0xff]
    %v5283 = vld [vmem:[%s23 + $0x30] sm:$0xff]
    %v5284 = vld [vmem:[%s23 + $0x38] sm:$0xff]
    %v5285 = vld [vmem:[%s24] sm:$0x3]
    %v5287 = vlaneseq
    %v5288 = vshrl.u32 %v5287, 7
    %v5289 = vsub.s32 0, %v5288
    %v5290 = vrot.slane %v5285, %v5289
    %v5291 = vlaneseq
    %v5292 = vshrl.u32 %v5291, 7
    %v5293 = vsub.s32 1, %v5292
    %v5294 = vrot.slane %v5285, %v5293
    %v5298 = vsel %vm208, %v5276, 0
    %5300 = vmatprep.subr.mxu0 %v5278
    %5301 = vmatpush1.msra.mxu0 %v5277
    %5302 = vmatprep.subr.mxu0 %v5280
    %5303 = vmatpush1.msra.mxu0 %v5279
    %5304 = vmatprep.subr.mxu0 %v5282
    %5305 = vmatpush1.msra.mxu0 %v5281
    %5306 = vmatprep.subr.mxu0 %v5284
    %5307 = vmatpush1.msra.mxu0 %v5283
    %5308 = vmatprep.subr.mxu0 0.0
    %5309 = vmatpush1.msra.mxu0 0.0
    %5310 = vmatprep.subr.mxu0 0.0
    %5311 = vmatpush1.msra.mxu0 0.0
    %5312 = vmatprep.subr.mxu0 0.0
    %5313 = vmatpush1.msra.mxu0 0.0
    %5314 = vmatprep.subr.mxu0 0.0
    %5315 = vmatpush1.msra.mxu0 0.0
    %5316 = vmatprep.subr.mxu0 0.0
    %5317 = vmatpush1.msra.mxu0 0.0
    %5318 = vmatprep.subr.mxu0 0.0
    %5319 = vmatpush1.msra.mxu0 0.0
    %5320 = vmatprep.subr.mxu0 0.0
    %5321 = vmatpush1.msra.mxu0 0.0
    %5322 = vmatprep.subr.mxu0 0.0
    %5323 = vmatpush1.msra.mxu0 0.0
    %5324 = vmatprep.subr.mxu0 0.0
    %5325 = vmatpush1.msra.mxu0 0.0
    %5326 = vmatprep.subr.mxu0 0.0
    %5327 = vmatpush1.msra.mxu0 0.0
    %5328 = vmatprep.subr.mxu0 0.0
    %5329 = vmatpush1.msra.mxu0 0.0
    %5330 = vmatprep.subr.mxu0 0.0
    %5331 = vmatpush1.msra.mxu0 0.0
    %5332 = vmatprep.subr.mxu0 0.0
    %5333 = vmatpush1.msra.mxu0 0.0
    %5334 = vmatprep.subr.mxu0 0.0
    %5335 = vmatpush1.msra.mxu0 0.0
    %5336 = vmatprep.subr.mxu0 0.0
    %5337 = vmatpush1.msra.mxu0 0.0
    %5338 = vmatprep.subr.mxu0 0.0
    %5339 = vmatpush1.msra.mxu0 0.0
    %5340 = vmatprep.subr.mxu0 0.0
    %5341 = vmatpush1.msra.mxu0 0.0
    %5342 = vmatprep.subr.mxu0 0.0
    %5343 = vmatpush1.msra.mxu0 0.0
    %5344 = vmatprep.subr.mxu0 0.0
    %5345 = vmatpush1.msra.mxu0 0.0
    %5346 = vmatprep.subr.mxu0 0.0
    %5347 = vmatpush1.msra.mxu0 0.0
    %5348 = vmatprep.subr.mxu0 0.0
    %5349 = vmatpush1.msra.mxu0 0.0
    %5350 = vmatprep.subr.mxu0 0.0
    %5351 = vmatpush1.msra.mxu0 0.0
    %5352 = vmatprep.subr.mxu0 0.0
    %5353 = vmatpush1.msra.mxu0 0.0
    %5354 = vmatprep.subr.mxu0 0.0
    %5355 = vmatpush1.msra.mxu0 0.0
    %5356 = vmatprep.subr.mxu0 0.0
    %5357 = vmatpush1.msra.mxu0 0.0
    %5358 = vmatprep.subr.mxu0 0.0
    %5359 = vmatpush1.msra.mxu0 0.0
    %5360 = vmatprep.subr.mxu0 0.0
    %5361 = vmatpush1.msra.mxu0 0.0
    %5362 = vmatprep.subr.mxu0 0.0
    %5363 = vmatpush1.msra.mxu0 0.0
    %5364 = vmatprep.mubr.f32.mxu0 0.0
    %5365 = vmatmul.mubr.f32.gmra.mrb[0].mxu0 %v5298
    %v5366 = vpop.f32.mrb[0].mxu0
    %v5367 = vadd.f32 %v5290, %v5366
    %v5368 = vpop.f32.mrb[0].mxu0
    %v5369 = vadd.f32 %v5294, %v5368
    %5370 = vdwg.mxu0
    %v5373 = vcombine.low %v5367, %v5369
    %v5375 = vunpack.c.l.s4 1983009808
    %v5376 = vunpack.c.0.s8 %v5375
    %v5377 = vlaneseq
    %v5378 = vshrl.u32 %v5377, 7
    %v5379 = vsub.s32 %v5376, %v5378
    %v5380 = vrot.slane %v5373, %v5379
    %5382 = vst [vmem:[#allocation3] sm:$0xf] %v5380
    // Predicated region
    $region102: #{fine_tuned_vit.1} parent=1 // pred_check
      _
    $region103: #{fine_tuned_vit.1} parent=1 // pred_check_branch
      %5384 = sbr.rel (0) target = $region105
    $region104: #{fine_tuned_vit.1} parent=1 // pred_region
      %s5386 = ssub.s32 64, 64
      %5387 = vsyncadd [#allocation4], %s5386
      %s5389 = sshll.u32 [#allocation3], 4
      %s5390 = int_to_ptr.vmem [resolvable:$true] %s5389
      %5392 = dma.vmem_to_hbm [thread:$0]  %s5390, 64, %s25, [#allocation4]
    $region105: #{fine_tuned_vit.1} parent=1 // pred_fallthru
      _
    // Predicated region
    $region106: #{fine_tuned_vit.1} parent=1 // pred_check
      _
    $region107: #{fine_tuned_vit.1} parent=1 // pred_check_branch
      %5394 = sbr.rel (0) target = $region109
    $region108: #{fine_tuned_vit.1} parent=1 // pred_region
      %5395 = dma.done [#allocation4], 64
    $region109: #{fine_tuned_vit.1} parent=1 // pred_fallthru
      _
    %5396 = vsyncpa [#allocation4], 1

</llo_original>
